<compile_context>
chip_gen: v6e
topology: v6e:2x2x1
jax: 0.10.0
libtpu: 0.0.40
codegen_flags: <defaults>
</compile_context>

<pallas_src>
import functools
from typing import NamedTuple

import jax
import jax.numpy as jnp
from jax.experimental import pallas as pl
from jax.experimental.pallas import tpu as pltpu


def _round_up(x, m):
    return (x + m - 1) // m * m


class _Plan(NamedTuple):
    wp: int          # padded row width (W + 2)
    mrow: int        # valid flat output rows (H * wp)
    mrow_pad: int    # output rows padded to nc_b * ch_b
    nc_b: int        # row chunks for the 3x3 / attend phases
    ch_b: int
    mf_pad: int      # padded-flat input rows resident in VMEM (nc_a * ch_a)
    nc_a: int        # row chunks for the conv1 phase
    ch_a: int
    resid_off: int   # out-flat row m maps to padded-flat row m + wp + 1


def _plan(h, w, target=256):
    """Row-chunking plan: chunk rows are multiples of 16 (bf16 sublane pack),
    ~128-256 rows each, so per-chunk f32 accumulators stay <= ~72 KB."""
    wp = w + 2
    mrow = h * wp
    nc_b = max(1, -(-mrow // target))
    ch_b = _round_up(-(-mrow // nc_b), 16)
    mrow_pad = nc_b * ch_b
    mf_need = mrow_pad + 2 * wp + 2          # one past the last 3x3 tap row read
    nc_a = max(1, -(-mf_need // target))
    ch_a = _round_up(-(-mf_need // nc_a), 16)
    mf_pad = nc_a * ch_a
    return _Plan(wp, mrow, mrow_pad, nc_b, ch_b, mf_pad, nc_a, ch_a, wp + 1)


# ------------------------------ fused kernel ------------------------------- #

def _fused_bottleneck_kernel(
        x_ref, mask_ref,
        w1_ref, s1_ref, b1_ref,
        w2_ref, s0_ref, b0_ref,
        fc1w_ref, fc1s_ref, fc1b_ref, fc2w_ref, fc2b_ref,
        w3_ref, s3_ref, b3_ref,
        o_ref,
        out1_ref, y_ref,
        *, wp, gw, ch_a, nc_a, ch_b, nc_b, resid_off, inv_hw):
    f32 = jnp.float32
    bf16 = jnp.bfloat16

    # ---------------- Phase A: conv1 (1x1) + bn1 + ReLU ---------------------
    # Zero-padded flat layout; the mask re-zeroes pad rows/columns so the 3x3
    # below sees true zero padding.  Chunked: each f32 chunk result ~44 KB.
    for c in range(nc_a):
        r0 = c * ch_a
        v = jnp.dot(x_ref[0, pl.ds(r0, ch_a), :], w1_ref[...],
                    preferred_element_type=f32)
        v = jnp.maximum(v * s1_ref[...] + b1_ref[...], 0.0)
        out1_ref[pl.ds(r0, ch_a), :] = (v.astype(bf16)
                                        * mask_ref[pl.ds(r0, ch_a), :])

    # ------- Phase B: grouped 3x3 conv + bn0 + ReLU + radix-sum GAP ---------
    # The 9 taps are shifted row-slices (offset kh*wp+kw) of the resident
    # conv1 scratch; block-diagonal per-tap weights give the groups=2 conv.
    gap = jnp.zeros((1, gw), f32)
    for c in range(nc_b):
        m0 = c * ch_b
        acc = jnp.zeros((ch_b, 2 * gw), f32)          # ~72 KB, stays in vregs
        for kh in range(3):
            for kw in range(3):
                xt = out1_ref[pl.ds(m0 + kh * wp + kw, ch_b), :]
                acc = acc + jnp.dot(xt, w2_ref[kh * 3 + kw],
                                    preferred_element_type=f32)
        yv = jnp.maximum(acc * s0_ref[...] + b0_ref[...], 0.0)
        y_ref[pl.ds(m0, ch_b), :] = yv.astype(bf16)
        # masked radix-split sum + partial global average pool
        gm = mask_ref[pl.ds(resid_off + m0, ch_b), :].astype(f32)
        gap = gap + jnp.sum((yv[:, :gw] + yv[:, gw:]) * gm,
                            axis=0, keepdims=True)

    # --------- Phase C: fc1 + bn + ReLU + fc2 + radix-2 softmax -------------
    g = gap * inv_hw
    h = jnp.dot(g, fc1w_ref[...], preferred_element_type=f32)
    h = jnp.maximum(h * fc1s_ref[...] + fc1b_ref[...], 0.0)
    logits = (jnp.dot(h, fc2w_ref[...], preferred_element_type=f32)
              + fc2b_ref[...])
    a0 = logits[:, :gw]
    a1 = logits[:, gw:]
    mx = jnp.maximum(a0, a1)
    e0 = jnp.exp(a0 - mx)
    e1 = jnp.exp(a1 - mx)
    inv = pl.reciprocal(e0 + e1, approx=True)   # EUP slot; ~1e-3 rel err (inference)
    att0 = e0 * inv
    att1 = e1 * inv

    # ------ Phase D: attend + conv3 (1x1) + bn3 + residual add + ReLU -------
    # Residual = shifted row-slice of the padded input block already in VMEM.
    for c in range(nc_b):
        m0 = c * ch_b
        yv = y_ref[pl.ds(m0, ch_b), :].astype(f32)
        u = att0 * yv[:, :gw] + att1 * yv[:, gw:]
        z = jnp.dot(u.astype(bf16), w3_ref[...], preferred_element_type=f32)
        resid = x_ref[0, pl.ds(resid_off + m0, ch_b), :].astype(f32)
        z = z * s3_ref[...] + b3_ref[...] + resid
        o_ref[0, pl.ds(m0, ch_b), :] = jnp.maximum(z, 0.0).astype(o_ref.dtype)


def fused_bottleneck(xf, t, plan, hw):
    B, mf_pad, cin = xf.shape
    gw = t["w1"].shape[1]
    c2 = 2 * gw
    c4 = t["w3"].shape[1]
    inter = t["fc1w"].shape[1]

    kern = functools.partial(
        _fused_bottleneck_kernel,
        wp=plan.wp, gw=gw, ch_a=plan.ch_a, nc_a=plan.nc_a,
        ch_b=plan.ch_b, nc_b=plan.nc_b, resid_off=plan.resid_off,
        inv_hw=1.0 / hw)

    c2d = lambda b: (0, 0)
    c3d = lambda b: (0, 0, 0)

    flops = B * (2 * mf_pad * cin * gw
                 + 2 * 9 * plan.mrow_pad * gw * c2
                 + 2 * plan.mrow_pad * gw * c4
                 + 8 * plan.mrow_pad * c2)
    bytes_accessed = (B * (mf_pad * cin + plan.mrow_pad * c4) * 2
                      + (mf_pad * gw + cin * gw + 9 * gw * c2 + gw * c4) * 2
                      + (gw * inter + inter * c2 + 3 * c2 + 2 * c4 + 2 * gw
                         + 2 * inter) * 4)

    return pl.pallas_call(
        kern,
        out_shape=jax.ShapeDtypeStruct((B, plan.mrow_pad, c4), jnp.bfloat16),
        grid=(B,),
        in_specs=[
            pl.BlockSpec((1, mf_pad, cin), lambda b: (b, 0, 0)),   # x, padded-flat
            pl.BlockSpec((mf_pad, gw), c2d),                       # validity mask
            pl.BlockSpec((cin, gw), c2d),                          # w1
            pl.BlockSpec((1, gw), c2d),                            # bn1 scale
            pl.BlockSpec((1, gw), c2d),                            # bn1 bias
            pl.BlockSpec((9, gw, c2), c3d),                        # w2 (block-diag taps)
            pl.BlockSpec((1, c2), c2d),                            # bn0 scale
            pl.BlockSpec((1, c2), c2d),                            # bn0 bias
            pl.BlockSpec((gw, inter), c2d),                        # fc1 w
            pl.BlockSpec((1, inter), c2d),                         # fc1 bn scale
            pl.BlockSpec((1, inter), c2d),                         # fc1 bias (folded)
            pl.BlockSpec((inter, c2), c2d),                        # fc2 w
            pl.BlockSpec((1, c2), c2d),                            # fc2 bias
            pl.BlockSpec((gw, c4), c2d),                           # w3
            pl.BlockSpec((1, c4), c2d),                            # bn3 scale
            pl.BlockSpec((1, c4), c2d),                            # bn3 bias
        ],
        out_specs=pl.BlockSpec((1, plan.mrow_pad, c4), lambda b: (b, 0, 0)),
        scratch_shapes=[
            pltpu.VMEM((plan.mf_pad, gw), jnp.bfloat16),      # out1 (conv1 output)
            pltpu.VMEM((plan.mrow_pad, c2), jnp.bfloat16),    # y (3x3 + bn0 + relu)
        ],
        compiler_params=pltpu.CompilerParams(
            dimension_semantics=("parallel",)),
        cost_estimate=pl.CostEstimate(
            flops=int(flops), transcendentals=int(2 * B * gw),
            bytes_accessed=int(bytes_accessed)),
    )(xf, t["mask"],
      t["w1"], t["s1"], t["b1"],
      t["w2"], t["s0"], t["b0"],
      t["fc1w"], t["fc1s"], t["fc1b"], t["fc2w"], t["fc2b"],
      t["w3"], t["s3"], t["b3"])


# ------------------------------ model glue ---------------------------------- #

def bn_fold(gamma, beta, mean, var, eps=1e-5):
    scale = gamma / jnp.sqrt(var + eps)
    return scale, beta - mean * scale


def init_params(key, inplanes, planes, radix=2, cardinality=1,
                bottleneck_width=64, reduction_factor=4):
    gw = int(planes * (bottleneck_width / 64.0)) * cardinality      # group_width
    inter = max(gw * radix // reduction_factor, 32)                 # inter_channels
    groups = cardinality * radix
    cin_g = gw // groups
    cout_g = gw * radix // groups
    ks = jax.random.split(key, 16)

    def bn(k, c):
        k1, k2, k3, k4 = jax.random.split(k, 4)
        return (jax.random.uniform(k1, (c,), minval=0.5, maxval=1.5),
                0.1 * jax.random.normal(k2, (c,)),
                0.1 * jax.random.normal(k3, (c,)),
                jax.random.uniform(k4, (c,), minval=0.5, maxval=1.5))

    return {
        # conv1: 1x1, inplanes -> group_width (stored (Cin, Cout))
        "w1": 0.1 * jax.random.normal(ks[0], (inplanes, gw)),
        "bn1": bn(ks[1], gw),
        # SplAtConv2d 3x3 grouped conv: (groups, 9 taps, Cin_g, Cout_g)
        "w2": 0.1 * jax.random.normal(ks[2], (groups, 9, cin_g, cout_g)),
        "bn0": bn(ks[3], gw * radix),
        "fc1_w": 0.1 * jax.random.normal(ks[4], (gw, inter)),
        "fc1_b": 0.1 * jax.random.normal(ks[5], (inter,)),
        "bn1_splat": bn(ks[6], inter),
        "fc2_w": 0.1 * jax.random.normal(ks[7], (inter, gw * radix)),
        "fc2_b": 0.1 * jax.random.normal(ks[8], (gw * radix,)),
        # conv3: 1x1, group_width -> planes*4
        "w3": 0.1 * jax.random.normal(ks[9], (gw, planes * 4)),
        "bn3": bn(ks[10], planes * 4),
    }


def prepare_params(p, H, W, radix=2, cardinality=1):
    """One-time (outside jit) prep: BN folding, block-diagonal packing of the
    grouped 3x3 weight, bf16 casts, fc1 bias folding and the validity mask."""
    plan = _plan(H, W)
    gw = p["w1"].shape[1]
    c2 = gw * radix

    s1, b1 = bn_fold(*p["bn1"])
    s0, b0 = bn_fold(*p["bn0"])
    s1s, b1s = bn_fold(*p["bn1_splat"])
    s3, b3 = bn_fold(*p["bn3"])

    groups = cardinality * radix
    cin_g = gw // groups
    cout_g = c2 // groups
    w_bd = jnp.zeros((9, gw, c2), jnp.float32)                  # block-diagonal
    for g in range(groups):
        w_bd = w_bd.at[:, g * cin_g:(g + 1) * cin_g,
                       g * cout_g:(g + 1) * cout_g].set(p["w2"][g])

    # Validity mask over padded-flat rows: 1 inside the HxW image, 0 on pad
    # rows/columns.  Full lane-block (no (M,1) stream / lane broadcast);
    # the same array sliced at +wp+1 masks the GAP over the out-flat layout.
    idx = jnp.arange(plan.mf_pad)
    r = idx // plan.wp
    c = idx % plan.wp
    valid = (r >= 1) & (r <= H) & (c >= 1) & (c <= W)
    mask = jnp.broadcast_to(valid[:, None], (plan.mf_pad, gw)).astype(jnp.bfloat16)

    t = {
        "mask": mask,
        "w1": p["w1"].astype(jnp.bfloat16),
        "s1": s1.reshape(1, -1).astype(jnp.float32),
        "b1": b1.reshape(1, -1).astype(jnp.float32),
        "w2": w_bd.astype(jnp.bfloat16),
        "s0": s0.reshape(1, -1).astype(jnp.float32),
        "b0": b0.reshape(1, -1).astype(jnp.float32),
        "fc1w": p["fc1_w"].astype(jnp.float32),
        "fc1s": s1s.reshape(1, -1).astype(jnp.float32),
        "fc1b": (b1s + p["fc1_b"] * s1s).reshape(1, -1).astype(jnp.float32),
        "fc2w": p["fc2_w"].astype(jnp.float32),
        "fc2b": p["fc2_b"].reshape(1, -1).astype(jnp.float32),
        "w3": p["w3"].astype(jnp.bfloat16),
        "s3": s3.reshape(1, -1).astype(jnp.float32),
        "b3": b3.reshape(1, -1).astype(jnp.float32),
    }
    return jax.tree_util.tree_map(jnp.asarray, t)


def bottleneck_forward(x_nchw, t):
    """NCHW in/out.  Internals: NHWC flattened (channels on TPU lanes)."""
    B, cin, H, W = x_nchw.shape
    c4 = t["w3"].shape[1]
    assert cin == c4, "downsample=None requires inplanes == planes*4"
    plan = _plan(H, W)

    # padded-flat layout: 1 top pad row, 2 bottom pad rows, 1 left/right pad col
    x_nhwc = jnp.transpose(x_nchw, (0, 2, 3, 1))
    xf = jnp.pad(x_nhwc, ((0, 0), (1, 2), (1, 1), (0, 0)))
    mf = (H + 3) * plan.wp
    xf = xf.reshape(B, mf, cin)
    if plan.mf_pad >= mf:
        xf = jnp.pad(xf, ((0, 0), (0, plan.mf_pad - mf), (0, 0)))
    else:
        xf = xf[:, :plan.mf_pad]
    xf = xf.astype(jnp.bfloat16)

    out = fused_bottleneck(xf, t, plan, H * W)          # (B, mrow_pad, c4) bf16
    out = out[:, :plan.mrow].reshape(B, H, plan.wp, c4)[:, :, :W, :]
    return jnp.transpose(out, (0, 3, 1, 2)).astype(jnp.float32)   # NCHW f32


if __name__ == "__main__":
    key = jax.random.PRNGKey(0)
    B, planes = 2, 64
    inplanes = planes * 4          # 256, so residual add works without downsample
    H = W = 16

    kx, kp = jax.random.split(key)
    x = jax.random.normal(kx, (B, inplanes, H, W), dtype=jnp.float32)
    params = init_params(kp, inplanes, planes)
    prep = prepare_params(params, H, W)        # hoisted one-time parameter prep

    fwd = jax.jit(bottleneck_forward)
    out = jax.block_until_ready(fwd(x, prep))

    assert out.shape == (B, planes * 4, H, W)
    assert bool(jnp.all(jnp.isfinite(out)))
    assert bool(jnp.all(out >= 0.0))           # final ReLU
    print("KERNEL_OK")
</pallas_src>

<mosaic_0001>
module attributes {stable_mosaic.version = 11 : i64} {
  func.func @_fused_bottleneck_kernel(%arg0: i32, %arg1: memref<1x352x256xbf16, #tpu.memory_space<vmem>>, %arg2: memref<352x64xbf16, #tpu.memory_space<vmem>>, %arg3: memref<256x64xbf16, #tpu.memory_space<vmem>>, %arg4: memref<1x64xf32, #tpu.memory_space<vmem>>, %arg5: memref<1x64xf32, #tpu.memory_space<vmem>>, %arg6: memref<9x64x128xbf16, #tpu.memory_space<vmem>>, %arg7: memref<1x128xf32, #tpu.memory_space<vmem>>, %arg8: memref<1x128xf32, #tpu.memory_space<vmem>>, %arg9: memref<64x32xf32, #tpu.memory_space<vmem>>, %arg10: memref<1x32xf32, #tpu.memory_space<vmem>>, %arg11: memref<1x32xf32, #tpu.memory_space<vmem>>, %arg12: memref<32x128xf32, #tpu.memory_space<vmem>>, %arg13: memref<1x128xf32, #tpu.memory_space<vmem>>, %arg14: memref<64x256xbf16, #tpu.memory_space<vmem>>, %arg15: memref<1x256xf32, #tpu.memory_space<vmem>>, %arg16: memref<1x256xf32, #tpu.memory_space<vmem>>, %arg17: memref<1x288x256xbf16, #tpu.memory_space<vmem>>, %arg18: memref<352x64xbf16, #tpu.memory_space<vmem>>, %arg19: memref<288x128xbf16, #tpu.memory_space<vmem>>) attributes {dimension_semantics = [#tpu.dimension_semantics<parallel>], iteration_bounds = array<i64: 2>, scalar_prefetch = 0 : i64, scratch_operands = 2 : i64, tpu.core_type = #tpu.core_type<tc>, window_params = [{transform_indices = @transform_0, window_bounds = array<i64: 1, 352, 256>}, {pipeline_mode = #tpu.pipeline_mode<synchronous>, transform_indices = @transform_1, window_bounds = array<i64: 352, 64>}, {pipeline_mode = #tpu.pipeline_mode<synchronous>, transform_indices = @transform_2, window_bounds = array<i64: 256, 64>}, {pipeline_mode = #tpu.pipeline_mode<synchronous>, transform_indices = @transform_3, window_bounds = array<i64: 1, 64>}, {pipeline_mode = #tpu.pipeline_mode<synchronous>, transform_indices = @transform_4, window_bounds = array<i64: 1, 64>}, {pipeline_mode = #tpu.pipeline_mode<synchronous>, transform_indices = @transform_5, window_bounds = array<i64: 9, 64, 128>}, {pipeline_mode = #tpu.pipeline_mode<synchronous>, transform_indices = @transform_6, window_bounds = array<i64: 1, 128>}, {pipeline_mode = #tpu.pipeline_mode<synchronous>, transform_indices = @transform_7, window_bounds = array<i64: 1, 128>}, {pipeline_mode = #tpu.pipeline_mode<synchronous>, transform_indices = @transform_8, window_bounds = array<i64: 64, 32>}, {pipeline_mode = #tpu.pipeline_mode<synchronous>, transform_indices = @transform_9, window_bounds = array<i64: 1, 32>}, {pipeline_mode = #tpu.pipeline_mode<synchronous>, transform_indices = @transform_10, window_bounds = array<i64: 1, 32>}, {pipeline_mode = #tpu.pipeline_mode<synchronous>, transform_indices = @transform_11, window_bounds = array<i64: 32, 128>}, {pipeline_mode = #tpu.pipeline_mode<synchronous>, transform_indices = @transform_12, window_bounds = array<i64: 1, 128>}, {pipeline_mode = #tpu.pipeline_mode<synchronous>, transform_indices = @transform_13, window_bounds = array<i64: 64, 256>}, {pipeline_mode = #tpu.pipeline_mode<synchronous>, transform_indices = @transform_14, window_bounds = array<i64: 1, 256>}, {pipeline_mode = #tpu.pipeline_mode<synchronous>, transform_indices = @transform_15, window_bounds = array<i64: 1, 256>}, {transform_indices = @transform_16, window_bounds = array<i64: 1, 288, 256>}]} {
    %c0 = arith.constant 0 : index
    %c0_0 = arith.constant 0 : index
    %c0_1 = arith.constant 0 : index
    %0 = vector.load %arg1[%c0, %c0_0, %c0_1] : memref<1x352x256xbf16, #tpu.memory_space<vmem>>, vector<1x176x256xbf16>
    %1 = vector.shape_cast %0 : vector<1x176x256xbf16> to vector<176x256xbf16>
    %c0_2 = arith.constant 0 : index
    %c0_3 = arith.constant 0 : index
    %2 = vector.load %arg3[%c0_2, %c0_3] : memref<256x64xbf16, #tpu.memory_space<vmem>>, vector<256x64xbf16>
    %cst = arith.constant dense<0.000000e+00> : vector<176x64xf32>
    %3 = tpu.matmul %1, %2, %cst {dimension_numbers = #tpu.dot_dimension_numbers<[1], [0], [0], [1], [0, 0, 1, 1], [], []>} : vector<176x256xbf16>, vector<256x64xbf16>, vector<176x64xf32> -> vector<176x64xf32>
    %c0_4 = arith.constant 0 : index
    %c0_5 = arith.constant 0 : index
    %4 = vector.load %arg4[%c0_4, %c0_5] : memref<1x64xf32, #tpu.memory_space<vmem>>, vector<1x64xf32>
    %5 = vector.broadcast %4 : vector<1x64xf32> to vector<176x64xf32>
    %6 = arith.mulf %3, %5 : vector<176x64xf32>
    %c0_6 = arith.constant 0 : index
    %c0_7 = arith.constant 0 : index
    %7 = vector.load %arg5[%c0_6, %c0_7] : memref<1x64xf32, #tpu.memory_space<vmem>>, vector<1x64xf32>
    %8 = vector.broadcast %7 : vector<1x64xf32> to vector<176x64xf32>
    %9 = arith.addf %6, %8 : vector<176x64xf32>
    %cst_8 = arith.constant 0.000000e+00 : f32
    %10 = vector.broadcast %cst_8 : f32 to vector<176x64xf32>
    %11 = arith.maximumf %9, %10 : vector<176x64xf32>
    %12 = arith.truncf %11 : vector<176x64xf32> to vector<176x64xbf16>
    %c0_9 = arith.constant 0 : index
    %c0_10 = arith.constant 0 : index
    %13 = vector.load %arg2[%c0_9, %c0_10] : memref<352x64xbf16, #tpu.memory_space<vmem>>, vector<176x64xbf16>
    %14 = arith.mulf %12, %13 : vector<176x64xbf16>
    %c0_11 = arith.constant 0 : index
    %c0_12 = arith.constant 0 : index
    %15 = vector.load %arg18[%c0_11, %c0_12] : memref<352x64xbf16, #tpu.memory_space<vmem>>, vector<176x64xbf16>
    tpu.vector_store %arg18[%c0_11, %c0_12], %14 {strides = array<i32>} : memref<352x64xbf16, #tpu.memory_space<vmem>>, vector<176x64xbf16>,
    %c0_13 = arith.constant 0 : index
    %c176 = arith.constant 176 : index
    %c0_14 = arith.constant 0 : index
    %16 = vector.load %arg1[%c0_13, %c176, %c0_14] : memref<1x352x256xbf16, #tpu.memory_space<vmem>>, vector<1x176x256xbf16>
    %17 = vector.shape_cast %16 : vector<1x176x256xbf16> to vector<176x256xbf16>
    %c0_15 = arith.constant 0 : index
    %c0_16 = arith.constant 0 : index
    %18 = vector.load %arg3[%c0_15, %c0_16] : memref<256x64xbf16, #tpu.memory_space<vmem>>, vector<256x64xbf16>
    %cst_17 = arith.constant dense<0.000000e+00> : vector<176x64xf32>
    %19 = tpu.matmul %17, %18, %cst_17 {dimension_numbers = #tpu.dot_dimension_numbers<[1], [0], [0], [1], [0, 0, 1, 1], [], []>} : vector<176x256xbf16>, vector<256x64xbf16>, vector<176x64xf32> -> vector<176x64xf32>
    %c0_18 = arith.constant 0 : index
    %c0_19 = arith.constant 0 : index
    %20 = vector.load %arg4[%c0_18, %c0_19] : memref<1x64xf32, #tpu.memory_space<vmem>>, vector<1x64xf32>
    %21 = vector.broadcast %20 : vector<1x64xf32> to vector<176x64xf32>
    %22 = arith.mulf %19, %21 : vector<176x64xf32>
    %c0_20 = arith.constant 0 : index
    %c0_21 = arith.constant 0 : index
    %23 = vector.load %arg5[%c0_20, %c0_21] : memref<1x64xf32, #tpu.memory_space<vmem>>, vector<1x64xf32>
    %24 = vector.broadcast %23 : vector<1x64xf32> to vector<176x64xf32>
    %25 = arith.addf %22, %24 : vector<176x64xf32>
    %cst_22 = arith.constant 0.000000e+00 : f32
    %26 = vector.broadcast %cst_22 : f32 to vector<176x64xf32>
    %27 = arith.maximumf %25, %26 : vector<176x64xf32>
    %28 = arith.truncf %27 : vector<176x64xf32> to vector<176x64xbf16>
    %c176_23 = arith.constant 176 : index
    %c0_24 = arith.constant 0 : index
    %29 = vector.load %arg2[%c176_23, %c0_24] : memref<352x64xbf16, #tpu.memory_space<vmem>>, vector<176x64xbf16>
    %30 = arith.mulf %28, %29 : vector<176x64xbf16>
    %c176_25 = arith.constant 176 : index
    %c0_26 = arith.constant 0 : index
    %31 = vector.load %arg18[%c176_25, %c0_26] : memref<352x64xbf16, #tpu.memory_space<vmem>>, vector<176x64xbf16>
    tpu.vector_store %arg18[%c176_25, %c0_26], %30 {strides = array<i32>} : memref<352x64xbf16, #tpu.memory_space<vmem>>, vector<176x64xbf16>,
    %cst_27 = arith.constant 0.000000e+00 : f32
    %32 = vector.broadcast %cst_27 : f32 to vector<1x64xf32>
    %cst_28 = arith.constant 0.000000e+00 : f32
    %33 = vector.broadcast %cst_28 : f32 to vector<144x128xf32>
    %c0_29 = arith.constant 0 : index
    %c0_30 = arith.constant 0 : index
    %34 = vector.load %arg18[%c0_29, %c0_30] : memref<352x64xbf16, #tpu.memory_space<vmem>>, vector<144x64xbf16>
    %c0_31 = arith.constant 0 : index
    %c0_32 = arith.constant 0 : index
    %c0_33 = arith.constant 0 : index
    %35 = vector.load %arg6[%c0_31, %c0_32, %c0_33] : memref<9x64x128xbf16, #tpu.memory_space<vmem>>, vector<1x64x128xbf16>
    %36 = vector.shape_cast %35 : vector<1x64x128xbf16> to vector<64x128xbf16>
    %cst_34 = arith.constant dense<0.000000e+00> : vector<144x128xf32>
    %37 = tpu.matmul %34, %36, %cst_34 {dimension_numbers = #tpu.dot_dimension_numbers<[1], [0], [0], [1], [0, 0, 1, 1], [], []>} : vector<144x64xbf16>, vector<64x128xbf16>, vector<144x128xf32> -> vector<144x128xf32>
    %38 = arith.addf %33, %37 : vector<144x128xf32>
    %c1 = arith.constant 1 : index
    %c0_35 = arith.constant 0 : index
    %39 = vector.load %arg18[%c1, %c0_35] : memref<352x64xbf16, #tpu.memory_space<vmem>>, vector<144x64xbf16>
    %c1_36 = arith.constant 1 : index
    %c0_37 = arith.constant 0 : index
    %c0_38 = arith.constant 0 : index
    %40 = vector.load %arg6[%c1_36, %c0_37, %c0_38] : memref<9x64x128xbf16, #tpu.memory_space<vmem>>, vector<1x64x128xbf16>
    %41 = vector.shape_cast %40 : vector<1x64x128xbf16> to vector<64x128xbf16>
    %cst_39 = arith.constant dense<0.000000e+00> : vector<144x128xf32>
    %42 = tpu.matmul %39, %41, %cst_39 {dimension_numbers = #tpu.dot_dimension_numbers<[1], [0], [0], [1], [0, 0, 1, 1], [], []>} : vector<144x64xbf16>, vector<64x128xbf16>, vector<144x128xf32> -> vector<144x128xf32>
    %43 = arith.addf %38, %42 : vector<144x128xf32>
    %c2 = arith.constant 2 : index
    %c0_40 = arith.constant 0 : index
    %44 = vector.load %arg18[%c2, %c0_40] : memref<352x64xbf16, #tpu.memory_space<vmem>>, vector<144x64xbf16>
    %c2_41 = arith.constant 2 : index
    %c0_42 = arith.constant 0 : index
    %c0_43 = arith.constant 0 : index
    %45 = vector.load %arg6[%c2_41, %c0_42, %c0_43] : memref<9x64x128xbf16, #tpu.memory_space<vmem>>, vector<1x64x128xbf16>
    %46 = vector.shape_cast %45 : vector<1x64x128xbf16> to vector<64x128xbf16>
    %cst_44 = arith.constant dense<0.000000e+00> : vector<144x128xf32>
    %47 = tpu.matmul %44, %46, %cst_44 {dimension_numbers = #tpu.dot_dimension_numbers<[1], [0], [0], [1], [0, 0, 1, 1], [], []>} : vector<144x64xbf16>, vector<64x128xbf16>, vector<144x128xf32> -> vector<144x128xf32>
    %48 = arith.addf %43, %47 : vector<144x128xf32>
    %c18 = arith.constant 18 : index
    %c0_45 = arith.constant 0 : index
    %49 = vector.load %arg18[%c18, %c0_45] : memref<352x64xbf16, #tpu.memory_space<vmem>>, vector<144x64xbf16>
    %c3 = arith.constant 3 : index
    %c0_46 = arith.constant 0 : index
    %c0_47 = arith.constant 0 : index
    %50 = vector.load %arg6[%c3, %c0_46, %c0_47] : memref<9x64x128xbf16, #tpu.memory_space<vmem>>, vector<1x64x128xbf16>
    %51 = vector.shape_cast %50 : vector<1x64x128xbf16> to vector<64x128xbf16>
    %cst_48 = arith.constant dense<0.000000e+00> : vector<144x128xf32>
    %52 = tpu.matmul %49, %51, %cst_48 {dimension_numbers = #tpu.dot_dimension_numbers<[1], [0], [0], [1], [0, 0, 1, 1], [], []>} : vector<144x64xbf16>, vector<64x128xbf16>, vector<144x128xf32> -> vector<144x128xf32>
    %53 = arith.addf %48, %52 : vector<144x128xf32>
    %c19 = arith.constant 19 : index
    %c0_49 = arith.constant 0 : index
    %54 = vector.load %arg18[%c19, %c0_49] : memref<352x64xbf16, #tpu.memory_space<vmem>>, vector<144x64xbf16>
    %c4 = arith.constant 4 : index
    %c0_50 = arith.constant 0 : index
    %c0_51 = arith.constant 0 : index
    %55 = vector.load %arg6[%c4, %c0_50, %c0_51] : memref<9x64x128xbf16, #tpu.memory_space<vmem>>, vector<1x64x128xbf16>
    %56 = vector.shape_cast %55 : vector<1x64x128xbf16> to vector<64x128xbf16>
    %cst_52 = arith.constant dense<0.000000e+00> : vector<144x128xf32>
    %57 = tpu.matmul %54, %56, %cst_52 {dimension_numbers = #tpu.dot_dimension_numbers<[1], [0], [0], [1], [0, 0, 1, 1], [], []>} : vector<144x64xbf16>, vector<64x128xbf16>, vector<144x128xf32> -> vector<144x128xf32>
    %58 = arith.addf %53, %57 : vector<144x128xf32>
    %c20 = arith.constant 20 : index
    %c0_53 = arith.constant 0 : index
    %59 = vector.load %arg18[%c20, %c0_53] : memref<352x64xbf16, #tpu.memory_space<vmem>>, vector<144x64xbf16>
    %c5 = arith.constant 5 : index
    %c0_54 = arith.constant 0 : index
    %c0_55 = arith.constant 0 : index
    %60 = vector.load %arg6[%c5, %c0_54, %c0_55] : memref<9x64x128xbf16, #tpu.memory_space<vmem>>, vector<1x64x128xbf16>
    %61 = vector.shape_cast %60 : vector<1x64x128xbf16> to vector<64x128xbf16>
    %cst_56 = arith.constant dense<0.000000e+00> : vector<144x128xf32>
    %62 = tpu.matmul %59, %61, %cst_56 {dimension_numbers = #tpu.dot_dimension_numbers<[1], [0], [0], [1], [0, 0, 1, 1], [], []>} : vector<144x64xbf16>, vector<64x128xbf16>, vector<144x128xf32> -> vector<144x128xf32>
    %63 = arith.addf %58, %62 : vector<144x128xf32>
    %c36 = arith.constant 36 : index
    %c0_57 = arith.constant 0 : index
    %64 = vector.load %arg18[%c36, %c0_57] : memref<352x64xbf16, #tpu.memory_space<vmem>>, vector<144x64xbf16>
    %c6 = arith.constant 6 : index
    %c0_58 = arith.constant 0 : index
    %c0_59 = arith.constant 0 : index
    %65 = vector.load %arg6[%c6, %c0_58, %c0_59] : memref<9x64x128xbf16, #tpu.memory_space<vmem>>, vector<1x64x128xbf16>
    %66 = vector.shape_cast %65 : vector<1x64x128xbf16> to vector<64x128xbf16>
    %cst_60 = arith.constant dense<0.000000e+00> : vector<144x128xf32>
    %67 = tpu.matmul %64, %66, %cst_60 {dimension_numbers = #tpu.dot_dimension_numbers<[1], [0], [0], [1], [0, 0, 1, 1], [], []>} : vector<144x64xbf16>, vector<64x128xbf16>, vector<144x128xf32> -> vector<144x128xf32>
    %68 = arith.addf %63, %67 : vector<144x128xf32>
    %c37 = arith.constant 37 : index
    %c0_61 = arith.constant 0 : index
    %69 = vector.load %arg18[%c37, %c0_61] : memref<352x64xbf16, #tpu.memory_space<vmem>>, vector<144x64xbf16>
    %c7 = arith.constant 7 : index
    %c0_62 = arith.constant 0 : index
    %c0_63 = arith.constant 0 : index
    %70 = vector.load %arg6[%c7, %c0_62, %c0_63] : memref<9x64x128xbf16, #tpu.memory_space<vmem>>, vector<1x64x128xbf16>
    %71 = vector.shape_cast %70 : vector<1x64x128xbf16> to vector<64x128xbf16>
    %cst_64 = arith.constant dense<0.000000e+00> : vector<144x128xf32>
    %72 = tpu.matmul %69, %71, %cst_64 {dimension_numbers = #tpu.dot_dimension_numbers<[1], [0], [0], [1], [0, 0, 1, 1], [], []>} : vector<144x64xbf16>, vector<64x128xbf16>, vector<144x128xf32> -> vector<144x128xf32>
    %73 = arith.addf %68, %72 : vector<144x128xf32>
    %c38 = arith.constant 38 : index
    %c0_65 = arith.constant 0 : index
    %74 = vector.load %arg18[%c38, %c0_65] : memref<352x64xbf16, #tpu.memory_space<vmem>>, vector<144x64xbf16>
    %c8 = arith.constant 8 : index
    %c0_66 = arith.constant 0 : index
    %c0_67 = arith.constant 0 : index
    %75 = vector.load %arg6[%c8, %c0_66, %c0_67] : memref<9x64x128xbf16, #tpu.memory_space<vmem>>, vector<1x64x128xbf16>
    %76 = vector.shape_cast %75 : vector<1x64x128xbf16> to vector<64x128xbf16>
    %cst_68 = arith.constant dense<0.000000e+00> : vector<144x128xf32>
    %77 = tpu.matmul %74, %76, %cst_68 {dimension_numbers = #tpu.dot_dimension_numbers<[1], [0], [0], [1], [0, 0, 1, 1], [], []>} : vector<144x64xbf16>, vector<64x128xbf16>, vector<144x128xf32> -> vector<144x128xf32>
    %78 = arith.addf %73, %77 : vector<144x128xf32>
    %c0_69 = arith.constant 0 : index
    %c0_70 = arith.constant 0 : index
    %79 = vector.load %arg7[%c0_69, %c0_70] : memref<1x128xf32, #tpu.memory_space<vmem>>, vector<1x128xf32>
    %80 = vector.broadcast %79 : vector<1x128xf32> to vector<144x128xf32>
    %81 = arith.mulf %78, %80 : vector<144x128xf32>
    %c0_71 = arith.constant 0 : index
    %c0_72 = arith.constant 0 : index
    %82 = vector.load %arg8[%c0_71, %c0_72] : memref<1x128xf32, #tpu.memory_space<vmem>>, vector<1x128xf32>
    %83 = vector.broadcast %82 : vector<1x128xf32> to vector<144x128xf32>
    %84 = arith.addf %81, %83 : vector<144x128xf32>
    %cst_73 = arith.constant 0.000000e+00 : f32
    %85 = vector.broadcast %cst_73 : f32 to vector<144x128xf32>
    %86 = arith.maximumf %84, %85 : vector<144x128xf32>
    %87 = arith.truncf %86 : vector<144x128xf32> to vector<144x128xbf16>
    %c0_74 = arith.constant 0 : index
    %c0_75 = arith.constant 0 : index
    %88 = vector.load %arg19[%c0_74, %c0_75] : memref<288x128xbf16, #tpu.memory_space<vmem>>, vector<144x128xbf16>
    tpu.vector_store %arg19[%c0_74, %c0_75], %87 {strides = array<i32>} : memref<288x128xbf16, #tpu.memory_space<vmem>>, vector<144x128xbf16>,
    %c19_76 = arith.constant 19 : index
    %c0_77 = arith.constant 0 : index
    %89 = vector.load %arg2[%c19_76, %c0_77] : memref<352x64xbf16, #tpu.memory_space<vmem>>, vector<144x64xbf16>
    %90 = arith.extf %89 : vector<144x64xbf16> to vector<144x64xf32>
    %91 = vector.extract_strided_slice %86 {offsets = [0, 0], sizes = [144, 64], strides = [1, 1]} : vector<144x128xf32> to vector<144x64xf32>
    %92 = vector.extract_strided_slice %86 {offsets = [0, 64], sizes = [144, 64], strides = [1, 1]} : vector<144x128xf32> to vector<144x64xf32>
    %93 = arith.addf %91, %92 : vector<144x64xf32>
    %94 = arith.mulf %93, %90 : vector<144x64xf32>
    %cst_78 = arith.constant dense<0.000000e+00> : vector<64xf32>
    %95 = vector.multi_reduction <add>, %94, %cst_78 [0] : vector<144x64xf32> to vector<64xf32>
    %96 = vector.shape_cast %95 : vector<64xf32> to vector<1x64xf32>
    %97 = arith.addf %32, %96 : vector<1x64xf32>
    %cst_79 = arith.constant 0.000000e+00 : f32
    %98 = vector.broadcast %cst_79 : f32 to vector<144x128xf32>
    %c144 = arith.constant 144 : index
    %c0_80 = arith.constant 0 : index
    %99 = vector.load %arg18[%c144, %c0_80] : memref<352x64xbf16, #tpu.memory_space<vmem>>, vector<144x64xbf16>
    %c0_81 = arith.constant 0 : index
    %c0_82 = arith.constant 0 : index
    %c0_83 = arith.constant 0 : index
    %100 = vector.load %arg6[%c0_81, %c0_82, %c0_83] : memref<9x64x128xbf16, #tpu.memory_space<vmem>>, vector<1x64x128xbf16>
    %101 = vector.shape_cast %100 : vector<1x64x128xbf16> to vector<64x128xbf16>
    %cst_84 = arith.constant dense<0.000000e+00> : vector<144x128xf32>
    %102 = tpu.matmul %99, %101, %cst_84 {dimension_numbers = #tpu.dot_dimension_numbers<[1], [0], [0], [1], [0, 0, 1, 1], [], []>} : vector<144x64xbf16>, vector<64x128xbf16>, vector<144x128xf32> -> vector<144x128xf32>
    %103 = arith.addf %98, %102 : vector<144x128xf32>
    %c145 = arith.constant 145 : index
    %c0_85 = arith.constant 0 : index
    %104 = vector.load %arg18[%c145, %c0_85] : memref<352x64xbf16, #tpu.memory_space<vmem>>, vector<144x64xbf16>
    %c1_86 = arith.constant 1 : index
    %c0_87 = arith.constant 0 : index
    %c0_88 = arith.constant 0 : index
    %105 = vector.load %arg6[%c1_86, %c0_87, %c0_88] : memref<9x64x128xbf16, #tpu.memory_space<vmem>>, vector<1x64x128xbf16>
    %106 = vector.shape_cast %105 : vector<1x64x128xbf16> to vector<64x128xbf16>
    %cst_89 = arith.constant dense<0.000000e+00> : vector<144x128xf32>
    %107 = tpu.matmul %104, %106, %cst_89 {dimension_numbers = #tpu.dot_dimension_numbers<[1], [0], [0], [1], [0, 0, 1, 1], [], []>} : vector<144x64xbf16>, vector<64x128xbf16>, vector<144x128xf32> -> vector<144x128xf32>
    %108 = arith.addf %103, %107 : vector<144x128xf32>
    %c146 = arith.constant 146 : index
    %c0_90 = arith.constant 0 : index
    %109 = vector.load %arg18[%c146, %c0_90] : memref<352x64xbf16, #tpu.memory_space<vmem>>, vector<144x64xbf16>
    %c2_91 = arith.constant 2 : index
    %c0_92 = arith.constant 0 : index
    %c0_93 = arith.constant 0 : index
    %110 = vector.load %arg6[%c2_91, %c0_92, %c0_93] : memref<9x64x128xbf16, #tpu.memory_space<vmem>>, vector<1x64x128xbf16>
    %111 = vector.shape_cast %110 : vector<1x64x128xbf16> to vector<64x128xbf16>
    %cst_94 = arith.constant dense<0.000000e+00> : vector<144x128xf32>
    %112 = tpu.matmul %109, %111, %cst_94 {dimension_numbers = #tpu.dot_dimension_numbers<[1], [0], [0], [1], [0, 0, 1, 1], [], []>} : vector<144x64xbf16>, vector<64x128xbf16>, vector<144x128xf32> -> vector<144x128xf32>
    %113 = arith.addf %108, %112 : vector<144x128xf32>
    %c162 = arith.constant 162 : index
    %c0_95 = arith.constant 0 : index
    %114 = vector.load %arg18[%c162, %c0_95] : memref<352x64xbf16, #tpu.memory_space<vmem>>, vector<144x64xbf16>
    %c3_96 = arith.constant 3 : index
    %c0_97 = arith.constant 0 : index
    %c0_98 = arith.constant 0 : index
    %115 = vector.load %arg6[%c3_96, %c0_97, %c0_98] : memref<9x64x128xbf16, #tpu.memory_space<vmem>>, vector<1x64x128xbf16>
    %116 = vector.shape_cast %115 : vector<1x64x128xbf16> to vector<64x128xbf16>
    %cst_99 = arith.constant dense<0.000000e+00> : vector<144x128xf32>
    %117 = tpu.matmul %114, %116, %cst_99 {dimension_numbers = #tpu.dot_dimension_numbers<[1], [0], [0], [1], [0, 0, 1, 1], [], []>} : vector<144x64xbf16>, vector<64x128xbf16>, vector<144x128xf32> -> vector<144x128xf32>
    %118 = arith.addf %113, %117 : vector<144x128xf32>
    %c163 = arith.constant 163 : index
    %c0_100 = arith.constant 0 : index
    %119 = vector.load %arg18[%c163, %c0_100] : memref<352x64xbf16, #tpu.memory_space<vmem>>, vector<144x64xbf16>
    %c4_101 = arith.constant 4 : index
    %c0_102 = arith.constant 0 : index
    %c0_103 = arith.constant 0 : index
    %120 = vector.load %arg6[%c4_101, %c0_102, %c0_103] : memref<9x64x128xbf16, #tpu.memory_space<vmem>>, vector<1x64x128xbf16>
    %121 = vector.shape_cast %120 : vector<1x64x128xbf16> to vector<64x128xbf16>
    %cst_104 = arith.constant dense<0.000000e+00> : vector<144x128xf32>
    %122 = tpu.matmul %119, %121, %cst_104 {dimension_numbers = #tpu.dot_dimension_numbers<[1], [0], [0], [1], [0, 0, 1, 1], [], []>} : vector<144x64xbf16>, vector<64x128xbf16>, vector<144x128xf32> -> vector<144x128xf32>
    %123 = arith.addf %118, %122 : vector<144x128xf32>
    %c164 = arith.constant 164 : index
    %c0_105 = arith.constant 0 : index
    %124 = vector.load %arg18[%c164, %c0_105] : memref<352x64xbf16, #tpu.memory_space<vmem>>, vector<144x64xbf16>
    %c5_106 = arith.constant 5 : index
    %c0_107 = arith.constant 0 : index
    %c0_108 = arith.constant 0 : index
    %125 = vector.load %arg6[%c5_106, %c0_107, %c0_108] : memref<9x64x128xbf16, #tpu.memory_space<vmem>>, vector<1x64x128xbf16>
    %126 = vector.shape_cast %125 : vector<1x64x128xbf16> to vector<64x128xbf16>
    %cst_109 = arith.constant dense<0.000000e+00> : vector<144x128xf32>
    %127 = tpu.matmul %124, %126, %cst_109 {dimension_numbers = #tpu.dot_dimension_numbers<[1], [0], [0], [1], [0, 0, 1, 1], [], []>} : vector<144x64xbf16>, vector<64x128xbf16>, vector<144x128xf32> -> vector<144x128xf32>
    %128 = arith.addf %123, %127 : vector<144x128xf32>
    %c180 = arith.constant 180 : index
    %c0_110 = arith.constant 0 : index
    %129 = vector.load %arg18[%c180, %c0_110] : memref<352x64xbf16, #tpu.memory_space<vmem>>, vector<144x64xbf16>
    %c6_111 = arith.constant 6 : index
    %c0_112 = arith.constant 0 : index
    %c0_113 = arith.constant 0 : index
    %130 = vector.load %arg6[%c6_111, %c0_112, %c0_113] : memref<9x64x128xbf16, #tpu.memory_space<vmem>>, vector<1x64x128xbf16>
    %131 = vector.shape_cast %130 : vector<1x64x128xbf16> to vector<64x128xbf16>
    %cst_114 = arith.constant dense<0.000000e+00> : vector<144x128xf32>
    %132 = tpu.matmul %129, %131, %cst_114 {dimension_numbers = #tpu.dot_dimension_numbers<[1], [0], [0], [1], [0, 0, 1, 1], [], []>} : vector<144x64xbf16>, vector<64x128xbf16>, vector<144x128xf32> -> vector<144x128xf32>
    %133 = arith.addf %128, %132 : vector<144x128xf32>
    %c181 = arith.constant 181 : index
    %c0_115 = arith.constant 0 : index
    %134 = vector.load %arg18[%c181, %c0_115] : memref<352x64xbf16, #tpu.memory_space<vmem>>, vector<144x64xbf16>
    %c7_116 = arith.constant 7 : index
    %c0_117 = arith.constant 0 : index
    %c0_118 = arith.constant 0 : index
    %135 = vector.load %arg6[%c7_116, %c0_117, %c0_118] : memref<9x64x128xbf16, #tpu.memory_space<vmem>>, vector<1x64x128xbf16>
    %136 = vector.shape_cast %135 : vector<1x64x128xbf16> to vector<64x128xbf16>
    %cst_119 = arith.constant dense<0.000000e+00> : vector<144x128xf32>
    %137 = tpu.matmul %134, %136, %cst_119 {dimension_numbers = #tpu.dot_dimension_numbers<[1], [0], [0], [1], [0, 0, 1, 1], [], []>} : vector<144x64xbf16>, vector<64x128xbf16>, vector<144x128xf32> -> vector<144x128xf32>
    %138 = arith.addf %133, %137 : vector<144x128xf32>
    %c182 = arith.constant 182 : index
    %c0_120 = arith.constant 0 : index
    %139 = vector.load %arg18[%c182, %c0_120] : memref<352x64xbf16, #tpu.memory_space<vmem>>, vector<144x64xbf16>
    %c8_121 = arith.constant 8 : index
    %c0_122 = arith.constant 0 : index
    %c0_123 = arith.constant 0 : index
    %140 = vector.load %arg6[%c8_121, %c0_122, %c0_123] : memref<9x64x128xbf16, #tpu.memory_space<vmem>>, vector<1x64x128xbf16>
    %141 = vector.shape_cast %140 : vector<1x64x128xbf16> to vector<64x128xbf16>
    %cst_124 = arith.constant dense<0.000000e+00> : vector<144x128xf32>
    %142 = tpu.matmul %139, %141, %cst_124 {dimension_numbers = #tpu.dot_dimension_numbers<[1], [0], [0], [1], [0, 0, 1, 1], [], []>} : vector<144x64xbf16>, vector<64x128xbf16>, vector<144x128xf32> -> vector<144x128xf32>
    %143 = arith.addf %138, %142 : vector<144x128xf32>
    %c0_125 = arith.constant 0 : index
    %c0_126 = arith.constant 0 : index
    %144 = vector.load %arg7[%c0_125, %c0_126] : memref<1x128xf32, #tpu.memory_space<vmem>>, vector<1x128xf32>
    %145 = vector.broadcast %144 : vector<1x128xf32> to vector<144x128xf32>
    %146 = arith.mulf %143, %145 : vector<144x128xf32>
    %c0_127 = arith.constant 0 : index
    %c0_128 = arith.constant 0 : index
    %147 = vector.load %arg8[%c0_127, %c0_128] : memref<1x128xf32, #tpu.memory_space<vmem>>, vector<1x128xf32>
    %148 = vector.broadcast %147 : vector<1x128xf32> to vector<144x128xf32>
    %149 = arith.addf %146, %148 : vector<144x128xf32>
    %cst_129 = arith.constant 0.000000e+00 : f32
    %150 = vector.broadcast %cst_129 : f32 to vector<144x128xf32>
    %151 = arith.maximumf %149, %150 : vector<144x128xf32>
    %152 = arith.truncf %151 : vector<144x128xf32> to vector<144x128xbf16>
    %c144_130 = arith.constant 144 : index
    %c0_131 = arith.constant 0 : index
    %153 = vector.load %arg19[%c144_130, %c0_131] : memref<288x128xbf16, #tpu.memory_space<vmem>>, vector<144x128xbf16>
    tpu.vector_store %arg19[%c144_130, %c0_131], %152 {strides = array<i32>} : memref<288x128xbf16, #tpu.memory_space<vmem>>, vector<144x128xbf16>,
    %c163_132 = arith.constant 163 : index
    %c0_133 = arith.constant 0 : index
    %154 = vector.load %arg2[%c163_132, %c0_133] : memref<352x64xbf16, #tpu.memory_space<vmem>>, vector<144x64xbf16>
    %155 = arith.extf %154 : vector<144x64xbf16> to vector<144x64xf32>
    %156 = vector.extract_strided_slice %151 {offsets = [0, 0], sizes = [144, 64], strides = [1, 1]} : vector<144x128xf32> to vector<144x64xf32>
    %157 = vector.extract_strided_slice %151 {offsets = [0, 64], sizes = [144, 64], strides = [1, 1]} : vector<144x128xf32> to vector<144x64xf32>
    %158 = arith.addf %156, %157 : vector<144x64xf32>
    %159 = arith.mulf %158, %155 : vector<144x64xf32>
    %cst_134 = arith.constant dense<0.000000e+00> : vector<64xf32>
    %160 = vector.multi_reduction <add>, %159, %cst_134 [0] : vector<144x64xf32> to vector<64xf32>
    %161 = vector.shape_cast %160 : vector<64xf32> to vector<1x64xf32>
    %162 = arith.addf %97, %161 : vector<1x64xf32>
    %cst_135 = arith.constant 3.906250e-03 : f32
    %163 = vector.broadcast %cst_135 : f32 to vector<1x64xf32>
    %164 = arith.mulf %162, %163 : vector<1x64xf32>
    %c0_136 = arith.constant 0 : index
    %c0_137 = arith.constant 0 : index
    %165 = vector.load %arg9[%c0_136, %c0_137] : memref<64x32xf32, #tpu.memory_space<vmem>>, vector<64x32xf32>
    %cst_138 = arith.constant dense<0.000000e+00> : vector<1x32xf32>
    %166 = tpu.matmul %164, %165, %cst_138 {dimension_numbers = #tpu.dot_dimension_numbers<[1], [0], [0], [1], [0, 0, 1, 1], [], []>} : vector<1x64xf32>, vector<64x32xf32>, vector<1x32xf32> -> vector<1x32xf32>
    %c0_139 = arith.constant 0 : index
    %c0_140 = arith.constant 0 : index
    %167 = vector.load %arg10[%c0_139, %c0_140] : memref<1x32xf32, #tpu.memory_space<vmem>>, vector<1x32xf32>
    %168 = arith.mulf %166, %167 : vector<1x32xf32>
    %c0_141 = arith.constant 0 : index
    %c0_142 = arith.constant 0 : index
    %169 = vector.load %arg11[%c0_141, %c0_142] : memref<1x32xf32, #tpu.memory_space<vmem>>, vector<1x32xf32>
    %170 = arith.addf %168, %169 : vector<1x32xf32>
    %cst_143 = arith.constant 0.000000e+00 : f32
    %171 = vector.broadcast %cst_143 : f32 to vector<1x32xf32>
    %172 = arith.maximumf %170, %171 : vector<1x32xf32>
    %c0_144 = arith.constant 0 : index
    %c0_145 = arith.constant 0 : index
    %173 = vector.load %arg12[%c0_144, %c0_145] : memref<32x128xf32, #tpu.memory_space<vmem>>, vector<32x128xf32>
    %cst_146 = arith.constant dense<0.000000e+00> : vector<1x128xf32>
    %174 = tpu.matmul %172, %173, %cst_146 {dimension_numbers = #tpu.dot_dimension_numbers<[1], [0], [0], [1], [0, 0, 1, 1], [], []>} : vector<1x32xf32>, vector<32x128xf32>, vector<1x128xf32> -> vector<1x128xf32>
    %c0_147 = arith.constant 0 : index
    %c0_148 = arith.constant 0 : index
    %175 = vector.load %arg13[%c0_147, %c0_148] : memref<1x128xf32, #tpu.memory_space<vmem>>, vector<1x128xf32>
    %176 = arith.addf %174, %175 : vector<1x128xf32>
    %177 = vector.extract_strided_slice %176 {offsets = [0, 0], sizes = [1, 64], strides = [1, 1]} : vector<1x128xf32> to vector<1x64xf32>
    %178 = vector.extract_strided_slice %176 {offsets = [0, 64], sizes = [1, 64], strides = [1, 1]} : vector<1x128xf32> to vector<1x64xf32>
    %179 = arith.maximumf %177, %178 : vector<1x64xf32>
    %180 = arith.subf %177, %179 : vector<1x64xf32>
    %181 = math.exp %180 : vector<1x64xf32>
    %182 = arith.subf %178, %179 : vector<1x64xf32>
    %183 = math.exp %182 : vector<1x64xf32>
    %184 = arith.addf %181, %183 : vector<1x64xf32>
    %185 = tpu.reciprocal %184 {approx = true} : vector<1x64xf32> -> vector<1x64xf32>
    %186 = arith.mulf %181, %185 : vector<1x64xf32>
    %187 = arith.mulf %183, %185 : vector<1x64xf32>
    %c0_149 = arith.constant 0 : index
    %c0_150 = arith.constant 0 : index
    %188 = vector.load %arg19[%c0_149, %c0_150] : memref<288x128xbf16, #tpu.memory_space<vmem>>, vector<144x128xbf16>
    %189 = arith.extf %188 : vector<144x128xbf16> to vector<144x128xf32>
    %190 = vector.extract_strided_slice %189 {offsets = [0, 0], sizes = [144, 64], strides = [1, 1]} : vector<144x128xf32> to vector<144x64xf32>
    %191 = vector.broadcast %186 : vector<1x64xf32> to vector<144x64xf32>
    %192 = arith.mulf %191, %190 : vector<144x64xf32>
    %193 = vector.extract_strided_slice %189 {offsets = [0, 64], sizes = [144, 64], strides = [1, 1]} : vector<144x128xf32> to vector<144x64xf32>
    %194 = vector.broadcast %187 : vector<1x64xf32> to vector<144x64xf32>
    %195 = arith.mulf %194, %193 : vector<144x64xf32>
    %196 = arith.addf %192, %195 : vector<144x64xf32>
    %197 = arith.truncf %196 : vector<144x64xf32> to vector<144x64xbf16>
    %c0_151 = arith.constant 0 : index
    %c0_152 = arith.constant 0 : index
    %198 = vector.load %arg14[%c0_151, %c0_152] : memref<64x256xbf16, #tpu.memory_space<vmem>>, vector<64x256xbf16>
    %cst_153 = arith.constant dense<0.000000e+00> : vector<144x256xf32>
    %199 = tpu.matmul %197, %198, %cst_153 {dimension_numbers = #tpu.dot_dimension_numbers<[1], [0], [0], [1], [0, 0, 1, 1], [], []>} : vector<144x64xbf16>, vector<64x256xbf16>, vector<144x256xf32> -> vector<144x256xf32>
    %c0_154 = arith.constant 0 : index
    %c19_155 = arith.constant 19 : index
    %c0_156 = arith.constant 0 : index
    %200 = vector.load %arg1[%c0_154, %c19_155, %c0_156] : memref<1x352x256xbf16, #tpu.memory_space<vmem>>, vector<1x144x256xbf16>
    %201 = vector.shape_cast %200 : vector<1x144x256xbf16> to vector<144x256xbf16>
    %202 = arith.extf %201 : vector<144x256xbf16> to vector<144x256xf32>
    %c0_157 = arith.constant 0 : index
    %c0_158 = arith.constant 0 : index
    %203 = vector.load %arg15[%c0_157, %c0_158] : memref<1x256xf32, #tpu.memory_space<vmem>>, vector<1x256xf32>
    %204 = vector.broadcast %203 : vector<1x256xf32> to vector<144x256xf32>
    %205 = arith.mulf %199, %204 : vector<144x256xf32>
    %c0_159 = arith.constant 0 : index
    %c0_160 = arith.constant 0 : index
    %206 = vector.load %arg16[%c0_159, %c0_160] : memref<1x256xf32, #tpu.memory_space<vmem>>, vector<1x256xf32>
    %207 = vector.broadcast %206 : vector<1x256xf32> to vector<144x256xf32>
    %208 = arith.addf %205, %207 : vector<144x256xf32>
    %209 = arith.addf %208, %202 : vector<144x256xf32>
    %cst_161 = arith.constant 0.000000e+00 : f32
    %210 = vector.broadcast %cst_161 : f32 to vector<144x256xf32>
    %211 = arith.maximumf %209, %210 : vector<144x256xf32>
    %212 = arith.truncf %211 : vector<144x256xf32> to vector<144x256xbf16>
    %c0_162 = arith.constant 0 : index
    %c0_163 = arith.constant 0 : index
    %c0_164 = arith.constant 0 : index
    %213 = vector.load %arg17[%c0_162, %c0_163, %c0_164] : memref<1x288x256xbf16, #tpu.memory_space<vmem>>, vector<1x144x256xbf16>
    %214 = vector.shape_cast %213 : vector<1x144x256xbf16> to vector<144x256xbf16>
    %215 = vector.shape_cast %212 : vector<144x256xbf16> to vector<1x144x256xbf16>
    tpu.vector_store %arg17[%c0_162, %c0_163, %c0_164], %215 {strides = array<i32>} : memref<1x288x256xbf16, #tpu.memory_space<vmem>>, vector<1x144x256xbf16>,
    %c144_165 = arith.constant 144 : index
    %c0_166 = arith.constant 0 : index
    %216 = vector.load %arg19[%c144_165, %c0_166] : memref<288x128xbf16, #tpu.memory_space<vmem>>, vector<144x128xbf16>
    %217 = arith.extf %216 : vector<144x128xbf16> to vector<144x128xf32>
    %218 = vector.extract_strided_slice %217 {offsets = [0, 0], sizes = [144, 64], strides = [1, 1]} : vector<144x128xf32> to vector<144x64xf32>
    %219 = vector.broadcast %186 : vector<1x64xf32> to vector<144x64xf32>
    %220 = arith.mulf %219, %218 : vector<144x64xf32>
    %221 = vector.extract_strided_slice %217 {offsets = [0, 64], sizes = [144, 64], strides = [1, 1]} : vector<144x128xf32> to vector<144x64xf32>
    %222 = vector.broadcast %187 : vector<1x64xf32> to vector<144x64xf32>
    %223 = arith.mulf %222, %221 : vector<144x64xf32>
    %224 = arith.addf %220, %223 : vector<144x64xf32>
    %225 = arith.truncf %224 : vector<144x64xf32> to vector<144x64xbf16>
    %c0_167 = arith.constant 0 : index
    %c0_168 = arith.constant 0 : index
    %226 = vector.load %arg14[%c0_167, %c0_168] : memref<64x256xbf16, #tpu.memory_space<vmem>>, vector<64x256xbf16>
    %cst_169 = arith.constant dense<0.000000e+00> : vector<144x256xf32>
    %227 = tpu.matmul %225, %226, %cst_169 {dimension_numbers = #tpu.dot_dimension_numbers<[1], [0], [0], [1], [0, 0, 1, 1], [], []>} : vector<144x64xbf16>, vector<64x256xbf16>, vector<144x256xf32> -> vector<144x256xf32>
    %c0_170 = arith.constant 0 : index
    %c163_171 = arith.constant 163 : index
    %c0_172 = arith.constant 0 : index
    %228 = vector.load %arg1[%c0_170, %c163_171, %c0_172] : memref<1x352x256xbf16, #tpu.memory_space<vmem>>, vector<1x144x256xbf16>
    %229 = vector.shape_cast %228 : vector<1x144x256xbf16> to vector<144x256xbf16>
    %230 = arith.extf %229 : vector<144x256xbf16> to vector<144x256xf32>
    %c0_173 = arith.constant 0 : index
    %c0_174 = arith.constant 0 : index
    %231 = vector.load %arg15[%c0_173, %c0_174] : memref<1x256xf32, #tpu.memory_space<vmem>>, vector<1x256xf32>
    %232 = vector.broadcast %231 : vector<1x256xf32> to vector<144x256xf32>
    %233 = arith.mulf %227, %232 : vector<144x256xf32>
    %c0_175 = arith.constant 0 : index
    %c0_176 = arith.constant 0 : index
    %234 = vector.load %arg16[%c0_175, %c0_176] : memref<1x256xf32, #tpu.memory_space<vmem>>, vector<1x256xf32>
    %235 = vector.broadcast %234 : vector<1x256xf32> to vector<144x256xf32>
    %236 = arith.addf %233, %235 : vector<144x256xf32>
    %237 = arith.addf %236, %230 : vector<144x256xf32>
    %cst_177 = arith.constant 0.000000e+00 : f32
    %238 = vector.broadcast %cst_177 : f32 to vector<144x256xf32>
    %239 = arith.maximumf %237, %238 : vector<144x256xf32>
    %240 = arith.truncf %239 : vector<144x256xf32> to vector<144x256xbf16>
    %c0_178 = arith.constant 0 : index
    %c144_179 = arith.constant 144 : index
    %c0_180 = arith.constant 0 : index
    %241 = vector.load %arg17[%c0_178, %c144_179, %c0_180] : memref<1x288x256xbf16, #tpu.memory_space<vmem>>, vector<1x144x256xbf16>
    %242 = vector.shape_cast %241 : vector<1x144x256xbf16> to vector<144x256xbf16>
    %243 = vector.shape_cast %240 : vector<144x256xbf16> to vector<1x144x256xbf16>
    tpu.vector_store %arg17[%c0_178, %c144_179, %c0_180], %243 {strides = array<i32>} : memref<1x288x256xbf16, #tpu.memory_space<vmem>>, vector<1x144x256xbf16>,
    return
  }
  func.func @transform_0(%arg0: i32) -> (i32, i32, i32) {
    %c0_i32 = arith.constant 0 : i32
    %c0_i32_0 = arith.constant 0 : i32
    %c0_i32_1 = arith.constant 0 : i32
    return %arg0, %c0_i32, %c0_i32_0 : i32, i32, i32
  }
  func.func @transform_1(%arg0: i32) -> (i32, i32) {
    %c0_i32 = arith.constant 0 : i32
    %c0_i32_0 = arith.constant 0 : i32
    %c0_i32_1 = arith.constant 0 : i32
    return %c0_i32, %c0_i32_0 : i32, i32
  }
  func.func @transform_2(%arg0: i32) -> (i32, i32) {
    %c0_i32 = arith.constant 0 : i32
    %c0_i32_0 = arith.constant 0 : i32
    %c0_i32_1 = arith.constant 0 : i32
    return %c0_i32, %c0_i32_0 : i32, i32
  }
  func.func @transform_3(%arg0: i32) -> (i32, i32) {
    %c0_i32 = arith.constant 0 : i32
    %c0_i32_0 = arith.constant 0 : i32
    %c0_i32_1 = arith.constant 0 : i32
    return %c0_i32, %c0_i32_0 : i32, i32
  }
  func.func @transform_4(%arg0: i32) -> (i32, i32) {
    %c0_i32 = arith.constant 0 : i32
    %c0_i32_0 = arith.constant 0 : i32
    %c0_i32_1 = arith.constant 0 : i32
    return %c0_i32, %c0_i32_0 : i32, i32
  }
  func.func @transform_5(%arg0: i32) -> (i32, i32, i32) {
    %c0_i32 = arith.constant 0 : i32
    %c0_i32_0 = arith.constant 0 : i32
    %c0_i32_1 = arith.constant 0 : i32
    %c0_i32_2 = arith.constant 0 : i32
    return %c0_i32, %c0_i32_0, %c0_i32_1 : i32, i32, i32
  }
  func.func @transform_6(%arg0: i32) -> (i32, i32) {
    %c0_i32 = arith.constant 0 : i32
    %c0_i32_0 = arith.constant 0 : i32
    %c0_i32_1 = arith.constant 0 : i32
    return %c0_i32, %c0_i32_0 : i32, i32
  }
  func.func @transform_7(%arg0: i32) -> (i32, i32) {
    %c0_i32 = arith.constant 0 : i32
    %c0_i32_0 = arith.constant 0 : i32
    %c0_i32_1 = arith.constant 0 : i32
    return %c0_i32, %c0_i32_0 : i32, i32
  }
  func.func @transform_8(%arg0: i32) -> (i32, i32) {
    %c0_i32 = arith.constant 0 : i32
    %c0_i32_0 = arith.constant 0 : i32
    %c0_i32_1 = arith.constant 0 : i32
    return %c0_i32, %c0_i32_0 : i32, i32
  }
  func.func @transform_9(%arg0: i32) -> (i32, i32) {
    %c0_i32 = arith.constant 0 : i32
    %c0_i32_0 = arith.constant 0 : i32
    %c0_i32_1 = arith.constant 0 : i32
    return %c0_i32, %c0_i32_0 : i32, i32
  }
  func.func @transform_10(%arg0: i32) -> (i32, i32) {
    %c0_i32 = arith.constant 0 : i32
    %c0_i32_0 = arith.constant 0 : i32
    %c0_i32_1 = arith.constant 0 : i32
    return %c0_i32, %c0_i32_0 : i32, i32
  }
  func.func @transform_11(%arg0: i32) -> (i32, i32) {
    %c0_i32 = arith.constant 0 : i32
    %c0_i32_0 = arith.constant 0 : i32
    %c0_i32_1 = arith.constant 0 : i32
    return %c0_i32, %c0_i32_0 : i32, i32
  }
  func.func @transform_12(%arg0: i32) -> (i32, i32) {
    %c0_i32 = arith.constant 0 : i32
    %c0_i32_0 = arith.constant 0 : i32
    %c0_i32_1 = arith.constant 0 : i32
    return %c0_i32, %c0_i32_0 : i32, i32
  }
  func.func @transform_13(%arg0: i32) -> (i32, i32) {
    %c0_i32 = arith.constant 0 : i32
    %c0_i32_0 = arith.constant 0 : i32
    %c0_i32_1 = arith.constant 0 : i32
    return %c0_i32, %c0_i32_0 : i32, i32
  }
  func.func @transform_14(%arg0: i32) -> (i32, i32) {
    %c0_i32 = arith.constant 0 : i32
    %c0_i32_0 = arith.constant 0 : i32
    %c0_i32_1 = arith.constant 0 : i32
    return %c0_i32, %c0_i32_0 : i32, i32
  }
  func.func @transform_15(%arg0: i32) -> (i32, i32) {
    %c0_i32 = arith.constant 0 : i32
    %c0_i32_0 = arith.constant 0 : i32
    %c0_i32_1 = arith.constant 0 : i32
    return %c0_i32, %c0_i32_0 : i32, i32
  }
  func.func @transform_16(%arg0: i32) -> (i32, i32, i32) {
    %c0_i32 = arith.constant 0 : i32
    %c0_i32_0 = arith.constant 0 : i32
    %c0_i32_1 = arith.constant 0 : i32
    return %arg0, %c0_i32, %c0_i32_0 : i32, i32, i32
  }
}

</mosaic_0001>

<llo_original>
// kernel: bottleneck_forward.1
$region0: #{bottleneck_forward.1}
  #allocation0 [shape = 'u32[]', space=smem, size = 0x4, offset = 0x4, fixed_abs, tag = 'smem constant byte address 0x4 - core index']
  #allocation1 [shape = 'u32[144,128]{1,0:T(1,128)}', space=vmem, size = 0x12000, scoped, tag = 'internal scratch']
  #allocation2 [shape = 'bf16[352,64]{1,0:T(8,128)(2,1)}', space=vmem, size = 0x16000, scoped, tag = 'scratch operand']
  #allocation3 [shape = 'bf16[288,128]{1,0:T(8,128)(2,1)}', space=vmem, size = 0x12000, scoped, tag = 'scratch operand']
  %s0 = inlined_call_operand.vmem [shape: bf16[2,352,256], index: 0, kind: input, shape index: {}]
  %s1 = inlined_call_operand.vmem [shape: bf16[352,64], index: 1, kind: input, shape index: {}]
  %s2 = inlined_call_operand.vmem [shape: bf16[256,64], index: 2, kind: input, shape index: {}]
  %s3 = inlined_call_operand.vmem [shape: f32[1,64], index: 3, kind: input, shape index: {}]
  %s4 = inlined_call_operand.vmem [shape: f32[1,64], index: 4, kind: input, shape index: {}]
  %s5 = inlined_call_operand.vmem [shape: bf16[9,64,128], index: 5, kind: input, shape index: {}]
  %s6 = inlined_call_operand.vmem [shape: f32[1,128], index: 6, kind: input, shape index: {}]
  %s7 = inlined_call_operand.vmem [shape: f32[1,128], index: 7, kind: input, shape index: {}]
  %s8 = inlined_call_operand.vmem [shape: f32[64,32], index: 8, kind: input, shape index: {}]
  %s9 = inlined_call_operand.vmem [shape: f32[1,32], index: 9, kind: input, shape index: {}]
  %s10 = inlined_call_operand.vmem [shape: f32[1,32], index: 10, kind: input, shape index: {}]
  %s11 = inlined_call_operand.vmem [shape: f32[32,128], index: 11, kind: input, shape index: {}]
  %s12 = inlined_call_operand.vmem [shape: f32[1,128], index: 12, kind: input, shape index: {}]
  %s13 = inlined_call_operand.vmem [shape: bf16[64,256], index: 13, kind: input, shape index: {}]
  %s14 = inlined_call_operand.vmem [shape: f32[1,256], index: 14, kind: input, shape index: {}]
  %s15 = inlined_call_operand.vmem [shape: f32[1,256], index: 15, kind: input, shape index: {}]
  %s16 = inlined_call_operand.vmem [shape: bf16[2,288,256], index: 16, kind: output, shape index: {}]
  %s17 = sld [smem:[#allocation0]]
  $region97: #{bottleneck_forward.1} parent=0
    _
  %s19 = ssub.s32 1, %s17
  %s20 = scalar_select 0, %s19, %s17
  loop: start=0, step=1, limit=4
  $region2: #{bottleneck_forward.1} parent=0 // loop_pre_header
    _
  $region3: #{bottleneck_forward.1} parent=0 // loop_header
    %s22 = sphi 0, %s26
    %p23 = scmp.ge.s32.totalorder %s22, 4
    %s32 = sphi 0, %s34
    %s35 = sphi 0, %s32
    %s36 = sphi 0, %s35
    %s52 = sphi 0, %s36
    %s56 = sphi 0, %s56
    %s58 = sphi 0, %s56
    %s59 = sphi 0, %s58
    %s73 = sphi 0, %s59
    %s77 = sphi 0, %s77
    %s79 = sphi 0, %s77
    %s80 = sphi 0, %s79
    %s94 = sphi 0, %s80
    %s98 = sphi 0, %s98
    %s100 = sphi 0, %s98
    %s101 = sphi 0, %s100
    %s115 = sphi 0, %s101
    %s119 = sphi 0, %s119
    %s121 = sphi 0, %s119
    %s122 = sphi 0, %s121
    %s136 = sphi 0, %s122
    %s140 = sphi 0, %s140
    %s142 = sphi 0, %s140
    %s143 = sphi 0, %s142
    %s157 = sphi 0, %s143
    %s161 = sphi 0, %s161
    %s163 = sphi 0, %s161
    %s164 = sphi 0, %s163
    %s178 = sphi 0, %s164
    %s182 = sphi 0, %s182
    %s184 = sphi 0, %s182
    %s185 = sphi 0, %s184
    %s199 = sphi 0, %s185
    %s203 = sphi 0, %s203
    %s205 = sphi 0, %s203
    %s206 = sphi 0, %s205
    %s220 = sphi 0, %s206
    %s224 = sphi 0, %s224
    %s226 = sphi 0, %s224
    %s227 = sphi 0, %s226
    %s241 = sphi 0, %s227
    %s245 = sphi 0, %s245
    %s247 = sphi 0, %s245
    %s248 = sphi 0, %s247
    %s262 = sphi 0, %s248
    %s266 = sphi 0, %s266
    %s268 = sphi 0, %s266
    %s269 = sphi 0, %s268
    %s283 = sphi 0, %s269
    %s287 = sphi 0, %s287
    %s289 = sphi 0, %s287
    %s290 = sphi 0, %s289
    %s304 = sphi 0, %s290
    %s308 = sphi 0, %s308
    %s310 = sphi 0, %s308
    %s311 = sphi 0, %s310
    %s325 = sphi 0, %s311
    %s329 = sphi 0, %s329
    %s331 = sphi 0, %s329
    %s332 = sphi 0, %s331
    %s346 = sphi 0, %s332
    %s350 = sphi 0, %s350
    %s352 = sphi 0, %s350
    %s353 = sphi 0, %s352
    %s367 = sphi 0, %s353
    %s373 = sphi 0, %s375
    %s376 = sphi 0, %s373
    %s377 = sphi 0, %s376
    %s393 = sphi 0, %s377
  $region4: #{bottleneck_forward.1} parent=0 // loop_header_branch
    %25 = sbr.rel (%p23) target = $region8
  $region5: #{bottleneck_forward.1} parent=0 // loop_body
    %s27 = ssub.s32 %s22, 1
    %s28 = ssub.s32 %s22, 2
    %s29 = sadd.s32 %s22, 1
    %s30 = ssub.s32 %s22, %s29
    %p31 = scmp.eq.s32.totalorder %s30, 0
    %s33 = sadd.s32 %s32, 1
    %s34 = scalar_select %p31, %s32, %s33
    %p37 = pneg %p31
    %p38 = scmp.eq.s32.totalorder %s22, 1
    %p39 = por %p37, %p38
    %p40 = scmp.ne.s32.totalorder %s32, %s35
    %p41 = scmp.eq.s32.totalorder %s22, 0
    %p42 = por %p40, %p41
    %p43 = scmp.ne.s32.totalorder %s32, %s35
    %p44 = scmp.eq.s32.totalorder %s27, 1
    %p45 = por %p43, %p44
    %p46 = scmp.ne.s32.totalorder %s35, %s36
    %p47 = scmp.eq.s32.totalorder %s27, 0
    %p48 = por %p46, %p47
    %p49 = scmp.ne.s32.totalorder %s35, %s36
    %p50 = scmp.eq.s32.totalorder %s28, 1
    %p51 = por %p49, %p50
    %p53 = scmp.ne.s32.totalorder %s36, %s52
    %p54 = scmp.eq.s32.totalorder %s28, 0
    %p55 = por %p53, %p54
    %s57 = sadd.s32 %s56, 1
    %p60 = scmp.eq.s32.totalorder %s22, 1
    %p61 = scmp.ne.s32.totalorder %s56, %s58
    %p62 = scmp.eq.s32.totalorder %s22, 0
    %p63 = por %p61, %p62
    %p64 = scmp.ne.s32.totalorder %s56, %s58
    %p65 = scmp.eq.s32.totalorder %s27, 1
    %p66 = por %p64, %p65
    %p67 = scmp.ne.s32.totalorder %s58, %s59
    %p68 = scmp.eq.s32.totalorder %s27, 0
    %p69 = por %p67, %p68
    %p70 = scmp.ne.s32.totalorder %s58, %s59
    %p71 = scmp.eq.s32.totalorder %s28, 1
    %p72 = por %p70, %p71
    %p74 = scmp.ne.s32.totalorder %s59, %s73
    %p75 = scmp.eq.s32.totalorder %s28, 0
    %p76 = por %p74, %p75
    %s78 = sadd.s32 %s77, 1
    %p81 = scmp.eq.s32.totalorder %s22, 1
    %p82 = scmp.ne.s32.totalorder %s77, %s79
    %p83 = scmp.eq.s32.totalorder %s22, 0
    %p84 = por %p82, %p83
    %p85 = scmp.ne.s32.totalorder %s77, %s79
    %p86 = scmp.eq.s32.totalorder %s27, 1
    %p87 = por %p85, %p86
    %p88 = scmp.ne.s32.totalorder %s79, %s80
    %p89 = scmp.eq.s32.totalorder %s27, 0
    %p90 = por %p88, %p89
    %p91 = scmp.ne.s32.totalorder %s79, %s80
    %p92 = scmp.eq.s32.totalorder %s28, 1
    %p93 = por %p91, %p92
    %p95 = scmp.ne.s32.totalorder %s80, %s94
    %p96 = scmp.eq.s32.totalorder %s28, 0
    %p97 = por %p95, %p96
    %s99 = sadd.s32 %s98, 1
    %p102 = scmp.eq.s32.totalorder %s22, 1
    %p103 = scmp.ne.s32.totalorder %s98, %s100
    %p104 = scmp.eq.s32.totalorder %s22, 0
    %p105 = por %p103, %p104
    %p106 = scmp.ne.s32.totalorder %s98, %s100
    %p107 = scmp.eq.s32.totalorder %s27, 1
    %p108 = por %p106, %p107
    %p109 = scmp.ne.s32.totalorder %s100, %s101
    %p110 = scmp.eq.s32.totalorder %s27, 0
    %p111 = por %p109, %p110
    %p112 = scmp.ne.s32.totalorder %s100, %s101
    %p113 = scmp.eq.s32.totalorder %s28, 1
    %p114 = por %p112, %p113
    %p116 = scmp.ne.s32.totalorder %s101, %s115
    %p117 = scmp.eq.s32.totalorder %s28, 0
    %p118 = por %p116, %p117
    %s120 = sadd.s32 %s119, 1
    %p123 = scmp.eq.s32.totalorder %s22, 1
    %p124 = scmp.ne.s32.totalorder %s119, %s121
    %p125 = scmp.eq.s32.totalorder %s22, 0
    %p126 = por %p124, %p125
    %p127 = scmp.ne.s32.totalorder %s119, %s121
    %p128 = scmp.eq.s32.totalorder %s27, 1
    %p129 = por %p127, %p128
    %p130 = scmp.ne.s32.totalorder %s121, %s122
    %p131 = scmp.eq.s32.totalorder %s27, 0
    %p132 = por %p130, %p131
    %p133 = scmp.ne.s32.totalorder %s121, %s122
    %p134 = scmp.eq.s32.totalorder %s28, 1
    %p135 = por %p133, %p134
    %p137 = scmp.ne.s32.totalorder %s122, %s136
    %p138 = scmp.eq.s32.totalorder %s28, 0
    %p139 = por %p137, %p138
    %s141 = sadd.s32 %s140, 1
    %p144 = scmp.eq.s32.totalorder %s22, 1
    %p145 = scmp.ne.s32.totalorder %s140, %s142
    %p146 = scmp.eq.s32.totalorder %s22, 0
    %p147 = por %p145, %p146
    %p148 = scmp.ne.s32.totalorder %s140, %s142
    %p149 = scmp.eq.s32.totalorder %s27, 1
    %p150 = por %p148, %p149
    %p151 = scmp.ne.s32.totalorder %s142, %s143
    %p152 = scmp.eq.s32.totalorder %s27, 0
    %p153 = por %p151, %p152
    %p154 = scmp.ne.s32.totalorder %s142, %s143
    %p155 = scmp.eq.s32.totalorder %s28, 1
    %p156 = por %p154, %p155
    %p158 = scmp.ne.s32.totalorder %s143, %s157
    %p159 = scmp.eq.s32.totalorder %s28, 0
    %p160 = por %p158, %p159
    %s162 = sadd.s32 %s161, 1
    %p165 = scmp.eq.s32.totalorder %s22, 1
    %p166 = scmp.ne.s32.totalorder %s161, %s163
    %p167 = scmp.eq.s32.totalorder %s22, 0
    %p168 = por %p166, %p167
    %p169 = scmp.ne.s32.totalorder %s161, %s163
    %p170 = scmp.eq.s32.totalorder %s27, 1
    %p171 = por %p169, %p170
    %p172 = scmp.ne.s32.totalorder %s163, %s164
    %p173 = scmp.eq.s32.totalorder %s27, 0
    %p174 = por %p172, %p173
    %p175 = scmp.ne.s32.totalorder %s163, %s164
    %p176 = scmp.eq.s32.totalorder %s28, 1
    %p177 = por %p175, %p176
    %p179 = scmp.ne.s32.totalorder %s164, %s178
    %p180 = scmp.eq.s32.totalorder %s28, 0
    %p181 = por %p179, %p180
    %s183 = sadd.s32 %s182, 1
    %p186 = scmp.eq.s32.totalorder %s22, 1
    %p187 = scmp.ne.s32.totalorder %s182, %s184
    %p188 = scmp.eq.s32.totalorder %s22, 0
    %p189 = por %p187, %p188
    %p190 = scmp.ne.s32.totalorder %s182, %s184
    %p191 = scmp.eq.s32.totalorder %s27, 1
    %p192 = por %p190, %p191
    %p193 = scmp.ne.s32.totalorder %s184, %s185
    %p194 = scmp.eq.s32.totalorder %s27, 0
    %p195 = por %p193, %p194
    %p196 = scmp.ne.s32.totalorder %s184, %s185
    %p197 = scmp.eq.s32.totalorder %s28, 1
    %p198 = por %p196, %p197
    %p200 = scmp.ne.s32.totalorder %s185, %s199
    %p201 = scmp.eq.s32.totalorder %s28, 0
    %p202 = por %p200, %p201
    %s204 = sadd.s32 %s203, 1
    %p207 = scmp.eq.s32.totalorder %s22, 1
    %p208 = scmp.ne.s32.totalorder %s203, %s205
    %p209 = scmp.eq.s32.totalorder %s22, 0
    %p210 = por %p208, %p209
    %p211 = scmp.ne.s32.totalorder %s203, %s205
    %p212 = scmp.eq.s32.totalorder %s27, 1
    %p213 = por %p211, %p212
    %p214 = scmp.ne.s32.totalorder %s205, %s206
    %p215 = scmp.eq.s32.totalorder %s27, 0
    %p216 = por %p214, %p215
    %p217 = scmp.ne.s32.totalorder %s205, %s206
    %p218 = scmp.eq.s32.totalorder %s28, 1
    %p219 = por %p217, %p218
    %p221 = scmp.ne.s32.totalorder %s206, %s220
    %p222 = scmp.eq.s32.totalorder %s28, 0
    %p223 = por %p221, %p222
    %s225 = sadd.s32 %s224, 1
    %p228 = scmp.eq.s32.totalorder %s22, 1
    %p229 = scmp.ne.s32.totalorder %s224, %s226
    %p230 = scmp.eq.s32.totalorder %s22, 0
    %p231 = por %p229, %p230
    %p232 = scmp.ne.s32.totalorder %s224, %s226
    %p233 = scmp.eq.s32.totalorder %s27, 1
    %p234 = por %p232, %p233
    %p235 = scmp.ne.s32.totalorder %s226, %s227
    %p236 = scmp.eq.s32.totalorder %s27, 0
    %p237 = por %p235, %p236
    %p238 = scmp.ne.s32.totalorder %s226, %s227
    %p239 = scmp.eq.s32.totalorder %s28, 1
    %p240 = por %p238, %p239
    %p242 = scmp.ne.s32.totalorder %s227, %s241
    %p243 = scmp.eq.s32.totalorder %s28, 0
    %p244 = por %p242, %p243
    %s246 = sadd.s32 %s245, 1
    %p249 = scmp.eq.s32.totalorder %s22, 1
    %p250 = scmp.ne.s32.totalorder %s245, %s247
    %p251 = scmp.eq.s32.totalorder %s22, 0
    %p252 = por %p250, %p251
    %p253 = scmp.ne.s32.totalorder %s245, %s247
    %p254 = scmp.eq.s32.totalorder %s27, 1
    %p255 = por %p253, %p254
    %p256 = scmp.ne.s32.totalorder %s247, %s248
    %p257 = scmp.eq.s32.totalorder %s27, 0
    %p258 = por %p256, %p257
    %p259 = scmp.ne.s32.totalorder %s247, %s248
    %p260 = scmp.eq.s32.totalorder %s28, 1
    %p261 = por %p259, %p260
    %p263 = scmp.ne.s32.totalorder %s248, %s262
    %p264 = scmp.eq.s32.totalorder %s28, 0
    %p265 = por %p263, %p264
    %s267 = sadd.s32 %s266, 1
    %p270 = scmp.eq.s32.totalorder %s22, 1
    %p271 = scmp.ne.s32.totalorder %s266, %s268
    %p272 = scmp.eq.s32.totalorder %s22, 0
    %p273 = por %p271, %p272
    %p274 = scmp.ne.s32.totalorder %s266, %s268
    %p275 = scmp.eq.s32.totalorder %s27, 1
    %p276 = por %p274, %p275
    %p277 = scmp.ne.s32.totalorder %s268, %s269
    %p278 = scmp.eq.s32.totalorder %s27, 0
    %p279 = por %p277, %p278
    %p280 = scmp.ne.s32.totalorder %s268, %s269
    %p281 = scmp.eq.s32.totalorder %s28, 1
    %p282 = por %p280, %p281
    %p284 = scmp.ne.s32.totalorder %s269, %s283
    %p285 = scmp.eq.s32.totalorder %s28, 0
    %p286 = por %p284, %p285
    %s288 = sadd.s32 %s287, 1
    %p291 = scmp.eq.s32.totalorder %s22, 1
    %p292 = scmp.ne.s32.totalorder %s287, %s289
    %p293 = scmp.eq.s32.totalorder %s22, 0
    %p294 = por %p292, %p293
    %p295 = scmp.ne.s32.totalorder %s287, %s289
    %p296 = scmp.eq.s32.totalorder %s27, 1
    %p297 = por %p295, %p296
    %p298 = scmp.ne.s32.totalorder %s289, %s290
    %p299 = scmp.eq.s32.totalorder %s27, 0
    %p300 = por %p298, %p299
    %p301 = scmp.ne.s32.totalorder %s289, %s290
    %p302 = scmp.eq.s32.totalorder %s28, 1
    %p303 = por %p301, %p302
    %p305 = scmp.ne.s32.totalorder %s290, %s304
    %p306 = scmp.eq.s32.totalorder %s28, 0
    %p307 = por %p305, %p306
    %s309 = sadd.s32 %s308, 1
    %p312 = scmp.eq.s32.totalorder %s22, 1
    %p313 = scmp.ne.s32.totalorder %s308, %s310
    %p314 = scmp.eq.s32.totalorder %s22, 0
    %p315 = por %p313, %p314
    %p316 = scmp.ne.s32.totalorder %s308, %s310
    %p317 = scmp.eq.s32.totalorder %s27, 1
    %p318 = por %p316, %p317
    %p319 = scmp.ne.s32.totalorder %s310, %s311
    %p320 = scmp.eq.s32.totalorder %s27, 0
    %p321 = por %p319, %p320
    %p322 = scmp.ne.s32.totalorder %s310, %s311
    %p323 = scmp.eq.s32.totalorder %s28, 1
    %p324 = por %p322, %p323
    %p326 = scmp.ne.s32.totalorder %s311, %s325
    %p327 = scmp.eq.s32.totalorder %s28, 0
    %p328 = por %p326, %p327
    %s330 = sadd.s32 %s329, 1
    %p333 = scmp.eq.s32.totalorder %s22, 1
    %p334 = scmp.ne.s32.totalorder %s329, %s331
    %p335 = scmp.eq.s32.totalorder %s22, 0
    %p336 = por %p334, %p335
    %p337 = scmp.ne.s32.totalorder %s329, %s331
    %p338 = scmp.eq.s32.totalorder %s27, 1
    %p339 = por %p337, %p338
    %p340 = scmp.ne.s32.totalorder %s331, %s332
    %p341 = scmp.eq.s32.totalorder %s27, 0
    %p342 = por %p340, %p341
    %p343 = scmp.ne.s32.totalorder %s331, %s332
    %p344 = scmp.eq.s32.totalorder %s28, 1
    %p345 = por %p343, %p344
    %p347 = scmp.ne.s32.totalorder %s332, %s346
    %p348 = scmp.eq.s32.totalorder %s28, 0
    %p349 = por %p347, %p348
    %s351 = sadd.s32 %s350, 1
    %p354 = scmp.eq.s32.totalorder %s22, 1
    %p355 = scmp.ne.s32.totalorder %s350, %s352
    %p356 = scmp.eq.s32.totalorder %s22, 0
    %p357 = por %p355, %p356
    %p358 = scmp.ne.s32.totalorder %s350, %s352
    %p359 = scmp.eq.s32.totalorder %s27, 1
    %p360 = por %p358, %p359
    %p361 = scmp.ne.s32.totalorder %s352, %s353
    %p362 = scmp.eq.s32.totalorder %s27, 0
    %p363 = por %p361, %p362
    %p364 = scmp.ne.s32.totalorder %s352, %s353
    %p365 = scmp.eq.s32.totalorder %s28, 1
    %p366 = por %p364, %p365
    %p368 = scmp.ne.s32.totalorder %s353, %s367
    %p369 = scmp.eq.s32.totalorder %s28, 0
    %p370 = por %p368, %p369
    %s371 = ssub.s32 %s22, %s29
    %p372 = scmp.eq.s32.totalorder %s371, 0
    %s374 = sadd.s32 %s373, 1
    %s375 = scalar_select %p372, %s373, %s374
    %p378 = pneg %p372
    %p379 = scmp.eq.s32.totalorder %s22, 1
    %p380 = por %p378, %p379
    %p381 = scmp.ne.s32.totalorder %s373, %s376
    %p382 = scmp.eq.s32.totalorder %s22, 0
    %p383 = por %p381, %p382
    %p384 = scmp.ne.s32.totalorder %s373, %s376
    %p385 = scmp.eq.s32.totalorder %s27, 1
    %p386 = por %p384, %p385
    %p387 = scmp.ne.s32.totalorder %s376, %s377
    %p388 = scmp.eq.s32.totalorder %s27, 0
    %p389 = por %p387, %p388
    %p390 = scmp.ne.s32.totalorder %s376, %s377
    %p391 = scmp.eq.s32.totalorder %s28, 1
    %p392 = por %p390, %p391
    %p394 = scmp.ne.s32.totalorder %s377, %s393
    %p395 = scmp.eq.s32.totalorder %s28, 0
    %p396 = por %p394, %p395
    %p397 = scmp.le.s32.totalorder 1, %s22
    %p398 = scmp.lt.s32.totalorder %s22, 3
    %p399 = pnand %p397, %p398
    %p400 = pneg %p399
    // Predicated region
    $region9: #{bottleneck_forward.1} parent=5 // pred_check
      _
    $region10: #{bottleneck_forward.1} parent=5 // pred_check_branch
      %402 = sbr.rel (%p399) target = $region12
    $region11: #{bottleneck_forward.1} parent=5 // pred_region
      %s403 = ssub.s32 %s22, 1
      // Predicated region
      $region13: #{bottleneck_forward.1} parent=11 // pred_check
        %p404 = pneg %p69
      $region14: #{bottleneck_forward.1} parent=11 // pred_check_branch
        %406 = sbr.rel (%p404) target = $region16
      $region15: #{bottleneck_forward.1} parent=11 // pred_region
        _
      $region16: #{bottleneck_forward.1} parent=11 // pred_fallthru
        _
      // Predicated region
      $region17: #{bottleneck_forward.1} parent=11 // pred_check
        %p407 = pneg %p90
      $region18: #{bottleneck_forward.1} parent=11 // pred_check_branch
        %409 = sbr.rel (%p407) target = $region20
      $region19: #{bottleneck_forward.1} parent=11 // pred_region
        _
      $region20: #{bottleneck_forward.1} parent=11 // pred_fallthru
        _
      // Predicated region
      $region21: #{bottleneck_forward.1} parent=11 // pred_check
        %p410 = pneg %p111
      $region22: #{bottleneck_forward.1} parent=11 // pred_check_branch
        %412 = sbr.rel (%p410) target = $region24
      $region23: #{bottleneck_forward.1} parent=11 // pred_region
        _
      $region24: #{bottleneck_forward.1} parent=11 // pred_fallthru
        _
      // Predicated region
      $region25: #{bottleneck_forward.1} parent=11 // pred_check
        %p413 = pneg %p132
      $region26: #{bottleneck_forward.1} parent=11 // pred_check_branch
        %415 = sbr.rel (%p413) target = $region28
      $region27: #{bottleneck_forward.1} parent=11 // pred_region
        _
      $region28: #{bottleneck_forward.1} parent=11 // pred_fallthru
        _
      // Predicated region
      $region29: #{bottleneck_forward.1} parent=11 // pred_check
        %p416 = pneg %p153
      $region30: #{bottleneck_forward.1} parent=11 // pred_check_branch
        %418 = sbr.rel (%p416) target = $region32
      $region31: #{bottleneck_forward.1} parent=11 // pred_region
        _
      $region32: #{bottleneck_forward.1} parent=11 // pred_fallthru
        _
      // Predicated region
      $region33: #{bottleneck_forward.1} parent=11 // pred_check
        %p419 = pneg %p174
      $region34: #{bottleneck_forward.1} parent=11 // pred_check_branch
        %421 = sbr.rel (%p419) target = $region36
      $region35: #{bottleneck_forward.1} parent=11 // pred_region
        _
      $region36: #{bottleneck_forward.1} parent=11 // pred_fallthru
        _
      // Predicated region
      $region37: #{bottleneck_forward.1} parent=11 // pred_check
        %p422 = pneg %p195
      $region38: #{bottleneck_forward.1} parent=11 // pred_check_branch
        %424 = sbr.rel (%p422) target = $region40
      $region39: #{bottleneck_forward.1} parent=11 // pred_region
        _
      $region40: #{bottleneck_forward.1} parent=11 // pred_fallthru
        _
      // Predicated region
      $region41: #{bottleneck_forward.1} parent=11 // pred_check
        %p425 = pneg %p216
      $region42: #{bottleneck_forward.1} parent=11 // pred_check_branch
        %427 = sbr.rel (%p425) target = $region44
      $region43: #{bottleneck_forward.1} parent=11 // pred_region
        _
      $region44: #{bottleneck_forward.1} parent=11 // pred_fallthru
        _
      // Predicated region
      $region45: #{bottleneck_forward.1} parent=11 // pred_check
        %p428 = pneg %p237
      $region46: #{bottleneck_forward.1} parent=11 // pred_check_branch
        %430 = sbr.rel (%p428) target = $region48
      $region47: #{bottleneck_forward.1} parent=11 // pred_region
        _
      $region48: #{bottleneck_forward.1} parent=11 // pred_fallthru
        _
      // Predicated region
      $region49: #{bottleneck_forward.1} parent=11 // pred_check
        %p431 = pneg %p258
      $region50: #{bottleneck_forward.1} parent=11 // pred_check_branch
        %433 = sbr.rel (%p431) target = $region52
      $region51: #{bottleneck_forward.1} parent=11 // pred_region
        _
      $region52: #{bottleneck_forward.1} parent=11 // pred_fallthru
        _
      // Predicated region
      $region53: #{bottleneck_forward.1} parent=11 // pred_check
        %p434 = pneg %p279
      $region54: #{bottleneck_forward.1} parent=11 // pred_check_branch
        %436 = sbr.rel (%p434) target = $region56
      $region55: #{bottleneck_forward.1} parent=11 // pred_region
        _
      $region56: #{bottleneck_forward.1} parent=11 // pred_fallthru
        _
      // Predicated region
      $region57: #{bottleneck_forward.1} parent=11 // pred_check
        %p437 = pneg %p300
      $region58: #{bottleneck_forward.1} parent=11 // pred_check_branch
        %439 = sbr.rel (%p437) target = $region60
      $region59: #{bottleneck_forward.1} parent=11 // pred_region
        _
      $region60: #{bottleneck_forward.1} parent=11 // pred_fallthru
        _
      // Predicated region
      $region61: #{bottleneck_forward.1} parent=11 // pred_check
        %p440 = pneg %p321
      $region62: #{bottleneck_forward.1} parent=11 // pred_check_branch
        %442 = sbr.rel (%p440) target = $region64
      $region63: #{bottleneck_forward.1} parent=11 // pred_region
        _
      $region64: #{bottleneck_forward.1} parent=11 // pred_fallthru
        _
      // Predicated region
      $region65: #{bottleneck_forward.1} parent=11 // pred_check
        %p443 = pneg %p342
      $region66: #{bottleneck_forward.1} parent=11 // pred_check_branch
        %445 = sbr.rel (%p443) target = $region68
      $region67: #{bottleneck_forward.1} parent=11 // pred_region
        _
      $region68: #{bottleneck_forward.1} parent=11 // pred_fallthru
        _
      // Predicated region
      $region69: #{bottleneck_forward.1} parent=11 // pred_check
        %p446 = pneg %p363
      $region70: #{bottleneck_forward.1} parent=11 // pred_check_branch
        %448 = sbr.rel (%p446) target = $region72
      $region71: #{bottleneck_forward.1} parent=11 // pred_region
        _
      $region72: #{bottleneck_forward.1} parent=11 // pred_fallthru
        _
    $region12: #{bottleneck_forward.1} parent=5 // pred_fallthru
      _
    %p449 = scmp.lt.s32.totalorder %s22, 2
    // Predicated region
    $region73: #{bottleneck_forward.1} parent=5 // pred_check
      %p450 = pneg %p449
    $region74: #{bottleneck_forward.1} parent=5 // pred_check_branch
      %452 = sbr.rel (%p450) target = $region76
    $region75: #{bottleneck_forward.1} parent=5 // pred_region
      // Predicated region
      $region77: #{bottleneck_forward.1} parent=75 // pred_check
        %p453 = pneg %p42
      $region78: #{bottleneck_forward.1} parent=75 // pred_check_branch
        %455 = sbr.rel (%p453) target = $region80
      $region79: #{bottleneck_forward.1} parent=75 // pred_region
        %p456 = scmp.lt.s32.totalorder %s22, 1
        %s457 = scalar_select %p456, %s22, 1
        %s458 = smul.addr %s457, 88
        %s459 = smul.addr %s458, 4
        %s460 = scalar_lea.vmem %s0, %s459
      $region80: #{bottleneck_forward.1} parent=75 // pred_fallthru
        _
    $region76: #{bottleneck_forward.1} parent=5 // pred_fallthru
      _
    %p461 = scmp.le.s32.totalorder 1, %s22
    %p462 = scmp.lt.s32.totalorder %s22, 3
    %p463 = pnand %p461, %p462
    %p464 = pneg %p463
    // Predicated region
    $region81: #{bottleneck_forward.1} parent=5 // pred_check
      _
    $region82: #{bottleneck_forward.1} parent=5 // pred_check_branch
      %466 = sbr.rel (%p463) target = $region84
    $region83: #{bottleneck_forward.1} parent=5 // pred_region
      %s467 = ssub.s32 %s22, 1
      %p468 = scmp.lt.s32.totalorder %s27, 1
      %s469 = scalar_select %p468, %s27, 1
      %s470 = smul.addr %s469, 88
      %s471 = smul.addr %s470, 4
      %s472 = scalar_lea.vmem %s0, %s471
      %p473 = pneg %p48
      %p474 = pneg %p45
      %p475 = pneg %p69
      %p476 = pneg %p66
      %p477 = pneg %p90
      %p478 = pneg %p87
      %p479 = pneg %p111
      %p480 = pneg %p108
      %p481 = pneg %p132
      %p482 = pneg %p129
      %p483 = pneg %p153
      %p484 = pneg %p150
      %p485 = pneg %p174
      %p486 = pneg %p171
      %p487 = pneg %p195
      %p488 = pneg %p192
      %p489 = pneg %p216
      %p490 = pneg %p213
      %p491 = pneg %p237
      %p492 = pneg %p234
      %p493 = pneg %p258
      %p494 = pneg %p255
      %p495 = pneg %p279
      %p496 = pneg %p276
      %p497 = pneg %p300
      %p498 = pneg %p297
      %p499 = pneg %p321
      %p500 = pneg %p318
      %p501 = pneg %p342
      %p502 = pneg %p339
      %p503 = pneg %p363
      %p504 = pneg %p360
      %p505 = pneg %p389
      %p506 = pneg %p386
      %p507 = scmp.lt.s32.totalorder %s27, 1
      %s508 = scalar_select %p507, %s27, 1
      %s509 = smul.addr %s508, 72
      %s510 = smul.addr %s509, 4
      %s511 = scalar_lea.vmem %s16, %s510
      %p512 = scmp.lt.s32.totalorder %s27, 1
      %s513 = scalar_select %p512, %s27, 1
      %s514 = smul.addr %s513, 88
      %s515 = smul.addr %s514, 4
      %s516 = scalar_lea.vmem %s0, %s515
      %p517 = scmp.lt.s32.totalorder %s27, 1
      %s518 = scalar_select %p517, %s27, 1
      %s519 = smul.addr %s518, 72
      %s520 = smul.addr %s519, 4
      %s521 = scalar_lea.vmem %s16, %s520
      %v523 = vld [vmem:[%s516] sm:$0xff]
      %v524 = vld [vmem:[%s516 + $0x8] sm:$0xff]
      %v525 = vld [vmem:[%s516 + $0x10] sm:$0xff]
      %v526 = vld [vmem:[%s516 + $0x18] sm:$0xff]
      %v527 = vld [vmem:[%s516 + $0x20] sm:$0xff]
      %v528 = vld [vmem:[%s516 + $0x28] sm:$0xff]
      %v529 = vld [vmem:[%s516 + $0x30] sm:$0xff]
      %v530 = vld [vmem:[%s516 + $0x38] sm:$0xff]
      %v531 = vld [vmem:[%s516 + $0x40] sm:$0xff]
      %v532 = vld [vmem:[%s516 + $0x48] sm:$0xff]
      %v533 = vld [vmem:[%s516 + $0x50] sm:$0xff]
      %v534 = vld [vmem:[%s516 + $0x58] sm:$0xff]
      %v535 = vld [vmem:[%s516 + $0x60] sm:$0xff]
      %v536 = vld [vmem:[%s516 + $0x68] sm:$0xff]
      %v537 = vld [vmem:[%s516 + $0x70] sm:$0xff]
      %v538 = vld [vmem:[%s516 + $0x78] sm:$0xff]
      %v539 = vld [vmem:[%s516 + $0x80] sm:$0xff]
      %v540 = vld [vmem:[%s516 + $0x88] sm:$0xff]
      %v541 = vld [vmem:[%s516 + $0x90] sm:$0xff]
      %v542 = vld [vmem:[%s516 + $0x98] sm:$0xff]
      %v543 = vld [vmem:[%s516 + $0xa0] sm:$0xff]
      %v544 = vld [vmem:[%s516 + $0xa8] sm:$0xff]
      %v545 = vld [vmem:[%s2] sm:$0xf]
      %v546 = vld [vmem:[%s2 + $0x4] sm:$0xf]
      %v547 = vld [vmem:[%s2 + $0x8] sm:$0xf]
      %v548 = vld [vmem:[%s2 + $0xc] sm:$0xf]
      %v549 = vld [vmem:[%s2 + $0x10] sm:$0xf]
      %v550 = vld [vmem:[%s2 + $0x14] sm:$0xf]
      %v551 = vld [vmem:[%s2 + $0x18] sm:$0xf]
      %v552 = vld [vmem:[%s2 + $0x1c] sm:$0xf]
      %v553 = vld [vmem:[%s2 + $0x20] sm:$0xf]
      %v554 = vld [vmem:[%s2 + $0x24] sm:$0xf]
      %v555 = vld [vmem:[%s2 + $0x28] sm:$0xf]
      %v556 = vld [vmem:[%s2 + $0x2c] sm:$0xf]
      %v557 = vld [vmem:[%s2 + $0x30] sm:$0xf]
      %v558 = vld [vmem:[%s2 + $0x34] sm:$0xf]
      %v559 = vld [vmem:[%s2 + $0x38] sm:$0xf]
      %v560 = vld [vmem:[%s2 + $0x3c] sm:$0xf]
      %v561 = vld [vmem:[%s2 + $0x40] sm:$0xf]
      %v562 = vld [vmem:[%s2 + $0x44] sm:$0xf]
      %v563 = vld [vmem:[%s2 + $0x48] sm:$0xf]
      %v564 = vld [vmem:[%s2 + $0x4c] sm:$0xf]
      %v565 = vld [vmem:[%s2 + $0x50] sm:$0xf]
      %v566 = vld [vmem:[%s2 + $0x54] sm:$0xf]
      %v567 = vld [vmem:[%s2 + $0x58] sm:$0xf]
      %v568 = vld [vmem:[%s2 + $0x5c] sm:$0xf]
      %v569 = vld [vmem:[%s2 + $0x60] sm:$0xf]
      %v570 = vld [vmem:[%s2 + $0x64] sm:$0xf]
      %v571 = vld [vmem:[%s2 + $0x68] sm:$0xf]
      %v572 = vld [vmem:[%s2 + $0x6c] sm:$0xf]
      %v573 = vld [vmem:[%s2 + $0x70] sm:$0xf]
      %v574 = vld [vmem:[%s2 + $0x74] sm:$0xf]
      %v575 = vld [vmem:[%s2 + $0x78] sm:$0xf]
      %v576 = vld [vmem:[%s2 + $0x7c] sm:$0xf]
      %v599 = vunpack.c.l.b16 %v523
      %v600 = vunpack.c.h.b16 %v523
      %v601 = vunpack.c.l.b16 %v524
      %v602 = vunpack.c.h.b16 %v524
      %v603 = vunpack.c.l.b16 %v525
      %v604 = vunpack.c.h.b16 %v525
      %v605 = vunpack.c.l.b16 %v526
      %v606 = vunpack.c.h.b16 %v526
      %v607 = vunpack.c.l.b16 %v527
      %v608 = vunpack.c.h.b16 %v527
      %v609 = vunpack.c.l.b16 %v528
      %v610 = vunpack.c.h.b16 %v528
      %v611 = vunpack.c.l.b16 %v529
      %v612 = vunpack.c.h.b16 %v529
      %v613 = vunpack.c.l.b16 %v530
      %v614 = vunpack.c.h.b16 %v530
      %v615 = vunpack.c.l.b16 %v531
      %v616 = vunpack.c.h.b16 %v531
      %v617 = vunpack.c.l.b16 %v532
      %v618 = vunpack.c.h.b16 %v532
      %v619 = vunpack.c.l.b16 %v533
      %v620 = vunpack.c.h.b16 %v533
      %v621 = vunpack.c.l.b16 %v534
      %v622 = vunpack.c.h.b16 %v534
      %v623 = vunpack.c.l.b16 %v535
      %v624 = vunpack.c.h.b16 %v535
      %v625 = vunpack.c.l.b16 %v536
      %v626 = vunpack.c.h.b16 %v536
      %v627 = vunpack.c.l.b16 %v537
      %v628 = vunpack.c.h.b16 %v537
      %v629 = vunpack.c.l.b16 %v538
      %v630 = vunpack.c.h.b16 %v538
      %v631 = vunpack.c.l.b16 %v539
      %v632 = vunpack.c.h.b16 %v539
      %v633 = vunpack.c.l.b16 %v540
      %v634 = vunpack.c.h.b16 %v540
      %v635 = vunpack.c.l.b16 %v541
      %v636 = vunpack.c.h.b16 %v541
      %v637 = vunpack.c.l.b16 %v542
      %v638 = vunpack.c.h.b16 %v542
      %v639 = vunpack.c.l.b16 %v543
      %v640 = vunpack.c.h.b16 %v543
      %v641 = vunpack.c.l.b16 %v544
      %v642 = vunpack.c.h.b16 %v544
      %v643 = vpack.c.b16 %v601, %v599
      %v644 = vpack.c.b16 %v602, %v600
      %v645 = vpack.c.b16 %v605, %v603
      %v646 = vpack.c.b16 %v606, %v604
      %v647 = vpack.c.b16 %v609, %v607
      %v648 = vpack.c.b16 %v610, %v608
      %v649 = vpack.c.b16 %v613, %v611
      %v650 = vpack.c.b16 %v614, %v612
      %v651 = vpack.c.b16 %v617, %v615
      %v652 = vpack.c.b16 %v618, %v616
      %v653 = vpack.c.b16 %v621, %v619
      %v654 = vpack.c.b16 %v622, %v620
      %v655 = vpack.c.b16 %v625, %v623
      %v656 = vpack.c.b16 %v626, %v624
      %v657 = vpack.c.b16 %v629, %v627
      %v658 = vpack.c.b16 %v630, %v628
      %v659 = vpack.c.b16 %v633, %v631
      %v660 = vpack.c.b16 %v634, %v632
      %v661 = vpack.c.b16 %v637, %v635
      %v662 = vpack.c.b16 %v638, %v636
      %v663 = vpack.c.b16 %v641, %v639
      %v664 = vpack.c.b16 %v642, %v640
      %v719 = vunpack.c.l.b16 %v545
      %v720 = vunpack.c.l.b16 %v546
      %v721 = vunpack.c.l.b16 %v547
      %v722 = vunpack.c.l.b16 %v548
      %v723 = vunpack.c.l.b16 %v549
      %v724 = vunpack.c.l.b16 %v550
      %v725 = vunpack.c.l.b16 %v551
      %v726 = vunpack.c.l.b16 %v552
      %v727 = vunpack.c.l.b16 %v553
      %v728 = vunpack.c.l.b16 %v554
      %v729 = vunpack.c.l.b16 %v555
      %v730 = vunpack.c.l.b16 %v556
      %v731 = vunpack.c.l.b16 %v557
      %v732 = vunpack.c.l.b16 %v558
      %v733 = vunpack.c.l.b16 %v559
      %v734 = vunpack.c.l.b16 %v560
      %v735 = vunpack.c.l.b16 %v561
      %v736 = vunpack.c.l.b16 %v562
      %v737 = vunpack.c.l.b16 %v563
      %v738 = vunpack.c.l.b16 %v564
      %v739 = vunpack.c.l.b16 %v565
      %v740 = vunpack.c.l.b16 %v566
      %v741 = vunpack.c.l.b16 %v567
      %v742 = vunpack.c.l.b16 %v568
      %v743 = vunpack.c.l.b16 %v569
      %v744 = vunpack.c.l.b16 %v570
      %v745 = vunpack.c.l.b16 %v571
      %v746 = vunpack.c.l.b16 %v572
      %v747 = vunpack.c.l.b16 %v573
      %v748 = vunpack.c.l.b16 %v574
      %v749 = vunpack.c.l.b16 %v575
      %v750 = vunpack.c.l.b16 %v576
      %v751 = vpack.c.b16 %v720, %v719
      %v752 = vpack.c.b16 %v722, %v721
      %v753 = vpack.c.b16 %v724, %v723
      %v754 = vpack.c.b16 %v726, %v725
      %v755 = vpack.c.b16 %v728, %v727
      %v756 = vpack.c.b16 %v730, %v729
      %v757 = vpack.c.b16 %v732, %v731
      %v758 = vpack.c.b16 %v734, %v733
      %v759 = vpack.c.b16 %v736, %v735
      %v760 = vpack.c.b16 %v738, %v737
      %v761 = vpack.c.b16 %v740, %v739
      %v762 = vpack.c.b16 %v742, %v741
      %v763 = vpack.c.b16 %v744, %v743
      %v764 = vpack.c.b16 %v746, %v745
      %v765 = vpack.c.b16 %v748, %v747
      %v766 = vpack.c.b16 %v750, %v749
      %783 = vmatprep.subr.bf16.mxu0 0
      %784 = vmatpush1.bf16.msra.mxu0 %v758
      %785 = vmatprep.subr.bf16.mxu0 0
      %786 = vmatpush1.bf16.msra.mxu0 %v757
      %787 = vmatprep.subr.bf16.mxu0 0
      %788 = vmatpush1.bf16.msra.mxu0 %v756
      %789 = vmatprep.subr.bf16.mxu0 0
      %790 = vmatpush1.bf16.msra.mxu0 %v755
      %791 = vmatprep.subr.bf16.mxu0 0
      %792 = vmatpush1.bf16.msra.mxu0 %v754
      %793 = vmatprep.subr.bf16.mxu0 0
      %794 = vmatpush1.bf16.msra.mxu0 %v753
      %795 = vmatprep.subr.bf16.mxu0 0
      %796 = vmatpush1.bf16.msra.mxu0 %v752
      %797 = vmatprep.subr.bf16.mxu0 0
      %798 = vmatpush1.bf16.msra.mxu0 %v751
      %799 = vmatprep.subr.bf16.mxu0 0
      %800 = vmatpush2.bf16.msra.mxu0 %v766
      %801 = vmatprep.subr.bf16.mxu0 0
      %802 = vmatpush2.bf16.msra.mxu0 %v765
      %803 = vmatprep.subr.bf16.mxu0 0
      %804 = vmatpush2.bf16.msra.mxu0 %v764
      %805 = vmatprep.subr.bf16.mxu0 0
      %806 = vmatpush2.bf16.msra.mxu0 %v763
      %807 = vmatprep.subr.bf16.mxu0 0
      %808 = vmatpush2.bf16.msra.mxu0 %v762
      %809 = vmatprep.subr.bf16.mxu0 0
      %810 = vmatpush2.bf16.msra.mxu0 %v761
      %811 = vmatprep.subr.bf16.mxu0 0
      %812 = vmatpush2.bf16.msra.mxu0 %v760
      %813 = vmatprep.subr.bf16.mxu0 0
      %814 = vmatpush2.bf16.msra.mxu0 %v759
      %815 = vmatprep.mubr.bf16.mxu0 %v644
      %816 = vmatmul.mubr.bf16.gmra.mxu0 %v643
      %v817 = vpop.f32.mrf.mxu0
      %v818 = vadd.f32 0.0, %v817
      %v819 = vpop.f32.mrf.mxu0
      %v820 = vpop.f32.mrf.mxu0
      %v821 = vadd.f32 0.0, %v820
      %v822 = vpop.f32.mrf.mxu0
      %823 = vmatprep.mubr.bf16.mxu0 %v646
      %824 = vmatmul.mubr.bf16.gmra.mxu0 %v645
      %v825 = vpop.f32.mrf.mxu0
      %v826 = vadd.f32 0.0, %v825
      %v827 = vpop.f32.mrf.mxu0
      %v828 = vpop.f32.mrf.mxu0
      %v829 = vadd.f32 0.0, %v828
      %v830 = vpop.f32.mrf.mxu0
      %831 = vmatprep.mubr.bf16.mxu0 %v648
      %832 = vmatmul.mubr.bf16.gmra.mxu0 %v647
      %v833 = vpop.f32.mrf.mxu0
      %v834 = vadd.f32 0.0, %v833
      %v835 = vpop.f32.mrf.mxu0
      %v836 = vpop.f32.mrf.mxu0
      %v837 = vadd.f32 0.0, %v836
      %v838 = vpop.f32.mrf.mxu0
      %839 = vmatprep.mubr.bf16.mxu0 %v650
      %840 = vmatmul.mubr.bf16.gmra.mxu0 %v649
      %v841 = vpop.f32.mrf.mxu0
      %v842 = vadd.f32 0.0, %v841
      %v843 = vpop.f32.mrf.mxu0
      %v844 = vpop.f32.mrf.mxu0
      %v845 = vadd.f32 0.0, %v844
      %v846 = vpop.f32.mrf.mxu0
      %847 = vmatprep.mubr.bf16.mxu0 %v652
      %848 = vmatmul.mubr.bf16.gmra.mxu0 %v651
      %v849 = vpop.f32.mrf.mxu0
      %v850 = vadd.f32 0.0, %v849
      %v851 = vpop.f32.mrf.mxu0
      %v852 = vpop.f32.mrf.mxu0
      %v853 = vadd.f32 0.0, %v852
      %v854 = vpop.f32.mrf.mxu0
      %855 = vmatprep.mubr.bf16.mxu0 %v654
      %856 = vmatmul.mubr.bf16.gmra.mxu0 %v653
      %v857 = vpop.f32.mrf.mxu0
      %v858 = vadd.f32 0.0, %v857
      %v859 = vpop.f32.mrf.mxu0
      %v860 = vpop.f32.mrf.mxu0
      %v861 = vadd.f32 0.0, %v860
      %v862 = vpop.f32.mrf.mxu0
      %863 = vmatprep.mubr.bf16.mxu0 %v656
      %864 = vmatmul.mubr.bf16.gmra.mxu0 %v655
      %v865 = vpop.f32.mrf.mxu0
      %v866 = vadd.f32 0.0, %v865
      %v867 = vpop.f32.mrf.mxu0
      %v868 = vpop.f32.mrf.mxu0
      %v869 = vadd.f32 0.0, %v868
      %v870 = vpop.f32.mrf.mxu0
      %871 = vmatprep.mubr.bf16.mxu0 %v658
      %872 = vmatmul.mubr.bf16.gmra.mxu0 %v657
      %v873 = vpop.f32.mrf.mxu0
      %v874 = vadd.f32 0.0, %v873
      %v875 = vpop.f32.mrf.mxu0
      %v876 = vpop.f32.mrf.mxu0
      %v877 = vadd.f32 0.0, %v876
      %v878 = vpop.f32.mrf.mxu0
      %879 = vmatprep.mubr.bf16.mxu0 %v660
      %880 = vmatmul.mubr.bf16.gmra.mxu0 %v659
      %v881 = vpop.f32.mrf.mxu0
      %v882 = vadd.f32 0.0, %v881
      %v883 = vpop.f32.mrf.mxu0
      %v884 = vpop.f32.mrf.mxu0
      %v885 = vadd.f32 0.0, %v884
      %v886 = vpop.f32.mrf.mxu0
      %887 = vmatprep.mubr.bf16.mxu0 %v662
      %888 = vmatmul.mubr.bf16.gmra.mxu0 %v661
      %v889 = vpop.f32.mrf.mxu0
      %v890 = vadd.f32 0.0, %v889
      %v891 = vpop.f32.mrf.mxu0
      %v892 = vpop.f32.mrf.mxu0
      %v893 = vadd.f32 0.0, %v892
      %v894 = vpop.f32.mrf.mxu0
      %895 = vmatprep.mubr.bf16.mxu0 %v664
      %896 = vmatmul.mubr.bf16.gmra.mxu0 %v663
      %v897 = vpop.f32.mrf.mxu0
      %v898 = vadd.f32 0.0, %v897
      %v899 = vpop.f32.mrf.mxu0
      %v900 = vpop.f32.mrf.mxu0
      %v901 = vadd.f32 0.0, %v900
      %v902 = vpop.f32.mrf.mxu0
      %903 = vdwg.mxu0
      %v904 = vld [vmem:[%s3] sm:$0x1]
      %v906 = vlaneseq
      %v907 = vshrl.u32 %v906, 7
      %v908 = vsub.s32 0, %v907
      %v909 = vrot.slane %v904, %v908
      %v911 = vmul.f32 %v818, %v909
      %v912 = vmul.f32 %v821, %v909
      %v913 = vmul.f32 %v826, %v909
      %v914 = vmul.f32 %v829, %v909
      %v915 = vmul.f32 %v834, %v909
      %v916 = vmul.f32 %v837, %v909
      %v917 = vmul.f32 %v842, %v909
      %v918 = vmul.f32 %v845, %v909
      %v919 = vmul.f32 %v850, %v909
      %v920 = vmul.f32 %v853, %v909
      %v921 = vmul.f32 %v858, %v909
      %v922 = vmul.f32 %v861, %v909
      %v923 = vmul.f32 %v866, %v909
      %v924 = vmul.f32 %v869, %v909
      %v925 = vmul.f32 %v874, %v909
      %v926 = vmul.f32 %v877, %v909
      %v927 = vmul.f32 %v882, %v909
      %v928 = vmul.f32 %v885, %v909
      %v929 = vmul.f32 %v890, %v909
      %v930 = vmul.f32 %v893, %v909
      %v931 = vmul.f32 %v898, %v909
      %v932 = vmul.f32 %v901, %v909
      %v933 = vld [vmem:[%s4] sm:$0x1]
      %v935 = vlaneseq
      %v936 = vshrl.u32 %v935, 7
      %v937 = vsub.s32 0, %v936
      %v938 = vrot.slane %v933, %v937
      %v940 = vadd.f32 %v911, %v938
      %v941 = vadd.f32 %v912, %v938
      %v942 = vadd.f32 %v913, %v938
      %v943 = vadd.f32 %v914, %v938
      %v944 = vadd.f32 %v915, %v938
      %v945 = vadd.f32 %v916, %v938
      %v946 = vadd.f32 %v917, %v938
      %v947 = vadd.f32 %v918, %v938
      %v948 = vadd.f32 %v919, %v938
      %v949 = vadd.f32 %v920, %v938
      %v950 = vadd.f32 %v921, %v938
      %v951 = vadd.f32 %v922, %v938
      %v952 = vadd.f32 %v923, %v938
      %v953 = vadd.f32 %v924, %v938
      %v954 = vadd.f32 %v925, %v938
      %v955 = vadd.f32 %v926, %v938
      %v956 = vadd.f32 %v927, %v938
      %v957 = vadd.f32 %v928, %v938
      %v958 = vadd.f32 %v929, %v938
      %v959 = vadd.f32 %v930, %v938
      %v960 = vadd.f32 %v931, %v938
      %v961 = vadd.f32 %v932, %v938
      %v962 = vmax.f32 %v940, 0.0
      %v963 = vmax.f32 %v941, 0.0
      %v964 = vmax.f32 %v942, 0.0
      %v965 = vmax.f32 %v943, 0.0
      %v966 = vmax.f32 %v944, 0.0
      %v967 = vmax.f32 %v945, 0.0
      %v968 = vmax.f32 %v946, 0.0
      %v969 = vmax.f32 %v947, 0.0
      %v970 = vmax.f32 %v948, 0.0
      %v971 = vmax.f32 %v949, 0.0
      %v972 = vmax.f32 %v950, 0.0
      %v973 = vmax.f32 %v951, 0.0
      %v974 = vmax.f32 %v952, 0.0
      %v975 = vmax.f32 %v953, 0.0
      %v976 = vmax.f32 %v954, 0.0
      %v977 = vmax.f32 %v955, 0.0
      %v978 = vmax.f32 %v956, 0.0
      %v979 = vmax.f32 %v957, 0.0
      %v980 = vmax.f32 %v958, 0.0
      %v981 = vmax.f32 %v959, 0.0
      %v982 = vmax.f32 %v960, 0.0
      %v983 = vmax.f32 %v961, 0.0
      %v984 = vpack.c.bf16 %v963, %v962
      %v985 = vpack.c.bf16 %v965, %v964
      %v986 = vpack.c.bf16 %v967, %v966
      %v987 = vpack.c.bf16 %v969, %v968
      %v988 = vpack.c.bf16 %v971, %v970
      %v989 = vpack.c.bf16 %v973, %v972
      %v990 = vpack.c.bf16 %v975, %v974
      %v991 = vpack.c.bf16 %v977, %v976
      %v992 = vpack.c.bf16 %v979, %v978
      %v993 = vpack.c.bf16 %v981, %v980
      %v994 = vpack.c.bf16 %v983, %v982
      %v995 = vld [vmem:[%s1] sm:$0xf]
      %v996 = vld [vmem:[%s1 + $0x4] sm:$0xf]
      %v997 = vld [vmem:[%s1 + $0x8] sm:$0xf]
      %v998 = vld [vmem:[%s1 + $0xc] sm:$0xf]
      %v999 = vld [vmem:[%s1 + $0x10] sm:$0xf]
      %v1000 = vld [vmem:[%s1 + $0x14] sm:$0xf]
      %v1001 = vld [vmem:[%s1 + $0x18] sm:$0xf]
      %v1002 = vld [vmem:[%s1 + $0x1c] sm:$0xf]
      %v1003 = vld [vmem:[%s1 + $0x20] sm:$0xf]
      %v1004 = vld [vmem:[%s1 + $0x24] sm:$0xf]
      %v1005 = vld [vmem:[%s1 + $0x28] sm:$0xf]
      %v1006 = vld [vmem:[%s1 + $0x2c] sm:$0xf]
      %v1007 = vld [vmem:[%s1 + $0x30] sm:$0xf]
      %v1008 = vld [vmem:[%s1 + $0x34] sm:$0xf]
      %v1009 = vld [vmem:[%s1 + $0x38] sm:$0xf]
      %v1010 = vld [vmem:[%s1 + $0x3c] sm:$0xf]
      %v1011 = vld [vmem:[%s1 + $0x40] sm:$0xf]
      %v1012 = vld [vmem:[%s1 + $0x44] sm:$0xf]
      %v1013 = vld [vmem:[%s1 + $0x48] sm:$0xf]
      %v1014 = vld [vmem:[%s1 + $0x4c] sm:$0xf]
      %v1015 = vld [vmem:[%s1 + $0x50] sm:$0xf]
      %v1016 = vld [vmem:[%s1 + $0x54] sm:$0xf]
      %v1039 = vunpack.c.l.b16 %v995
      %v1040 = vunpack.c.l.b16 %v996
      %v1041 = vunpack.c.l.b16 %v997
      %v1042 = vunpack.c.l.b16 %v998
      %v1043 = vunpack.c.l.b16 %v999
      %v1044 = vunpack.c.l.b16 %v1000
      %v1045 = vunpack.c.l.b16 %v1001
      %v1046 = vunpack.c.l.b16 %v1002
      %v1047 = vunpack.c.l.b16 %v1003
      %v1048 = vunpack.c.l.b16 %v1004
      %v1049 = vunpack.c.l.b16 %v1005
      %v1050 = vunpack.c.l.b16 %v1006
      %v1051 = vunpack.c.l.b16 %v1007
      %v1052 = vunpack.c.l.b16 %v1008
      %v1053 = vunpack.c.l.b16 %v1009
      %v1054 = vunpack.c.l.b16 %v1010
      %v1055 = vunpack.c.l.b16 %v1011
      %v1056 = vunpack.c.l.b16 %v1012
      %v1057 = vunpack.c.l.b16 %v1013
      %v1058 = vunpack.c.l.b16 %v1014
      %v1059 = vunpack.c.l.b16 %v1015
      %v1060 = vunpack.c.l.b16 %v1016
      %v1061 = vpack.c.b16 %v1040, %v1039
      %v1062 = vpack.c.b16 %v1042, %v1041
      %v1063 = vpack.c.b16 %v1044, %v1043
      %v1064 = vpack.c.b16 %v1046, %v1045
      %v1065 = vpack.c.b16 %v1048, %v1047
      %v1066 = vpack.c.b16 %v1050, %v1049
      %v1067 = vpack.c.b16 %v1052, %v1051
      %v1068 = vpack.c.b16 %v1054, %v1053
      %v1069 = vpack.c.b16 %v1056, %v1055
      %v1070 = vpack.c.b16 %v1058, %v1057
      %v1071 = vpack.c.b16 %v1060, %v1059
      %v1083 = vmul.bf16 %v984, %v1061
      %v1084 = vmul.bf16 %v985, %v1062
      %v1085 = vmul.bf16 %v986, %v1063
      %v1086 = vmul.bf16 %v987, %v1064
      %v1087 = vmul.bf16 %v988, %v1065
      %v1088 = vmul.bf16 %v989, %v1066
      %v1089 = vmul.bf16 %v990, %v1067
      %v1090 = vmul.bf16 %v991, %v1068
      %v1091 = vmul.bf16 %v992, %v1069
      %v1092 = vmul.bf16 %v993, %v1070
      %v1093 = vmul.bf16 %v994, %v1071
      %v1105 = vunpack.c.l.b16 %v1083
      %v1106 = vunpack.c.h.b16 %v1083
      %v1107 = vunpack.c.l.b16 %v1084
      %v1108 = vunpack.c.h.b16 %v1084
      %v1109 = vunpack.c.l.b16 %v1085
      %v1110 = vunpack.c.h.b16 %v1085
      %v1111 = vunpack.c.l.b16 %v1086
      %v1112 = vunpack.c.h.b16 %v1086
      %v1113 = vunpack.c.l.b16 %v1087
      %v1114 = vunpack.c.h.b16 %v1087
      %v1115 = vunpack.c.l.b16 %v1088
      %v1116 = vunpack.c.h.b16 %v1088
      %v1117 = vunpack.c.l.b16 %v1089
      %v1118 = vunpack.c.h.b16 %v1089
      %v1119 = vunpack.c.l.b16 %v1090
      %v1120 = vunpack.c.h.b16 %v1090
      %v1121 = vunpack.c.l.b16 %v1091
      %v1122 = vunpack.c.h.b16 %v1091
      %v1123 = vunpack.c.l.b16 %v1092
      %v1124 = vunpack.c.h.b16 %v1092
      %v1125 = vunpack.c.l.b16 %v1093
      %v1126 = vunpack.c.h.b16 %v1093
      %v1127 = vpack.c.b16 %v1105, %v1105
      %v1128 = vpack.c.b16 %v1106, %v1106
      %v1129 = vpack.c.b16 %v1107, %v1107
      %v1130 = vpack.c.b16 %v1108, %v1108
      %v1131 = vpack.c.b16 %v1109, %v1109
      %v1132 = vpack.c.b16 %v1110, %v1110
      %v1133 = vpack.c.b16 %v1111, %v1111
      %v1134 = vpack.c.b16 %v1112, %v1112
      %v1135 = vpack.c.b16 %v1113, %v1113
      %v1136 = vpack.c.b16 %v1114, %v1114
      %v1137 = vpack.c.b16 %v1115, %v1115
      %v1138 = vpack.c.b16 %v1116, %v1116
      %v1139 = vpack.c.b16 %v1117, %v1117
      %v1140 = vpack.c.b16 %v1118, %v1118
      %v1141 = vpack.c.b16 %v1119, %v1119
      %v1142 = vpack.c.b16 %v1120, %v1120
      %v1143 = vpack.c.b16 %v1121, %v1121
      %v1144 = vpack.c.b16 %v1122, %v1122
      %v1145 = vpack.c.b16 %v1123, %v1123
      %v1146 = vpack.c.b16 %v1124, %v1124
      %v1147 = vpack.c.b16 %v1125, %v1125
      %v1148 = vpack.c.b16 %v1126, %v1126
      %vm1171 = vcmask 519168
      %1172 = vst.msk [vmem:[#allocation2] sm:$0xf] %vm1171, %v1127
      %1173 = vst.msk [vmem:[#allocation2 + $0x4] sm:$0xf] %vm1171, %v1128
      %1174 = vst.msk [vmem:[#allocation2 + $0x8] sm:$0xf] %vm1171, %v1129
      %1175 = vst.msk [vmem:[#allocation2 + $0xc] sm:$0xf] %vm1171, %v1130
      %1176 = vst.msk [vmem:[#allocation2 + $0x10] sm:$0xf] %vm1171, %v1131
      %1177 = vst.msk [vmem:[#allocation2 + $0x14] sm:$0xf] %vm1171, %v1132
      %1178 = vst.msk [vmem:[#allocation2 + $0x18] sm:$0xf] %vm1171, %v1133
      %1179 = vst.msk [vmem:[#allocation2 + $0x1c] sm:$0xf] %vm1171, %v1134
      %1180 = vst.msk [vmem:[#allocation2 + $0x20] sm:$0xf] %vm1171, %v1135
      %1181 = vst.msk [vmem:[#allocation2 + $0x24] sm:$0xf] %vm1171, %v1136
      %1182 = vst.msk [vmem:[#allocation2 + $0x28] sm:$0xf] %vm1171, %v1137
      %1183 = vst.msk [vmem:[#allocation2 + $0x2c] sm:$0xf] %vm1171, %v1138
      %1184 = vst.msk [vmem:[#allocation2 + $0x30] sm:$0xf] %vm1171, %v1139
      %1185 = vst.msk [vmem:[#allocation2 + $0x34] sm:$0xf] %vm1171, %v1140
      %1186 = vst.msk [vmem:[#allocation2 + $0x38] sm:$0xf] %vm1171, %v1141
      %1187 = vst.msk [vmem:[#allocation2 + $0x3c] sm:$0xf] %vm1171, %v1142
      %1188 = vst.msk [vmem:[#allocation2 + $0x40] sm:$0xf] %vm1171, %v1143
      %1189 = vst.msk [vmem:[#allocation2 + $0x44] sm:$0xf] %vm1171, %v1144
      %1190 = vst.msk [vmem:[#allocation2 + $0x48] sm:$0xf] %vm1171, %v1145
      %1191 = vst.msk [vmem:[#allocation2 + $0x4c] sm:$0xf] %vm1171, %v1146
      %1192 = vst.msk [vmem:[#allocation2 + $0x50] sm:$0xf] %vm1171, %v1147
      %1193 = vst.msk [vmem:[#allocation2 + $0x54] sm:$0xf] %vm1171, %v1148
      %v1194 = vld [vmem:[%s516 + $0xb0] sm:$0xff]
      %v1195 = vld [vmem:[%s516 + $0xb8] sm:$0xff]
      %v1196 = vld [vmem:[%s516 + $0xc0] sm:$0xff]
      %v1197 = vld [vmem:[%s516 + $0xc8] sm:$0xff]
      %v1198 = vld [vmem:[%s516 + $0xd0] sm:$0xff]
      %v1199 = vld [vmem:[%s516 + $0xd8] sm:$0xff]
      %v1200 = vld [vmem:[%s516 + $0xe0] sm:$0xff]
      %v1201 = vld [vmem:[%s516 + $0xe8] sm:$0xff]
      %v1202 = vld [vmem:[%s516 + $0xf0] sm:$0xff]
      %v1203 = vld [vmem:[%s516 + $0xf8] sm:$0xff]
      %v1204 = vld [vmem:[%s516 + $0x100] sm:$0xff]
      %v1205 = vld [vmem:[%s516 + $0x108] sm:$0xff]
      %v1206 = vld [vmem:[%s516 + $0x110] sm:$0xff]
      %v1207 = vld [vmem:[%s516 + $0x118] sm:$0xff]
      %v1208 = vld [vmem:[%s516 + $0x120] sm:$0xff]
      %v1209 = vld [vmem:[%s516 + $0x128] sm:$0xff]
      %v1210 = vld [vmem:[%s516 + $0x130] sm:$0xff]
      %v1211 = vld [vmem:[%s516 + $0x138] sm:$0xff]
      %v1212 = vld [vmem:[%s516 + $0x140] sm:$0xff]
      %v1213 = vld [vmem:[%s516 + $0x148] sm:$0xff]
      %v1214 = vld [vmem:[%s516 + $0x150] sm:$0xff]
      %v1215 = vld [vmem:[%s516 + $0x158] sm:$0xff]
      %v1216 = vld [vmem:[%s2] sm:$0xf]
      %v1217 = vld [vmem:[%s2 + $0x4] sm:$0xf]
      %v1218 = vld [vmem:[%s2 + $0x8] sm:$0xf]
      %v1219 = vld [vmem:[%s2 + $0xc] sm:$0xf]
      %v1220 = vld [vmem:[%s2 + $0x10] sm:$0xf]
      %v1221 = vld [vmem:[%s2 + $0x14] sm:$0xf]
      %v1222 = vld [vmem:[%s2 + $0x18] sm:$0xf]
      %v1223 = vld [vmem:[%s2 + $0x1c] sm:$0xf]
      %v1224 = vld [vmem:[%s2 + $0x20] sm:$0xf]
      %v1225 = vld [vmem:[%s2 + $0x24] sm:$0xf]
      %v1226 = vld [vmem:[%s2 + $0x28] sm:$0xf]
      %v1227 = vld [vmem:[%s2 + $0x2c] sm:$0xf]
      %v1228 = vld [vmem:[%s2 + $0x30] sm:$0xf]
      %v1229 = vld [vmem:[%s2 + $0x34] sm:$0xf]
      %v1230 = vld [vmem:[%s2 + $0x38] sm:$0xf]
      %v1231 = vld [vmem:[%s2 + $0x3c] sm:$0xf]
      %v1232 = vld [vmem:[%s2 + $0x40] sm:$0xf]
      %v1233 = vld [vmem:[%s2 + $0x44] sm:$0xf]
      %v1234 = vld [vmem:[%s2 + $0x48] sm:$0xf]
      %v1235 = vld [vmem:[%s2 + $0x4c] sm:$0xf]
      %v1236 = vld [vmem:[%s2 + $0x50] sm:$0xf]
      %v1237 = vld [vmem:[%s2 + $0x54] sm:$0xf]
      %v1238 = vld [vmem:[%s2 + $0x58] sm:$0xf]
      %v1239 = vld [vmem:[%s2 + $0x5c] sm:$0xf]
      %v1240 = vld [vmem:[%s2 + $0x60] sm:$0xf]
      %v1241 = vld [vmem:[%s2 + $0x64] sm:$0xf]
      %v1242 = vld [vmem:[%s2 + $0x68] sm:$0xf]
      %v1243 = vld [vmem:[%s2 + $0x6c] sm:$0xf]
      %v1244 = vld [vmem:[%s2 + $0x70] sm:$0xf]
      %v1245 = vld [vmem:[%s2 + $0x74] sm:$0xf]
      %v1246 = vld [vmem:[%s2 + $0x78] sm:$0xf]
      %v1247 = vld [vmem:[%s2 + $0x7c] sm:$0xf]
      %v1270 = vunpack.c.l.b16 %v1194
      %v1271 = vunpack.c.h.b16 %v1194
      %v1272 = vunpack.c.l.b16 %v1195
      %v1273 = vunpack.c.h.b16 %v1195
      %v1274 = vunpack.c.l.b16 %v1196
      %v1275 = vunpack.c.h.b16 %v1196
      %v1276 = vunpack.c.l.b16 %v1197
      %v1277 = vunpack.c.h.b16 %v1197
      %v1278 = vunpack.c.l.b16 %v1198
      %v1279 = vunpack.c.h.b16 %v1198
      %v1280 = vunpack.c.l.b16 %v1199
      %v1281 = vunpack.c.h.b16 %v1199
      %v1282 = vunpack.c.l.b16 %v1200
      %v1283 = vunpack.c.h.b16 %v1200
      %v1284 = vunpack.c.l.b16 %v1201
      %v1285 = vunpack.c.h.b16 %v1201
      %v1286 = vunpack.c.l.b16 %v1202
      %v1287 = vunpack.c.h.b16 %v1202
      %v1288 = vunpack.c.l.b16 %v1203
      %v1289 = vunpack.c.h.b16 %v1203
      %v1290 = vunpack.c.l.b16 %v1204
      %v1291 = vunpack.c.h.b16 %v1204
      %v1292 = vunpack.c.l.b16 %v1205
      %v1293 = vunpack.c.h.b16 %v1205
      %v1294 = vunpack.c.l.b16 %v1206
      %v1295 = vunpack.c.h.b16 %v1206
      %v1296 = vunpack.c.l.b16 %v1207
      %v1297 = vunpack.c.h.b16 %v1207
      %v1298 = vunpack.c.l.b16 %v1208
      %v1299 = vunpack.c.h.b16 %v1208
      %v1300 = vunpack.c.l.b16 %v1209
      %v1301 = vunpack.c.h.b16 %v1209
      %v1302 = vunpack.c.l.b16 %v1210
      %v1303 = vunpack.c.h.b16 %v1210
      %v1304 = vunpack.c.l.b16 %v1211
      %v1305 = vunpack.c.h.b16 %v1211
      %v1306 = vunpack.c.l.b16 %v1212
      %v1307 = vunpack.c.h.b16 %v1212
      %v1308 = vunpack.c.l.b16 %v1213
      %v1309 = vunpack.c.h.b16 %v1213
      %v1310 = vunpack.c.l.b16 %v1214
      %v1311 = vunpack.c.h.b16 %v1214
      %v1312 = vunpack.c.l.b16 %v1215
      %v1313 = vunpack.c.h.b16 %v1215
      %v1314 = vpack.c.b16 %v1272, %v1270
      %v1315 = vpack.c.b16 %v1273, %v1271
      %v1316 = vpack.c.b16 %v1276, %v1274
      %v1317 = vpack.c.b16 %v1277, %v1275
      %v1318 = vpack.c.b16 %v1280, %v1278
      %v1319 = vpack.c.b16 %v1281, %v1279
      %v1320 = vpack.c.b16 %v1284, %v1282
      %v1321 = vpack.c.b16 %v1285, %v1283
      %v1322 = vpack.c.b16 %v1288, %v1286
      %v1323 = vpack.c.b16 %v1289, %v1287
      %v1324 = vpack.c.b16 %v1292, %v1290
      %v1325 = vpack.c.b16 %v1293, %v1291
      %v1326 = vpack.c.b16 %v1296, %v1294
      %v1327 = vpack.c.b16 %v1297, %v1295
      %v1328 = vpack.c.b16 %v1300, %v1298
      %v1329 = vpack.c.b16 %v1301, %v1299
      %v1330 = vpack.c.b16 %v1304, %v1302
      %v1331 = vpack.c.b16 %v1305, %v1303
      %v1332 = vpack.c.b16 %v1308, %v1306
      %v1333 = vpack.c.b16 %v1309, %v1307
      %v1334 = vpack.c.b16 %v1312, %v1310
      %v1335 = vpack.c.b16 %v1313, %v1311
      %v1390 = vunpack.c.l.b16 %v1216
      %v1391 = vunpack.c.l.b16 %v1217
      %v1392 = vunpack.c.l.b16 %v1218
      %v1393 = vunpack.c.l.b16 %v1219
      %v1394 = vunpack.c.l.b16 %v1220
      %v1395 = vunpack.c.l.b16 %v1221
      %v1396 = vunpack.c.l.b16 %v1222
      %v1397 = vunpack.c.l.b16 %v1223
      %v1398 = vunpack.c.l.b16 %v1224
      %v1399 = vunpack.c.l.b16 %v1225
      %v1400 = vunpack.c.l.b16 %v1226
      %v1401 = vunpack.c.l.b16 %v1227
      %v1402 = vunpack.c.l.b16 %v1228
      %v1403 = vunpack.c.l.b16 %v1229
      %v1404 = vunpack.c.l.b16 %v1230
      %v1405 = vunpack.c.l.b16 %v1231
      %v1406 = vunpack.c.l.b16 %v1232
      %v1407 = vunpack.c.l.b16 %v1233
      %v1408 = vunpack.c.l.b16 %v1234
      %v1409 = vunpack.c.l.b16 %v1235
      %v1410 = vunpack.c.l.b16 %v1236
      %v1411 = vunpack.c.l.b16 %v1237
      %v1412 = vunpack.c.l.b16 %v1238
      %v1413 = vunpack.c.l.b16 %v1239
      %v1414 = vunpack.c.l.b16 %v1240
      %v1415 = vunpack.c.l.b16 %v1241
      %v1416 = vunpack.c.l.b16 %v1242
      %v1417 = vunpack.c.l.b16 %v1243
      %v1418 = vunpack.c.l.b16 %v1244
      %v1419 = vunpack.c.l.b16 %v1245
      %v1420 = vunpack.c.l.b16 %v1246
      %v1421 = vunpack.c.l.b16 %v1247
      %v1422 = vpack.c.b16 %v1391, %v1390
      %v1423 = vpack.c.b16 %v1393, %v1392
      %v1424 = vpack.c.b16 %v1395, %v1394
      %v1425 = vpack.c.b16 %v1397, %v1396
      %v1426 = vpack.c.b16 %v1399, %v1398
      %v1427 = vpack.c.b16 %v1401, %v1400
      %v1428 = vpack.c.b16 %v1403, %v1402
      %v1429 = vpack.c.b16 %v1405, %v1404
      %v1430 = vpack.c.b16 %v1407, %v1406
      %v1431 = vpack.c.b16 %v1409, %v1408
      %v1432 = vpack.c.b16 %v1411, %v1410
      %v1433 = vpack.c.b16 %v1413, %v1412
      %v1434 = vpack.c.b16 %v1415, %v1414
      %v1435 = vpack.c.b16 %v1417, %v1416
      %v1436 = vpack.c.b16 %v1419, %v1418
      %v1437 = vpack.c.b16 %v1421, %v1420
      %1454 = vmatprep.subr.bf16.mxu0 0
      %1455 = vmatpush1.bf16.msra.mxu0 %v1429
      %1456 = vmatprep.subr.bf16.mxu0 0
      %1457 = vmatpush1.bf16.msra.mxu0 %v1428
      %1458 = vmatprep.subr.bf16.mxu0 0
      %1459 = vmatpush1.bf16.msra.mxu0 %v1427
      %1460 = vmatprep.subr.bf16.mxu0 0
      %1461 = vmatpush1.bf16.msra.mxu0 %v1426
      %1462 = vmatprep.subr.bf16.mxu0 0
      %1463 = vmatpush1.bf16.msra.mxu0 %v1425
      %1464 = vmatprep.subr.bf16.mxu0 0
      %1465 = vmatpush1.bf16.msra.mxu0 %v1424
      %1466 = vmatprep.subr.bf16.mxu0 0
      %1467 = vmatpush1.bf16.msra.mxu0 %v1423
      %1468 = vmatprep.subr.bf16.mxu0 0
      %1469 = vmatpush1.bf16.msra.mxu0 %v1422
      %1470 = vmatprep.subr.bf16.mxu0 0
      %1471 = vmatpush2.bf16.msra.mxu0 %v1437
      %1472 = vmatprep.subr.bf16.mxu0 0
      %1473 = vmatpush2.bf16.msra.mxu0 %v1436
      %1474 = vmatprep.subr.bf16.mxu0 0
      %1475 = vmatpush2.bf16.msra.mxu0 %v1435
      %1476 = vmatprep.subr.bf16.mxu0 0
      %1477 = vmatpush2.bf16.msra.mxu0 %v1434
      %1478 = vmatprep.subr.bf16.mxu0 0
      %1479 = vmatpush2.bf16.msra.mxu0 %v1433
      %1480 = vmatprep.subr.bf16.mxu0 0
      %1481 = vmatpush2.bf16.msra.mxu0 %v1432
      %1482 = vmatprep.subr.bf16.mxu0 0
      %1483 = vmatpush2.bf16.msra.mxu0 %v1431
      %1484 = vmatprep.subr.bf16.mxu0 0
      %1485 = vmatpush2.bf16.msra.mxu0 %v1430
      %1486 = vmatprep.mubr.bf16.mxu0 %v1315
      %1487 = vmatmul.mubr.bf16.gmra.mxu0 %v1314
      %v1488 = vpop.f32.mrf.mxu0
      %v1489 = vadd.f32 0.0, %v1488
      %v1490 = vpop.f32.mrf.mxu0
      %v1491 = vpop.f32.mrf.mxu0
      %v1492 = vadd.f32 0.0, %v1491
      %v1493 = vpop.f32.mrf.mxu0
      %1494 = vmatprep.mubr.bf16.mxu0 %v1317
      %1495 = vmatmul.mubr.bf16.gmra.mxu0 %v1316
      %v1496 = vpop.f32.mrf.mxu0
      %v1497 = vadd.f32 0.0, %v1496
      %v1498 = vpop.f32.mrf.mxu0
      %v1499 = vpop.f32.mrf.mxu0
      %v1500 = vadd.f32 0.0, %v1499
      %v1501 = vpop.f32.mrf.mxu0
      %1502 = vmatprep.mubr.bf16.mxu0 %v1319
      %1503 = vmatmul.mubr.bf16.gmra.mxu0 %v1318
      %v1504 = vpop.f32.mrf.mxu0
      %v1505 = vadd.f32 0.0, %v1504
      %v1506 = vpop.f32.mrf.mxu0
      %v1507 = vpop.f32.mrf.mxu0
      %v1508 = vadd.f32 0.0, %v1507
      %v1509 = vpop.f32.mrf.mxu0
      %1510 = vmatprep.mubr.bf16.mxu0 %v1321
      %1511 = vmatmul.mubr.bf16.gmra.mxu0 %v1320
      %v1512 = vpop.f32.mrf.mxu0
      %v1513 = vadd.f32 0.0, %v1512
      %v1514 = vpop.f32.mrf.mxu0
      %v1515 = vpop.f32.mrf.mxu0
      %v1516 = vadd.f32 0.0, %v1515
      %v1517 = vpop.f32.mrf.mxu0
      %1518 = vmatprep.mubr.bf16.mxu0 %v1323
      %1519 = vmatmul.mubr.bf16.gmra.mxu0 %v1322
      %v1520 = vpop.f32.mrf.mxu0
      %v1521 = vadd.f32 0.0, %v1520
      %v1522 = vpop.f32.mrf.mxu0
      %v1523 = vpop.f32.mrf.mxu0
      %v1524 = vadd.f32 0.0, %v1523
      %v1525 = vpop.f32.mrf.mxu0
      %1526 = vmatprep.mubr.bf16.mxu0 %v1325
      %1527 = vmatmul.mubr.bf16.gmra.mxu0 %v1324
      %v1528 = vpop.f32.mrf.mxu0
      %v1529 = vadd.f32 0.0, %v1528
      %v1530 = vpop.f32.mrf.mxu0
      %v1531 = vpop.f32.mrf.mxu0
      %v1532 = vadd.f32 0.0, %v1531
      %v1533 = vpop.f32.mrf.mxu0
      %1534 = vmatprep.mubr.bf16.mxu0 %v1327
      %1535 = vmatmul.mubr.bf16.gmra.mxu0 %v1326
      %v1536 = vpop.f32.mrf.mxu0
      %v1537 = vadd.f32 0.0, %v1536
      %v1538 = vpop.f32.mrf.mxu0
      %v1539 = vpop.f32.mrf.mxu0
      %v1540 = vadd.f32 0.0, %v1539
      %v1541 = vpop.f32.mrf.mxu0
      %1542 = vmatprep.mubr.bf16.mxu0 %v1329
      %1543 = vmatmul.mubr.bf16.gmra.mxu0 %v1328
      %v1544 = vpop.f32.mrf.mxu0
      %v1545 = vadd.f32 0.0, %v1544
      %v1546 = vpop.f32.mrf.mxu0
      %v1547 = vpop.f32.mrf.mxu0
      %v1548 = vadd.f32 0.0, %v1547
      %v1549 = vpop.f32.mrf.mxu0
      %1550 = vmatprep.mubr.bf16.mxu0 %v1331
      %1551 = vmatmul.mubr.bf16.gmra.mxu0 %v1330
      %v1552 = vpop.f32.mrf.mxu0
      %v1553 = vadd.f32 0.0, %v1552
      %v1554 = vpop.f32.mrf.mxu0
      %v1555 = vpop.f32.mrf.mxu0
      %v1556 = vadd.f32 0.0, %v1555
      %v1557 = vpop.f32.mrf.mxu0
      %1558 = vmatprep.mubr.bf16.mxu0 %v1333
      %1559 = vmatmul.mubr.bf16.gmra.mxu0 %v1332
      %v1560 = vpop.f32.mrf.mxu0
      %v1561 = vadd.f32 0.0, %v1560
      %v1562 = vpop.f32.mrf.mxu0
      %v1563 = vpop.f32.mrf.mxu0
      %v1564 = vadd.f32 0.0, %v1563
      %v1565 = vpop.f32.mrf.mxu0
      %1566 = vmatprep.mubr.bf16.mxu0 %v1335
      %1567 = vmatmul.mubr.bf16.gmra.mxu0 %v1334
      %v1568 = vpop.f32.mrf.mxu0
      %v1569 = vadd.f32 0.0, %v1568
      %v1570 = vpop.f32.mrf.mxu0
      %v1571 = vpop.f32.mrf.mxu0
      %v1572 = vadd.f32 0.0, %v1571
      %v1573 = vpop.f32.mrf.mxu0
      %1574 = vdwg.mxu0
      %v1575 = vld [vmem:[%s3] sm:$0x1]
      %v1577 = vlaneseq
      %v1578 = vshrl.u32 %v1577, 7
      %v1579 = vsub.s32 0, %v1578
      %v1580 = vrot.slane %v1575, %v1579
      %v1582 = vmul.f32 %v1489, %v1580
      %v1583 = vmul.f32 %v1492, %v1580
      %v1584 = vmul.f32 %v1497, %v1580
      %v1585 = vmul.f32 %v1500, %v1580
      %v1586 = vmul.f32 %v1505, %v1580
      %v1587 = vmul.f32 %v1508, %v1580
      %v1588 = vmul.f32 %v1513, %v1580
      %v1589 = vmul.f32 %v1516, %v1580
      %v1590 = vmul.f32 %v1521, %v1580
      %v1591 = vmul.f32 %v1524, %v1580
      %v1592 = vmul.f32 %v1529, %v1580
      %v1593 = vmul.f32 %v1532, %v1580
      %v1594 = vmul.f32 %v1537, %v1580
      %v1595 = vmul.f32 %v1540, %v1580
      %v1596 = vmul.f32 %v1545, %v1580
      %v1597 = vmul.f32 %v1548, %v1580
      %v1598 = vmul.f32 %v1553, %v1580
      %v1599 = vmul.f32 %v1556, %v1580
      %v1600 = vmul.f32 %v1561, %v1580
      %v1601 = vmul.f32 %v1564, %v1580
      %v1602 = vmul.f32 %v1569, %v1580
      %v1603 = vmul.f32 %v1572, %v1580
      %v1604 = vld [vmem:[%s4] sm:$0x1]
      %v1606 = vlaneseq
      %v1607 = vshrl.u32 %v1606, 7
      %v1608 = vsub.s32 0, %v1607
      %v1609 = vrot.slane %v1604, %v1608
      %v1611 = vadd.f32 %v1582, %v1609
      %v1612 = vadd.f32 %v1583, %v1609
      %v1613 = vadd.f32 %v1584, %v1609
      %v1614 = vadd.f32 %v1585, %v1609
      %v1615 = vadd.f32 %v1586, %v1609
      %v1616 = vadd.f32 %v1587, %v1609
      %v1617 = vadd.f32 %v1588, %v1609
      %v1618 = vadd.f32 %v1589, %v1609
      %v1619 = vadd.f32 %v1590, %v1609
      %v1620 = vadd.f32 %v1591, %v1609
      %v1621 = vadd.f32 %v1592, %v1609
      %v1622 = vadd.f32 %v1593, %v1609
      %v1623 = vadd.f32 %v1594, %v1609
      %v1624 = vadd.f32 %v1595, %v1609
      %v1625 = vadd.f32 %v1596, %v1609
      %v1626 = vadd.f32 %v1597, %v1609
      %v1627 = vadd.f32 %v1598, %v1609
      %v1628 = vadd.f32 %v1599, %v1609
      %v1629 = vadd.f32 %v1600, %v1609
      %v1630 = vadd.f32 %v1601, %v1609
      %v1631 = vadd.f32 %v1602, %v1609
      %v1632 = vadd.f32 %v1603, %v1609
      %v1633 = vmax.f32 %v1611, 0.0
      %v1634 = vmax.f32 %v1612, 0.0
      %v1635 = vmax.f32 %v1613, 0.0
      %v1636 = vmax.f32 %v1614, 0.0
      %v1637 = vmax.f32 %v1615, 0.0
      %v1638 = vmax.f32 %v1616, 0.0
      %v1639 = vmax.f32 %v1617, 0.0
      %v1640 = vmax.f32 %v1618, 0.0
      %v1641 = vmax.f32 %v1619, 0.0
      %v1642 = vmax.f32 %v1620, 0.0
      %v1643 = vmax.f32 %v1621, 0.0
      %v1644 = vmax.f32 %v1622, 0.0
      %v1645 = vmax.f32 %v1623, 0.0
      %v1646 = vmax.f32 %v1624, 0.0
      %v1647 = vmax.f32 %v1625, 0.0
      %v1648 = vmax.f32 %v1626, 0.0
      %v1649 = vmax.f32 %v1627, 0.0
      %v1650 = vmax.f32 %v1628, 0.0
      %v1651 = vmax.f32 %v1629, 0.0
      %v1652 = vmax.f32 %v1630, 0.0
      %v1653 = vmax.f32 %v1631, 0.0
      %v1654 = vmax.f32 %v1632, 0.0
      %v1655 = vpack.c.bf16 %v1634, %v1633
      %v1656 = vpack.c.bf16 %v1636, %v1635
      %v1657 = vpack.c.bf16 %v1638, %v1637
      %v1658 = vpack.c.bf16 %v1640, %v1639
      %v1659 = vpack.c.bf16 %v1642, %v1641
      %v1660 = vpack.c.bf16 %v1644, %v1643
      %v1661 = vpack.c.bf16 %v1646, %v1645
      %v1662 = vpack.c.bf16 %v1648, %v1647
      %v1663 = vpack.c.bf16 %v1650, %v1649
      %v1664 = vpack.c.bf16 %v1652, %v1651
      %v1665 = vpack.c.bf16 %v1654, %v1653
      %v1666 = vld [vmem:[%s1 + $0x58] sm:$0xf]
      %v1667 = vld [vmem:[%s1 + $0x5c] sm:$0xf]
      %v1668 = vld [vmem:[%s1 + $0x60] sm:$0xf]
      %v1669 = vld [vmem:[%s1 + $0x64] sm:$0xf]
      %v1670 = vld [vmem:[%s1 + $0x68] sm:$0xf]
      %v1671 = vld [vmem:[%s1 + $0x6c] sm:$0xf]
      %v1672 = vld [vmem:[%s1 + $0x70] sm:$0xf]
      %v1673 = vld [vmem:[%s1 + $0x74] sm:$0xf]
      %v1674 = vld [vmem:[%s1 + $0x78] sm:$0xf]
      %v1675 = vld [vmem:[%s1 + $0x7c] sm:$0xf]
      %v1676 = vld [vmem:[%s1 + $0x80] sm:$0xf]
      %v1677 = vld [vmem:[%s1 + $0x84] sm:$0xf]
      %v1678 = vld [vmem:[%s1 + $0x88] sm:$0xf]
      %v1679 = vld [vmem:[%s1 + $0x8c] sm:$0xf]
      %v1680 = vld [vmem:[%s1 + $0x90] sm:$0xf]
      %v1681 = vld [vmem:[%s1 + $0x94] sm:$0xf]
      %v1682 = vld [vmem:[%s1 + $0x98] sm:$0xf]
      %v1683 = vld [vmem:[%s1 + $0x9c] sm:$0xf]
      %v1684 = vld [vmem:[%s1 + $0xa0] sm:$0xf]
      %v1685 = vld [vmem:[%s1 + $0xa4] sm:$0xf]
      %v1686 = vld [vmem:[%s1 + $0xa8] sm:$0xf]
      %v1687 = vld [vmem:[%s1 + $0xac] sm:$0xf]
      %v1710 = vunpack.c.l.b16 %v1666
      %v1711 = vunpack.c.l.b16 %v1667
      %v1712 = vunpack.c.l.b16 %v1668
      %v1713 = vunpack.c.l.b16 %v1669
      %v1714 = vunpack.c.l.b16 %v1670
      %v1715 = vunpack.c.l.b16 %v1671
      %v1716 = vunpack.c.l.b16 %v1672
      %v1717 = vunpack.c.l.b16 %v1673
      %v1718 = vunpack.c.l.b16 %v1674
      %v1719 = vunpack.c.l.b16 %v1675
      %v1720 = vunpack.c.l.b16 %v1676
      %v1721 = vunpack.c.l.b16 %v1677
      %v1722 = vunpack.c.l.b16 %v1678
      %v1723 = vunpack.c.l.b16 %v1679
      %v1724 = vunpack.c.l.b16 %v1680
      %v1725 = vunpack.c.l.b16 %v1681
      %v1726 = vunpack.c.l.b16 %v1682
      %v1727 = vunpack.c.l.b16 %v1683
      %v1728 = vunpack.c.l.b16 %v1684
      %v1729 = vunpack.c.l.b16 %v1685
      %v1730 = vunpack.c.l.b16 %v1686
      %v1731 = vunpack.c.l.b16 %v1687
      %v1732 = vpack.c.b16 %v1711, %v1710
      %v1733 = vpack.c.b16 %v1713, %v1712
      %v1734 = vpack.c.b16 %v1715, %v1714
      %v1735 = vpack.c.b16 %v1717, %v1716
      %v1736 = vpack.c.b16 %v1719, %v1718
      %v1737 = vpack.c.b16 %v1721, %v1720
      %v1738 = vpack.c.b16 %v1723, %v1722
      %v1739 = vpack.c.b16 %v1725, %v1724
      %v1740 = vpack.c.b16 %v1727, %v1726
      %v1741 = vpack.c.b16 %v1729, %v1728
      %v1742 = vpack.c.b16 %v1731, %v1730
      %v1754 = vmul.bf16 %v1655, %v1732
      %v1755 = vmul.bf16 %v1656, %v1733
      %v1756 = vmul.bf16 %v1657, %v1734
      %v1757 = vmul.bf16 %v1658, %v1735
      %v1758 = vmul.bf16 %v1659, %v1736
      %v1759 = vmul.bf16 %v1660, %v1737
      %v1760 = vmul.bf16 %v1661, %v1738
      %v1761 = vmul.bf16 %v1662, %v1739
      %v1762 = vmul.bf16 %v1663, %v1740
      %v1763 = vmul.bf16 %v1664, %v1741
      %v1764 = vmul.bf16 %v1665, %v1742
      %v1776 = vunpack.c.l.b16 %v1754
      %v1777 = vunpack.c.h.b16 %v1754
      %v1778 = vunpack.c.l.b16 %v1755
      %v1779 = vunpack.c.h.b16 %v1755
      %v1780 = vunpack.c.l.b16 %v1756
      %v1781 = vunpack.c.h.b16 %v1756
      %v1782 = vunpack.c.l.b16 %v1757
      %v1783 = vunpack.c.h.b16 %v1757
      %v1784 = vunpack.c.l.b16 %v1758
      %v1785 = vunpack.c.h.b16 %v1758
      %v1786 = vunpack.c.l.b16 %v1759
      %v1787 = vunpack.c.h.b16 %v1759
      %v1788 = vunpack.c.l.b16 %v1760
      %v1789 = vunpack.c.h.b16 %v1760
      %v1790 = vunpack.c.l.b16 %v1761
      %v1791 = vunpack.c.h.b16 %v1761
      %v1792 = vunpack.c.l.b16 %v1762
      %v1793 = vunpack.c.h.b16 %v1762
      %v1794 = vunpack.c.l.b16 %v1763
      %v1795 = vunpack.c.h.b16 %v1763
      %v1796 = vunpack.c.l.b16 %v1764
      %v1797 = vunpack.c.h.b16 %v1764
      %v1798 = vpack.c.b16 %v1776, %v1776
      %v1799 = vpack.c.b16 %v1777, %v1777
      %v1800 = vpack.c.b16 %v1778, %v1778
      %v1801 = vpack.c.b16 %v1779, %v1779
      %v1802 = vpack.c.b16 %v1780, %v1780
      %v1803 = vpack.c.b16 %v1781, %v1781
      %v1804 = vpack.c.b16 %v1782, %v1782
      %v1805 = vpack.c.b16 %v1783, %v1783
      %v1806 = vpack.c.b16 %v1784, %v1784
      %v1807 = vpack.c.b16 %v1785, %v1785
      %v1808 = vpack.c.b16 %v1786, %v1786
      %v1809 = vpack.c.b16 %v1787, %v1787
      %v1810 = vpack.c.b16 %v1788, %v1788
      %v1811 = vpack.c.b16 %v1789, %v1789
      %v1812 = vpack.c.b16 %v1790, %v1790
      %v1813 = vpack.c.b16 %v1791, %v1791
      %v1814 = vpack.c.b16 %v1792, %v1792
      %v1815 = vpack.c.b16 %v1793, %v1793
      %v1816 = vpack.c.b16 %v1794, %v1794
      %v1817 = vpack.c.b16 %v1795, %v1795
      %v1818 = vpack.c.b16 %v1796, %v1796
      %v1819 = vpack.c.b16 %v1797, %v1797
      %1842 = vst.msk [vmem:[#allocation2 + $0x58] sm:$0xf] %vm1171, %v1798
      %1843 = vst.msk [vmem:[#allocation2 + $0x5c] sm:$0xf] %vm1171, %v1799
      %1844 = vst.msk [vmem:[#allocation2 + $0x60] sm:$0xf] %vm1171, %v1800
      %1845 = vst.msk [vmem:[#allocation2 + $0x64] sm:$0xf] %vm1171, %v1801
      %1846 = vst.msk [vmem:[#allocation2 + $0x68] sm:$0xf] %vm1171, %v1802
      %1847 = vst.msk [vmem:[#allocation2 + $0x6c] sm:$0xf] %vm1171, %v1803
      %1848 = vst.msk [vmem:[#allocation2 + $0x70] sm:$0xf] %vm1171, %v1804
      %1849 = vst.msk [vmem:[#allocation2 + $0x74] sm:$0xf] %vm1171, %v1805
      %1850 = vst.msk [vmem:[#allocation2 + $0x78] sm:$0xf] %vm1171, %v1806
      %1851 = vst.msk [vmem:[#allocation2 + $0x7c] sm:$0xf] %vm1171, %v1807
      %1852 = vst.msk [vmem:[#allocation2 + $0x80] sm:$0xf] %vm1171, %v1808
      %1853 = vst.msk [vmem:[#allocation2 + $0x84] sm:$0xf] %vm1171, %v1809
      %1854 = vst.msk [vmem:[#allocation2 + $0x88] sm:$0xf] %vm1171, %v1810
      %1855 = vst.msk [vmem:[#allocation2 + $0x8c] sm:$0xf] %vm1171, %v1811
      %1856 = vst.msk [vmem:[#allocation2 + $0x90] sm:$0xf] %vm1171, %v1812
      %1857 = vst.msk [vmem:[#allocation2 + $0x94] sm:$0xf] %vm1171, %v1813
      %1858 = vst.msk [vmem:[#allocation2 + $0x98] sm:$0xf] %vm1171, %v1814
      %1859 = vst.msk [vmem:[#allocation2 + $0x9c] sm:$0xf] %vm1171, %v1815
      %1860 = vst.msk [vmem:[#allocation2 + $0xa0] sm:$0xf] %vm1171, %v1816
      %1861 = vst.msk [vmem:[#allocation2 + $0xa4] sm:$0xf] %vm1171, %v1817
      %1862 = vst.msk [vmem:[#allocation2 + $0xa8] sm:$0xf] %vm1171, %v1818
      %1863 = vst.msk [vmem:[#allocation2 + $0xac] sm:$0xf] %vm1171, %v1819
      %v1864 = vld [vmem:[#allocation2] sm:$0xf]
      %v1865 = vld [vmem:[#allocation2 + $0x4] sm:$0xf]
      %v1866 = vld [vmem:[#allocation2 + $0x8] sm:$0xf]
      %v1867 = vld [vmem:[#allocation2 + $0xc] sm:$0xf]
      %v1868 = vld [vmem:[#allocation2 + $0x10] sm:$0xf]
      %v1869 = vld [vmem:[#allocation2 + $0x14] sm:$0xf]
      %v1870 = vld [vmem:[#allocation2 + $0x18] sm:$0xf]
      %v1871 = vld [vmem:[#allocation2 + $0x1c] sm:$0xf]
      %v1872 = vld [vmem:[#allocation2 + $0x20] sm:$0xf]
      %v1873 = vld [vmem:[#allocation2 + $0x24] sm:$0xf]
      %v1874 = vld [vmem:[#allocation2 + $0x28] sm:$0xf]
      %v1875 = vld [vmem:[#allocation2 + $0x2c] sm:$0xf]
      %v1876 = vld [vmem:[#allocation2 + $0x30] sm:$0xf]
      %v1877 = vld [vmem:[#allocation2 + $0x34] sm:$0xf]
      %v1878 = vld [vmem:[#allocation2 + $0x38] sm:$0xf]
      %v1879 = vld [vmem:[#allocation2 + $0x3c] sm:$0xf]
      %v1880 = vld [vmem:[#allocation2 + $0x40] sm:$0xf]
      %v1881 = vld [vmem:[#allocation2 + $0x44] sm:$0xf]
      %v1882 = vld [vmem:[%s5] sm:$0xf]
      %v1883 = vld [vmem:[%s5 + $0x4] sm:$0xf]
      %v1884 = vld [vmem:[%s5 + $0x8] sm:$0xf]
      %v1885 = vld [vmem:[%s5 + $0xc] sm:$0xf]
      %v1886 = vld [vmem:[%s5 + $0x10] sm:$0xf]
      %v1887 = vld [vmem:[%s5 + $0x14] sm:$0xf]
      %v1888 = vld [vmem:[%s5 + $0x18] sm:$0xf]
      %v1889 = vld [vmem:[%s5 + $0x1c] sm:$0xf]
      %v1890 = vld [vmem:[#allocation2 + $0x48] sm:$0x1]
      %s1891 = scalar_lea.vmem %s5, 32
      %v1892 = vld [vmem:[%s1891] sm:$0xf]
      %v1893 = vld [vmem:[%s1891 + $0x4] sm:$0xf]
      %v1894 = vld [vmem:[%s1891 + $0x8] sm:$0xf]
      %v1895 = vld [vmem:[%s1891 + $0xc] sm:$0xf]
      %v1896 = vld [vmem:[%s1891 + $0x10] sm:$0xf]
      %v1897 = vld [vmem:[%s1891 + $0x14] sm:$0xf]
      %v1898 = vld [vmem:[%s1891 + $0x18] sm:$0xf]
      %v1899 = vld [vmem:[%s1891 + $0x1c] sm:$0xf]
      %v1919 = vunpack.c.l.b16 %v1864
      %v1920 = vunpack.c.l.b16 %v1865
      %v1921 = vunpack.c.l.b16 %v1866
      %v1922 = vunpack.c.l.b16 %v1867
      %v1923 = vunpack.c.l.b16 %v1868
      %v1924 = vunpack.c.l.b16 %v1869
      %v1925 = vunpack.c.l.b16 %v1870
      %v1926 = vunpack.c.l.b16 %v1871
      %v1927 = vunpack.c.l.b16 %v1872
      %v1928 = vunpack.c.l.b16 %v1873
      %v1929 = vunpack.c.l.b16 %v1874
      %v1930 = vunpack.c.l.b16 %v1875
      %v1931 = vunpack.c.l.b16 %v1876
      %v1932 = vunpack.c.l.b16 %v1877
      %v1933 = vunpack.c.l.b16 %v1878
      %v1934 = vunpack.c.l.b16 %v1879
      %v1935 = vunpack.c.l.b16 %v1880
      %v1936 = vunpack.c.l.b16 %v1881
      %v1937 = vunpack.c.l.b16 %v1890
      %v1938 = vpack.c.b16 %v1920, %v1919
      %v1939 = vpack.c.b16 %v1922, %v1921
      %v1940 = vpack.c.b16 %v1924, %v1923
      %v1941 = vpack.c.b16 %v1926, %v1925
      %v1942 = vpack.c.b16 %v1928, %v1927
      %v1943 = vpack.c.b16 %v1930, %v1929
      %v1944 = vpack.c.b16 %v1932, %v1931
      %v1945 = vpack.c.b16 %v1934, %v1933
      %v1946 = vpack.c.b16 %v1936, %v1935
      %v1947 = vpack.c.b16 %v1937, %v1937
      %vm1948 = vsmask.f32 7424
      %v1950 = vshrl.u32 %v1938, 16
      %v1952 = vshll.u32 %v1938, 16
      %v1954 = vrot.slane %v1952, 1
      %v1955 = vor.u32 %v1950, %v1954
      %v1957 = vshll.u32 %v1939, 16
      %v1959 = vrot.slane %v1957, 1
      %v1960 = vsel %vm1948, %v1955, %v1959
      %v1961 = vshrl.u32 %v1939, 16
      %v1963 = vor.u32 %v1961, %v1959
      %v1965 = vshll.u32 %v1940, 16
      %v1967 = vrot.slane %v1965, 1
      %v1968 = vsel %vm1948, %v1963, %v1967
      %v1969 = vshrl.u32 %v1940, 16
      %v1971 = vor.u32 %v1969, %v1967
      %v1973 = vshll.u32 %v1941, 16
      %v1975 = vrot.slane %v1973, 1
      %v1976 = vsel %vm1948, %v1971, %v1975
      %v1977 = vshrl.u32 %v1941, 16
      %v1979 = vor.u32 %v1977, %v1975
      %v1981 = vshll.u32 %v1942, 16
      %v1983 = vrot.slane %v1981, 1
      %v1984 = vsel %vm1948, %v1979, %v1983
      %v1985 = vshrl.u32 %v1942, 16
      %v1987 = vor.u32 %v1985, %v1983
      %v1989 = vshll.u32 %v1943, 16
      %v1991 = vrot.slane %v1989, 1
      %v1992 = vsel %vm1948, %v1987, %v1991
      %v1993 = vshrl.u32 %v1943, 16
      %v1995 = vor.u32 %v1993, %v1991
      %v1997 = vshll.u32 %v1944, 16
      %v1999 = vrot.slane %v1997, 1
      %v2000 = vsel %vm1948, %v1995, %v1999
      %v2001 = vshrl.u32 %v1944, 16
      %v2003 = vor.u32 %v2001, %v1999
      %v2005 = vshll.u32 %v1945, 16
      %v2007 = vrot.slane %v2005, 1
      %v2008 = vsel %vm1948, %v2003, %v2007
      %v2009 = vshrl.u32 %v1945, 16
      %v2011 = vor.u32 %v2009, %v2007
      %v2013 = vshll.u32 %v1946, 16
      %v2015 = vrot.slane %v2013, 1
      %v2016 = vsel %vm1948, %v2011, %v2015
      %v2017 = vshrl.u32 %v1946, 16
      %v2019 = vor.u32 %v2017, %v2015
      %v2021 = vshll.u32 %v1947, 16
      %v2023 = vrot.slane %v2021, 1
      %v2024 = vsel %vm1948, %v2019, %v2023
      %v2033 = vunpack.c.l.b16 %v1892
      %v2034 = vunpack.c.l.b16 %v1893
      %v2035 = vunpack.c.l.b16 %v1894
      %v2036 = vunpack.c.l.b16 %v1895
      %v2037 = vunpack.c.l.b16 %v1896
      %v2038 = vunpack.c.l.b16 %v1897
      %v2039 = vunpack.c.l.b16 %v1898
      %v2040 = vunpack.c.l.b16 %v1899
      %v2041 = vpack.c.b16 %v2034, %v2033
      %v2042 = vpack.c.b16 %v2036, %v2035
      %v2043 = vpack.c.b16 %v2038, %v2037
      %v2044 = vpack.c.b16 %v2040, %v2039
      %vm2049 = vcmask 523264
      %v2051 = vsel %vm2049, %v1960, 0
      %v2054 = vsel %vm2049, %v1968, 0
      %v2057 = vsel %vm2049, %v1976, 0
      %v2060 = vsel %vm2049, %v1984, 0
      %v2063 = vsel %vm2049, %v1992, 0
      %v2066 = vsel %vm2049, %v2000, 0
      %v2069 = vsel %vm2049, %v2008, 0
      %v2072 = vsel %vm2049, %v2016, 0
      %v2075 = vsel %vm2049, %v2024, 0
      %2077 = vmatprep.subr.bf16.mxu0 0
      %2078 = vmatpush1.bf16.msra.mxu0 0
      %2079 = vmatprep.subr.bf16.mxu0 0
      %2080 = vmatpush1.bf16.msra.mxu0 0
      %2081 = vmatprep.subr.bf16.mxu0 0
      %2082 = vmatpush1.bf16.msra.mxu0 0
      %2083 = vmatprep.subr.bf16.mxu0 0
      %2084 = vmatpush1.bf16.msra.mxu0 0
      %2085 = vmatprep.subr.bf16.mxu0 0
      %2086 = vmatpush1.bf16.msra.mxu0 %v2044
      %2087 = vmatprep.subr.bf16.mxu0 0
      %2088 = vmatpush1.bf16.msra.mxu0 %v2043
      %2089 = vmatprep.subr.bf16.mxu0 0
      %2090 = vmatpush1.bf16.msra.mxu0 %v2042
      %2091 = vmatprep.subr.bf16.mxu0 0
      %2092 = vmatpush1.bf16.msra.mxu0 %v2041
      %2093 = vmatprep.subr.bf16.mxu0 0
      %2094 = vmatpush2.bf16.msra.mxu0 0
      %2095 = vmatprep.subr.bf16.mxu0 0
      %2096 = vmatpush2.bf16.msra.mxu0 0
      %2097 = vmatprep.subr.bf16.mxu0 0
      %2098 = vmatpush2.bf16.msra.mxu0 0
      %2099 = vmatprep.subr.bf16.mxu0 0
      %2100 = vmatpush2.bf16.msra.mxu0 0
      %2101 = vmatprep.subr.bf16.mxu0 0
      %2102 = vmatpush2.bf16.msra.mxu0 0
      %2103 = vmatprep.subr.bf16.mxu0 0
      %2104 = vmatpush2.bf16.msra.mxu0 0
      %2105 = vmatprep.subr.bf16.mxu0 0
      %2106 = vmatpush2.bf16.msra.mxu0 0
      %2107 = vmatprep.subr.bf16.mxu0 0
      %2108 = vmatpush2.bf16.msra.mxu0 0
      %2109 = vmatprep.mubr.bf16.mxu0 0
      %2110 = vmatmul.mubr.bf16.gmra.mxu0 %v2051
      %v2111 = vpop.f32.mrf.mxu0
      %v2112 = vadd.f32 0.0, %v2111
      %v2113 = vpop.f32.mrf.mxu0
      %v2114 = vpop.f32.mrf.mxu0
      %v2115 = vadd.f32 0.0, %v2114
      %v2116 = vpop.f32.mrf.mxu0
      %2117 = vmatprep.mubr.bf16.mxu0 0
      %2118 = vmatmul.mubr.bf16.gmra.mxu0 %v2054
      %v2119 = vpop.f32.mrf.mxu0
      %v2120 = vadd.f32 0.0, %v2119
      %v2121 = vpop.f32.mrf.mxu0
      %v2122 = vpop.f32.mrf.mxu0
      %v2123 = vadd.f32 0.0, %v2122
      %v2124 = vpop.f32.mrf.mxu0
      %2125 = vmatprep.mubr.bf16.mxu0 0
      %2126 = vmatmul.mubr.bf16.gmra.mxu0 %v2057
      %v2127 = vpop.f32.mrf.mxu0
      %v2128 = vadd.f32 0.0, %v2127
      %v2129 = vpop.f32.mrf.mxu0
      %v2130 = vpop.f32.mrf.mxu0
      %v2131 = vadd.f32 0.0, %v2130
      %v2132 = vpop.f32.mrf.mxu0
      %2133 = vmatprep.mubr.bf16.mxu0 0
      %2134 = vmatmul.mubr.bf16.gmra.mxu0 %v2060
      %v2135 = vpop.f32.mrf.mxu0
      %v2136 = vadd.f32 0.0, %v2135
      %v2137 = vpop.f32.mrf.mxu0
      %v2138 = vpop.f32.mrf.mxu0
      %v2139 = vadd.f32 0.0, %v2138
      %v2140 = vpop.f32.mrf.mxu0
      %2141 = vmatprep.mubr.bf16.mxu0 0
      %2142 = vmatmul.mubr.bf16.gmra.mxu0 %v2063
      %v2143 = vpop.f32.mrf.mxu0
      %v2144 = vadd.f32 0.0, %v2143
      %v2145 = vpop.f32.mrf.mxu0
      %v2146 = vpop.f32.mrf.mxu0
      %v2147 = vadd.f32 0.0, %v2146
      %v2148 = vpop.f32.mrf.mxu0
      %2149 = vmatprep.mubr.bf16.mxu0 0
      %2150 = vmatmul.mubr.bf16.gmra.mxu0 %v2066
      %v2151 = vpop.f32.mrf.mxu0
      %v2152 = vadd.f32 0.0, %v2151
      %v2153 = vpop.f32.mrf.mxu0
      %v2154 = vpop.f32.mrf.mxu0
      %v2155 = vadd.f32 0.0, %v2154
      %v2156 = vpop.f32.mrf.mxu0
      %2157 = vmatprep.mubr.bf16.mxu0 0
      %2158 = vmatmul.mubr.bf16.gmra.mxu0 %v2069
      %v2159 = vpop.f32.mrf.mxu0
      %v2160 = vadd.f32 0.0, %v2159
      %v2161 = vpop.f32.mrf.mxu0
      %v2162 = vpop.f32.mrf.mxu0
      %v2163 = vadd.f32 0.0, %v2162
      %v2164 = vpop.f32.mrf.mxu0
      %2165 = vmatprep.mubr.bf16.mxu0 0
      %2166 = vmatmul.mubr.bf16.gmra.mxu0 %v2072
      %v2167 = vpop.f32.mrf.mxu0
      %v2168 = vadd.f32 0.0, %v2167
      %v2169 = vpop.f32.mrf.mxu0
      %v2170 = vpop.f32.mrf.mxu0
      %v2171 = vadd.f32 0.0, %v2170
      %v2172 = vpop.f32.mrf.mxu0
      %2173 = vmatprep.mubr.bf16.mxu0 0
      %2174 = vmatmul.mubr.bf16.gmra.mxu0 %v2075
      %v2175 = vpop.f32.mrf.mxu0
      %v2176 = vadd.f32 0.0, %v2175
      %v2177 = vpop.f32.mrf.mxu0
      %v2178 = vpop.f32.mrf.mxu0
      %v2179 = vadd.f32 0.0, %v2178
      %v2180 = vpop.f32.mrf.mxu0
      %2181 = vdwg.mxu0
      %v2190 = vunpack.c.l.b16 %v1882
      %v2191 = vunpack.c.l.b16 %v1883
      %v2192 = vunpack.c.l.b16 %v1884
      %v2193 = vunpack.c.l.b16 %v1885
      %v2194 = vunpack.c.l.b16 %v1886
      %v2195 = vunpack.c.l.b16 %v1887
      %v2196 = vunpack.c.l.b16 %v1888
      %v2197 = vunpack.c.l.b16 %v1889
      %v2198 = vpack.c.b16 %v2191, %v2190
      %v2199 = vpack.c.b16 %v2193, %v2192
      %v2200 = vpack.c.b16 %v2195, %v2194
      %v2201 = vpack.c.b16 %v2197, %v2196
      %v2206 = vsel %vm2049, %v1938, 0
      %v2208 = vsel %vm2049, %v1939, 0
      %v2210 = vsel %vm2049, %v1940, 0
      %v2212 = vsel %vm2049, %v1941, 0
      %v2214 = vsel %vm2049, %v1942, 0
      %v2216 = vsel %vm2049, %v1943, 0
      %v2218 = vsel %vm2049, %v1944, 0
      %v2220 = vsel %vm2049, %v1945, 0
      %v2222 = vsel %vm2049, %v1946, 0
      %2224 = vmatprep.subr.bf16.mxu0 0
      %2225 = vmatpush1.bf16.msra.mxu0 0
      %2226 = vmatprep.subr.bf16.mxu0 0
      %2227 = vmatpush1.bf16.msra.mxu0 0
      %2228 = vmatprep.subr.bf16.mxu0 0
      %2229 = vmatpush1.bf16.msra.mxu0 0
      %2230 = vmatprep.subr.bf16.mxu0 0
      %2231 = vmatpush1.bf16.msra.mxu0 0
      %2232 = vmatprep.subr.bf16.mxu0 0
      %2233 = vmatpush1.bf16.msra.mxu0 %v2201
      %2234 = vmatprep.subr.bf16.mxu0 0
      %2235 = vmatpush1.bf16.msra.mxu0 %v2200
      %2236 = vmatprep.subr.bf16.mxu0 0
      %2237 = vmatpush1.bf16.msra.mxu0 %v2199
      %2238 = vmatprep.subr.bf16.mxu0 0
      %2239 = vmatpush1.bf16.msra.mxu0 %v2198
      %2240 = vmatprep.subr.bf16.mxu0 0
      %2241 = vmatpush2.bf16.msra.mxu0 0
      %2242 = vmatprep.subr.bf16.mxu0 0
      %2243 = vmatpush2.bf16.msra.mxu0 0
      %2244 = vmatprep.subr.bf16.mxu0 0
      %2245 = vmatpush2.bf16.msra.mxu0 0
      %2246 = vmatprep.subr.bf16.mxu0 0
      %2247 = vmatpush2.bf16.msra.mxu0 0
      %2248 = vmatprep.subr.bf16.mxu0 0
      %2249 = vmatpush2.bf16.msra.mxu0 0
      %2250 = vmatprep.subr.bf16.mxu0 0
      %2251 = vmatpush2.bf16.msra.mxu0 0
      %2252 = vmatprep.subr.bf16.mxu0 0
      %2253 = vmatpush2.bf16.msra.mxu0 0
      %2254 = vmatprep.subr.bf16.mxu0 0
      %2255 = vmatpush2.bf16.msra.mxu0 0
      %2256 = vmatprep.mubr.bf16.mxu0 0
      %2257 = vmatmul.mubr.bf16.gmra.mxu0 %v2206
      %v2258 = vpop.f32.mrf.mxu0
      %v2259 = vadd.f32 %v2112, %v2258
      %v2260 = vpop.f32.mrf.mxu0
      %v2261 = vpop.f32.mrf.mxu0
      %v2262 = vadd.f32 %v2115, %v2261
      %v2263 = vpop.f32.mrf.mxu0
      %2264 = vmatprep.mubr.bf16.mxu0 0
      %2265 = vmatmul.mubr.bf16.gmra.mxu0 %v2208
      %v2266 = vpop.f32.mrf.mxu0
      %v2267 = vadd.f32 %v2120, %v2266
      %v2268 = vpop.f32.mrf.mxu0
      %v2269 = vpop.f32.mrf.mxu0
      %v2270 = vadd.f32 %v2123, %v2269
      %v2271 = vpop.f32.mrf.mxu0
      %2272 = vmatprep.mubr.bf16.mxu0 0
      %2273 = vmatmul.mubr.bf16.gmra.mxu0 %v2210
      %v2274 = vpop.f32.mrf.mxu0
      %v2275 = vadd.f32 %v2128, %v2274
      %v2276 = vpop.f32.mrf.mxu0
      %v2277 = vpop.f32.mrf.mxu0
      %v2278 = vadd.f32 %v2131, %v2277
      %v2279 = vpop.f32.mrf.mxu0
      %2280 = vmatprep.mubr.bf16.mxu0 0
      %2281 = vmatmul.mubr.bf16.gmra.mxu0 %v2212
      %v2282 = vpop.f32.mrf.mxu0
      %v2283 = vadd.f32 %v2136, %v2282
      %v2284 = vpop.f32.mrf.mxu0
      %v2285 = vpop.f32.mrf.mxu0
      %v2286 = vadd.f32 %v2139, %v2285
      %v2287 = vpop.f32.mrf.mxu0
      %2288 = vmatprep.mubr.bf16.mxu0 0
      %2289 = vmatmul.mubr.bf16.gmra.mxu0 %v2214
      %v2290 = vpop.f32.mrf.mxu0
      %v2291 = vadd.f32 %v2144, %v2290
      %v2292 = vpop.f32.mrf.mxu0
      %v2293 = vpop.f32.mrf.mxu0
      %v2294 = vadd.f32 %v2147, %v2293
      %v2295 = vpop.f32.mrf.mxu0
      %2296 = vmatprep.mubr.bf16.mxu0 0
      %2297 = vmatmul.mubr.bf16.gmra.mxu0 %v2216
      %v2298 = vpop.f32.mrf.mxu0
      %v2299 = vadd.f32 %v2152, %v2298
      %v2300 = vpop.f32.mrf.mxu0
      %v2301 = vpop.f32.mrf.mxu0
      %v2302 = vadd.f32 %v2155, %v2301
      %v2303 = vpop.f32.mrf.mxu0
      %2304 = vmatprep.mubr.bf16.mxu0 0
      %2305 = vmatmul.mubr.bf16.gmra.mxu0 %v2218
      %v2306 = vpop.f32.mrf.mxu0
      %v2307 = vadd.f32 %v2160, %v2306
      %v2308 = vpop.f32.mrf.mxu0
      %v2309 = vpop.f32.mrf.mxu0
      %v2310 = vadd.f32 %v2163, %v2309
      %v2311 = vpop.f32.mrf.mxu0
      %2312 = vmatprep.mubr.bf16.mxu0 0
      %2313 = vmatmul.mubr.bf16.gmra.mxu0 %v2220
      %v2314 = vpop.f32.mrf.mxu0
      %v2315 = vadd.f32 %v2168, %v2314
      %v2316 = vpop.f32.mrf.mxu0
      %v2317 = vpop.f32.mrf.mxu0
      %v2318 = vadd.f32 %v2171, %v2317
      %v2319 = vpop.f32.mrf.mxu0
      %2320 = vmatprep.mubr.bf16.mxu0 0
      %2321 = vmatmul.mubr.bf16.gmra.mxu0 %v2222
      %v2322 = vpop.f32.mrf.mxu0
      %v2323 = vadd.f32 %v2176, %v2322
      %v2324 = vpop.f32.mrf.mxu0
      %v2325 = vpop.f32.mrf.mxu0
      %v2326 = vadd.f32 %v2179, %v2325
      %v2327 = vpop.f32.mrf.mxu0
      %2328 = vdwg.mxu0
      %v2329 = vld [vmem:[#allocation2] sm:$0xe]
      %s2330 = scalar_lea.vmem %s5, 64
      %v2331 = vld [vmem:[%s2330] sm:$0xf]
      %v2332 = vld [vmem:[%s2330 + $0x4] sm:$0xf]
      %v2333 = vld [vmem:[%s2330 + $0x8] sm:$0xf]
      %v2334 = vld [vmem:[%s2330 + $0xc] sm:$0xf]
      %v2335 = vld [vmem:[%s2330 + $0x10] sm:$0xf]
      %v2336 = vld [vmem:[%s2330 + $0x14] sm:$0xf]
      %v2337 = vld [vmem:[%s2330 + $0x18] sm:$0xf]
      %v2338 = vld [vmem:[%s2330 + $0x1c] sm:$0xf]
      %v2340 = vunpack.c.l.b16 %v2329
      %v2341 = vpack.c.b16 %v1920, %v2340
      %vm2342 = vcmask 1046528
      %v2343 = vrot.slane %v2341, 1
      %v2344 = vrot.slane %v1939, 1
      %v2345 = vsel %vm2342, %v2343, %v2344
      %v2346 = vrot.slane %v1940, 1
      %v2347 = vsel %vm2342, %v2344, %v2346
      %v2348 = vrot.slane %v1941, 1
      %v2349 = vsel %vm2342, %v2346, %v2348
      %v2350 = vrot.slane %v1942, 1
      %v2351 = vsel %vm2342, %v2348, %v2350
      %v2352 = vrot.slane %v1943, 1
      %v2353 = vsel %vm2342, %v2350, %v2352
      %v2354 = vrot.slane %v1944, 1
      %v2355 = vsel %vm2342, %v2352, %v2354
      %v2356 = vrot.slane %v1945, 1
      %v2357 = vsel %vm2342, %v2354, %v2356
      %v2358 = vrot.slane %v1946, 1
      %v2359 = vsel %vm2342, %v2356, %v2358
      %v2360 = vrot.slane %v1947, 1
      %v2361 = vsel %vm2342, %v2358, %v2360
      %v2370 = vunpack.c.l.b16 %v2331
      %v2371 = vunpack.c.l.b16 %v2332
      %v2372 = vunpack.c.l.b16 %v2333
      %v2373 = vunpack.c.l.b16 %v2334
      %v2374 = vunpack.c.l.b16 %v2335
      %v2375 = vunpack.c.l.b16 %v2336
      %v2376 = vunpack.c.l.b16 %v2337
      %v2377 = vunpack.c.l.b16 %v2338
      %v2378 = vpack.c.b16 %v2371, %v2370
      %v2379 = vpack.c.b16 %v2373, %v2372
      %v2380 = vpack.c.b16 %v2375, %v2374
      %v2381 = vpack.c.b16 %v2377, %v2376
      %v2387 = vsel %vm2049, %v2345, 0
      %v2390 = vsel %vm2049, %v2347, 0
      %v2393 = vsel %vm2049, %v2349, 0
      %v2396 = vsel %vm2049, %v2351, 0
      %v2399 = vsel %vm2049, %v2353, 0
      %v2402 = vsel %vm2049, %v2355, 0
      %v2405 = vsel %vm2049, %v2357, 0
      %v2408 = vsel %vm2049, %v2359, 0
      %v2411 = vsel %vm2049, %v2361, 0
      %2413 = vmatprep.subr.bf16.mxu0 0
      %2414 = vmatpush1.bf16.msra.mxu0 0
      %2415 = vmatprep.subr.bf16.mxu0 0
      %2416 = vmatpush1.bf16.msra.mxu0 0
      %2417 = vmatprep.subr.bf16.mxu0 0
      %2418 = vmatpush1.bf16.msra.mxu0 0
      %2419 = vmatprep.subr.bf16.mxu0 0
      %2420 = vmatpush1.bf16.msra.mxu0 0
      %2421 = vmatprep.subr.bf16.mxu0 0
      %2422 = vmatpush1.bf16.msra.mxu0 %v2381
      %2423 = vmatprep.subr.bf16.mxu0 0
      %2424 = vmatpush1.bf16.msra.mxu0 %v2380
      %2425 = vmatprep.subr.bf16.mxu0 0
      %2426 = vmatpush1.bf16.msra.mxu0 %v2379
      %2427 = vmatprep.subr.bf16.mxu0 0
      %2428 = vmatpush1.bf16.msra.mxu0 %v2378
      %2429 = vmatprep.subr.bf16.mxu0 0
      %2430 = vmatpush2.bf16.msra.mxu0 0
      %2431 = vmatprep.subr.bf16.mxu0 0
      %2432 = vmatpush2.bf16.msra.mxu0 0
      %2433 = vmatprep.subr.bf16.mxu0 0
      %2434 = vmatpush2.bf16.msra.mxu0 0
      %2435 = vmatprep.subr.bf16.mxu0 0
      %2436 = vmatpush2.bf16.msra.mxu0 0
      %2437 = vmatprep.subr.bf16.mxu0 0
      %2438 = vmatpush2.bf16.msra.mxu0 0
      %2439 = vmatprep.subr.bf16.mxu0 0
      %2440 = vmatpush2.bf16.msra.mxu0 0
      %2441 = vmatprep.subr.bf16.mxu0 0
      %2442 = vmatpush2.bf16.msra.mxu0 0
      %2443 = vmatprep.subr.bf16.mxu0 0
      %2444 = vmatpush2.bf16.msra.mxu0 0
      %2445 = vmatprep.mubr.bf16.mxu0 0
      %2446 = vmatmul.mubr.bf16.gmra.mxu0 %v2387
      %v2447 = vpop.f32.mrf.mxu0
      %v2448 = vadd.f32 0.0, %v2447
      %v2449 = vpop.f32.mrf.mxu0
      %v2450 = vpop.f32.mrf.mxu0
      %v2451 = vadd.f32 0.0, %v2450
      %v2452 = vpop.f32.mrf.mxu0
      %2453 = vmatprep.mubr.bf16.mxu0 0
      %2454 = vmatmul.mubr.bf16.gmra.mxu0 %v2390
      %v2455 = vpop.f32.mrf.mxu0
      %v2456 = vadd.f32 0.0, %v2455
      %v2457 = vpop.f32.mrf.mxu0
      %v2458 = vpop.f32.mrf.mxu0
      %v2459 = vadd.f32 0.0, %v2458
      %v2460 = vpop.f32.mrf.mxu0
      %2461 = vmatprep.mubr.bf16.mxu0 0
      %2462 = vmatmul.mubr.bf16.gmra.mxu0 %v2393
      %v2463 = vpop.f32.mrf.mxu0
      %v2464 = vadd.f32 0.0, %v2463
      %v2465 = vpop.f32.mrf.mxu0
      %v2466 = vpop.f32.mrf.mxu0
      %v2467 = vadd.f32 0.0, %v2466
      %v2468 = vpop.f32.mrf.mxu0
      %2469 = vmatprep.mubr.bf16.mxu0 0
      %2470 = vmatmul.mubr.bf16.gmra.mxu0 %v2396
      %v2471 = vpop.f32.mrf.mxu0
      %v2472 = vadd.f32 0.0, %v2471
      %v2473 = vpop.f32.mrf.mxu0
      %v2474 = vpop.f32.mrf.mxu0
      %v2475 = vadd.f32 0.0, %v2474
      %v2476 = vpop.f32.mrf.mxu0
      %2477 = vmatprep.mubr.bf16.mxu0 0
      %2478 = vmatmul.mubr.bf16.gmra.mxu0 %v2399
      %v2479 = vpop.f32.mrf.mxu0
      %v2480 = vadd.f32 0.0, %v2479
      %v2481 = vpop.f32.mrf.mxu0
      %v2482 = vpop.f32.mrf.mxu0
      %v2483 = vadd.f32 0.0, %v2482
      %v2484 = vpop.f32.mrf.mxu0
      %2485 = vmatprep.mubr.bf16.mxu0 0
      %2486 = vmatmul.mubr.bf16.gmra.mxu0 %v2402
      %v2487 = vpop.f32.mrf.mxu0
      %v2488 = vadd.f32 0.0, %v2487
      %v2489 = vpop.f32.mrf.mxu0
      %v2490 = vpop.f32.mrf.mxu0
      %v2491 = vadd.f32 0.0, %v2490
      %v2492 = vpop.f32.mrf.mxu0
      %2493 = vmatprep.mubr.bf16.mxu0 0
      %2494 = vmatmul.mubr.bf16.gmra.mxu0 %v2405
      %v2495 = vpop.f32.mrf.mxu0
      %v2496 = vadd.f32 0.0, %v2495
      %v2497 = vpop.f32.mrf.mxu0
      %v2498 = vpop.f32.mrf.mxu0
      %v2499 = vadd.f32 0.0, %v2498
      %v2500 = vpop.f32.mrf.mxu0
      %2501 = vmatprep.mubr.bf16.mxu0 0
      %2502 = vmatmul.mubr.bf16.gmra.mxu0 %v2408
      %v2503 = vpop.f32.mrf.mxu0
      %v2504 = vadd.f32 0.0, %v2503
      %v2505 = vpop.f32.mrf.mxu0
      %v2506 = vpop.f32.mrf.mxu0
      %v2507 = vadd.f32 0.0, %v2506
      %v2508 = vpop.f32.mrf.mxu0
      %2509 = vmatprep.mubr.bf16.mxu0 0
      %2510 = vmatmul.mubr.bf16.gmra.mxu0 %v2411
      %v2511 = vpop.f32.mrf.mxu0
      %v2512 = vadd.f32 0.0, %v2511
      %v2513 = vpop.f32.mrf.mxu0
      %v2514 = vpop.f32.mrf.mxu0
      %v2515 = vadd.f32 0.0, %v2514
      %v2516 = vpop.f32.mrf.mxu0
      %2517 = vdwg.mxu0
      %v2518 = vadd.f32 %v2259, %v2448
      %v2519 = vadd.f32 %v2262, %v2451
      %v2520 = vadd.f32 %v2267, %v2456
      %v2521 = vadd.f32 %v2270, %v2459
      %v2522 = vadd.f32 %v2275, %v2464
      %v2523 = vadd.f32 %v2278, %v2467
      %v2524 = vadd.f32 %v2283, %v2472
      %v2525 = vadd.f32 %v2286, %v2475
      %v2526 = vadd.f32 %v2291, %v2480
      %v2527 = vadd.f32 %v2294, %v2483
      %v2528 = vadd.f32 %v2299, %v2488
      %v2529 = vadd.f32 %v2302, %v2491
      %v2530 = vadd.f32 %v2307, %v2496
      %v2531 = vadd.f32 %v2310, %v2499
      %v2532 = vadd.f32 %v2315, %v2504
      %v2533 = vadd.f32 %v2318, %v2507
      %v2534 = vadd.f32 %v2323, %v2512
      %v2535 = vadd.f32 %v2326, %v2515
      %v2536 = vld [vmem:[#allocation2 + $0x8] sm:$0xe]
      %v2537 = vld [vmem:[#allocation2 + $0xc] sm:$0xf]
      %v2538 = vld [vmem:[#allocation2 + $0x10] sm:$0xf]
      %v2539 = vld [vmem:[#allocation2 + $0x14] sm:$0xf]
      %v2540 = vld [vmem:[#allocation2 + $0x18] sm:$0xf]
      %v2541 = vld [vmem:[#allocation2 + $0x1c] sm:$0xf]
      %v2542 = vld [vmem:[#allocation2 + $0x20] sm:$0xf]
      %v2543 = vld [vmem:[#allocation2 + $0x24] sm:$0xf]
      %v2544 = vld [vmem:[#allocation2 + $0x28] sm:$0xf]
      %v2545 = vld [vmem:[#allocation2 + $0x2c] sm:$0xf]
      %v2546 = vld [vmem:[#allocation2 + $0x30] sm:$0xf]
      %v2547 = vld [vmem:[#allocation2 + $0x34] sm:$0xf]
      %v2548 = vld [vmem:[#allocation2 + $0x38] sm:$0xf]
      %v2549 = vld [vmem:[#allocation2 + $0x3c] sm:$0xf]
      %v2550 = vld [vmem:[#allocation2 + $0x40] sm:$0xf]
      %v2551 = vld [vmem:[#allocation2 + $0x44] sm:$0xf]
      %v2552 = vld [vmem:[#allocation2 + $0x48] sm:$0xf]
      %v2553 = vld [vmem:[#allocation2 + $0x4c] sm:$0xf]
      %v2554 = vld [vmem:[#allocation2 + $0x50] sm:$0x1]
      %s2555 = scalar_lea.vmem %s5, 96
      %v2556 = vld [vmem:[%s2555] sm:$0xf]
      %v2557 = vld [vmem:[%s2555 + $0x4] sm:$0xf]
      %v2558 = vld [vmem:[%s2555 + $0x8] sm:$0xf]
      %v2559 = vld [vmem:[%s2555 + $0xc] sm:$0xf]
      %v2560 = vld [vmem:[%s2555 + $0x10] sm:$0xf]
      %v2561 = vld [vmem:[%s2555 + $0x14] sm:$0xf]
      %v2562 = vld [vmem:[%s2555 + $0x18] sm:$0xf]
      %v2563 = vld [vmem:[%s2555 + $0x1c] sm:$0xf]
      %v2583 = vunpack.c.l.b16 %v2536
      %v2584 = vunpack.c.l.b16 %v2537
      %v2585 = vunpack.c.l.b16 %v2538
      %v2586 = vunpack.c.l.b16 %v2539
      %v2587 = vunpack.c.l.b16 %v2540
      %v2588 = vunpack.c.l.b16 %v2541
      %v2589 = vunpack.c.l.b16 %v2542
      %v2590 = vunpack.c.l.b16 %v2543
      %v2591 = vunpack.c.l.b16 %v2544
      %v2592 = vunpack.c.l.b16 %v2545
      %v2593 = vunpack.c.l.b16 %v2546
      %v2594 = vunpack.c.l.b16 %v2547
      %v2595 = vunpack.c.l.b16 %v2548
      %v2596 = vunpack.c.l.b16 %v2549
      %v2597 = vunpack.c.l.b16 %v2550
      %v2598 = vunpack.c.l.b16 %v2551
      %v2599 = vunpack.c.l.b16 %v2552
      %v2600 = vunpack.c.l.b16 %v2553
      %v2601 = vunpack.c.l.b16 %v2554
      %v2602 = vpack.c.b16 %v2584, %v2583
      %v2603 = vpack.c.b16 %v2586, %v2585
      %v2604 = vpack.c.b16 %v2588, %v2587
      %v2605 = vpack.c.b16 %v2590, %v2589
      %v2606 = vpack.c.b16 %v2592, %v2591
      %v2607 = vpack.c.b16 %v2594, %v2593
      %v2608 = vpack.c.b16 %v2596, %v2595
      %v2609 = vpack.c.b16 %v2598, %v2597
      %v2610 = vpack.c.b16 %v2600, %v2599
      %v2611 = vpack.c.b16 %v2601, %v2601
      %v2612 = vrot.slane %v2602, 1
      %v2613 = vrot.slane %v2603, 1
      %v2614 = vsel %vm2342, %v2612, %v2613
      %v2615 = vrot.slane %v2604, 1
      %v2616 = vsel %vm2342, %v2613, %v2615
      %v2617 = vrot.slane %v2605, 1
      %v2618 = vsel %vm2342, %v2615, %v2617
      %v2619 = vrot.slane %v2606, 1
      %v2620 = vsel %vm2342, %v2617, %v2619
      %v2621 = vrot.slane %v2607, 1
      %v2622 = vsel %vm2342, %v2619, %v2621
      %v2623 = vrot.slane %v2608, 1
      %v2624 = vsel %vm2342, %v2621, %v2623
      %v2625 = vrot.slane %v2609, 1
      %v2626 = vsel %vm2342, %v2623, %v2625
      %v2627 = vrot.slane %v2610, 1
      %v2628 = vsel %vm2342, %v2625, %v2627
      %v2629 = vrot.slane %v2611, 1
      %v2630 = vsel %vm2342, %v2627, %v2629
      %v2639 = vunpack.c.l.b16 %v2556
      %v2640 = vunpack.c.l.b16 %v2557
      %v2641 = vunpack.c.l.b16 %v2558
      %v2642 = vunpack.c.l.b16 %v2559
      %v2643 = vunpack.c.l.b16 %v2560
      %v2644 = vunpack.c.l.b16 %v2561
      %v2645 = vunpack.c.l.b16 %v2562
      %v2646 = vunpack.c.l.b16 %v2563
      %v2647 = vpack.c.b16 %v2640, %v2639
      %v2648 = vpack.c.b16 %v2642, %v2641
      %v2649 = vpack.c.b16 %v2644, %v2643
      %v2650 = vpack.c.b16 %v2646, %v2645
      %v2656 = vsel %vm2049, %v2614, 0
      %v2659 = vsel %vm2049, %v2616, 0
      %v2662 = vsel %vm2049, %v2618, 0
      %v2665 = vsel %vm2049, %v2620, 0
      %v2668 = vsel %vm2049, %v2622, 0
      %v2671 = vsel %vm2049, %v2624, 0
      %v2674 = vsel %vm2049, %v2626, 0
      %v2677 = vsel %vm2049, %v2628, 0
      %v2680 = vsel %vm2049, %v2630, 0
      %2682 = vmatprep.subr.bf16.mxu0 0
      %2683 = vmatpush1.bf16.msra.mxu0 0
      %2684 = vmatprep.subr.bf16.mxu0 0
      %2685 = vmatpush1.bf16.msra.mxu0 0
      %2686 = vmatprep.subr.bf16.mxu0 0
      %2687 = vmatpush1.bf16.msra.mxu0 0
      %2688 = vmatprep.subr.bf16.mxu0 0
      %2689 = vmatpush1.bf16.msra.mxu0 0
      %2690 = vmatprep.subr.bf16.mxu0 0
      %2691 = vmatpush1.bf16.msra.mxu0 %v2650
      %2692 = vmatprep.subr.bf16.mxu0 0
      %2693 = vmatpush1.bf16.msra.mxu0 %v2649
      %2694 = vmatprep.subr.bf16.mxu0 0
      %2695 = vmatpush1.bf16.msra.mxu0 %v2648
      %2696 = vmatprep.subr.bf16.mxu0 0
      %2697 = vmatpush1.bf16.msra.mxu0 %v2647
      %2698 = vmatprep.subr.bf16.mxu0 0
      %2699 = vmatpush2.bf16.msra.mxu0 0
      %2700 = vmatprep.subr.bf16.mxu0 0
      %2701 = vmatpush2.bf16.msra.mxu0 0
      %2702 = vmatprep.subr.bf16.mxu0 0
      %2703 = vmatpush2.bf16.msra.mxu0 0
      %2704 = vmatprep.subr.bf16.mxu0 0
      %2705 = vmatpush2.bf16.msra.mxu0 0
      %2706 = vmatprep.subr.bf16.mxu0 0
      %2707 = vmatpush2.bf16.msra.mxu0 0
      %2708 = vmatprep.subr.bf16.mxu0 0
      %2709 = vmatpush2.bf16.msra.mxu0 0
      %2710 = vmatprep.subr.bf16.mxu0 0
      %2711 = vmatpush2.bf16.msra.mxu0 0
      %2712 = vmatprep.subr.bf16.mxu0 0
      %2713 = vmatpush2.bf16.msra.mxu0 0
      %2714 = vmatprep.mubr.bf16.mxu0 0
      %2715 = vmatmul.mubr.bf16.gmra.mxu0 %v2656
      %v2716 = vpop.f32.mrf.mxu0
      %v2717 = vadd.f32 0.0, %v2716
      %v2718 = vpop.f32.mrf.mxu0
      %v2719 = vpop.f32.mrf.mxu0
      %v2720 = vadd.f32 0.0, %v2719
      %v2721 = vpop.f32.mrf.mxu0
      %2722 = vmatprep.mubr.bf16.mxu0 0
      %2723 = vmatmul.mubr.bf16.gmra.mxu0 %v2659
      %v2724 = vpop.f32.mrf.mxu0
      %v2725 = vadd.f32 0.0, %v2724
      %v2726 = vpop.f32.mrf.mxu0
      %v2727 = vpop.f32.mrf.mxu0
      %v2728 = vadd.f32 0.0, %v2727
      %v2729 = vpop.f32.mrf.mxu0
      %2730 = vmatprep.mubr.bf16.mxu0 0
      %2731 = vmatmul.mubr.bf16.gmra.mxu0 %v2662
      %v2732 = vpop.f32.mrf.mxu0
      %v2733 = vadd.f32 0.0, %v2732
      %v2734 = vpop.f32.mrf.mxu0
      %v2735 = vpop.f32.mrf.mxu0
      %v2736 = vadd.f32 0.0, %v2735
      %v2737 = vpop.f32.mrf.mxu0
      %2738 = vmatprep.mubr.bf16.mxu0 0
      %2739 = vmatmul.mubr.bf16.gmra.mxu0 %v2665
      %v2740 = vpop.f32.mrf.mxu0
      %v2741 = vadd.f32 0.0, %v2740
      %v2742 = vpop.f32.mrf.mxu0
      %v2743 = vpop.f32.mrf.mxu0
      %v2744 = vadd.f32 0.0, %v2743
      %v2745 = vpop.f32.mrf.mxu0
      %2746 = vmatprep.mubr.bf16.mxu0 0
      %2747 = vmatmul.mubr.bf16.gmra.mxu0 %v2668
      %v2748 = vpop.f32.mrf.mxu0
      %v2749 = vadd.f32 0.0, %v2748
      %v2750 = vpop.f32.mrf.mxu0
      %v2751 = vpop.f32.mrf.mxu0
      %v2752 = vadd.f32 0.0, %v2751
      %v2753 = vpop.f32.mrf.mxu0
      %2754 = vmatprep.mubr.bf16.mxu0 0
      %2755 = vmatmul.mubr.bf16.gmra.mxu0 %v2671
      %v2756 = vpop.f32.mrf.mxu0
      %v2757 = vadd.f32 0.0, %v2756
      %v2758 = vpop.f32.mrf.mxu0
      %v2759 = vpop.f32.mrf.mxu0
      %v2760 = vadd.f32 0.0, %v2759
      %v2761 = vpop.f32.mrf.mxu0
      %2762 = vmatprep.mubr.bf16.mxu0 0
      %2763 = vmatmul.mubr.bf16.gmra.mxu0 %v2674
      %v2764 = vpop.f32.mrf.mxu0
      %v2765 = vadd.f32 0.0, %v2764
      %v2766 = vpop.f32.mrf.mxu0
      %v2767 = vpop.f32.mrf.mxu0
      %v2768 = vadd.f32 0.0, %v2767
      %v2769 = vpop.f32.mrf.mxu0
      %2770 = vmatprep.mubr.bf16.mxu0 0
      %2771 = vmatmul.mubr.bf16.gmra.mxu0 %v2677
      %v2772 = vpop.f32.mrf.mxu0
      %v2773 = vadd.f32 0.0, %v2772
      %v2774 = vpop.f32.mrf.mxu0
      %v2775 = vpop.f32.mrf.mxu0
      %v2776 = vadd.f32 0.0, %v2775
      %v2777 = vpop.f32.mrf.mxu0
      %2778 = vmatprep.mubr.bf16.mxu0 0
      %2779 = vmatmul.mubr.bf16.gmra.mxu0 %v2680
      %v2780 = vpop.f32.mrf.mxu0
      %v2781 = vadd.f32 0.0, %v2780
      %v2782 = vpop.f32.mrf.mxu0
      %v2783 = vpop.f32.mrf.mxu0
      %v2784 = vadd.f32 0.0, %v2783
      %v2785 = vpop.f32.mrf.mxu0
      %2786 = vdwg.mxu0
      %v2787 = vadd.f32 %v2518, %v2717
      %v2788 = vadd.f32 %v2519, %v2720
      %v2789 = vadd.f32 %v2520, %v2725
      %v2790 = vadd.f32 %v2521, %v2728
      %v2791 = vadd.f32 %v2522, %v2733
      %v2792 = vadd.f32 %v2523, %v2736
      %v2793 = vadd.f32 %v2524, %v2741
      %v2794 = vadd.f32 %v2525, %v2744
      %v2795 = vadd.f32 %v2526, %v2749
      %v2796 = vadd.f32 %v2527, %v2752
      %v2797 = vadd.f32 %v2528, %v2757
      %v2798 = vadd.f32 %v2529, %v2760
      %v2799 = vadd.f32 %v2530, %v2765
      %v2800 = vadd.f32 %v2531, %v2768
      %v2801 = vadd.f32 %v2532, %v2773
      %v2802 = vadd.f32 %v2533, %v2776
      %v2803 = vadd.f32 %v2534, %v2781
      %v2804 = vadd.f32 %v2535, %v2784
      %v2805 = vld [vmem:[#allocation2 + $0x50] sm:$0x3]
      %s2806 = scalar_lea.vmem %s5, 128
      %v2807 = vld [vmem:[%s2806] sm:$0xf]
      %v2808 = vld [vmem:[%s2806 + $0x4] sm:$0xf]
      %v2809 = vld [vmem:[%s2806 + $0x8] sm:$0xf]
      %v2810 = vld [vmem:[%s2806 + $0xc] sm:$0xf]
      %v2811 = vld [vmem:[%s2806 + $0x10] sm:$0xf]
      %v2812 = vld [vmem:[%s2806 + $0x14] sm:$0xf]
      %v2813 = vld [vmem:[%s2806 + $0x18] sm:$0xf]
      %v2814 = vld [vmem:[%s2806 + $0x1c] sm:$0xf]
      %v2816 = vunpack.c.l.b16 %v2805
      %v2817 = vpack.c.b16 %v2816, %v2816
      %vm2818 = vsmask.f32 6400
      %v2820 = vshrl.u32 %v2602, 16
      %v2822 = vrot.slane %v2820, 1
      %v2823 = vshll.u32 %v2602, 16
      %v2825 = vrot.slane %v2823, 2
      %v2826 = vor.u32 %v2822, %v2825
      %v2828 = vshrl.u32 %v2603, 16
      %v2830 = vrot.slane %v2828, 1
      %v2831 = vshll.u32 %v2603, 16
      %v2833 = vrot.slane %v2831, 2
      %v2834 = vor.u32 %v2830, %v2833
      %v2835 = vsel %vm2818, %v2826, %v2834
      %v2837 = vshrl.u32 %v2604, 16
      %v2839 = vrot.slane %v2837, 1
      %v2840 = vshll.u32 %v2604, 16
      %v2842 = vrot.slane %v2840, 2
      %v2843 = vor.u32 %v2839, %v2842
      %v2844 = vsel %vm2818, %v2834, %v2843
      %v2846 = vshrl.u32 %v2605, 16
      %v2848 = vrot.slane %v2846, 1
      %v2849 = vshll.u32 %v2605, 16
      %v2851 = vrot.slane %v2849, 2
      %v2852 = vor.u32 %v2848, %v2851
      %v2853 = vsel %vm2818, %v2843, %v2852
      %v2855 = vshrl.u32 %v2606, 16
      %v2857 = vrot.slane %v2855, 1
      %v2858 = vshll.u32 %v2606, 16
      %v2860 = vrot.slane %v2858, 2
      %v2861 = vor.u32 %v2857, %v2860
      %v2862 = vsel %vm2818, %v2852, %v2861
      %v2864 = vshrl.u32 %v2607, 16
      %v2866 = vrot.slane %v2864, 1
      %v2867 = vshll.u32 %v2607, 16
      %v2869 = vrot.slane %v2867, 2
      %v2870 = vor.u32 %v2866, %v2869
      %v2871 = vsel %vm2818, %v2861, %v2870
      %v2873 = vshrl.u32 %v2608, 16
      %v2875 = vrot.slane %v2873, 1
      %v2876 = vshll.u32 %v2608, 16
      %v2878 = vrot.slane %v2876, 2
      %v2879 = vor.u32 %v2875, %v2878
      %v2880 = vsel %vm2818, %v2870, %v2879
      %v2882 = vshrl.u32 %v2609, 16
      %v2884 = vrot.slane %v2882, 1
      %v2885 = vshll.u32 %v2609, 16
      %v2887 = vrot.slane %v2885, 2
      %v2888 = vor.u32 %v2884, %v2887
      %v2889 = vsel %vm2818, %v2879, %v2888
      %v2891 = vshrl.u32 %v2610, 16
      %v2893 = vrot.slane %v2891, 1
      %v2894 = vshll.u32 %v2610, 16
      %v2896 = vrot.slane %v2894, 2
      %v2897 = vor.u32 %v2893, %v2896
      %v2898 = vsel %vm2818, %v2888, %v2897
      %v2900 = vshrl.u32 %v2817, 16
      %v2902 = vrot.slane %v2900, 1
      %v2903 = vshll.u32 %v2817, 16
      %v2905 = vrot.slane %v2903, 2
      %v2906 = vor.u32 %v2902, %v2905
      %v2907 = vsel %vm2818, %v2897, %v2906
      %v2916 = vunpack.c.l.b16 %v2807
      %v2917 = vunpack.c.l.b16 %v2808
      %v2918 = vunpack.c.l.b16 %v2809
      %v2919 = vunpack.c.l.b16 %v2810
      %v2920 = vunpack.c.l.b16 %v2811
      %v2921 = vunpack.c.l.b16 %v2812
      %v2922 = vunpack.c.l.b16 %v2813
      %v2923 = vunpack.c.l.b16 %v2814
      %v2924 = vpack.c.b16 %v2917, %v2916
      %v2925 = vpack.c.b16 %v2919, %v2918
      %v2926 = vpack.c.b16 %v2921, %v2920
      %v2927 = vpack.c.b16 %v2923, %v2922
      %v2933 = vsel %vm2049, %v2835, 0
      %v2936 = vsel %vm2049, %v2844, 0
      %v2939 = vsel %vm2049, %v2853, 0
      %v2942 = vsel %vm2049, %v2862, 0
      %v2945 = vsel %vm2049, %v2871, 0
      %v2948 = vsel %vm2049, %v2880, 0
      %v2951 = vsel %vm2049, %v2889, 0
      %v2954 = vsel %vm2049, %v2898, 0
      %v2957 = vsel %vm2049, %v2907, 0
      %2959 = vmatprep.subr.bf16.mxu0 0
      %2960 = vmatpush1.bf16.msra.mxu0 0
      %2961 = vmatprep.subr.bf16.mxu0 0
      %2962 = vmatpush1.bf16.msra.mxu0 0
      %2963 = vmatprep.subr.bf16.mxu0 0
      %2964 = vmatpush1.bf16.msra.mxu0 0
      %2965 = vmatprep.subr.bf16.mxu0 0
      %2966 = vmatpush1.bf16.msra.mxu0 0
      %2967 = vmatprep.subr.bf16.mxu0 0
      %2968 = vmatpush1.bf16.msra.mxu0 %v2927
      %2969 = vmatprep.subr.bf16.mxu0 0
      %2970 = vmatpush1.bf16.msra.mxu0 %v2926
      %2971 = vmatprep.subr.bf16.mxu0 0
      %2972 = vmatpush1.bf16.msra.mxu0 %v2925
      %2973 = vmatprep.subr.bf16.mxu0 0
      %2974 = vmatpush1.bf16.msra.mxu0 %v2924
      %2975 = vmatprep.subr.bf16.mxu0 0
      %2976 = vmatpush2.bf16.msra.mxu0 0
      %2977 = vmatprep.subr.bf16.mxu0 0
      %2978 = vmatpush2.bf16.msra.mxu0 0
      %2979 = vmatprep.subr.bf16.mxu0 0
      %2980 = vmatpush2.bf16.msra.mxu0 0
      %2981 = vmatprep.subr.bf16.mxu0 0
      %2982 = vmatpush2.bf16.msra.mxu0 0
      %2983 = vmatprep.subr.bf16.mxu0 0
      %2984 = vmatpush2.bf16.msra.mxu0 0
      %2985 = vmatprep.subr.bf16.mxu0 0
      %2986 = vmatpush2.bf16.msra.mxu0 0
      %2987 = vmatprep.subr.bf16.mxu0 0
      %2988 = vmatpush2.bf16.msra.mxu0 0
      %2989 = vmatprep.subr.bf16.mxu0 0
      %2990 = vmatpush2.bf16.msra.mxu0 0
      %2991 = vmatprep.mubr.bf16.mxu0 0
      %2992 = vmatmul.mubr.bf16.gmra.mxu0 %v2933
      %v2993 = vpop.f32.mrf.mxu0
      %v2994 = vadd.f32 0.0, %v2993
      %v2995 = vpop.f32.mrf.mxu0
      %v2996 = vpop.f32.mrf.mxu0
      %v2997 = vadd.f32 0.0, %v2996
      %v2998 = vpop.f32.mrf.mxu0
      %2999 = vmatprep.mubr.bf16.mxu0 0
      %3000 = vmatmul.mubr.bf16.gmra.mxu0 %v2936
      %v3001 = vpop.f32.mrf.mxu0
      %v3002 = vadd.f32 0.0, %v3001
      %v3003 = vpop.f32.mrf.mxu0
      %v3004 = vpop.f32.mrf.mxu0
      %v3005 = vadd.f32 0.0, %v3004
      %v3006 = vpop.f32.mrf.mxu0
      %3007 = vmatprep.mubr.bf16.mxu0 0
      %3008 = vmatmul.mubr.bf16.gmra.mxu0 %v2939
      %v3009 = vpop.f32.mrf.mxu0
      %v3010 = vadd.f32 0.0, %v3009
      %v3011 = vpop.f32.mrf.mxu0
      %v3012 = vpop.f32.mrf.mxu0
      %v3013 = vadd.f32 0.0, %v3012
      %v3014 = vpop.f32.mrf.mxu0
      %3015 = vmatprep.mubr.bf16.mxu0 0
      %3016 = vmatmul.mubr.bf16.gmra.mxu0 %v2942
      %v3017 = vpop.f32.mrf.mxu0
      %v3018 = vadd.f32 0.0, %v3017
      %v3019 = vpop.f32.mrf.mxu0
      %v3020 = vpop.f32.mrf.mxu0
      %v3021 = vadd.f32 0.0, %v3020
      %v3022 = vpop.f32.mrf.mxu0
      %3023 = vmatprep.mubr.bf16.mxu0 0
      %3024 = vmatmul.mubr.bf16.gmra.mxu0 %v2945
      %v3025 = vpop.f32.mrf.mxu0
      %v3026 = vadd.f32 0.0, %v3025
      %v3027 = vpop.f32.mrf.mxu0
      %v3028 = vpop.f32.mrf.mxu0
      %v3029 = vadd.f32 0.0, %v3028
      %v3030 = vpop.f32.mrf.mxu0
      %3031 = vmatprep.mubr.bf16.mxu0 0
      %3032 = vmatmul.mubr.bf16.gmra.mxu0 %v2948
      %v3033 = vpop.f32.mrf.mxu0
      %v3034 = vadd.f32 0.0, %v3033
      %v3035 = vpop.f32.mrf.mxu0
      %v3036 = vpop.f32.mrf.mxu0
      %v3037 = vadd.f32 0.0, %v3036
      %v3038 = vpop.f32.mrf.mxu0
      %3039 = vmatprep.mubr.bf16.mxu0 0
      %3040 = vmatmul.mubr.bf16.gmra.mxu0 %v2951
      %v3041 = vpop.f32.mrf.mxu0
      %v3042 = vadd.f32 0.0, %v3041
      %v3043 = vpop.f32.mrf.mxu0
      %v3044 = vpop.f32.mrf.mxu0
      %v3045 = vadd.f32 0.0, %v3044
      %v3046 = vpop.f32.mrf.mxu0
      %3047 = vmatprep.mubr.bf16.mxu0 0
      %3048 = vmatmul.mubr.bf16.gmra.mxu0 %v2954
      %v3049 = vpop.f32.mrf.mxu0
      %v3050 = vadd.f32 0.0, %v3049
      %v3051 = vpop.f32.mrf.mxu0
      %v3052 = vpop.f32.mrf.mxu0
      %v3053 = vadd.f32 0.0, %v3052
      %v3054 = vpop.f32.mrf.mxu0
      %3055 = vmatprep.mubr.bf16.mxu0 0
      %3056 = vmatmul.mubr.bf16.gmra.mxu0 %v2957
      %v3057 = vpop.f32.mrf.mxu0
      %v3058 = vadd.f32 0.0, %v3057
      %v3059 = vpop.f32.mrf.mxu0
      %v3060 = vpop.f32.mrf.mxu0
      %v3061 = vadd.f32 0.0, %v3060
      %v3062 = vpop.f32.mrf.mxu0
      %3063 = vdwg.mxu0
      %v3064 = vadd.f32 %v2787, %v2994
      %v3065 = vadd.f32 %v2788, %v2997
      %v3066 = vadd.f32 %v2789, %v3002
      %v3067 = vadd.f32 %v2790, %v3005
      %v3068 = vadd.f32 %v2791, %v3010
      %v3069 = vadd.f32 %v2792, %v3013
      %v3070 = vadd.f32 %v2793, %v3018
      %v3071 = vadd.f32 %v2794, %v3021
      %v3072 = vadd.f32 %v2795, %v3026
      %v3073 = vadd.f32 %v2796, %v3029
      %v3074 = vadd.f32 %v2797, %v3034
      %v3075 = vadd.f32 %v2798, %v3037
      %v3076 = vadd.f32 %v2799, %v3042
      %v3077 = vadd.f32 %v2800, %v3045
      %v3078 = vadd.f32 %v2801, %v3050
      %v3079 = vadd.f32 %v2802, %v3053
      %v3080 = vadd.f32 %v2803, %v3058
      %v3081 = vadd.f32 %v2804, %v3061
      %v3082 = vld [vmem:[#allocation2 + $0x8] sm:$0xc]
      %s3083 = scalar_lea.vmem %s5, 160
      %v3084 = vld [vmem:[%s3083] sm:$0xf]
      %v3085 = vld [vmem:[%s3083 + $0x4] sm:$0xf]
      %v3086 = vld [vmem:[%s3083 + $0x8] sm:$0xf]
      %v3087 = vld [vmem:[%s3083 + $0xc] sm:$0xf]
      %v3088 = vld [vmem:[%s3083 + $0x10] sm:$0xf]
      %v3089 = vld [vmem:[%s3083 + $0x14] sm:$0xf]
      %v3090 = vld [vmem:[%s3083 + $0x18] sm:$0xf]
      %v3091 = vld [vmem:[%s3083 + $0x1c] sm:$0xf]
      %v3093 = vunpack.c.l.b16 %v3082
      %v3094 = vpack.c.b16 %v2584, %v3093
      %vm3095 = vcmask 1045504
      %v3096 = vrot.slane %v3094, 2
      %v3097 = vrot.slane %v2603, 2
      %v3098 = vsel %vm3095, %v3096, %v3097
      %v3099 = vrot.slane %v2604, 2
      %v3100 = vsel %vm3095, %v3097, %v3099
      %v3101 = vrot.slane %v2605, 2
      %v3102 = vsel %vm3095, %v3099, %v3101
      %v3103 = vrot.slane %v2606, 2
      %v3104 = vsel %vm3095, %v3101, %v3103
      %v3105 = vrot.slane %v2607, 2
      %v3106 = vsel %vm3095, %v3103, %v3105
      %v3107 = vrot.slane %v2608, 2
      %v3108 = vsel %vm3095, %v3105, %v3107
      %v3109 = vrot.slane %v2609, 2
      %v3110 = vsel %vm3095, %v3107, %v3109
      %v3111 = vrot.slane %v2610, 2
      %v3112 = vsel %vm3095, %v3109, %v3111
      %v3113 = vrot.slane %v2817, 2
      %v3114 = vsel %vm3095, %v3111, %v3113
      %v3123 = vunpack.c.l.b16 %v3084
      %v3124 = vunpack.c.l.b16 %v3085
      %v3125 = vunpack.c.l.b16 %v3086
      %v3126 = vunpack.c.l.b16 %v3087
      %v3127 = vunpack.c.l.b16 %v3088
      %v3128 = vunpack.c.l.b16 %v3089
      %v3129 = vunpack.c.l.b16 %v3090
      %v3130 = vunpack.c.l.b16 %v3091
      %v3131 = vpack.c.b16 %v3124, %v3123
      %v3132 = vpack.c.b16 %v3126, %v3125
      %v3133 = vpack.c.b16 %v3128, %v3127
      %v3134 = vpack.c.b16 %v3130, %v3129
      %v3140 = vsel %vm2049, %v3098, 0
      %v3143 = vsel %vm2049, %v3100, 0
      %v3146 = vsel %vm2049, %v3102, 0
      %v3149 = vsel %vm2049, %v3104, 0
      %v3152 = vsel %vm2049, %v3106, 0
      %v3155 = vsel %vm2049, %v3108, 0
      %v3158 = vsel %vm2049, %v3110, 0
      %v3161 = vsel %vm2049, %v3112, 0
      %v3164 = vsel %vm2049, %v3114, 0
      %3166 = vmatprep.subr.bf16.mxu0 0
      %3167 = vmatpush1.bf16.msra.mxu0 0
      %3168 = vmatprep.subr.bf16.mxu0 0
      %3169 = vmatpush1.bf16.msra.mxu0 0
      %3170 = vmatprep.subr.bf16.mxu0 0
      %3171 = vmatpush1.bf16.msra.mxu0 0
      %3172 = vmatprep.subr.bf16.mxu0 0
      %3173 = vmatpush1.bf16.msra.mxu0 0
      %3174 = vmatprep.subr.bf16.mxu0 0
      %3175 = vmatpush1.bf16.msra.mxu0 %v3134
      %3176 = vmatprep.subr.bf16.mxu0 0
      %3177 = vmatpush1.bf16.msra.mxu0 %v3133
      %3178 = vmatprep.subr.bf16.mxu0 0
      %3179 = vmatpush1.bf16.msra.mxu0 %v3132
      %3180 = vmatprep.subr.bf16.mxu0 0
      %3181 = vmatpush1.bf16.msra.mxu0 %v3131
      %3182 = vmatprep.subr.bf16.mxu0 0
      %3183 = vmatpush2.bf16.msra.mxu0 0
      %3184 = vmatprep.subr.bf16.mxu0 0
      %3185 = vmatpush2.bf16.msra.mxu0 0
      %3186 = vmatprep.subr.bf16.mxu0 0
      %3187 = vmatpush2.bf16.msra.mxu0 0
      %3188 = vmatprep.subr.bf16.mxu0 0
      %3189 = vmatpush2.bf16.msra.mxu0 0
      %3190 = vmatprep.subr.bf16.mxu0 0
      %3191 = vmatpush2.bf16.msra.mxu0 0
      %3192 = vmatprep.subr.bf16.mxu0 0
      %3193 = vmatpush2.bf16.msra.mxu0 0
      %3194 = vmatprep.subr.bf16.mxu0 0
      %3195 = vmatpush2.bf16.msra.mxu0 0
      %3196 = vmatprep.subr.bf16.mxu0 0
      %3197 = vmatpush2.bf16.msra.mxu0 0
      %3198 = vmatprep.mubr.bf16.mxu0 0
      %3199 = vmatmul.mubr.bf16.gmra.mxu0 %v3140
      %v3200 = vpop.f32.mrf.mxu0
      %v3201 = vadd.f32 0.0, %v3200
      %v3202 = vpop.f32.mrf.mxu0
      %v3203 = vpop.f32.mrf.mxu0
      %v3204 = vadd.f32 0.0, %v3203
      %v3205 = vpop.f32.mrf.mxu0
      %3206 = vmatprep.mubr.bf16.mxu0 0
      %3207 = vmatmul.mubr.bf16.gmra.mxu0 %v3143
      %v3208 = vpop.f32.mrf.mxu0
      %v3209 = vadd.f32 0.0, %v3208
      %v3210 = vpop.f32.mrf.mxu0
      %v3211 = vpop.f32.mrf.mxu0
      %v3212 = vadd.f32 0.0, %v3211
      %v3213 = vpop.f32.mrf.mxu0
      %3214 = vmatprep.mubr.bf16.mxu0 0
      %3215 = vmatmul.mubr.bf16.gmra.mxu0 %v3146
      %v3216 = vpop.f32.mrf.mxu0
      %v3217 = vadd.f32 0.0, %v3216
      %v3218 = vpop.f32.mrf.mxu0
      %v3219 = vpop.f32.mrf.mxu0
      %v3220 = vadd.f32 0.0, %v3219
      %v3221 = vpop.f32.mrf.mxu0
      %3222 = vmatprep.mubr.bf16.mxu0 0
      %3223 = vmatmul.mubr.bf16.gmra.mxu0 %v3149
      %v3224 = vpop.f32.mrf.mxu0
      %v3225 = vadd.f32 0.0, %v3224
      %v3226 = vpop.f32.mrf.mxu0
      %v3227 = vpop.f32.mrf.mxu0
      %v3228 = vadd.f32 0.0, %v3227
      %v3229 = vpop.f32.mrf.mxu0
      %3230 = vmatprep.mubr.bf16.mxu0 0
      %3231 = vmatmul.mubr.bf16.gmra.mxu0 %v3152
      %v3232 = vpop.f32.mrf.mxu0
      %v3233 = vadd.f32 0.0, %v3232
      %v3234 = vpop.f32.mrf.mxu0
      %v3235 = vpop.f32.mrf.mxu0
      %v3236 = vadd.f32 0.0, %v3235
      %v3237 = vpop.f32.mrf.mxu0
      %3238 = vmatprep.mubr.bf16.mxu0 0
      %3239 = vmatmul.mubr.bf16.gmra.mxu0 %v3155
      %v3240 = vpop.f32.mrf.mxu0
      %v3241 = vadd.f32 0.0, %v3240
      %v3242 = vpop.f32.mrf.mxu0
      %v3243 = vpop.f32.mrf.mxu0
      %v3244 = vadd.f32 0.0, %v3243
      %v3245 = vpop.f32.mrf.mxu0
      %3246 = vmatprep.mubr.bf16.mxu0 0
      %3247 = vmatmul.mubr.bf16.gmra.mxu0 %v3158
      %v3248 = vpop.f32.mrf.mxu0
      %v3249 = vadd.f32 0.0, %v3248
      %v3250 = vpop.f32.mrf.mxu0
      %v3251 = vpop.f32.mrf.mxu0
      %v3252 = vadd.f32 0.0, %v3251
      %v3253 = vpop.f32.mrf.mxu0
      %3254 = vmatprep.mubr.bf16.mxu0 0
      %3255 = vmatmul.mubr.bf16.gmra.mxu0 %v3161
      %v3256 = vpop.f32.mrf.mxu0
      %v3257 = vadd.f32 0.0, %v3256
      %v3258 = vpop.f32.mrf.mxu0
      %v3259 = vpop.f32.mrf.mxu0
      %v3260 = vadd.f32 0.0, %v3259
      %v3261 = vpop.f32.mrf.mxu0
      %3262 = vmatprep.mubr.bf16.mxu0 0
      %3263 = vmatmul.mubr.bf16.gmra.mxu0 %v3164
      %v3264 = vpop.f32.mrf.mxu0
      %v3265 = vadd.f32 0.0, %v3264
      %v3266 = vpop.f32.mrf.mxu0
      %v3267 = vpop.f32.mrf.mxu0
      %v3268 = vadd.f32 0.0, %v3267
      %v3269 = vpop.f32.mrf.mxu0
      %3270 = vdwg.mxu0
      %v3271 = vadd.f32 %v3064, %v3201
      %v3272 = vadd.f32 %v3065, %v3204
      %v3273 = vadd.f32 %v3066, %v3209
      %v3274 = vadd.f32 %v3067, %v3212
      %v3275 = vadd.f32 %v3068, %v3217
      %v3276 = vadd.f32 %v3069, %v3220
      %v3277 = vadd.f32 %v3070, %v3225
      %v3278 = vadd.f32 %v3071, %v3228
      %v3279 = vadd.f32 %v3072, %v3233
      %v3280 = vadd.f32 %v3073, %v3236
      %v3281 = vadd.f32 %v3074, %v3241
      %v3282 = vadd.f32 %v3075, %v3244
      %v3283 = vadd.f32 %v3076, %v3249
      %v3284 = vadd.f32 %v3077, %v3252
      %v3285 = vadd.f32 %v3078, %v3257
      %v3286 = vadd.f32 %v3079, %v3260
      %v3287 = vadd.f32 %v3080, %v3265
      %v3288 = vadd.f32 %v3081, %v3268
      %v3289 = vld [vmem:[#allocation2 + $0x10] sm:$0xc]
      %v3290 = vld [vmem:[#allocation2 + $0x14] sm:$0xf]
      %v3291 = vld [vmem:[#allocation2 + $0x18] sm:$0xf]
      %v3292 = vld [vmem:[#allocation2 + $0x1c] sm:$0xf]
      %v3293 = vld [vmem:[#allocation2 + $0x20] sm:$0xf]
      %v3294 = vld [vmem:[#allocation2 + $0x24] sm:$0xf]
      %v3295 = vld [vmem:[#allocation2 + $0x28] sm:$0xf]
      %v3296 = vld [vmem:[#allocation2 + $0x2c] sm:$0xf]
      %v3297 = vld [vmem:[#allocation2 + $0x30] sm:$0xf]
      %v3298 = vld [vmem:[#allocation2 + $0x34] sm:$0xf]
      %v3299 = vld [vmem:[#allocation2 + $0x38] sm:$0xf]
      %v3300 = vld [vmem:[#allocation2 + $0x3c] sm:$0xf]
      %v3301 = vld [vmem:[#allocation2 + $0x40] sm:$0xf]
      %v3302 = vld [vmem:[#allocation2 + $0x44] sm:$0xf]
      %v3303 = vld [vmem:[#allocation2 + $0x48] sm:$0xf]
      %v3304 = vld [vmem:[#allocation2 + $0x4c] sm:$0xf]
      %v3305 = vld [vmem:[#allocation2 + $0x50] sm:$0xf]
      %v3306 = vld [vmem:[#allocation2 + $0x54] sm:$0xf]
      %v3307 = vld [vmem:[#allocation2 + $0x58] sm:$0x3]
      %s3308 = scalar_lea.vmem %s5, 192
      %v3309 = vld [vmem:[%s3308] sm:$0xf]
      %v3310 = vld [vmem:[%s3308 + $0x4] sm:$0xf]
      %v3311 = vld [vmem:[%s3308 + $0x8] sm:$0xf]
      %v3312 = vld [vmem:[%s3308 + $0xc] sm:$0xf]
      %v3313 = vld [vmem:[%s3308 + $0x10] sm:$0xf]
      %v3314 = vld [vmem:[%s3308 + $0x14] sm:$0xf]
      %v3315 = vld [vmem:[%s3308 + $0x18] sm:$0xf]
      %v3316 = vld [vmem:[%s3308 + $0x1c] sm:$0xf]
      %v3336 = vunpack.c.l.b16 %v3289
      %v3337 = vunpack.c.l.b16 %v3290
      %v3338 = vunpack.c.l.b16 %v3291
      %v3339 = vunpack.c.l.b16 %v3292
      %v3340 = vunpack.c.l.b16 %v3293
      %v3341 = vunpack.c.l.b16 %v3294
      %v3342 = vunpack.c.l.b16 %v3295
      %v3343 = vunpack.c.l.b16 %v3296
      %v3344 = vunpack.c.l.b16 %v3297
      %v3345 = vunpack.c.l.b16 %v3298
      %v3346 = vunpack.c.l.b16 %v3299
      %v3347 = vunpack.c.l.b16 %v3300
      %v3348 = vunpack.c.l.b16 %v3301
      %v3349 = vunpack.c.l.b16 %v3302
      %v3350 = vunpack.c.l.b16 %v3303
      %v3351 = vunpack.c.l.b16 %v3304
      %v3352 = vunpack.c.l.b16 %v3305
      %v3353 = vunpack.c.l.b16 %v3306
      %v3354 = vunpack.c.l.b16 %v3307
      %v3355 = vpack.c.b16 %v3337, %v3336
      %v3356 = vpack.c.b16 %v3339, %v3338
      %v3357 = vpack.c.b16 %v3341, %v3340
      %v3358 = vpack.c.b16 %v3343, %v3342
      %v3359 = vpack.c.b16 %v3345, %v3344
      %v3360 = vpack.c.b16 %v3347, %v3346
      %v3361 = vpack.c.b16 %v3349, %v3348
      %v3362 = vpack.c.b16 %v3351, %v3350
      %v3363 = vpack.c.b16 %v3353, %v3352
      %v3364 = vpack.c.b16 %v3354, %v3354
      %v3365 = vrot.slane %v3355, 2
      %v3366 = vrot.slane %v3356, 2
      %v3367 = vsel %vm3095, %v3365, %v3366
      %v3368 = vrot.slane %v3357, 2
      %v3369 = vsel %vm3095, %v3366, %v3368
      %v3370 = vrot.slane %v3358, 2
      %v3371 = vsel %vm3095, %v3368, %v3370
      %v3372 = vrot.slane %v3359, 2
      %v3373 = vsel %vm3095, %v3370, %v3372
      %v3374 = vrot.slane %v3360, 2
      %v3375 = vsel %vm3095, %v3372, %v3374
      %v3376 = vrot.slane %v3361, 2
      %v3377 = vsel %vm3095, %v3374, %v3376
      %v3378 = vrot.slane %v3362, 2
      %v3379 = vsel %vm3095, %v3376, %v3378
      %v3380 = vrot.slane %v3363, 2
      %v3381 = vsel %vm3095, %v3378, %v3380
      %v3382 = vrot.slane %v3364, 2
      %v3383 = vsel %vm3095, %v3380, %v3382
      %v3392 = vunpack.c.l.b16 %v3309
      %v3393 = vunpack.c.l.b16 %v3310
      %v3394 = vunpack.c.l.b16 %v3311
      %v3395 = vunpack.c.l.b16 %v3312
      %v3396 = vunpack.c.l.b16 %v3313
      %v3397 = vunpack.c.l.b16 %v3314
      %v3398 = vunpack.c.l.b16 %v3315
      %v3399 = vunpack.c.l.b16 %v3316
      %v3400 = vpack.c.b16 %v3393, %v3392
      %v3401 = vpack.c.b16 %v3395, %v3394
      %v3402 = vpack.c.b16 %v3397, %v3396
      %v3403 = vpack.c.b16 %v3399, %v3398
      %v3409 = vsel %vm2049, %v3367, 0
      %v3412 = vsel %vm2049, %v3369, 0
      %v3415 = vsel %vm2049, %v3371, 0
      %v3418 = vsel %vm2049, %v3373, 0
      %v3421 = vsel %vm2049, %v3375, 0
      %v3424 = vsel %vm2049, %v3377, 0
      %v3427 = vsel %vm2049, %v3379, 0
      %v3430 = vsel %vm2049, %v3381, 0
      %v3433 = vsel %vm2049, %v3383, 0
      %3435 = vmatprep.subr.bf16.mxu0 0
      %3436 = vmatpush1.bf16.msra.mxu0 0
      %3437 = vmatprep.subr.bf16.mxu0 0
      %3438 = vmatpush1.bf16.msra.mxu0 0
      %3439 = vmatprep.subr.bf16.mxu0 0
      %3440 = vmatpush1.bf16.msra.mxu0 0
      %3441 = vmatprep.subr.bf16.mxu0 0
      %3442 = vmatpush1.bf16.msra.mxu0 0
      %3443 = vmatprep.subr.bf16.mxu0 0
      %3444 = vmatpush1.bf16.msra.mxu0 %v3403
      %3445 = vmatprep.subr.bf16.mxu0 0
      %3446 = vmatpush1.bf16.msra.mxu0 %v3402
      %3447 = vmatprep.subr.bf16.mxu0 0
      %3448 = vmatpush1.bf16.msra.mxu0 %v3401
      %3449 = vmatprep.subr.bf16.mxu0 0
      %3450 = vmatpush1.bf16.msra.mxu0 %v3400
      %3451 = vmatprep.subr.bf16.mxu0 0
      %3452 = vmatpush2.bf16.msra.mxu0 0
      %3453 = vmatprep.subr.bf16.mxu0 0
      %3454 = vmatpush2.bf16.msra.mxu0 0
      %3455 = vmatprep.subr.bf16.mxu0 0
      %3456 = vmatpush2.bf16.msra.mxu0 0
      %3457 = vmatprep.subr.bf16.mxu0 0
      %3458 = vmatpush2.bf16.msra.mxu0 0
      %3459 = vmatprep.subr.bf16.mxu0 0
      %3460 = vmatpush2.bf16.msra.mxu0 0
      %3461 = vmatprep.subr.bf16.mxu0 0
      %3462 = vmatpush2.bf16.msra.mxu0 0
      %3463 = vmatprep.subr.bf16.mxu0 0
      %3464 = vmatpush2.bf16.msra.mxu0 0
      %3465 = vmatprep.subr.bf16.mxu0 0
      %3466 = vmatpush2.bf16.msra.mxu0 0
      %3467 = vmatprep.mubr.bf16.mxu0 0
      %3468 = vmatmul.mubr.bf16.gmra.mxu0 %v3409
      %v3469 = vpop.f32.mrf.mxu0
      %v3470 = vadd.f32 0.0, %v3469
      %v3471 = vpop.f32.mrf.mxu0
      %v3472 = vpop.f32.mrf.mxu0
      %v3473 = vadd.f32 0.0, %v3472
      %v3474 = vpop.f32.mrf.mxu0
      %3475 = vmatprep.mubr.bf16.mxu0 0
      %3476 = vmatmul.mubr.bf16.gmra.mxu0 %v3412
      %v3477 = vpop.f32.mrf.mxu0
      %v3478 = vadd.f32 0.0, %v3477
      %v3479 = vpop.f32.mrf.mxu0
      %v3480 = vpop.f32.mrf.mxu0
      %v3481 = vadd.f32 0.0, %v3480
      %v3482 = vpop.f32.mrf.mxu0
      %3483 = vmatprep.mubr.bf16.mxu0 0
      %3484 = vmatmul.mubr.bf16.gmra.mxu0 %v3415
      %v3485 = vpop.f32.mrf.mxu0
      %v3486 = vadd.f32 0.0, %v3485
      %v3487 = vpop.f32.mrf.mxu0
      %v3488 = vpop.f32.mrf.mxu0
      %v3489 = vadd.f32 0.0, %v3488
      %v3490 = vpop.f32.mrf.mxu0
      %3491 = vmatprep.mubr.bf16.mxu0 0
      %3492 = vmatmul.mubr.bf16.gmra.mxu0 %v3418
      %v3493 = vpop.f32.mrf.mxu0
      %v3494 = vadd.f32 0.0, %v3493
      %v3495 = vpop.f32.mrf.mxu0
      %v3496 = vpop.f32.mrf.mxu0
      %v3497 = vadd.f32 0.0, %v3496
      %v3498 = vpop.f32.mrf.mxu0
      %3499 = vmatprep.mubr.bf16.mxu0 0
      %3500 = vmatmul.mubr.bf16.gmra.mxu0 %v3421
      %v3501 = vpop.f32.mrf.mxu0
      %v3502 = vadd.f32 0.0, %v3501
      %v3503 = vpop.f32.mrf.mxu0
      %v3504 = vpop.f32.mrf.mxu0
      %v3505 = vadd.f32 0.0, %v3504
      %v3506 = vpop.f32.mrf.mxu0
      %3507 = vmatprep.mubr.bf16.mxu0 0
      %3508 = vmatmul.mubr.bf16.gmra.mxu0 %v3424
      %v3509 = vpop.f32.mrf.mxu0
      %v3510 = vadd.f32 0.0, %v3509
      %v3511 = vpop.f32.mrf.mxu0
      %v3512 = vpop.f32.mrf.mxu0
      %v3513 = vadd.f32 0.0, %v3512
      %v3514 = vpop.f32.mrf.mxu0
      %3515 = vmatprep.mubr.bf16.mxu0 0
      %3516 = vmatmul.mubr.bf16.gmra.mxu0 %v3427
      %v3517 = vpop.f32.mrf.mxu0
      %v3518 = vadd.f32 0.0, %v3517
      %v3519 = vpop.f32.mrf.mxu0
      %v3520 = vpop.f32.mrf.mxu0
      %v3521 = vadd.f32 0.0, %v3520
      %v3522 = vpop.f32.mrf.mxu0
      %3523 = vmatprep.mubr.bf16.mxu0 0
      %3524 = vmatmul.mubr.bf16.gmra.mxu0 %v3430
      %v3525 = vpop.f32.mrf.mxu0
      %v3526 = vadd.f32 0.0, %v3525
      %v3527 = vpop.f32.mrf.mxu0
      %v3528 = vpop.f32.mrf.mxu0
      %v3529 = vadd.f32 0.0, %v3528
      %v3530 = vpop.f32.mrf.mxu0
      %3531 = vmatprep.mubr.bf16.mxu0 0
      %3532 = vmatmul.mubr.bf16.gmra.mxu0 %v3433
      %v3533 = vpop.f32.mrf.mxu0
      %v3534 = vadd.f32 0.0, %v3533
      %v3535 = vpop.f32.mrf.mxu0
      %v3536 = vpop.f32.mrf.mxu0
      %v3537 = vadd.f32 0.0, %v3536
      %v3538 = vpop.f32.mrf.mxu0
      %3539 = vdwg.mxu0
      %v3540 = vadd.f32 %v3271, %v3470
      %v3541 = vadd.f32 %v3272, %v3473
      %v3542 = vadd.f32 %v3273, %v3478
      %v3543 = vadd.f32 %v3274, %v3481
      %v3544 = vadd.f32 %v3275, %v3486
      %v3545 = vadd.f32 %v3276, %v3489
      %v3546 = vadd.f32 %v3277, %v3494
      %v3547 = vadd.f32 %v3278, %v3497
      %v3548 = vadd.f32 %v3279, %v3502
      %v3549 = vadd.f32 %v3280, %v3505
      %v3550 = vadd.f32 %v3281, %v3510
      %v3551 = vadd.f32 %v3282, %v3513
      %v3552 = vadd.f32 %v3283, %v3518
      %v3553 = vadd.f32 %v3284, %v3521
      %v3554 = vadd.f32 %v3285, %v3526
      %v3555 = vadd.f32 %v3286, %v3529
      %v3556 = vadd.f32 %v3287, %v3534
      %v3557 = vadd.f32 %v3288, %v3537
      %v3558 = vld [vmem:[#allocation2 + $0x58] sm:$0x7]
      %s3559 = scalar_lea.vmem %s5, 224
      %v3560 = vld [vmem:[%s3559] sm:$0xf]
      %v3561 = vld [vmem:[%s3559 + $0x4] sm:$0xf]
      %v3562 = vld [vmem:[%s3559 + $0x8] sm:$0xf]
      %v3563 = vld [vmem:[%s3559 + $0xc] sm:$0xf]
      %v3564 = vld [vmem:[%s3559 + $0x10] sm:$0xf]
      %v3565 = vld [vmem:[%s3559 + $0x14] sm:$0xf]
      %v3566 = vld [vmem:[%s3559 + $0x18] sm:$0xf]
      %v3567 = vld [vmem:[%s3559 + $0x1c] sm:$0xf]
      %v3569 = vunpack.c.l.b16 %v3558
      %v3570 = vpack.c.b16 %v3569, %v3569
      %vm3571 = vsmask.f32 5376
      %v3573 = vshrl.u32 %v3355, 16
      %v3575 = vrot.slane %v3573, 2
      %v3576 = vshll.u32 %v3355, 16
      %v3578 = vrot.slane %v3576, 3
      %v3579 = vor.u32 %v3575, %v3578
      %v3581 = vshrl.u32 %v3356, 16
      %v3583 = vrot.slane %v3581, 2
      %v3584 = vshll.u32 %v3356, 16
      %v3586 = vrot.slane %v3584, 3
      %v3587 = vor.u32 %v3583, %v3586
      %v3588 = vsel %vm3571, %v3579, %v3587
      %v3590 = vshrl.u32 %v3357, 16
      %v3592 = vrot.slane %v3590, 2
      %v3593 = vshll.u32 %v3357, 16
      %v3595 = vrot.slane %v3593, 3
      %v3596 = vor.u32 %v3592, %v3595
      %v3597 = vsel %vm3571, %v3587, %v3596
      %v3599 = vshrl.u32 %v3358, 16
      %v3601 = vrot.slane %v3599, 2
      %v3602 = vshll.u32 %v3358, 16
      %v3604 = vrot.slane %v3602, 3
      %v3605 = vor.u32 %v3601, %v3604
      %v3606 = vsel %vm3571, %v3596, %v3605
      %v3608 = vshrl.u32 %v3359, 16
      %v3610 = vrot.slane %v3608, 2
      %v3611 = vshll.u32 %v3359, 16
      %v3613 = vrot.slane %v3611, 3
      %v3614 = vor.u32 %v3610, %v3613
      %v3615 = vsel %vm3571, %v3605, %v3614
      %v3617 = vshrl.u32 %v3360, 16
      %v3619 = vrot.slane %v3617, 2
      %v3620 = vshll.u32 %v3360, 16
      %v3622 = vrot.slane %v3620, 3
      %v3623 = vor.u32 %v3619, %v3622
      %v3624 = vsel %vm3571, %v3614, %v3623
      %v3626 = vshrl.u32 %v3361, 16
      %v3628 = vrot.slane %v3626, 2
      %v3629 = vshll.u32 %v3361, 16
      %v3631 = vrot.slane %v3629, 3
      %v3632 = vor.u32 %v3628, %v3631
      %v3633 = vsel %vm3571, %v3623, %v3632
      %v3635 = vshrl.u32 %v3362, 16
      %v3637 = vrot.slane %v3635, 2
      %v3638 = vshll.u32 %v3362, 16
      %v3640 = vrot.slane %v3638, 3
      %v3641 = vor.u32 %v3637, %v3640
      %v3642 = vsel %vm3571, %v3632, %v3641
      %v3644 = vshrl.u32 %v3363, 16
      %v3646 = vrot.slane %v3644, 2
      %v3647 = vshll.u32 %v3363, 16
      %v3649 = vrot.slane %v3647, 3
      %v3650 = vor.u32 %v3646, %v3649
      %v3651 = vsel %vm3571, %v3641, %v3650
      %v3653 = vshrl.u32 %v3570, 16
      %v3655 = vrot.slane %v3653, 2
      %v3656 = vshll.u32 %v3570, 16
      %v3658 = vrot.slane %v3656, 3
      %v3659 = vor.u32 %v3655, %v3658
      %v3660 = vsel %vm3571, %v3650, %v3659
      %v3669 = vunpack.c.l.b16 %v3560
      %v3670 = vunpack.c.l.b16 %v3561
      %v3671 = vunpack.c.l.b16 %v3562
      %v3672 = vunpack.c.l.b16 %v3563
      %v3673 = vunpack.c.l.b16 %v3564
      %v3674 = vunpack.c.l.b16 %v3565
      %v3675 = vunpack.c.l.b16 %v3566
      %v3676 = vunpack.c.l.b16 %v3567
      %v3677 = vpack.c.b16 %v3670, %v3669
      %v3678 = vpack.c.b16 %v3672, %v3671
      %v3679 = vpack.c.b16 %v3674, %v3673
      %v3680 = vpack.c.b16 %v3676, %v3675
      %v3686 = vsel %vm2049, %v3588, 0
      %v3689 = vsel %vm2049, %v3597, 0
      %v3692 = vsel %vm2049, %v3606, 0
      %v3695 = vsel %vm2049, %v3615, 0
      %v3698 = vsel %vm2049, %v3624, 0
      %v3701 = vsel %vm2049, %v3633, 0
      %v3704 = vsel %vm2049, %v3642, 0
      %v3707 = vsel %vm2049, %v3651, 0
      %v3710 = vsel %vm2049, %v3660, 0
      %3712 = vmatprep.subr.bf16.mxu0 0
      %3713 = vmatpush1.bf16.msra.mxu0 0
      %3714 = vmatprep.subr.bf16.mxu0 0
      %3715 = vmatpush1.bf16.msra.mxu0 0
      %3716 = vmatprep.subr.bf16.mxu0 0
      %3717 = vmatpush1.bf16.msra.mxu0 0
      %3718 = vmatprep.subr.bf16.mxu0 0
      %3719 = vmatpush1.bf16.msra.mxu0 0
      %3720 = vmatprep.subr.bf16.mxu0 0
      %3721 = vmatpush1.bf16.msra.mxu0 %v3680
      %3722 = vmatprep.subr.bf16.mxu0 0
      %3723 = vmatpush1.bf16.msra.mxu0 %v3679
      %3724 = vmatprep.subr.bf16.mxu0 0
      %3725 = vmatpush1.bf16.msra.mxu0 %v3678
      %3726 = vmatprep.subr.bf16.mxu0 0
      %3727 = vmatpush1.bf16.msra.mxu0 %v3677
      %3728 = vmatprep.subr.bf16.mxu0 0
      %3729 = vmatpush2.bf16.msra.mxu0 0
      %3730 = vmatprep.subr.bf16.mxu0 0
      %3731 = vmatpush2.bf16.msra.mxu0 0
      %3732 = vmatprep.subr.bf16.mxu0 0
      %3733 = vmatpush2.bf16.msra.mxu0 0
      %3734 = vmatprep.subr.bf16.mxu0 0
      %3735 = vmatpush2.bf16.msra.mxu0 0
      %3736 = vmatprep.subr.bf16.mxu0 0
      %3737 = vmatpush2.bf16.msra.mxu0 0
      %3738 = vmatprep.subr.bf16.mxu0 0
      %3739 = vmatpush2.bf16.msra.mxu0 0
      %3740 = vmatprep.subr.bf16.mxu0 0
      %3741 = vmatpush2.bf16.msra.mxu0 0
      %3742 = vmatprep.subr.bf16.mxu0 0
      %3743 = vmatpush2.bf16.msra.mxu0 0
      %3744 = vmatprep.mubr.bf16.mxu0 0
      %3745 = vmatmul.mubr.bf16.gmra.mxu0 %v3686
      %v3746 = vpop.f32.mrf.mxu0
      %v3747 = vadd.f32 0.0, %v3746
      %v3748 = vpop.f32.mrf.mxu0
      %v3749 = vpop.f32.mrf.mxu0
      %v3750 = vadd.f32 0.0, %v3749
      %v3751 = vpop.f32.mrf.mxu0
      %3752 = vmatprep.mubr.bf16.mxu0 0
      %3753 = vmatmul.mubr.bf16.gmra.mxu0 %v3689
      %v3754 = vpop.f32.mrf.mxu0
      %v3755 = vadd.f32 0.0, %v3754
      %v3756 = vpop.f32.mrf.mxu0
      %v3757 = vpop.f32.mrf.mxu0
      %v3758 = vadd.f32 0.0, %v3757
      %v3759 = vpop.f32.mrf.mxu0
      %3760 = vmatprep.mubr.bf16.mxu0 0
      %3761 = vmatmul.mubr.bf16.gmra.mxu0 %v3692
      %v3762 = vpop.f32.mrf.mxu0
      %v3763 = vadd.f32 0.0, %v3762
      %v3764 = vpop.f32.mrf.mxu0
      %v3765 = vpop.f32.mrf.mxu0
      %v3766 = vadd.f32 0.0, %v3765
      %v3767 = vpop.f32.mrf.mxu0
      %3768 = vmatprep.mubr.bf16.mxu0 0
      %3769 = vmatmul.mubr.bf16.gmra.mxu0 %v3695
      %v3770 = vpop.f32.mrf.mxu0
      %v3771 = vadd.f32 0.0, %v3770
      %v3772 = vpop.f32.mrf.mxu0
      %v3773 = vpop.f32.mrf.mxu0
      %v3774 = vadd.f32 0.0, %v3773
      %v3775 = vpop.f32.mrf.mxu0
      %3776 = vmatprep.mubr.bf16.mxu0 0
      %3777 = vmatmul.mubr.bf16.gmra.mxu0 %v3698
      %v3778 = vpop.f32.mrf.mxu0
      %v3779 = vadd.f32 0.0, %v3778
      %v3780 = vpop.f32.mrf.mxu0
      %v3781 = vpop.f32.mrf.mxu0
      %v3782 = vadd.f32 0.0, %v3781
      %v3783 = vpop.f32.mrf.mxu0
      %3784 = vmatprep.mubr.bf16.mxu0 0
      %3785 = vmatmul.mubr.bf16.gmra.mxu0 %v3701
      %v3786 = vpop.f32.mrf.mxu0
      %v3787 = vadd.f32 0.0, %v3786
      %v3788 = vpop.f32.mrf.mxu0
      %v3789 = vpop.f32.mrf.mxu0
      %v3790 = vadd.f32 0.0, %v3789
      %v3791 = vpop.f32.mrf.mxu0
      %3792 = vmatprep.mubr.bf16.mxu0 0
      %3793 = vmatmul.mubr.bf16.gmra.mxu0 %v3704
      %v3794 = vpop.f32.mrf.mxu0
      %v3795 = vadd.f32 0.0, %v3794
      %v3796 = vpop.f32.mrf.mxu0
      %v3797 = vpop.f32.mrf.mxu0
      %v3798 = vadd.f32 0.0, %v3797
      %v3799 = vpop.f32.mrf.mxu0
      %3800 = vmatprep.mubr.bf16.mxu0 0
      %3801 = vmatmul.mubr.bf16.gmra.mxu0 %v3707
      %v3802 = vpop.f32.mrf.mxu0
      %v3803 = vadd.f32 0.0, %v3802
      %v3804 = vpop.f32.mrf.mxu0
      %v3805 = vpop.f32.mrf.mxu0
      %v3806 = vadd.f32 0.0, %v3805
      %v3807 = vpop.f32.mrf.mxu0
      %3808 = vmatprep.mubr.bf16.mxu0 0
      %3809 = vmatmul.mubr.bf16.gmra.mxu0 %v3710
      %v3810 = vpop.f32.mrf.mxu0
      %v3811 = vadd.f32 0.0, %v3810
      %v3812 = vpop.f32.mrf.mxu0
      %v3813 = vpop.f32.mrf.mxu0
      %v3814 = vadd.f32 0.0, %v3813
      %v3815 = vpop.f32.mrf.mxu0
      %3816 = vdwg.mxu0
      %v3817 = vadd.f32 %v3540, %v3747
      %v3818 = vadd.f32 %v3541, %v3750
      %v3819 = vadd.f32 %v3542, %v3755
      %v3820 = vadd.f32 %v3543, %v3758
      %v3821 = vadd.f32 %v3544, %v3763
      %v3822 = vadd.f32 %v3545, %v3766
      %v3823 = vadd.f32 %v3546, %v3771
      %v3824 = vadd.f32 %v3547, %v3774
      %v3825 = vadd.f32 %v3548, %v3779
      %v3826 = vadd.f32 %v3549, %v3782
      %v3827 = vadd.f32 %v3550, %v3787
      %v3828 = vadd.f32 %v3551, %v3790
      %v3829 = vadd.f32 %v3552, %v3795
      %v3830 = vadd.f32 %v3553, %v3798
      %v3831 = vadd.f32 %v3554, %v3803
      %v3832 = vadd.f32 %v3555, %v3806
      %v3833 = vadd.f32 %v3556, %v3811
      %v3834 = vadd.f32 %v3557, %v3814
      %v3835 = vld [vmem:[#allocation2 + $0x10] sm:$0x8]
      %s3836 = scalar_lea.vmem %s5, 256
      %v3837 = vld [vmem:[%s3836] sm:$0xf]
      %v3838 = vld [vmem:[%s3836 + $0x4] sm:$0xf]
      %v3839 = vld [vmem:[%s3836 + $0x8] sm:$0xf]
      %v3840 = vld [vmem:[%s3836 + $0xc] sm:$0xf]
      %v3841 = vld [vmem:[%s3836 + $0x10] sm:$0xf]
      %v3842 = vld [vmem:[%s3836 + $0x14] sm:$0xf]
      %v3843 = vld [vmem:[%s3836 + $0x18] sm:$0xf]
      %v3844 = vld [vmem:[%s3836 + $0x1c] sm:$0xf]
      %v3846 = vunpack.c.l.b16 %v3835
      %v3847 = vpack.c.b16 %v3337, %v3846
      %vm3848 = vcmask 1044480
      %v3849 = vrot.slane %v3847, 3
      %v3850 = vrot.slane %v3356, 3
      %v3851 = vsel %vm3848, %v3849, %v3850
      %v3852 = vrot.slane %v3357, 3
      %v3853 = vsel %vm3848, %v3850, %v3852
      %v3854 = vrot.slane %v3358, 3
      %v3855 = vsel %vm3848, %v3852, %v3854
      %v3856 = vrot.slane %v3359, 3
      %v3857 = vsel %vm3848, %v3854, %v3856
      %v3858 = vrot.slane %v3360, 3
      %v3859 = vsel %vm3848, %v3856, %v3858
      %v3860 = vrot.slane %v3361, 3
      %v3861 = vsel %vm3848, %v3858, %v3860
      %v3862 = vrot.slane %v3362, 3
      %v3863 = vsel %vm3848, %v3860, %v3862
      %v3864 = vrot.slane %v3363, 3
      %v3865 = vsel %vm3848, %v3862, %v3864
      %v3866 = vrot.slane %v3570, 3
      %v3867 = vsel %vm3848, %v3864, %v3866
      %v3876 = vunpack.c.l.b16 %v3837
      %v3877 = vunpack.c.l.b16 %v3838
      %v3878 = vunpack.c.l.b16 %v3839
      %v3879 = vunpack.c.l.b16 %v3840
      %v3880 = vunpack.c.l.b16 %v3841
      %v3881 = vunpack.c.l.b16 %v3842
      %v3882 = vunpack.c.l.b16 %v3843
      %v3883 = vunpack.c.l.b16 %v3844
      %v3884 = vpack.c.b16 %v3877, %v3876
      %v3885 = vpack.c.b16 %v3879, %v3878
      %v3886 = vpack.c.b16 %v3881, %v3880
      %v3887 = vpack.c.b16 %v3883, %v3882
      %v3893 = vsel %vm2049, %v3851, 0
      %v3896 = vsel %vm2049, %v3853, 0
      %v3899 = vsel %vm2049, %v3855, 0
      %v3902 = vsel %vm2049, %v3857, 0
      %v3905 = vsel %vm2049, %v3859, 0
      %v3908 = vsel %vm2049, %v3861, 0
      %v3911 = vsel %vm2049, %v3863, 0
      %v3914 = vsel %vm2049, %v3865, 0
      %v3917 = vsel %vm2049, %v3867, 0
      %3919 = vmatprep.subr.bf16.mxu0 0
      %3920 = vmatpush1.bf16.msra.mxu0 0
      %3921 = vmatprep.subr.bf16.mxu0 0
      %3922 = vmatpush1.bf16.msra.mxu0 0
      %3923 = vmatprep.subr.bf16.mxu0 0
      %3924 = vmatpush1.bf16.msra.mxu0 0
      %3925 = vmatprep.subr.bf16.mxu0 0
      %3926 = vmatpush1.bf16.msra.mxu0 0
      %3927 = vmatprep.subr.bf16.mxu0 0
      %3928 = vmatpush1.bf16.msra.mxu0 %v3887
      %3929 = vmatprep.subr.bf16.mxu0 0
      %3930 = vmatpush1.bf16.msra.mxu0 %v3886
      %3931 = vmatprep.subr.bf16.mxu0 0
      %3932 = vmatpush1.bf16.msra.mxu0 %v3885
      %3933 = vmatprep.subr.bf16.mxu0 0
      %3934 = vmatpush1.bf16.msra.mxu0 %v3884
      %3935 = vmatprep.subr.bf16.mxu0 0
      %3936 = vmatpush2.bf16.msra.mxu0 0
      %3937 = vmatprep.subr.bf16.mxu0 0
      %3938 = vmatpush2.bf16.msra.mxu0 0
      %3939 = vmatprep.subr.bf16.mxu0 0
      %3940 = vmatpush2.bf16.msra.mxu0 0
      %3941 = vmatprep.subr.bf16.mxu0 0
      %3942 = vmatpush2.bf16.msra.mxu0 0
      %3943 = vmatprep.subr.bf16.mxu0 0
      %3944 = vmatpush2.bf16.msra.mxu0 0
      %3945 = vmatprep.subr.bf16.mxu0 0
      %3946 = vmatpush2.bf16.msra.mxu0 0
      %3947 = vmatprep.subr.bf16.mxu0 0
      %3948 = vmatpush2.bf16.msra.mxu0 0
      %3949 = vmatprep.subr.bf16.mxu0 0
      %3950 = vmatpush2.bf16.msra.mxu0 0
      %3951 = vmatprep.mubr.bf16.mxu0 0
      %3952 = vmatmul.mubr.bf16.gmra.mxu0 %v3893
      %v3953 = vpop.f32.mrf.mxu0
      %v3954 = vadd.f32 0.0, %v3953
      %v3955 = vpop.f32.mrf.mxu0
      %v3956 = vpop.f32.mrf.mxu0
      %v3957 = vadd.f32 0.0, %v3956
      %v3958 = vpop.f32.mrf.mxu0
      %3959 = vmatprep.mubr.bf16.mxu0 0
      %3960 = vmatmul.mubr.bf16.gmra.mxu0 %v3896
      %v3961 = vpop.f32.mrf.mxu0
      %v3962 = vadd.f32 0.0, %v3961
      %v3963 = vpop.f32.mrf.mxu0
      %v3964 = vpop.f32.mrf.mxu0
      %v3965 = vadd.f32 0.0, %v3964
      %v3966 = vpop.f32.mrf.mxu0
      %3967 = vmatprep.mubr.bf16.mxu0 0
      %3968 = vmatmul.mubr.bf16.gmra.mxu0 %v3899
      %v3969 = vpop.f32.mrf.mxu0
      %v3970 = vadd.f32 0.0, %v3969
      %v3971 = vpop.f32.mrf.mxu0
      %v3972 = vpop.f32.mrf.mxu0
      %v3973 = vadd.f32 0.0, %v3972
      %v3974 = vpop.f32.mrf.mxu0
      %3975 = vmatprep.mubr.bf16.mxu0 0
      %3976 = vmatmul.mubr.bf16.gmra.mxu0 %v3902
      %v3977 = vpop.f32.mrf.mxu0
      %v3978 = vadd.f32 0.0, %v3977
      %v3979 = vpop.f32.mrf.mxu0
      %v3980 = vpop.f32.mrf.mxu0
      %v3981 = vadd.f32 0.0, %v3980
      %v3982 = vpop.f32.mrf.mxu0
      %3983 = vmatprep.mubr.bf16.mxu0 0
      %3984 = vmatmul.mubr.bf16.gmra.mxu0 %v3905
      %v3985 = vpop.f32.mrf.mxu0
      %v3986 = vadd.f32 0.0, %v3985
      %v3987 = vpop.f32.mrf.mxu0
      %v3988 = vpop.f32.mrf.mxu0
      %v3989 = vadd.f32 0.0, %v3988
      %v3990 = vpop.f32.mrf.mxu0
      %3991 = vmatprep.mubr.bf16.mxu0 0
      %3992 = vmatmul.mubr.bf16.gmra.mxu0 %v3908
      %v3993 = vpop.f32.mrf.mxu0
      %v3994 = vadd.f32 0.0, %v3993
      %v3995 = vpop.f32.mrf.mxu0
      %v3996 = vpop.f32.mrf.mxu0
      %v3997 = vadd.f32 0.0, %v3996
      %v3998 = vpop.f32.mrf.mxu0
      %3999 = vmatprep.mubr.bf16.mxu0 0
      %4000 = vmatmul.mubr.bf16.gmra.mxu0 %v3911
      %v4001 = vpop.f32.mrf.mxu0
      %v4002 = vadd.f32 0.0, %v4001
      %v4003 = vpop.f32.mrf.mxu0
      %v4004 = vpop.f32.mrf.mxu0
      %v4005 = vadd.f32 0.0, %v4004
      %v4006 = vpop.f32.mrf.mxu0
      %4007 = vmatprep.mubr.bf16.mxu0 0
      %4008 = vmatmul.mubr.bf16.gmra.mxu0 %v3914
      %v4009 = vpop.f32.mrf.mxu0
      %v4010 = vadd.f32 0.0, %v4009
      %v4011 = vpop.f32.mrf.mxu0
      %v4012 = vpop.f32.mrf.mxu0
      %v4013 = vadd.f32 0.0, %v4012
      %v4014 = vpop.f32.mrf.mxu0
      %4015 = vmatprep.mubr.bf16.mxu0 0
      %4016 = vmatmul.mubr.bf16.gmra.mxu0 %v3917
      %v4017 = vpop.f32.mrf.mxu0
      %v4018 = vadd.f32 0.0, %v4017
      %v4019 = vpop.f32.mrf.mxu0
      %v4020 = vpop.f32.mrf.mxu0
      %v4021 = vadd.f32 0.0, %v4020
      %v4022 = vpop.f32.mrf.mxu0
      %4023 = vdwg.mxu0
      %v4024 = vadd.f32 %v3817, %v3954
      %v4025 = vadd.f32 %v3818, %v3957
      %v4026 = vadd.f32 %v3819, %v3962
      %v4027 = vadd.f32 %v3820, %v3965
      %v4028 = vadd.f32 %v3821, %v3970
      %v4029 = vadd.f32 %v3822, %v3973
      %v4030 = vadd.f32 %v3823, %v3978
      %v4031 = vadd.f32 %v3824, %v3981
      %v4032 = vadd.f32 %v3825, %v3986
      %v4033 = vadd.f32 %v3826, %v3989
      %v4034 = vadd.f32 %v3827, %v3994
      %v4035 = vadd.f32 %v3828, %v3997
      %v4036 = vadd.f32 %v3829, %v4002
      %v4037 = vadd.f32 %v3830, %v4005
      %v4038 = vadd.f32 %v3831, %v4010
      %v4039 = vadd.f32 %v3832, %v4013
      %v4040 = vadd.f32 %v3833, %v4018
      %v4041 = vadd.f32 %v3834, %v4021
      %v4042 = vld [vmem:[%s6] sm:$0x1]
      %v4044 = vlaneseq
      %v4045 = vshrl.u32 %v4044, 7
      %v4046 = vsub.s32 0, %v4045
      %v4047 = vrot.slane %v4042, %v4046
      %v4049 = vmul.f32 %v4024, %v4047
      %v4050 = vmul.f32 %v4025, %v4047
      %v4051 = vmul.f32 %v4026, %v4047
      %v4052 = vmul.f32 %v4027, %v4047
      %v4053 = vmul.f32 %v4028, %v4047
      %v4054 = vmul.f32 %v4029, %v4047
      %v4055 = vmul.f32 %v4030, %v4047
      %v4056 = vmul.f32 %v4031, %v4047
      %v4057 = vmul.f32 %v4032, %v4047
      %v4058 = vmul.f32 %v4033, %v4047
      %v4059 = vmul.f32 %v4034, %v4047
      %v4060 = vmul.f32 %v4035, %v4047
      %v4061 = vmul.f32 %v4036, %v4047
      %v4062 = vmul.f32 %v4037, %v4047
      %v4063 = vmul.f32 %v4038, %v4047
      %v4064 = vmul.f32 %v4039, %v4047
      %v4065 = vmul.f32 %v4040, %v4047
      %v4066 = vmul.f32 %v4041, %v4047
      %v4067 = vld [vmem:[%s7] sm:$0x1]
      %v4069 = vlaneseq
      %v4070 = vshrl.u32 %v4069, 7
      %v4071 = vsub.s32 0, %v4070
      %v4072 = vrot.slane %v4067, %v4071
      %v4074 = vadd.f32 %v4049, %v4072
      %v4075 = vadd.f32 %v4050, %v4072
      %v4076 = vadd.f32 %v4051, %v4072
      %v4077 = vadd.f32 %v4052, %v4072
      %v4078 = vadd.f32 %v4053, %v4072
      %v4079 = vadd.f32 %v4054, %v4072
      %v4080 = vadd.f32 %v4055, %v4072
      %v4081 = vadd.f32 %v4056, %v4072
      %v4082 = vadd.f32 %v4057, %v4072
      %v4083 = vadd.f32 %v4058, %v4072
      %v4084 = vadd.f32 %v4059, %v4072
      %v4085 = vadd.f32 %v4060, %v4072
      %v4086 = vadd.f32 %v4061, %v4072
      %v4087 = vadd.f32 %v4062, %v4072
      %v4088 = vadd.f32 %v4063, %v4072
      %v4089 = vadd.f32 %v4064, %v4072
      %v4090 = vadd.f32 %v4065, %v4072
      %v4091 = vadd.f32 %v4066, %v4072
      %v4092 = vmax.f32 %v4074, 0.0
      %v4093 = vmax.f32 %v4075, 0.0
      %v4094 = vmax.f32 %v4076, 0.0
      %v4095 = vmax.f32 %v4077, 0.0
      %v4096 = vmax.f32 %v4078, 0.0
      %v4097 = vmax.f32 %v4079, 0.0
      %v4098 = vmax.f32 %v4080, 0.0
      %v4099 = vmax.f32 %v4081, 0.0
      %v4100 = vmax.f32 %v4082, 0.0
      %v4101 = vmax.f32 %v4083, 0.0
      %v4102 = vmax.f32 %v4084, 0.0
      %v4103 = vmax.f32 %v4085, 0.0
      %v4104 = vmax.f32 %v4086, 0.0
      %v4105 = vmax.f32 %v4087, 0.0
      %v4106 = vmax.f32 %v4088, 0.0
      %v4107 = vmax.f32 %v4089, 0.0
      %v4108 = vmax.f32 %v4090, 0.0
      %v4109 = vmax.f32 %v4091, 0.0
      %v4110 = vpack.c.bf16 %v4093, %v4092
      %v4111 = vpack.c.bf16 %v4095, %v4094
      %v4112 = vpack.c.bf16 %v4097, %v4096
      %v4113 = vpack.c.bf16 %v4099, %v4098
      %v4114 = vpack.c.bf16 %v4101, %v4100
      %v4115 = vpack.c.bf16 %v4103, %v4102
      %v4116 = vpack.c.bf16 %v4105, %v4104
      %v4117 = vpack.c.bf16 %v4107, %v4106
      %v4118 = vpack.c.bf16 %v4109, %v4108
      %v4128 = vunpack.c.l.b16 %v4110
      %v4129 = vunpack.c.h.b16 %v4110
      %v4130 = vunpack.c.l.b16 %v4111
      %v4131 = vunpack.c.h.b16 %v4111
      %v4132 = vunpack.c.l.b16 %v4112
      %v4133 = vunpack.c.h.b16 %v4112
      %v4134 = vunpack.c.l.b16 %v4113
      %v4135 = vunpack.c.h.b16 %v4113
      %v4136 = vunpack.c.l.b16 %v4114
      %v4137 = vunpack.c.h.b16 %v4114
      %v4138 = vunpack.c.l.b16 %v4115
      %v4139 = vunpack.c.h.b16 %v4115
      %v4140 = vunpack.c.l.b16 %v4116
      %v4141 = vunpack.c.h.b16 %v4116
      %v4142 = vunpack.c.l.b16 %v4117
      %v4143 = vunpack.c.h.b16 %v4117
      %v4144 = vunpack.c.l.b16 %v4118
      %v4145 = vunpack.c.h.b16 %v4118
      %v4146 = vpack.c.b16 %v4128, %v4128
      %v4147 = vpack.c.b16 %v4129, %v4129
      %v4148 = vpack.c.b16 %v4130, %v4130
      %v4149 = vpack.c.b16 %v4131, %v4131
      %v4150 = vpack.c.b16 %v4132, %v4132
      %v4151 = vpack.c.b16 %v4133, %v4133
      %v4152 = vpack.c.b16 %v4134, %v4134
      %v4153 = vpack.c.b16 %v4135, %v4135
      %v4154 = vpack.c.b16 %v4136, %v4136
      %v4155 = vpack.c.b16 %v4137, %v4137
      %v4156 = vpack.c.b16 %v4138, %v4138
      %v4157 = vpack.c.b16 %v4139, %v4139
      %v4158 = vpack.c.b16 %v4140, %v4140
      %v4159 = vpack.c.b16 %v4141, %v4141
      %v4160 = vpack.c.b16 %v4142, %v4142
      %v4161 = vpack.c.b16 %v4143, %v4143
      %v4162 = vpack.c.b16 %v4144, %v4144
      %v4163 = vpack.c.b16 %v4145, %v4145
      %4182 = vst [vmem:[#allocation3] sm:$0xf] %v4146
      %4183 = vst [vmem:[#allocation3 + $0x4] sm:$0xf] %v4147
      %4184 = vst [vmem:[#allocation3 + $0x8] sm:$0xf] %v4148
      %4185 = vst [vmem:[#allocation3 + $0xc] sm:$0xf] %v4149
      %4186 = vst [vmem:[#allocation3 + $0x10] sm:$0xf] %v4150
      %4187 = vst [vmem:[#allocation3 + $0x14] sm:$0xf] %v4151
      %4188 = vst [vmem:[#allocation3 + $0x18] sm:$0xf] %v4152
      %4189 = vst [vmem:[#allocation3 + $0x1c] sm:$0xf] %v4153
      %4190 = vst [vmem:[#allocation3 + $0x20] sm:$0xf] %v4154
      %4191 = vst [vmem:[#allocation3 + $0x24] sm:$0xf] %v4155
      %4192 = vst [vmem:[#allocation3 + $0x28] sm:$0xf] %v4156
      %4193 = vst [vmem:[#allocation3 + $0x2c] sm:$0xf] %v4157
      %4194 = vst [vmem:[#allocation3 + $0x30] sm:$0xf] %v4158
      %4195 = vst [vmem:[#allocation3 + $0x34] sm:$0xf] %v4159
      %4196 = vst [vmem:[#allocation3 + $0x38] sm:$0xf] %v4160
      %4197 = vst [vmem:[#allocation3 + $0x3c] sm:$0xf] %v4161
      %4198 = vst [vmem:[#allocation3 + $0x40] sm:$0xf] %v4162
      %4199 = vst [vmem:[#allocation3 + $0x44] sm:$0xf] %v4163
      %v4200 = vld [vmem:[%s1 + $0x8] sm:$0xe]
      %v4201 = vld [vmem:[%s1 + $0xc] sm:$0xf]
      %v4202 = vld [vmem:[%s1 + $0x10] sm:$0xf]
      %v4203 = vld [vmem:[%s1 + $0x14] sm:$0xf]
      %v4204 = vld [vmem:[%s1 + $0x18] sm:$0xf]
      %v4205 = vld [vmem:[%s1 + $0x1c] sm:$0xf]
      %v4206 = vld [vmem:[%s1 + $0x20] sm:$0xf]
      %v4207 = vld [vmem:[%s1 + $0x24] sm:$0xf]
      %v4208 = vld [vmem:[%s1 + $0x28] sm:$0xf]
      %v4209 = vld [vmem:[%s1 + $0x2c] sm:$0xf]
      %v4210 = vld [vmem:[%s1 + $0x30] sm:$0xf]
      %v4211 = vld [vmem:[%s1 + $0x34] sm:$0xf]
      %v4212 = vld [vmem:[%s1 + $0x38] sm:$0xf]
      %v4213 = vld [vmem:[%s1 + $0x3c] sm:$0xf]
      %v4214 = vld [vmem:[%s1 + $0x40] sm:$0xf]
      %v4215 = vld [vmem:[%s1 + $0x44] sm:$0xf]
      %v4216 = vld [vmem:[%s1 + $0x48] sm:$0xf]
      %v4217 = vld [vmem:[%s1 + $0x4c] sm:$0xf]
      %v4218 = vld [vmem:[%s1 + $0x50] sm:$0x3]
      %v4219 = vunpack.c.l.bf16 %v4200
      %v4220 = vunpack.c.l.bf16 %v4201
      %v4221 = vunpack.c.l.bf16 %v4202
      %v4222 = vunpack.c.l.bf16 %v4203
      %v4223 = vunpack.c.l.bf16 %v4204
      %v4224 = vunpack.c.l.bf16 %v4205
      %v4225 = vunpack.c.l.bf16 %v4206
      %v4226 = vunpack.c.l.bf16 %v4207
      %v4227 = vunpack.c.l.bf16 %v4208
      %v4228 = vunpack.c.l.bf16 %v4209
      %v4229 = vunpack.c.l.bf16 %v4210
      %v4230 = vunpack.c.l.bf16 %v4211
      %v4231 = vunpack.c.l.bf16 %v4212
      %v4232 = vunpack.c.l.bf16 %v4213
      %v4233 = vunpack.c.l.bf16 %v4214
      %v4234 = vunpack.c.l.bf16 %v4215
      %v4235 = vunpack.c.l.bf16 %v4216
      %v4236 = vunpack.c.l.bf16 %v4217
      %v4237 = vunpack.c.l.bf16 %v4218
      %4256 = vrot.lane.b32.xlu0 %v4092, 64
      %v4257 = vpop.permute.xlu0 %4256
      %4258 = vrot.lane.b32.xlu0 %v4093, 64
      %v4259 = vpop.permute.xlu0 %4258
      %4260 = vrot.lane.b32.xlu0 %v4094, 64
      %v4261 = vpop.permute.xlu0 %4260
      %4262 = vrot.lane.b32.xlu0 %v4095, 64
      %v4263 = vpop.permute.xlu0 %4262
      %4264 = vrot.lane.b32.xlu0 %v4096, 64
      %v4265 = vpop.permute.xlu0 %4264
      %4266 = vrot.lane.b32.xlu0 %v4097, 64
      %v4267 = vpop.permute.xlu0 %4266
      %4268 = vrot.lane.b32.xlu0 %v4098, 64
      %v4269 = vpop.permute.xlu0 %4268
      %4270 = vrot.lane.b32.xlu0 %v4099, 64
      %v4271 = vpop.permute.xlu0 %4270
      %4272 = vrot.lane.b32.xlu0 %v4100, 64
      %v4273 = vpop.permute.xlu0 %4272
      %4274 = vrot.lane.b32.xlu0 %v4101, 64
      %v4275 = vpop.permute.xlu0 %4274
      %4276 = vrot.lane.b32.xlu0 %v4102, 64
      %v4277 = vpop.permute.xlu0 %4276
      %4278 = vrot.lane.b32.xlu0 %v4103, 64
      %v4279 = vpop.permute.xlu0 %4278
      %4280 = vrot.lane.b32.xlu0 %v4104, 64
      %v4281 = vpop.permute.xlu0 %4280
      %4282 = vrot.lane.b32.xlu0 %v4105, 64
      %v4283 = vpop.permute.xlu0 %4282
      %4284 = vrot.lane.b32.xlu0 %v4106, 64
      %v4285 = vpop.permute.xlu0 %4284
      %4286 = vrot.lane.b32.xlu0 %v4107, 64
      %v4287 = vpop.permute.xlu0 %4286
      %4288 = vrot.lane.b32.xlu0 %v4108, 64
      %v4289 = vpop.permute.xlu0 %4288
      %4290 = vrot.lane.b32.xlu0 %v4109, 64
      %v4291 = vpop.permute.xlu0 %4290
      %v4310 = vadd.f32 %v4092, %v4257
      %v4311 = vadd.f32 %v4093, %v4259
      %v4312 = vadd.f32 %v4094, %v4261
      %v4313 = vadd.f32 %v4095, %v4263
      %v4314 = vadd.f32 %v4096, %v4265
      %v4315 = vadd.f32 %v4097, %v4267
      %v4316 = vadd.f32 %v4098, %v4269
      %v4317 = vadd.f32 %v4099, %v4271
      %v4318 = vadd.f32 %v4100, %v4273
      %v4319 = vadd.f32 %v4101, %v4275
      %v4320 = vadd.f32 %v4102, %v4277
      %v4321 = vadd.f32 %v4103, %v4279
      %v4322 = vadd.f32 %v4104, %v4281
      %v4323 = vadd.f32 %v4105, %v4283
      %v4324 = vadd.f32 %v4106, %v4285
      %v4325 = vadd.f32 %v4107, %v4287
      %v4326 = vadd.f32 %v4108, %v4289
      %v4327 = vadd.f32 %v4109, %v4291
      %vm4347 = vcmask 1044480
      %v4348 = vrot.slane %v4219, 3
      %v4349 = vrot.slane %v4220, 3
      %v4350 = vsel %vm4347, %v4348, %v4349
      %v4351 = vrot.slane %v4221, 3
      %v4352 = vsel %vm4347, %v4349, %v4351
      %v4353 = vrot.slane %v4222, 3
      %v4354 = vsel %vm4347, %v4351, %v4353
      %v4355 = vrot.slane %v4223, 3
      %v4356 = vsel %vm4347, %v4353, %v4355
      %v4357 = vrot.slane %v4224, 3
      %v4358 = vsel %vm4347, %v4355, %v4357
      %v4359 = vrot.slane %v4225, 3
      %v4360 = vsel %vm4347, %v4357, %v4359
      %v4361 = vrot.slane %v4226, 3
      %v4362 = vsel %vm4347, %v4359, %v4361
      %v4363 = vrot.slane %v4227, 3
      %v4364 = vsel %vm4347, %v4361, %v4363
      %v4365 = vrot.slane %v4228, 3
      %v4366 = vsel %vm4347, %v4363, %v4365
      %v4367 = vrot.slane %v4229, 3
      %v4368 = vsel %vm4347, %v4365, %v4367
      %v4369 = vrot.slane %v4230, 3
      %v4370 = vsel %vm4347, %v4367, %v4369
      %v4371 = vrot.slane %v4231, 3
      %v4372 = vsel %vm4347, %v4369, %v4371
      %v4373 = vrot.slane %v4232, 3
      %v4374 = vsel %vm4347, %v4371, %v4373
      %v4375 = vrot.slane %v4233, 3
      %v4376 = vsel %vm4347, %v4373, %v4375
      %v4377 = vrot.slane %v4234, 3
      %v4378 = vsel %vm4347, %v4375, %v4377
      %v4379 = vrot.slane %v4235, 3
      %v4380 = vsel %vm4347, %v4377, %v4379
      %v4381 = vrot.slane %v4236, 3
      %v4382 = vsel %vm4347, %v4379, %v4381
      %v4383 = vrot.slane %v4237, 3
      %v4384 = vsel %vm4347, %v4381, %v4383
      %v4403 = vmul.f32 %v4310, %v4350
      %v4404 = vmul.f32 %v4311, %v4352
      %v4405 = vmul.f32 %v4312, %v4354
      %v4406 = vmul.f32 %v4313, %v4356
      %v4407 = vmul.f32 %v4314, %v4358
      %v4408 = vmul.f32 %v4315, %v4360
      %v4409 = vmul.f32 %v4316, %v4362
      %v4410 = vmul.f32 %v4317, %v4364
      %v4411 = vmul.f32 %v4318, %v4366
      %v4412 = vmul.f32 %v4319, %v4368
      %v4413 = vmul.f32 %v4320, %v4370
      %v4414 = vmul.f32 %v4321, %v4372
      %v4415 = vmul.f32 %v4322, %v4374
      %v4416 = vmul.f32 %v4323, %v4376
      %v4417 = vmul.f32 %v4324, %v4378
      %v4418 = vmul.f32 %v4325, %v4380
      %v4419 = vmul.f32 %v4326, %v4382
      %v4420 = vmul.f32 %v4327, %v4384
      %v4421 = vsel %vm2049, %v4403, 0.0
      %v4422 = vsel %vm2049, %v4404, 0.0
      %v4423 = vadd.f32 %v4421, %v4422
      %v4424 = vsel %vm2049, %v4405, 0.0
      %v4425 = vadd.f32 %v4423, %v4424
      %v4426 = vsel %vm2049, %v4406, 0.0
      %v4427 = vadd.f32 %v4425, %v4426
      %v4428 = vsel %vm2049, %v4407, 0.0
      %v4429 = vadd.f32 %v4427, %v4428
      %v4430 = vsel %vm2049, %v4408, 0.0
      %v4431 = vadd.f32 %v4429, %v4430
      %v4432 = vsel %vm2049, %v4409, 0.0
      %v4433 = vadd.f32 %v4431, %v4432
      %v4434 = vsel %vm2049, %v4410, 0.0
      %v4435 = vadd.f32 %v4433, %v4434
      %v4436 = vsel %vm2049, %v4411, 0.0
      %v4437 = vadd.f32 %v4435, %v4436
      %v4438 = vsel %vm2049, %v4412, 0.0
      %v4439 = vadd.f32 %v4437, %v4438
      %v4440 = vsel %vm2049, %v4413, 0.0
      %v4441 = vadd.f32 %v4439, %v4440
      %v4442 = vsel %vm2049, %v4414, 0.0
      %v4443 = vadd.f32 %v4441, %v4442
      %v4444 = vsel %vm2049, %v4415, 0.0
      %v4445 = vadd.f32 %v4443, %v4444
      %v4446 = vsel %vm2049, %v4416, 0.0
      %v4447 = vadd.f32 %v4445, %v4446
      %v4448 = vsel %vm2049, %v4417, 0.0
      %v4449 = vadd.f32 %v4447, %v4448
      %v4450 = vsel %vm2049, %v4418, 0.0
      %v4451 = vadd.f32 %v4449, %v4450
      %v4452 = vsel %vm2049, %v4419, 0.0
      %v4453 = vadd.f32 %v4451, %v4452
      %v4454 = vsel %vm2049, %v4420, 0.0
      %v4455 = vadd.f32 %v4453, %v4454
      %v4456 = vrot.slane %v4455, 4
      %v4457 = vadd.f32 %v4455, %v4456
      %v4458 = vrot.slane %v4457, 2
      %v4459 = vadd.f32 %v4457, %v4458
      %v4460 = vrot.slane %v4459, 1
      %v4461 = vadd.f32 %v4459, %v4460
      %v4462 = vadd.f32 %v4461, 0.0
      %v4463 = vld [vmem:[#allocation2 + $0x48] sm:$0xf]
      %v4464 = vld [vmem:[#allocation2 + $0x4c] sm:$0xf]
      %v4465 = vld [vmem:[#allocation2 + $0x50] sm:$0xf]
      %v4466 = vld [vmem:[#allocation2 + $0x54] sm:$0xf]
      %v4467 = vld [vmem:[#allocation2 + $0x58] sm:$0xf]
      %v4468 = vld [vmem:[#allocation2 + $0x5c] sm:$0xf]
      %v4469 = vld [vmem:[#allocation2 + $0x60] sm:$0xf]
      %v4470 = vld [vmem:[#allocation2 + $0x64] sm:$0xf]
      %v4471 = vld [vmem:[#allocation2 + $0x68] sm:$0xf]
      %v4472 = vld [vmem:[#allocation2 + $0x6c] sm:$0xf]
      %v4473 = vld [vmem:[#allocation2 + $0x70] sm:$0xf]
      %v4474 = vld [vmem:[#allocation2 + $0x74] sm:$0xf]
      %v4475 = vld [vmem:[#allocation2 + $0x78] sm:$0xf]
      %v4476 = vld [vmem:[#allocation2 + $0x7c] sm:$0xf]
      %v4477 = vld [vmem:[#allocation2 + $0x80] sm:$0xf]
      %v4478 = vld [vmem:[#allocation2 + $0x84] sm:$0xf]
      %v4479 = vld [vmem:[#allocation2 + $0x88] sm:$0xf]
      %v4480 = vld [vmem:[#allocation2 + $0x8c] sm:$0xf]
      %v4481 = vld [vmem:[%s5] sm:$0xf]
      %v4482 = vld [vmem:[%s5 + $0x4] sm:$0xf]
      %v4483 = vld [vmem:[%s5 + $0x8] sm:$0xf]
      %v4484 = vld [vmem:[%s5 + $0xc] sm:$0xf]
      %v4485 = vld [vmem:[%s5 + $0x10] sm:$0xf]
      %v4486 = vld [vmem:[%s5 + $0x14] sm:$0xf]
      %v4487 = vld [vmem:[%s5 + $0x18] sm:$0xf]
      %v4488 = vld [vmem:[%s5 + $0x1c] sm:$0xf]
      %v4489 = vld [vmem:[#allocation2 + $0x90] sm:$0x1]
      %v4490 = vld [vmem:[%s1891] sm:$0xf]
      %v4491 = vld [vmem:[%s1891 + $0x4] sm:$0xf]
      %v4492 = vld [vmem:[%s1891 + $0x8] sm:$0xf]
      %v4493 = vld [vmem:[%s1891 + $0xc] sm:$0xf]
      %v4494 = vld [vmem:[%s1891 + $0x10] sm:$0xf]
      %v4495 = vld [vmem:[%s1891 + $0x14] sm:$0xf]
      %v4496 = vld [vmem:[%s1891 + $0x18] sm:$0xf]
      %v4497 = vld [vmem:[%s1891 + $0x1c] sm:$0xf]
      %v4517 = vunpack.c.l.b16 %v4463
      %v4518 = vunpack.c.l.b16 %v4464
      %v4519 = vunpack.c.l.b16 %v4465
      %v4520 = vunpack.c.l.b16 %v4466
      %v4521 = vunpack.c.l.b16 %v4467
      %v4522 = vunpack.c.l.b16 %v4468
      %v4523 = vunpack.c.l.b16 %v4469
      %v4524 = vunpack.c.l.b16 %v4470
      %v4525 = vunpack.c.l.b16 %v4471
      %v4526 = vunpack.c.l.b16 %v4472
      %v4527 = vunpack.c.l.b16 %v4473
      %v4528 = vunpack.c.l.b16 %v4474
      %v4529 = vunpack.c.l.b16 %v4475
      %v4530 = vunpack.c.l.b16 %v4476
      %v4531 = vunpack.c.l.b16 %v4477
      %v4532 = vunpack.c.l.b16 %v4478
      %v4533 = vunpack.c.l.b16 %v4479
      %v4534 = vunpack.c.l.b16 %v4480
      %v4535 = vunpack.c.l.b16 %v4489
      %v4536 = vpack.c.b16 %v4518, %v4517
      %v4537 = vpack.c.b16 %v4520, %v4519
      %v4538 = vpack.c.b16 %v4522, %v4521
      %v4539 = vpack.c.b16 %v4524, %v4523
      %v4540 = vpack.c.b16 %v4526, %v4525
      %v4541 = vpack.c.b16 %v4528, %v4527
      %v4542 = vpack.c.b16 %v4530, %v4529
      %v4543 = vpack.c.b16 %v4532, %v4531
      %v4544 = vpack.c.b16 %v4534, %v4533
      %v4545 = vpack.c.b16 %v4535, %v4535
      %v4547 = vshrl.u32 %v4536, 16
      %v4549 = vshll.u32 %v4536, 16
      %v4551 = vrot.slane %v4549, 1
      %v4552 = vor.u32 %v4547, %v4551
      %v4554 = vshll.u32 %v4537, 16
      %v4556 = vrot.slane %v4554, 1
      %v4557 = vsel %vm1948, %v4552, %v4556
      %v4558 = vshrl.u32 %v4537, 16
      %v4560 = vor.u32 %v4558, %v4556
      %v4562 = vshll.u32 %v4538, 16
      %v4564 = vrot.slane %v4562, 1
      %v4565 = vsel %vm1948, %v4560, %v4564
      %v4566 = vshrl.u32 %v4538, 16
      %v4568 = vor.u32 %v4566, %v4564
      %v4570 = vshll.u32 %v4539, 16
      %v4572 = vrot.slane %v4570, 1
      %v4573 = vsel %vm1948, %v4568, %v4572
      %v4574 = vshrl.u32 %v4539, 16
      %v4576 = vor.u32 %v4574, %v4572
      %v4578 = vshll.u32 %v4540, 16
      %v4580 = vrot.slane %v4578, 1
      %v4581 = vsel %vm1948, %v4576, %v4580
      %v4582 = vshrl.u32 %v4540, 16
      %v4584 = vor.u32 %v4582, %v4580
      %v4586 = vshll.u32 %v4541, 16
      %v4588 = vrot.slane %v4586, 1
      %v4589 = vsel %vm1948, %v4584, %v4588
      %v4590 = vshrl.u32 %v4541, 16
      %v4592 = vor.u32 %v4590, %v4588
      %v4594 = vshll.u32 %v4542, 16
      %v4596 = vrot.slane %v4594, 1
      %v4597 = vsel %vm1948, %v4592, %v4596
      %v4598 = vshrl.u32 %v4542, 16
      %v4600 = vor.u32 %v4598, %v4596
      %v4602 = vshll.u32 %v4543, 16
      %v4604 = vrot.slane %v4602, 1
      %v4605 = vsel %vm1948, %v4600, %v4604
      %v4606 = vshrl.u32 %v4543, 16
      %v4608 = vor.u32 %v4606, %v4604
      %v4610 = vshll.u32 %v4544, 16
      %v4612 = vrot.slane %v4610, 1
      %v4613 = vsel %vm1948, %v4608, %v4612
      %v4614 = vshrl.u32 %v4544, 16
      %v4616 = vor.u32 %v4614, %v4612
      %v4618 = vshll.u32 %v4545, 16
      %v4620 = vrot.slane %v4618, 1
      %v4621 = vsel %vm1948, %v4616, %v4620
      %v4630 = vunpack.c.l.b16 %v4490
      %v4631 = vunpack.c.l.b16 %v4491
      %v4632 = vunpack.c.l.b16 %v4492
      %v4633 = vunpack.c.l.b16 %v4493
      %v4634 = vunpack.c.l.b16 %v4494
      %v4635 = vunpack.c.l.b16 %v4495
      %v4636 = vunpack.c.l.b16 %v4496
      %v4637 = vunpack.c.l.b16 %v4497
      %v4638 = vpack.c.b16 %v4631, %v4630
      %v4639 = vpack.c.b16 %v4633, %v4632
      %v4640 = vpack.c.b16 %v4635, %v4634
      %v4641 = vpack.c.b16 %v4637, %v4636
      %v4647 = vsel %vm2049, %v4557, 0
      %v4650 = vsel %vm2049, %v4565, 0
      %v4653 = vsel %vm2049, %v4573, 0
      %v4656 = vsel %vm2049, %v4581, 0
      %v4659 = vsel %vm2049, %v4589, 0
      %v4662 = vsel %vm2049, %v4597, 0
      %v4665 = vsel %vm2049, %v4605, 0
      %v4668 = vsel %vm2049, %v4613, 0
      %v4671 = vsel %vm2049, %v4621, 0
      %4673 = vmatprep.subr.bf16.mxu0 0
      %4674 = vmatpush1.bf16.msra.mxu0 0
      %4675 = vmatprep.subr.bf16.mxu0 0
      %4676 = vmatpush1.bf16.msra.mxu0 0
      %4677 = vmatprep.subr.bf16.mxu0 0
      %4678 = vmatpush1.bf16.msra.mxu0 0
      %4679 = vmatprep.subr.bf16.mxu0 0
      %4680 = vmatpush1.bf16.msra.mxu0 0
      %4681 = vmatprep.subr.bf16.mxu0 0
      %4682 = vmatpush1.bf16.msra.mxu0 %v4641
      %4683 = vmatprep.subr.bf16.mxu0 0
      %4684 = vmatpush1.bf16.msra.mxu0 %v4640
      %4685 = vmatprep.subr.bf16.mxu0 0
      %4686 = vmatpush1.bf16.msra.mxu0 %v4639
      %4687 = vmatprep.subr.bf16.mxu0 0
      %4688 = vmatpush1.bf16.msra.mxu0 %v4638
      %4689 = vmatprep.subr.bf16.mxu0 0
      %4690 = vmatpush2.bf16.msra.mxu0 0
      %4691 = vmatprep.subr.bf16.mxu0 0
      %4692 = vmatpush2.bf16.msra.mxu0 0
      %4693 = vmatprep.subr.bf16.mxu0 0
      %4694 = vmatpush2.bf16.msra.mxu0 0
      %4695 = vmatprep.subr.bf16.mxu0 0
      %4696 = vmatpush2.bf16.msra.mxu0 0
      %4697 = vmatprep.subr.bf16.mxu0 0
      %4698 = vmatpush2.bf16.msra.mxu0 0
      %4699 = vmatprep.subr.bf16.mxu0 0
      %4700 = vmatpush2.bf16.msra.mxu0 0
      %4701 = vmatprep.subr.bf16.mxu0 0
      %4702 = vmatpush2.bf16.msra.mxu0 0
      %4703 = vmatprep.subr.bf16.mxu0 0
      %4704 = vmatpush2.bf16.msra.mxu0 0
      %4705 = vmatprep.mubr.bf16.mxu0 0
      %4706 = vmatmul.mubr.bf16.gmra.mxu0 %v4647
      %v4707 = vpop.f32.mrf.mxu0
      %v4708 = vadd.f32 0.0, %v4707
      %v4709 = vpop.f32.mrf.mxu0
      %v4710 = vpop.f32.mrf.mxu0
      %v4711 = vadd.f32 0.0, %v4710
      %v4712 = vpop.f32.mrf.mxu0
      %4713 = vmatprep.mubr.bf16.mxu0 0
      %4714 = vmatmul.mubr.bf16.gmra.mxu0 %v4650
      %v4715 = vpop.f32.mrf.mxu0
      %v4716 = vadd.f32 0.0, %v4715
      %v4717 = vpop.f32.mrf.mxu0
      %v4718 = vpop.f32.mrf.mxu0
      %v4719 = vadd.f32 0.0, %v4718
      %v4720 = vpop.f32.mrf.mxu0
      %4721 = vmatprep.mubr.bf16.mxu0 0
      %4722 = vmatmul.mubr.bf16.gmra.mxu0 %v4653
      %v4723 = vpop.f32.mrf.mxu0
      %v4724 = vadd.f32 0.0, %v4723
      %v4725 = vpop.f32.mrf.mxu0
      %v4726 = vpop.f32.mrf.mxu0
      %v4727 = vadd.f32 0.0, %v4726
      %v4728 = vpop.f32.mrf.mxu0
      %4729 = vmatprep.mubr.bf16.mxu0 0
      %4730 = vmatmul.mubr.bf16.gmra.mxu0 %v4656
      %v4731 = vpop.f32.mrf.mxu0
      %v4732 = vadd.f32 0.0, %v4731
      %v4733 = vpop.f32.mrf.mxu0
      %v4734 = vpop.f32.mrf.mxu0
      %v4735 = vadd.f32 0.0, %v4734
      %v4736 = vpop.f32.mrf.mxu0
      %4737 = vmatprep.mubr.bf16.mxu0 0
      %4738 = vmatmul.mubr.bf16.gmra.mxu0 %v4659
      %v4739 = vpop.f32.mrf.mxu0
      %v4740 = vadd.f32 0.0, %v4739
      %v4741 = vpop.f32.mrf.mxu0
      %v4742 = vpop.f32.mrf.mxu0
      %v4743 = vadd.f32 0.0, %v4742
      %v4744 = vpop.f32.mrf.mxu0
      %4745 = vmatprep.mubr.bf16.mxu0 0
      %4746 = vmatmul.mubr.bf16.gmra.mxu0 %v4662
      %v4747 = vpop.f32.mrf.mxu0
      %v4748 = vadd.f32 0.0, %v4747
      %v4749 = vpop.f32.mrf.mxu0
      %v4750 = vpop.f32.mrf.mxu0
      %v4751 = vadd.f32 0.0, %v4750
      %v4752 = vpop.f32.mrf.mxu0
      %4753 = vmatprep.mubr.bf16.mxu0 0
      %4754 = vmatmul.mubr.bf16.gmra.mxu0 %v4665
      %v4755 = vpop.f32.mrf.mxu0
      %v4756 = vadd.f32 0.0, %v4755
      %v4757 = vpop.f32.mrf.mxu0
      %v4758 = vpop.f32.mrf.mxu0
      %v4759 = vadd.f32 0.0, %v4758
      %v4760 = vpop.f32.mrf.mxu0
      %4761 = vmatprep.mubr.bf16.mxu0 0
      %4762 = vmatmul.mubr.bf16.gmra.mxu0 %v4668
      %v4763 = vpop.f32.mrf.mxu0
      %v4764 = vadd.f32 0.0, %v4763
      %v4765 = vpop.f32.mrf.mxu0
      %v4766 = vpop.f32.mrf.mxu0
      %v4767 = vadd.f32 0.0, %v4766
      %v4768 = vpop.f32.mrf.mxu0
      %4769 = vmatprep.mubr.bf16.mxu0 0
      %4770 = vmatmul.mubr.bf16.gmra.mxu0 %v4671
      %v4771 = vpop.f32.mrf.mxu0
      %v4772 = vadd.f32 0.0, %v4771
      %v4773 = vpop.f32.mrf.mxu0
      %v4774 = vpop.f32.mrf.mxu0
      %v4775 = vadd.f32 0.0, %v4774
      %v4776 = vpop.f32.mrf.mxu0
      %4777 = vdwg.mxu0
      %v4786 = vunpack.c.l.b16 %v4481
      %v4787 = vunpack.c.l.b16 %v4482
      %v4788 = vunpack.c.l.b16 %v4483
      %v4789 = vunpack.c.l.b16 %v4484
      %v4790 = vunpack.c.l.b16 %v4485
      %v4791 = vunpack.c.l.b16 %v4486
      %v4792 = vunpack.c.l.b16 %v4487
      %v4793 = vunpack.c.l.b16 %v4488
      %v4794 = vpack.c.b16 %v4787, %v4786
      %v4795 = vpack.c.b16 %v4789, %v4788
      %v4796 = vpack.c.b16 %v4791, %v4790
      %v4797 = vpack.c.b16 %v4793, %v4792
      %v4802 = vsel %vm2049, %v4536, 0
      %v4804 = vsel %vm2049, %v4537, 0
      %v4806 = vsel %vm2049, %v4538, 0
      %v4808 = vsel %vm2049, %v4539, 0
      %v4810 = vsel %vm2049, %v4540, 0
      %v4812 = vsel %vm2049, %v4541, 0
      %v4814 = vsel %vm2049, %v4542, 0
      %v4816 = vsel %vm2049, %v4543, 0
      %v4818 = vsel %vm2049, %v4544, 0
      %4820 = vmatprep.subr.bf16.mxu0 0
      %4821 = vmatpush1.bf16.msra.mxu0 0
      %4822 = vmatprep.subr.bf16.mxu0 0
      %4823 = vmatpush1.bf16.msra.mxu0 0
      %4824 = vmatprep.subr.bf16.mxu0 0
      %4825 = vmatpush1.bf16.msra.mxu0 0
      %4826 = vmatprep.subr.bf16.mxu0 0
      %4827 = vmatpush1.bf16.msra.mxu0 0
      %4828 = vmatprep.subr.bf16.mxu0 0
      %4829 = vmatpush1.bf16.msra.mxu0 %v4797
      %4830 = vmatprep.subr.bf16.mxu0 0
      %4831 = vmatpush1.bf16.msra.mxu0 %v4796
      %4832 = vmatprep.subr.bf16.mxu0 0
      %4833 = vmatpush1.bf16.msra.mxu0 %v4795
      %4834 = vmatprep.subr.bf16.mxu0 0
      %4835 = vmatpush1.bf16.msra.mxu0 %v4794
      %4836 = vmatprep.subr.bf16.mxu0 0
      %4837 = vmatpush2.bf16.msra.mxu0 0
      %4838 = vmatprep.subr.bf16.mxu0 0
      %4839 = vmatpush2.bf16.msra.mxu0 0
      %4840 = vmatprep.subr.bf16.mxu0 0
      %4841 = vmatpush2.bf16.msra.mxu0 0
      %4842 = vmatprep.subr.bf16.mxu0 0
      %4843 = vmatpush2.bf16.msra.mxu0 0
      %4844 = vmatprep.subr.bf16.mxu0 0
      %4845 = vmatpush2.bf16.msra.mxu0 0
      %4846 = vmatprep.subr.bf16.mxu0 0
      %4847 = vmatpush2.bf16.msra.mxu0 0
      %4848 = vmatprep.subr.bf16.mxu0 0
      %4849 = vmatpush2.bf16.msra.mxu0 0
      %4850 = vmatprep.subr.bf16.mxu0 0
      %4851 = vmatpush2.bf16.msra.mxu0 0
      %4852 = vmatprep.mubr.bf16.mxu0 0
      %4853 = vmatmul.mubr.bf16.gmra.mxu0 %v4802
      %v4854 = vpop.f32.mrf.mxu0
      %v4855 = vadd.f32 %v4708, %v4854
      %v4856 = vpop.f32.mrf.mxu0
      %v4857 = vpop.f32.mrf.mxu0
      %v4858 = vadd.f32 %v4711, %v4857
      %v4859 = vpop.f32.mrf.mxu0
      %4860 = vmatprep.mubr.bf16.mxu0 0
      %4861 = vmatmul.mubr.bf16.gmra.mxu0 %v4804
      %v4862 = vpop.f32.mrf.mxu0
      %v4863 = vadd.f32 %v4716, %v4862
      %v4864 = vpop.f32.mrf.mxu0
      %v4865 = vpop.f32.mrf.mxu0
      %v4866 = vadd.f32 %v4719, %v4865
      %v4867 = vpop.f32.mrf.mxu0
      %4868 = vmatprep.mubr.bf16.mxu0 0
      %4869 = vmatmul.mubr.bf16.gmra.mxu0 %v4806
      %v4870 = vpop.f32.mrf.mxu0
      %v4871 = vadd.f32 %v4724, %v4870
      %v4872 = vpop.f32.mrf.mxu0
      %v4873 = vpop.f32.mrf.mxu0
      %v4874 = vadd.f32 %v4727, %v4873
      %v4875 = vpop.f32.mrf.mxu0
      %4876 = vmatprep.mubr.bf16.mxu0 0
      %4877 = vmatmul.mubr.bf16.gmra.mxu0 %v4808
      %v4878 = vpop.f32.mrf.mxu0
      %v4879 = vadd.f32 %v4732, %v4878
      %v4880 = vpop.f32.mrf.mxu0
      %v4881 = vpop.f32.mrf.mxu0
      %v4882 = vadd.f32 %v4735, %v4881
      %v4883 = vpop.f32.mrf.mxu0
      %4884 = vmatprep.mubr.bf16.mxu0 0
      %4885 = vmatmul.mubr.bf16.gmra.mxu0 %v4810
      %v4886 = vpop.f32.mrf.mxu0
      %v4887 = vadd.f32 %v4740, %v4886
      %v4888 = vpop.f32.mrf.mxu0
      %v4889 = vpop.f32.mrf.mxu0
      %v4890 = vadd.f32 %v4743, %v4889
      %v4891 = vpop.f32.mrf.mxu0
      %4892 = vmatprep.mubr.bf16.mxu0 0
      %4893 = vmatmul.mubr.bf16.gmra.mxu0 %v4812
      %v4894 = vpop.f32.mrf.mxu0
      %v4895 = vadd.f32 %v4748, %v4894
      %v4896 = vpop.f32.mrf.mxu0
      %v4897 = vpop.f32.mrf.mxu0
      %v4898 = vadd.f32 %v4751, %v4897
      %v4899 = vpop.f32.mrf.mxu0
      %4900 = vmatprep.mubr.bf16.mxu0 0
      %4901 = vmatmul.mubr.bf16.gmra.mxu0 %v4814
      %v4902 = vpop.f32.mrf.mxu0
      %v4903 = vadd.f32 %v4756, %v4902
      %v4904 = vpop.f32.mrf.mxu0
      %v4905 = vpop.f32.mrf.mxu0
      %v4906 = vadd.f32 %v4759, %v4905
      %v4907 = vpop.f32.mrf.mxu0
      %4908 = vmatprep.mubr.bf16.mxu0 0
      %4909 = vmatmul.mubr.bf16.gmra.mxu0 %v4816
      %v4910 = vpop.f32.mrf.mxu0
      %v4911 = vadd.f32 %v4764, %v4910
      %v4912 = vpop.f32.mrf.mxu0
      %v4913 = vpop.f32.mrf.mxu0
      %v4914 = vadd.f32 %v4767, %v4913
      %v4915 = vpop.f32.mrf.mxu0
      %4916 = vmatprep.mubr.bf16.mxu0 0
      %4917 = vmatmul.mubr.bf16.gmra.mxu0 %v4818
      %v4918 = vpop.f32.mrf.mxu0
      %v4919 = vadd.f32 %v4772, %v4918
      %v4920 = vpop.f32.mrf.mxu0
      %v4921 = vpop.f32.mrf.mxu0
      %v4922 = vadd.f32 %v4775, %v4921
      %v4923 = vpop.f32.mrf.mxu0
      %4924 = vdwg.mxu0
      %v4925 = vld [vmem:[#allocation2 + $0x48] sm:$0xe]
      %v4926 = vld [vmem:[%s2330] sm:$0xf]
      %v4927 = vld [vmem:[%s2330 + $0x4] sm:$0xf]
      %v4928 = vld [vmem:[%s2330 + $0x8] sm:$0xf]
      %v4929 = vld [vmem:[%s2330 + $0xc] sm:$0xf]
      %v4930 = vld [vmem:[%s2330 + $0x10] sm:$0xf]
      %v4931 = vld [vmem:[%s2330 + $0x14] sm:$0xf]
      %v4932 = vld [vmem:[%s2330 + $0x18] sm:$0xf]
      %v4933 = vld [vmem:[%s2330 + $0x1c] sm:$0xf]
      %v4935 = vunpack.c.l.b16 %v4925
      %v4936 = vpack.c.b16 %v4518, %v4935
      %v4937 = vrot.slane %v4936, 1
      %v4938 = vrot.slane %v4537, 1
      %v4939 = vsel %vm2342, %v4937, %v4938
      %v4940 = vrot.slane %v4538, 1
      %v4941 = vsel %vm2342, %v4938, %v4940
      %v4942 = vrot.slane %v4539, 1
      %v4943 = vsel %vm2342, %v4940, %v4942
      %v4944 = vrot.slane %v4540, 1
      %v4945 = vsel %vm2342, %v4942, %v4944
      %v4946 = vrot.slane %v4541, 1
      %v4947 = vsel %vm2342, %v4944, %v4946
      %v4948 = vrot.slane %v4542, 1
      %v4949 = vsel %vm2342, %v4946, %v4948
      %v4950 = vrot.slane %v4543, 1
      %v4951 = vsel %vm2342, %v4948, %v4950
      %v4952 = vrot.slane %v4544, 1
      %v4953 = vsel %vm2342, %v4950, %v4952
      %v4954 = vrot.slane %v4545, 1
      %v4955 = vsel %vm2342, %v4952, %v4954
      %v4964 = vunpack.c.l.b16 %v4926
      %v4965 = vunpack.c.l.b16 %v4927
      %v4966 = vunpack.c.l.b16 %v4928
      %v4967 = vunpack.c.l.b16 %v4929
      %v4968 = vunpack.c.l.b16 %v4930
      %v4969 = vunpack.c.l.b16 %v4931
      %v4970 = vunpack.c.l.b16 %v4932
      %v4971 = vunpack.c.l.b16 %v4933
      %v4972 = vpack.c.b16 %v4965, %v4964
      %v4973 = vpack.c.b16 %v4967, %v4966
      %v4974 = vpack.c.b16 %v4969, %v4968
      %v4975 = vpack.c.b16 %v4971, %v4970
      %v4981 = vsel %vm2049, %v4939, 0
      %v4984 = vsel %vm2049, %v4941, 0
      %v4987 = vsel %vm2049, %v4943, 0
      %v4990 = vsel %vm2049, %v4945, 0
      %v4993 = vsel %vm2049, %v4947, 0
      %v4996 = vsel %vm2049, %v4949, 0
      %v4999 = vsel %vm2049, %v4951, 0
      %v5002 = vsel %vm2049, %v4953, 0
      %v5005 = vsel %vm2049, %v4955, 0
      %5007 = vmatprep.subr.bf16.mxu0 0
      %5008 = vmatpush1.bf16.msra.mxu0 0
      %5009 = vmatprep.subr.bf16.mxu0 0
      %5010 = vmatpush1.bf16.msra.mxu0 0
      %5011 = vmatprep.subr.bf16.mxu0 0
      %5012 = vmatpush1.bf16.msra.mxu0 0
      %5013 = vmatprep.subr.bf16.mxu0 0
      %5014 = vmatpush1.bf16.msra.mxu0 0
      %5015 = vmatprep.subr.bf16.mxu0 0
      %5016 = vmatpush1.bf16.msra.mxu0 %v4975
      %5017 = vmatprep.subr.bf16.mxu0 0
      %5018 = vmatpush1.bf16.msra.mxu0 %v4974
      %5019 = vmatprep.subr.bf16.mxu0 0
      %5020 = vmatpush1.bf16.msra.mxu0 %v4973
      %5021 = vmatprep.subr.bf16.mxu0 0
      %5022 = vmatpush1.bf16.msra.mxu0 %v4972
      %5023 = vmatprep.subr.bf16.mxu0 0
      %5024 = vmatpush2.bf16.msra.mxu0 0
      %5025 = vmatprep.subr.bf16.mxu0 0
      %5026 = vmatpush2.bf16.msra.mxu0 0
      %5027 = vmatprep.subr.bf16.mxu0 0
      %5028 = vmatpush2.bf16.msra.mxu0 0
      %5029 = vmatprep.subr.bf16.mxu0 0
      %5030 = vmatpush2.bf16.msra.mxu0 0
      %5031 = vmatprep.subr.bf16.mxu0 0
      %5032 = vmatpush2.bf16.msra.mxu0 0
      %5033 = vmatprep.subr.bf16.mxu0 0
      %5034 = vmatpush2.bf16.msra.mxu0 0
      %5035 = vmatprep.subr.bf16.mxu0 0
      %5036 = vmatpush2.bf16.msra.mxu0 0
      %5037 = vmatprep.subr.bf16.mxu0 0
      %5038 = vmatpush2.bf16.msra.mxu0 0
      %5039 = vmatprep.mubr.bf16.mxu0 0
      %5040 = vmatmul.mubr.bf16.gmra.mxu0 %v4981
      %v5041 = vpop.f32.mrf.mxu0
      %v5042 = vadd.f32 0.0, %v5041
      %v5043 = vpop.f32.mrf.mxu0
      %v5044 = vpop.f32.mrf.mxu0
      %v5045 = vadd.f32 0.0, %v5044
      %v5046 = vpop.f32.mrf.mxu0
      %5047 = vmatprep.mubr.bf16.mxu0 0
      %5048 = vmatmul.mubr.bf16.gmra.mxu0 %v4984
      %v5049 = vpop.f32.mrf.mxu0
      %v5050 = vadd.f32 0.0, %v5049
      %v5051 = vpop.f32.mrf.mxu0
      %v5052 = vpop.f32.mrf.mxu0
      %v5053 = vadd.f32 0.0, %v5052
      %v5054 = vpop.f32.mrf.mxu0
      %5055 = vmatprep.mubr.bf16.mxu0 0
      %5056 = vmatmul.mubr.bf16.gmra.mxu0 %v4987
      %v5057 = vpop.f32.mrf.mxu0
      %v5058 = vadd.f32 0.0, %v5057
      %v5059 = vpop.f32.mrf.mxu0
      %v5060 = vpop.f32.mrf.mxu0
      %v5061 = vadd.f32 0.0, %v5060
      %v5062 = vpop.f32.mrf.mxu0
      %5063 = vmatprep.mubr.bf16.mxu0 0
      %5064 = vmatmul.mubr.bf16.gmra.mxu0 %v4990
      %v5065 = vpop.f32.mrf.mxu0
      %v5066 = vadd.f32 0.0, %v5065
      %v5067 = vpop.f32.mrf.mxu0
      %v5068 = vpop.f32.mrf.mxu0
      %v5069 = vadd.f32 0.0, %v5068
      %v5070 = vpop.f32.mrf.mxu0
      %5071 = vmatprep.mubr.bf16.mxu0 0
      %5072 = vmatmul.mubr.bf16.gmra.mxu0 %v4993
      %v5073 = vpop.f32.mrf.mxu0
      %v5074 = vadd.f32 0.0, %v5073
      %v5075 = vpop.f32.mrf.mxu0
      %v5076 = vpop.f32.mrf.mxu0
      %v5077 = vadd.f32 0.0, %v5076
      %v5078 = vpop.f32.mrf.mxu0
      %5079 = vmatprep.mubr.bf16.mxu0 0
      %5080 = vmatmul.mubr.bf16.gmra.mxu0 %v4996
      %v5081 = vpop.f32.mrf.mxu0
      %v5082 = vadd.f32 0.0, %v5081
      %v5083 = vpop.f32.mrf.mxu0
      %v5084 = vpop.f32.mrf.mxu0
      %v5085 = vadd.f32 0.0, %v5084
      %v5086 = vpop.f32.mrf.mxu0
      %5087 = vmatprep.mubr.bf16.mxu0 0
      %5088 = vmatmul.mubr.bf16.gmra.mxu0 %v4999
      %v5089 = vpop.f32.mrf.mxu0
      %v5090 = vadd.f32 0.0, %v5089
      %v5091 = vpop.f32.mrf.mxu0
      %v5092 = vpop.f32.mrf.mxu0
      %v5093 = vadd.f32 0.0, %v5092
      %v5094 = vpop.f32.mrf.mxu0
      %5095 = vmatprep.mubr.bf16.mxu0 0
      %5096 = vmatmul.mubr.bf16.gmra.mxu0 %v5002
      %v5097 = vpop.f32.mrf.mxu0
      %v5098 = vadd.f32 0.0, %v5097
      %v5099 = vpop.f32.mrf.mxu0
      %v5100 = vpop.f32.mrf.mxu0
      %v5101 = vadd.f32 0.0, %v5100
      %v5102 = vpop.f32.mrf.mxu0
      %5103 = vmatprep.mubr.bf16.mxu0 0
      %5104 = vmatmul.mubr.bf16.gmra.mxu0 %v5005
      %v5105 = vpop.f32.mrf.mxu0
      %v5106 = vadd.f32 0.0, %v5105
      %v5107 = vpop.f32.mrf.mxu0
      %v5108 = vpop.f32.mrf.mxu0
      %v5109 = vadd.f32 0.0, %v5108
      %v5110 = vpop.f32.mrf.mxu0
      %5111 = vdwg.mxu0
      %v5112 = vadd.f32 %v4855, %v5042
      %v5113 = vadd.f32 %v4858, %v5045
      %v5114 = vadd.f32 %v4863, %v5050
      %v5115 = vadd.f32 %v4866, %v5053
      %v5116 = vadd.f32 %v4871, %v5058
      %v5117 = vadd.f32 %v4874, %v5061
      %v5118 = vadd.f32 %v4879, %v5066
      %v5119 = vadd.f32 %v4882, %v5069
      %v5120 = vadd.f32 %v4887, %v5074
      %v5121 = vadd.f32 %v4890, %v5077
      %v5122 = vadd.f32 %v4895, %v5082
      %v5123 = vadd.f32 %v4898, %v5085
      %v5124 = vadd.f32 %v4903, %v5090
      %v5125 = vadd.f32 %v4906, %v5093
      %v5126 = vadd.f32 %v4911, %v5098
      %v5127 = vadd.f32 %v4914, %v5101
      %v5128 = vadd.f32 %v4919, %v5106
      %v5129 = vadd.f32 %v4922, %v5109
      %v5130 = vld [vmem:[#allocation2 + $0x50] sm:$0xe]
      %v5131 = vld [vmem:[#allocation2 + $0x54] sm:$0xf]
      %v5132 = vld [vmem:[#allocation2 + $0x58] sm:$0xf]
      %v5133 = vld [vmem:[#allocation2 + $0x5c] sm:$0xf]
      %v5134 = vld [vmem:[#allocation2 + $0x60] sm:$0xf]
      %v5135 = vld [vmem:[#allocation2 + $0x64] sm:$0xf]
      %v5136 = vld [vmem:[#allocation2 + $0x68] sm:$0xf]
      %v5137 = vld [vmem:[#allocation2 + $0x6c] sm:$0xf]
      %v5138 = vld [vmem:[#allocation2 + $0x70] sm:$0xf]
      %v5139 = vld [vmem:[#allocation2 + $0x74] sm:$0xf]
      %v5140 = vld [vmem:[#allocation2 + $0x78] sm:$0xf]
      %v5141 = vld [vmem:[#allocation2 + $0x7c] sm:$0xf]
      %v5142 = vld [vmem:[#allocation2 + $0x80] sm:$0xf]
      %v5143 = vld [vmem:[#allocation2 + $0x84] sm:$0xf]
      %v5144 = vld [vmem:[#allocation2 + $0x88] sm:$0xf]
      %v5145 = vld [vmem:[#allocation2 + $0x8c] sm:$0xf]
      %v5146 = vld [vmem:[#allocation2 + $0x90] sm:$0xf]
      %v5147 = vld [vmem:[#allocation2 + $0x94] sm:$0xf]
      %v5148 = vld [vmem:[#allocation2 + $0x98] sm:$0x1]
      %v5149 = vld [vmem:[%s2555] sm:$0xf]
      %v5150 = vld [vmem:[%s2555 + $0x4] sm:$0xf]
      %v5151 = vld [vmem:[%s2555 + $0x8] sm:$0xf]
      %v5152 = vld [vmem:[%s2555 + $0xc] sm:$0xf]
      %v5153 = vld [vmem:[%s2555 + $0x10] sm:$0xf]
      %v5154 = vld [vmem:[%s2555 + $0x14] sm:$0xf]
      %v5155 = vld [vmem:[%s2555 + $0x18] sm:$0xf]
      %v5156 = vld [vmem:[%s2555 + $0x1c] sm:$0xf]
      %v5176 = vunpack.c.l.b16 %v5130
      %v5177 = vunpack.c.l.b16 %v5131
      %v5178 = vunpack.c.l.b16 %v5132
      %v5179 = vunpack.c.l.b16 %v5133
      %v5180 = vunpack.c.l.b16 %v5134
      %v5181 = vunpack.c.l.b16 %v5135
      %v5182 = vunpack.c.l.b16 %v5136
      %v5183 = vunpack.c.l.b16 %v5137
      %v5184 = vunpack.c.l.b16 %v5138
      %v5185 = vunpack.c.l.b16 %v5139
      %v5186 = vunpack.c.l.b16 %v5140
      %v5187 = vunpack.c.l.b16 %v5141
      %v5188 = vunpack.c.l.b16 %v5142
      %v5189 = vunpack.c.l.b16 %v5143
      %v5190 = vunpack.c.l.b16 %v5144
      %v5191 = vunpack.c.l.b16 %v5145
      %v5192 = vunpack.c.l.b16 %v5146
      %v5193 = vunpack.c.l.b16 %v5147
      %v5194 = vunpack.c.l.b16 %v5148
      %v5195 = vpack.c.b16 %v5177, %v5176
      %v5196 = vpack.c.b16 %v5179, %v5178
      %v5197 = vpack.c.b16 %v5181, %v5180
      %v5198 = vpack.c.b16 %v5183, %v5182
      %v5199 = vpack.c.b16 %v5185, %v5184
      %v5200 = vpack.c.b16 %v5187, %v5186
      %v5201 = vpack.c.b16 %v5189, %v5188
      %v5202 = vpack.c.b16 %v5191, %v5190
      %v5203 = vpack.c.b16 %v5193, %v5192
      %v5204 = vpack.c.b16 %v5194, %v5194
      %v5205 = vrot.slane %v5195, 1
      %v5206 = vrot.slane %v5196, 1
      %v5207 = vsel %vm2342, %v5205, %v5206
      %v5208 = vrot.slane %v5197, 1
      %v5209 = vsel %vm2342, %v5206, %v5208
      %v5210 = vrot.slane %v5198, 1
      %v5211 = vsel %vm2342, %v5208, %v5210
      %v5212 = vrot.slane %v5199, 1
      %v5213 = vsel %vm2342, %v5210, %v5212
      %v5214 = vrot.slane %v5200, 1
      %v5215 = vsel %vm2342, %v5212, %v5214
      %v5216 = vrot.slane %v5201, 1
      %v5217 = vsel %vm2342, %v5214, %v5216
      %v5218 = vrot.slane %v5202, 1
      %v5219 = vsel %vm2342, %v5216, %v5218
      %v5220 = vrot.slane %v5203, 1
      %v5221 = vsel %vm2342, %v5218, %v5220
      %v5222 = vrot.slane %v5204, 1
      %v5223 = vsel %vm2342, %v5220, %v5222
      %v5232 = vunpack.c.l.b16 %v5149
      %v5233 = vunpack.c.l.b16 %v5150
      %v5234 = vunpack.c.l.b16 %v5151
      %v5235 = vunpack.c.l.b16 %v5152
      %v5236 = vunpack.c.l.b16 %v5153
      %v5237 = vunpack.c.l.b16 %v5154
      %v5238 = vunpack.c.l.b16 %v5155
      %v5239 = vunpack.c.l.b16 %v5156
      %v5240 = vpack.c.b16 %v5233, %v5232
      %v5241 = vpack.c.b16 %v5235, %v5234
      %v5242 = vpack.c.b16 %v5237, %v5236
      %v5243 = vpack.c.b16 %v5239, %v5238
      %v5249 = vsel %vm2049, %v5207, 0
      %v5252 = vsel %vm2049, %v5209, 0
      %v5255 = vsel %vm2049, %v5211, 0
      %v5258 = vsel %vm2049, %v5213, 0
      %v5261 = vsel %vm2049, %v5215, 0
      %v5264 = vsel %vm2049, %v5217, 0
      %v5267 = vsel %vm2049, %v5219, 0
      %v5270 = vsel %vm2049, %v5221, 0
      %v5273 = vsel %vm2049, %v5223, 0
      %5275 = vmatprep.subr.bf16.mxu0 0
      %5276 = vmatpush1.bf16.msra.mxu0 0
      %5277 = vmatprep.subr.bf16.mxu0 0
      %5278 = vmatpush1.bf16.msra.mxu0 0
      %5279 = vmatprep.subr.bf16.mxu0 0
      %5280 = vmatpush1.bf16.msra.mxu0 0
      %5281 = vmatprep.subr.bf16.mxu0 0
      %5282 = vmatpush1.bf16.msra.mxu0 0
      %5283 = vmatprep.subr.bf16.mxu0 0
      %5284 = vmatpush1.bf16.msra.mxu0 %v5243
      %5285 = vmatprep.subr.bf16.mxu0 0
      %5286 = vmatpush1.bf16.msra.mxu0 %v5242
      %5287 = vmatprep.subr.bf16.mxu0 0
      %5288 = vmatpush1.bf16.msra.mxu0 %v5241
      %5289 = vmatprep.subr.bf16.mxu0 0
      %5290 = vmatpush1.bf16.msra.mxu0 %v5240
      %5291 = vmatprep.subr.bf16.mxu0 0
      %5292 = vmatpush2.bf16.msra.mxu0 0
      %5293 = vmatprep.subr.bf16.mxu0 0
      %5294 = vmatpush2.bf16.msra.mxu0 0
      %5295 = vmatprep.subr.bf16.mxu0 0
      %5296 = vmatpush2.bf16.msra.mxu0 0
      %5297 = vmatprep.subr.bf16.mxu0 0
      %5298 = vmatpush2.bf16.msra.mxu0 0
      %5299 = vmatprep.subr.bf16.mxu0 0
      %5300 = vmatpush2.bf16.msra.mxu0 0
      %5301 = vmatprep.subr.bf16.mxu0 0
      %5302 = vmatpush2.bf16.msra.mxu0 0
      %5303 = vmatprep.subr.bf16.mxu0 0
      %5304 = vmatpush2.bf16.msra.mxu0 0
      %5305 = vmatprep.subr.bf16.mxu0 0
      %5306 = vmatpush2.bf16.msra.mxu0 0
      %5307 = vmatprep.mubr.bf16.mxu0 0
      %5308 = vmatmul.mubr.bf16.gmra.mxu0 %v5249
      %v5309 = vpop.f32.mrf.mxu0
      %v5310 = vadd.f32 0.0, %v5309
      %v5311 = vpop.f32.mrf.mxu0
      %v5312 = vpop.f32.mrf.mxu0
      %v5313 = vadd.f32 0.0, %v5312
      %v5314 = vpop.f32.mrf.mxu0
      %5315 = vmatprep.mubr.bf16.mxu0 0
      %5316 = vmatmul.mubr.bf16.gmra.mxu0 %v5252
      %v5317 = vpop.f32.mrf.mxu0
      %v5318 = vadd.f32 0.0, %v5317
      %v5319 = vpop.f32.mrf.mxu0
      %v5320 = vpop.f32.mrf.mxu0
      %v5321 = vadd.f32 0.0, %v5320
      %v5322 = vpop.f32.mrf.mxu0
      %5323 = vmatprep.mubr.bf16.mxu0 0
      %5324 = vmatmul.mubr.bf16.gmra.mxu0 %v5255
      %v5325 = vpop.f32.mrf.mxu0
      %v5326 = vadd.f32 0.0, %v5325
      %v5327 = vpop.f32.mrf.mxu0
      %v5328 = vpop.f32.mrf.mxu0
      %v5329 = vadd.f32 0.0, %v5328
      %v5330 = vpop.f32.mrf.mxu0
      %5331 = vmatprep.mubr.bf16.mxu0 0
      %5332 = vmatmul.mubr.bf16.gmra.mxu0 %v5258
      %v5333 = vpop.f32.mrf.mxu0
      %v5334 = vadd.f32 0.0, %v5333
      %v5335 = vpop.f32.mrf.mxu0
      %v5336 = vpop.f32.mrf.mxu0
      %v5337 = vadd.f32 0.0, %v5336
      %v5338 = vpop.f32.mrf.mxu0
      %5339 = vmatprep.mubr.bf16.mxu0 0
      %5340 = vmatmul.mubr.bf16.gmra.mxu0 %v5261
      %v5341 = vpop.f32.mrf.mxu0
      %v5342 = vadd.f32 0.0, %v5341
      %v5343 = vpop.f32.mrf.mxu0
      %v5344 = vpop.f32.mrf.mxu0
      %v5345 = vadd.f32 0.0, %v5344
      %v5346 = vpop.f32.mrf.mxu0
      %5347 = vmatprep.mubr.bf16.mxu0 0
      %5348 = vmatmul.mubr.bf16.gmra.mxu0 %v5264
      %v5349 = vpop.f32.mrf.mxu0
      %v5350 = vadd.f32 0.0, %v5349
      %v5351 = vpop.f32.mrf.mxu0
      %v5352 = vpop.f32.mrf.mxu0
      %v5353 = vadd.f32 0.0, %v5352
      %v5354 = vpop.f32.mrf.mxu0
      %5355 = vmatprep.mubr.bf16.mxu0 0
      %5356 = vmatmul.mubr.bf16.gmra.mxu0 %v5267
      %v5357 = vpop.f32.mrf.mxu0
      %v5358 = vadd.f32 0.0, %v5357
      %v5359 = vpop.f32.mrf.mxu0
      %v5360 = vpop.f32.mrf.mxu0
      %v5361 = vadd.f32 0.0, %v5360
      %v5362 = vpop.f32.mrf.mxu0
      %5363 = vmatprep.mubr.bf16.mxu0 0
      %5364 = vmatmul.mubr.bf16.gmra.mxu0 %v5270
      %v5365 = vpop.f32.mrf.mxu0
      %v5366 = vadd.f32 0.0, %v5365
      %v5367 = vpop.f32.mrf.mxu0
      %v5368 = vpop.f32.mrf.mxu0
      %v5369 = vadd.f32 0.0, %v5368
      %v5370 = vpop.f32.mrf.mxu0
      %5371 = vmatprep.mubr.bf16.mxu0 0
      %5372 = vmatmul.mubr.bf16.gmra.mxu0 %v5273
      %v5373 = vpop.f32.mrf.mxu0
      %v5374 = vadd.f32 0.0, %v5373
      %v5375 = vpop.f32.mrf.mxu0
      %v5376 = vpop.f32.mrf.mxu0
      %v5377 = vadd.f32 0.0, %v5376
      %v5378 = vpop.f32.mrf.mxu0
      %5379 = vdwg.mxu0
      %v5380 = vadd.f32 %v5112, %v5310
      %v5381 = vadd.f32 %v5113, %v5313
      %v5382 = vadd.f32 %v5114, %v5318
      %v5383 = vadd.f32 %v5115, %v5321
      %v5384 = vadd.f32 %v5116, %v5326
      %v5385 = vadd.f32 %v5117, %v5329
      %v5386 = vadd.f32 %v5118, %v5334
      %v5387 = vadd.f32 %v5119, %v5337
      %v5388 = vadd.f32 %v5120, %v5342
      %v5389 = vadd.f32 %v5121, %v5345
      %v5390 = vadd.f32 %v5122, %v5350
      %v5391 = vadd.f32 %v5123, %v5353
      %v5392 = vadd.f32 %v5124, %v5358
      %v5393 = vadd.f32 %v5125, %v5361
      %v5394 = vadd.f32 %v5126, %v5366
      %v5395 = vadd.f32 %v5127, %v5369
      %v5396 = vadd.f32 %v5128, %v5374
      %v5397 = vadd.f32 %v5129, %v5377
      %v5398 = vld [vmem:[#allocation2 + $0x98] sm:$0x3]
      %v5399 = vld [vmem:[%s2806] sm:$0xf]
      %v5400 = vld [vmem:[%s2806 + $0x4] sm:$0xf]
      %v5401 = vld [vmem:[%s2806 + $0x8] sm:$0xf]
      %v5402 = vld [vmem:[%s2806 + $0xc] sm:$0xf]
      %v5403 = vld [vmem:[%s2806 + $0x10] sm:$0xf]
      %v5404 = vld [vmem:[%s2806 + $0x14] sm:$0xf]
      %v5405 = vld [vmem:[%s2806 + $0x18] sm:$0xf]
      %v5406 = vld [vmem:[%s2806 + $0x1c] sm:$0xf]
      %v5408 = vunpack.c.l.b16 %v5398
      %v5409 = vpack.c.b16 %v5408, %v5408
      %v5411 = vshrl.u32 %v5195, 16
      %v5413 = vrot.slane %v5411, 1
      %v5414 = vshll.u32 %v5195, 16
      %v5416 = vrot.slane %v5414, 2
      %v5417 = vor.u32 %v5413, %v5416
      %v5419 = vshrl.u32 %v5196, 16
      %v5421 = vrot.slane %v5419, 1
      %v5422 = vshll.u32 %v5196, 16
      %v5424 = vrot.slane %v5422, 2
      %v5425 = vor.u32 %v5421, %v5424
      %v5426 = vsel %vm2818, %v5417, %v5425
      %v5428 = vshrl.u32 %v5197, 16
      %v5430 = vrot.slane %v5428, 1
      %v5431 = vshll.u32 %v5197, 16
      %v5433 = vrot.slane %v5431, 2
      %v5434 = vor.u32 %v5430, %v5433
      %v5435 = vsel %vm2818, %v5425, %v5434
      %v5437 = vshrl.u32 %v5198, 16
      %v5439 = vrot.slane %v5437, 1
      %v5440 = vshll.u32 %v5198, 16
      %v5442 = vrot.slane %v5440, 2
      %v5443 = vor.u32 %v5439, %v5442
      %v5444 = vsel %vm2818, %v5434, %v5443
      %v5446 = vshrl.u32 %v5199, 16
      %v5448 = vrot.slane %v5446, 1
      %v5449 = vshll.u32 %v5199, 16
      %v5451 = vrot.slane %v5449, 2
      %v5452 = vor.u32 %v5448, %v5451
      %v5453 = vsel %vm2818, %v5443, %v5452
      %v5455 = vshrl.u32 %v5200, 16
      %v5457 = vrot.slane %v5455, 1
      %v5458 = vshll.u32 %v5200, 16
      %v5460 = vrot.slane %v5458, 2
      %v5461 = vor.u32 %v5457, %v5460
      %v5462 = vsel %vm2818, %v5452, %v5461
      %v5464 = vshrl.u32 %v5201, 16
      %v5466 = vrot.slane %v5464, 1
      %v5467 = vshll.u32 %v5201, 16
      %v5469 = vrot.slane %v5467, 2
      %v5470 = vor.u32 %v5466, %v5469
      %v5471 = vsel %vm2818, %v5461, %v5470
      %v5473 = vshrl.u32 %v5202, 16
      %v5475 = vrot.slane %v5473, 1
      %v5476 = vshll.u32 %v5202, 16
      %v5478 = vrot.slane %v5476, 2
      %v5479 = vor.u32 %v5475, %v5478
      %v5480 = vsel %vm2818, %v5470, %v5479
      %v5482 = vshrl.u32 %v5203, 16
      %v5484 = vrot.slane %v5482, 1
      %v5485 = vshll.u32 %v5203, 16
      %v5487 = vrot.slane %v5485, 2
      %v5488 = vor.u32 %v5484, %v5487
      %v5489 = vsel %vm2818, %v5479, %v5488
      %v5491 = vshrl.u32 %v5409, 16
      %v5493 = vrot.slane %v5491, 1
      %v5494 = vshll.u32 %v5409, 16
      %v5496 = vrot.slane %v5494, 2
      %v5497 = vor.u32 %v5493, %v5496
      %v5498 = vsel %vm2818, %v5488, %v5497
      %v5507 = vunpack.c.l.b16 %v5399
      %v5508 = vunpack.c.l.b16 %v5400
      %v5509 = vunpack.c.l.b16 %v5401
      %v5510 = vunpack.c.l.b16 %v5402
      %v5511 = vunpack.c.l.b16 %v5403
      %v5512 = vunpack.c.l.b16 %v5404
      %v5513 = vunpack.c.l.b16 %v5405
      %v5514 = vunpack.c.l.b16 %v5406
      %v5515 = vpack.c.b16 %v5508, %v5507
      %v5516 = vpack.c.b16 %v5510, %v5509
      %v5517 = vpack.c.b16 %v5512, %v5511
      %v5518 = vpack.c.b16 %v5514, %v5513
      %v5524 = vsel %vm2049, %v5426, 0
      %v5527 = vsel %vm2049, %v5435, 0
      %v5530 = vsel %vm2049, %v5444, 0
      %v5533 = vsel %vm2049, %v5453, 0
      %v5536 = vsel %vm2049, %v5462, 0
      %v5539 = vsel %vm2049, %v5471, 0
      %v5542 = vsel %vm2049, %v5480, 0
      %v5545 = vsel %vm2049, %v5489, 0
      %v5548 = vsel %vm2049, %v5498, 0
      %5550 = vmatprep.subr.bf16.mxu0 0
      %5551 = vmatpush1.bf16.msra.mxu0 0
      %5552 = vmatprep.subr.bf16.mxu0 0
      %5553 = vmatpush1.bf16.msra.mxu0 0
      %5554 = vmatprep.subr.bf16.mxu0 0
      %5555 = vmatpush1.bf16.msra.mxu0 0
      %5556 = vmatprep.subr.bf16.mxu0 0
      %5557 = vmatpush1.bf16.msra.mxu0 0
      %5558 = vmatprep.subr.bf16.mxu0 0
      %5559 = vmatpush1.bf16.msra.mxu0 %v5518
      %5560 = vmatprep.subr.bf16.mxu0 0
      %5561 = vmatpush1.bf16.msra.mxu0 %v5517
      %5562 = vmatprep.subr.bf16.mxu0 0
      %5563 = vmatpush1.bf16.msra.mxu0 %v5516
      %5564 = vmatprep.subr.bf16.mxu0 0
      %5565 = vmatpush1.bf16.msra.mxu0 %v5515
      %5566 = vmatprep.subr.bf16.mxu0 0
      %5567 = vmatpush2.bf16.msra.mxu0 0
      %5568 = vmatprep.subr.bf16.mxu0 0
      %5569 = vmatpush2.bf16.msra.mxu0 0
      %5570 = vmatprep.subr.bf16.mxu0 0
      %5571 = vmatpush2.bf16.msra.mxu0 0
      %5572 = vmatprep.subr.bf16.mxu0 0
      %5573 = vmatpush2.bf16.msra.mxu0 0
      %5574 = vmatprep.subr.bf16.mxu0 0
      %5575 = vmatpush2.bf16.msra.mxu0 0
      %5576 = vmatprep.subr.bf16.mxu0 0
      %5577 = vmatpush2.bf16.msra.mxu0 0
      %5578 = vmatprep.subr.bf16.mxu0 0
      %5579 = vmatpush2.bf16.msra.mxu0 0
      %5580 = vmatprep.subr.bf16.mxu0 0
      %5581 = vmatpush2.bf16.msra.mxu0 0
      %5582 = vmatprep.mubr.bf16.mxu0 0
      %5583 = vmatmul.mubr.bf16.gmra.mxu0 %v5524
      %v5584 = vpop.f32.mrf.mxu0
      %v5585 = vadd.f32 0.0, %v5584
      %v5586 = vpop.f32.mrf.mxu0
      %v5587 = vpop.f32.mrf.mxu0
      %v5588 = vadd.f32 0.0, %v5587
      %v5589 = vpop.f32.mrf.mxu0
      %5590 = vmatprep.mubr.bf16.mxu0 0
      %5591 = vmatmul.mubr.bf16.gmra.mxu0 %v5527
      %v5592 = vpop.f32.mrf.mxu0
      %v5593 = vadd.f32 0.0, %v5592
      %v5594 = vpop.f32.mrf.mxu0
      %v5595 = vpop.f32.mrf.mxu0
      %v5596 = vadd.f32 0.0, %v5595
      %v5597 = vpop.f32.mrf.mxu0
      %5598 = vmatprep.mubr.bf16.mxu0 0
      %5599 = vmatmul.mubr.bf16.gmra.mxu0 %v5530
      %v5600 = vpop.f32.mrf.mxu0
      %v5601 = vadd.f32 0.0, %v5600
      %v5602 = vpop.f32.mrf.mxu0
      %v5603 = vpop.f32.mrf.mxu0
      %v5604 = vadd.f32 0.0, %v5603
      %v5605 = vpop.f32.mrf.mxu0
      %5606 = vmatprep.mubr.bf16.mxu0 0
      %5607 = vmatmul.mubr.bf16.gmra.mxu0 %v5533
      %v5608 = vpop.f32.mrf.mxu0
      %v5609 = vadd.f32 0.0, %v5608
      %v5610 = vpop.f32.mrf.mxu0
      %v5611 = vpop.f32.mrf.mxu0
      %v5612 = vadd.f32 0.0, %v5611
      %v5613 = vpop.f32.mrf.mxu0
      %5614 = vmatprep.mubr.bf16.mxu0 0
      %5615 = vmatmul.mubr.bf16.gmra.mxu0 %v5536
      %v5616 = vpop.f32.mrf.mxu0
      %v5617 = vadd.f32 0.0, %v5616
      %v5618 = vpop.f32.mrf.mxu0
      %v5619 = vpop.f32.mrf.mxu0
      %v5620 = vadd.f32 0.0, %v5619
      %v5621 = vpop.f32.mrf.mxu0
      %5622 = vmatprep.mubr.bf16.mxu0 0
      %5623 = vmatmul.mubr.bf16.gmra.mxu0 %v5539
      %v5624 = vpop.f32.mrf.mxu0
      %v5625 = vadd.f32 0.0, %v5624
      %v5626 = vpop.f32.mrf.mxu0
      %v5627 = vpop.f32.mrf.mxu0
      %v5628 = vadd.f32 0.0, %v5627
      %v5629 = vpop.f32.mrf.mxu0
      %5630 = vmatprep.mubr.bf16.mxu0 0
      %5631 = vmatmul.mubr.bf16.gmra.mxu0 %v5542
      %v5632 = vpop.f32.mrf.mxu0
      %v5633 = vadd.f32 0.0, %v5632
      %v5634 = vpop.f32.mrf.mxu0
      %v5635 = vpop.f32.mrf.mxu0
      %v5636 = vadd.f32 0.0, %v5635
      %v5637 = vpop.f32.mrf.mxu0
      %5638 = vmatprep.mubr.bf16.mxu0 0
      %5639 = vmatmul.mubr.bf16.gmra.mxu0 %v5545
      %v5640 = vpop.f32.mrf.mxu0
      %v5641 = vadd.f32 0.0, %v5640
      %v5642 = vpop.f32.mrf.mxu0
      %v5643 = vpop.f32.mrf.mxu0
      %v5644 = vadd.f32 0.0, %v5643
      %v5645 = vpop.f32.mrf.mxu0
      %5646 = vmatprep.mubr.bf16.mxu0 0
      %5647 = vmatmul.mubr.bf16.gmra.mxu0 %v5548
      %v5648 = vpop.f32.mrf.mxu0
      %v5649 = vadd.f32 0.0, %v5648
      %v5650 = vpop.f32.mrf.mxu0
      %v5651 = vpop.f32.mrf.mxu0
      %v5652 = vadd.f32 0.0, %v5651
      %v5653 = vpop.f32.mrf.mxu0
      %5654 = vdwg.mxu0
      %v5655 = vadd.f32 %v5380, %v5585
      %v5656 = vadd.f32 %v5381, %v5588
      %v5657 = vadd.f32 %v5382, %v5593
      %v5658 = vadd.f32 %v5383, %v5596
      %v5659 = vadd.f32 %v5384, %v5601
      %v5660 = vadd.f32 %v5385, %v5604
      %v5661 = vadd.f32 %v5386, %v5609
      %v5662 = vadd.f32 %v5387, %v5612
      %v5663 = vadd.f32 %v5388, %v5617
      %v5664 = vadd.f32 %v5389, %v5620
      %v5665 = vadd.f32 %v5390, %v5625
      %v5666 = vadd.f32 %v5391, %v5628
      %v5667 = vadd.f32 %v5392, %v5633
      %v5668 = vadd.f32 %v5393, %v5636
      %v5669 = vadd.f32 %v5394, %v5641
      %v5670 = vadd.f32 %v5395, %v5644
      %v5671 = vadd.f32 %v5396, %v5649
      %v5672 = vadd.f32 %v5397, %v5652
      %v5673 = vld [vmem:[#allocation2 + $0x50] sm:$0xc]
      %v5674 = vld [vmem:[%s3083] sm:$0xf]
      %v5675 = vld [vmem:[%s3083 + $0x4] sm:$0xf]
      %v5676 = vld [vmem:[%s3083 + $0x8] sm:$0xf]
      %v5677 = vld [vmem:[%s3083 + $0xc] sm:$0xf]
      %v5678 = vld [vmem:[%s3083 + $0x10] sm:$0xf]
      %v5679 = vld [vmem:[%s3083 + $0x14] sm:$0xf]
      %v5680 = vld [vmem:[%s3083 + $0x18] sm:$0xf]
      %v5681 = vld [vmem:[%s3083 + $0x1c] sm:$0xf]
      %v5683 = vunpack.c.l.b16 %v5673
      %v5684 = vpack.c.b16 %v5177, %v5683
      %v5685 = vrot.slane %v5684, 2
      %v5686 = vrot.slane %v5196, 2
      %v5687 = vsel %vm3095, %v5685, %v5686
      %v5688 = vrot.slane %v5197, 2
      %v5689 = vsel %vm3095, %v5686, %v5688
      %v5690 = vrot.slane %v5198, 2
      %v5691 = vsel %vm3095, %v5688, %v5690
      %v5692 = vrot.slane %v5199, 2
      %v5693 = vsel %vm3095, %v5690, %v5692
      %v5694 = vrot.slane %v5200, 2
      %v5695 = vsel %vm3095, %v5692, %v5694
      %v5696 = vrot.slane %v5201, 2
      %v5697 = vsel %vm3095, %v5694, %v5696
      %v5698 = vrot.slane %v5202, 2
      %v5699 = vsel %vm3095, %v5696, %v5698
      %v5700 = vrot.slane %v5203, 2
      %v5701 = vsel %vm3095, %v5698, %v5700
      %v5702 = vrot.slane %v5409, 2
      %v5703 = vsel %vm3095, %v5700, %v5702
      %v5712 = vunpack.c.l.b16 %v5674
      %v5713 = vunpack.c.l.b16 %v5675
      %v5714 = vunpack.c.l.b16 %v5676
      %v5715 = vunpack.c.l.b16 %v5677
      %v5716 = vunpack.c.l.b16 %v5678
      %v5717 = vunpack.c.l.b16 %v5679
      %v5718 = vunpack.c.l.b16 %v5680
      %v5719 = vunpack.c.l.b16 %v5681
      %v5720 = vpack.c.b16 %v5713, %v5712
      %v5721 = vpack.c.b16 %v5715, %v5714
      %v5722 = vpack.c.b16 %v5717, %v5716
      %v5723 = vpack.c.b16 %v5719, %v5718
      %v5729 = vsel %vm2049, %v5687, 0
      %v5732 = vsel %vm2049, %v5689, 0
      %v5735 = vsel %vm2049, %v5691, 0
      %v5738 = vsel %vm2049, %v5693, 0
      %v5741 = vsel %vm2049, %v5695, 0
      %v5744 = vsel %vm2049, %v5697, 0
      %v5747 = vsel %vm2049, %v5699, 0
      %v5750 = vsel %vm2049, %v5701, 0
      %v5753 = vsel %vm2049, %v5703, 0
      %5755 = vmatprep.subr.bf16.mxu0 0
      %5756 = vmatpush1.bf16.msra.mxu0 0
      %5757 = vmatprep.subr.bf16.mxu0 0
      %5758 = vmatpush1.bf16.msra.mxu0 0
      %5759 = vmatprep.subr.bf16.mxu0 0
      %5760 = vmatpush1.bf16.msra.mxu0 0
      %5761 = vmatprep.subr.bf16.mxu0 0
      %5762 = vmatpush1.bf16.msra.mxu0 0
      %5763 = vmatprep.subr.bf16.mxu0 0
      %5764 = vmatpush1.bf16.msra.mxu0 %v5723
      %5765 = vmatprep.subr.bf16.mxu0 0
      %5766 = vmatpush1.bf16.msra.mxu0 %v5722
      %5767 = vmatprep.subr.bf16.mxu0 0
      %5768 = vmatpush1.bf16.msra.mxu0 %v5721
      %5769 = vmatprep.subr.bf16.mxu0 0
      %5770 = vmatpush1.bf16.msra.mxu0 %v5720
      %5771 = vmatprep.subr.bf16.mxu0 0
      %5772 = vmatpush2.bf16.msra.mxu0 0
      %5773 = vmatprep.subr.bf16.mxu0 0
      %5774 = vmatpush2.bf16.msra.mxu0 0
      %5775 = vmatprep.subr.bf16.mxu0 0
      %5776 = vmatpush2.bf16.msra.mxu0 0
      %5777 = vmatprep.subr.bf16.mxu0 0
      %5778 = vmatpush2.bf16.msra.mxu0 0
      %5779 = vmatprep.subr.bf16.mxu0 0
      %5780 = vmatpush2.bf16.msra.mxu0 0
      %5781 = vmatprep.subr.bf16.mxu0 0
      %5782 = vmatpush2.bf16.msra.mxu0 0
      %5783 = vmatprep.subr.bf16.mxu0 0
      %5784 = vmatpush2.bf16.msra.mxu0 0
      %5785 = vmatprep.subr.bf16.mxu0 0
      %5786 = vmatpush2.bf16.msra.mxu0 0
      %5787 = vmatprep.mubr.bf16.mxu0 0
      %5788 = vmatmul.mubr.bf16.gmra.mxu0 %v5729
      %v5789 = vpop.f32.mrf.mxu0
      %v5790 = vadd.f32 0.0, %v5789
      %v5791 = vpop.f32.mrf.mxu0
      %v5792 = vpop.f32.mrf.mxu0
      %v5793 = vadd.f32 0.0, %v5792
      %v5794 = vpop.f32.mrf.mxu0
      %5795 = vmatprep.mubr.bf16.mxu0 0
      %5796 = vmatmul.mubr.bf16.gmra.mxu0 %v5732
      %v5797 = vpop.f32.mrf.mxu0
      %v5798 = vadd.f32 0.0, %v5797
      %v5799 = vpop.f32.mrf.mxu0
      %v5800 = vpop.f32.mrf.mxu0
      %v5801 = vadd.f32 0.0, %v5800
      %v5802 = vpop.f32.mrf.mxu0
      %5803 = vmatprep.mubr.bf16.mxu0 0
      %5804 = vmatmul.mubr.bf16.gmra.mxu0 %v5735
      %v5805 = vpop.f32.mrf.mxu0
      %v5806 = vadd.f32 0.0, %v5805
      %v5807 = vpop.f32.mrf.mxu0
      %v5808 = vpop.f32.mrf.mxu0
      %v5809 = vadd.f32 0.0, %v5808
      %v5810 = vpop.f32.mrf.mxu0
      %5811 = vmatprep.mubr.bf16.mxu0 0
      %5812 = vmatmul.mubr.bf16.gmra.mxu0 %v5738
      %v5813 = vpop.f32.mrf.mxu0
      %v5814 = vadd.f32 0.0, %v5813
      %v5815 = vpop.f32.mrf.mxu0
      %v5816 = vpop.f32.mrf.mxu0
      %v5817 = vadd.f32 0.0, %v5816
      %v5818 = vpop.f32.mrf.mxu0
      %5819 = vmatprep.mubr.bf16.mxu0 0
      %5820 = vmatmul.mubr.bf16.gmra.mxu0 %v5741
      %v5821 = vpop.f32.mrf.mxu0
      %v5822 = vadd.f32 0.0, %v5821
      %v5823 = vpop.f32.mrf.mxu0
      %v5824 = vpop.f32.mrf.mxu0
      %v5825 = vadd.f32 0.0, %v5824
      %v5826 = vpop.f32.mrf.mxu0
      %5827 = vmatprep.mubr.bf16.mxu0 0
      %5828 = vmatmul.mubr.bf16.gmra.mxu0 %v5744
      %v5829 = vpop.f32.mrf.mxu0
      %v5830 = vadd.f32 0.0, %v5829
      %v5831 = vpop.f32.mrf.mxu0
      %v5832 = vpop.f32.mrf.mxu0
      %v5833 = vadd.f32 0.0, %v5832
      %v5834 = vpop.f32.mrf.mxu0
      %5835 = vmatprep.mubr.bf16.mxu0 0
      %5836 = vmatmul.mubr.bf16.gmra.mxu0 %v5747
      %v5837 = vpop.f32.mrf.mxu0
      %v5838 = vadd.f32 0.0, %v5837
      %v5839 = vpop.f32.mrf.mxu0
      %v5840 = vpop.f32.mrf.mxu0
      %v5841 = vadd.f32 0.0, %v5840
      %v5842 = vpop.f32.mrf.mxu0
      %5843 = vmatprep.mubr.bf16.mxu0 0
      %5844 = vmatmul.mubr.bf16.gmra.mxu0 %v5750
      %v5845 = vpop.f32.mrf.mxu0
      %v5846 = vadd.f32 0.0, %v5845
      %v5847 = vpop.f32.mrf.mxu0
      %v5848 = vpop.f32.mrf.mxu0
      %v5849 = vadd.f32 0.0, %v5848
      %v5850 = vpop.f32.mrf.mxu0
      %5851 = vmatprep.mubr.bf16.mxu0 0
      %5852 = vmatmul.mubr.bf16.gmra.mxu0 %v5753
      %v5853 = vpop.f32.mrf.mxu0
      %v5854 = vadd.f32 0.0, %v5853
      %v5855 = vpop.f32.mrf.mxu0
      %v5856 = vpop.f32.mrf.mxu0
      %v5857 = vadd.f32 0.0, %v5856
      %v5858 = vpop.f32.mrf.mxu0
      %5859 = vdwg.mxu0
      %v5860 = vadd.f32 %v5655, %v5790
      %v5861 = vadd.f32 %v5656, %v5793
      %v5862 = vadd.f32 %v5657, %v5798
      %v5863 = vadd.f32 %v5658, %v5801
      %v5864 = vadd.f32 %v5659, %v5806
      %v5865 = vadd.f32 %v5660, %v5809
      %v5866 = vadd.f32 %v5661, %v5814
      %v5867 = vadd.f32 %v5662, %v5817
      %v5868 = vadd.f32 %v5663, %v5822
      %v5869 = vadd.f32 %v5664, %v5825
      %v5870 = vadd.f32 %v5665, %v5830
      %v5871 = vadd.f32 %v5666, %v5833
      %v5872 = vadd.f32 %v5667, %v5838
      %v5873 = vadd.f32 %v5668, %v5841
      %v5874 = vadd.f32 %v5669, %v5846
      %v5875 = vadd.f32 %v5670, %v5849
      %v5876 = vadd.f32 %v5671, %v5854
      %v5877 = vadd.f32 %v5672, %v5857
      %v5878 = vld [vmem:[#allocation2 + $0x58] sm:$0xc]
      %v5879 = vld [vmem:[#allocation2 + $0x5c] sm:$0xf]
      %v5880 = vld [vmem:[#allocation2 + $0x60] sm:$0xf]
      %v5881 = vld [vmem:[#allocation2 + $0x64] sm:$0xf]
      %v5882 = vld [vmem:[#allocation2 + $0x68] sm:$0xf]
      %v5883 = vld [vmem:[#allocation2 + $0x6c] sm:$0xf]
      %v5884 = vld [vmem:[#allocation2 + $0x70] sm:$0xf]
      %v5885 = vld [vmem:[#allocation2 + $0x74] sm:$0xf]
      %v5886 = vld [vmem:[#allocation2 + $0x78] sm:$0xf]
      %v5887 = vld [vmem:[#allocation2 + $0x7c] sm:$0xf]
      %v5888 = vld [vmem:[#allocation2 + $0x80] sm:$0xf]
      %v5889 = vld [vmem:[#allocation2 + $0x84] sm:$0xf]
      %v5890 = vld [vmem:[#allocation2 + $0x88] sm:$0xf]
      %v5891 = vld [vmem:[#allocation2 + $0x8c] sm:$0xf]
      %v5892 = vld [vmem:[#allocation2 + $0x90] sm:$0xf]
      %v5893 = vld [vmem:[#allocation2 + $0x94] sm:$0xf]
      %v5894 = vld [vmem:[#allocation2 + $0x98] sm:$0xf]
      %v5895 = vld [vmem:[#allocation2 + $0x9c] sm:$0xf]
      %v5896 = vld [vmem:[#allocation2 + $0xa0] sm:$0x3]
      %v5897 = vld [vmem:[%s3308] sm:$0xf]
      %v5898 = vld [vmem:[%s3308 + $0x4] sm:$0xf]
      %v5899 = vld [vmem:[%s3308 + $0x8] sm:$0xf]
      %v5900 = vld [vmem:[%s3308 + $0xc] sm:$0xf]
      %v5901 = vld [vmem:[%s3308 + $0x10] sm:$0xf]
      %v5902 = vld [vmem:[%s3308 + $0x14] sm:$0xf]
      %v5903 = vld [vmem:[%s3308 + $0x18] sm:$0xf]
      %v5904 = vld [vmem:[%s3308 + $0x1c] sm:$0xf]
      %v5924 = vunpack.c.l.b16 %v5878
      %v5925 = vunpack.c.l.b16 %v5879
      %v5926 = vunpack.c.l.b16 %v5880
      %v5927 = vunpack.c.l.b16 %v5881
      %v5928 = vunpack.c.l.b16 %v5882
      %v5929 = vunpack.c.l.b16 %v5883
      %v5930 = vunpack.c.l.b16 %v5884
      %v5931 = vunpack.c.l.b16 %v5885
      %v5932 = vunpack.c.l.b16 %v5886
      %v5933 = vunpack.c.l.b16 %v5887
      %v5934 = vunpack.c.l.b16 %v5888
      %v5935 = vunpack.c.l.b16 %v5889
      %v5936 = vunpack.c.l.b16 %v5890
      %v5937 = vunpack.c.l.b16 %v5891
      %v5938 = vunpack.c.l.b16 %v5892
      %v5939 = vunpack.c.l.b16 %v5893
      %v5940 = vunpack.c.l.b16 %v5894
      %v5941 = vunpack.c.l.b16 %v5895
      %v5942 = vunpack.c.l.b16 %v5896
      %v5943 = vpack.c.b16 %v5925, %v5924
      %v5944 = vpack.c.b16 %v5927, %v5926
      %v5945 = vpack.c.b16 %v5929, %v5928
      %v5946 = vpack.c.b16 %v5931, %v5930
      %v5947 = vpack.c.b16 %v5933, %v5932
      %v5948 = vpack.c.b16 %v5935, %v5934
      %v5949 = vpack.c.b16 %v5937, %v5936
      %v5950 = vpack.c.b16 %v5939, %v5938
      %v5951 = vpack.c.b16 %v5941, %v5940
      %v5952 = vpack.c.b16 %v5942, %v5942
      %v5953 = vrot.slane %v5943, 2
      %v5954 = vrot.slane %v5944, 2
      %v5955 = vsel %vm3095, %v5953, %v5954
      %v5956 = vrot.slane %v5945, 2
      %v5957 = vsel %vm3095, %v5954, %v5956
      %v5958 = vrot.slane %v5946, 2
      %v5959 = vsel %vm3095, %v5956, %v5958
      %v5960 = vrot.slane %v5947, 2
      %v5961 = vsel %vm3095, %v5958, %v5960
      %v5962 = vrot.slane %v5948, 2
      %v5963 = vsel %vm3095, %v5960, %v5962
      %v5964 = vrot.slane %v5949, 2
      %v5965 = vsel %vm3095, %v5962, %v5964
      %v5966 = vrot.slane %v5950, 2
      %v5967 = vsel %vm3095, %v5964, %v5966
      %v5968 = vrot.slane %v5951, 2
      %v5969 = vsel %vm3095, %v5966, %v5968
      %v5970 = vrot.slane %v5952, 2
      %v5971 = vsel %vm3095, %v5968, %v5970
      %v5980 = vunpack.c.l.b16 %v5897
      %v5981 = vunpack.c.l.b16 %v5898
      %v5982 = vunpack.c.l.b16 %v5899
      %v5983 = vunpack.c.l.b16 %v5900
      %v5984 = vunpack.c.l.b16 %v5901
      %v5985 = vunpack.c.l.b16 %v5902
      %v5986 = vunpack.c.l.b16 %v5903
      %v5987 = vunpack.c.l.b16 %v5904
      %v5988 = vpack.c.b16 %v5981, %v5980
      %v5989 = vpack.c.b16 %v5983, %v5982
      %v5990 = vpack.c.b16 %v5985, %v5984
      %v5991 = vpack.c.b16 %v5987, %v5986
      %v5997 = vsel %vm2049, %v5955, 0
      %v6000 = vsel %vm2049, %v5957, 0
      %v6003 = vsel %vm2049, %v5959, 0
      %v6006 = vsel %vm2049, %v5961, 0
      %v6009 = vsel %vm2049, %v5963, 0
      %v6012 = vsel %vm2049, %v5965, 0
      %v6015 = vsel %vm2049, %v5967, 0
      %v6018 = vsel %vm2049, %v5969, 0
      %v6021 = vsel %vm2049, %v5971, 0
      %6023 = vmatprep.subr.bf16.mxu0 0
      %6024 = vmatpush1.bf16.msra.mxu0 0
      %6025 = vmatprep.subr.bf16.mxu0 0
      %6026 = vmatpush1.bf16.msra.mxu0 0
      %6027 = vmatprep.subr.bf16.mxu0 0
      %6028 = vmatpush1.bf16.msra.mxu0 0
      %6029 = vmatprep.subr.bf16.mxu0 0
      %6030 = vmatpush1.bf16.msra.mxu0 0
      %6031 = vmatprep.subr.bf16.mxu0 0
      %6032 = vmatpush1.bf16.msra.mxu0 %v5991
      %6033 = vmatprep.subr.bf16.mxu0 0
      %6034 = vmatpush1.bf16.msra.mxu0 %v5990
      %6035 = vmatprep.subr.bf16.mxu0 0
      %6036 = vmatpush1.bf16.msra.mxu0 %v5989
      %6037 = vmatprep.subr.bf16.mxu0 0
      %6038 = vmatpush1.bf16.msra.mxu0 %v5988
      %6039 = vmatprep.subr.bf16.mxu0 0
      %6040 = vmatpush2.bf16.msra.mxu0 0
      %6041 = vmatprep.subr.bf16.mxu0 0
      %6042 = vmatpush2.bf16.msra.mxu0 0
      %6043 = vmatprep.subr.bf16.mxu0 0
      %6044 = vmatpush2.bf16.msra.mxu0 0
      %6045 = vmatprep.subr.bf16.mxu0 0
      %6046 = vmatpush2.bf16.msra.mxu0 0
      %6047 = vmatprep.subr.bf16.mxu0 0
      %6048 = vmatpush2.bf16.msra.mxu0 0
      %6049 = vmatprep.subr.bf16.mxu0 0
      %6050 = vmatpush2.bf16.msra.mxu0 0
      %6051 = vmatprep.subr.bf16.mxu0 0
      %6052 = vmatpush2.bf16.msra.mxu0 0
      %6053 = vmatprep.subr.bf16.mxu0 0
      %6054 = vmatpush2.bf16.msra.mxu0 0
      %6055 = vmatprep.mubr.bf16.mxu0 0
      %6056 = vmatmul.mubr.bf16.gmra.mxu0 %v5997
      %v6057 = vpop.f32.mrf.mxu0
      %v6058 = vadd.f32 0.0, %v6057
      %v6059 = vpop.f32.mrf.mxu0
      %v6060 = vpop.f32.mrf.mxu0
      %v6061 = vadd.f32 0.0, %v6060
      %v6062 = vpop.f32.mrf.mxu0
      %6063 = vmatprep.mubr.bf16.mxu0 0
      %6064 = vmatmul.mubr.bf16.gmra.mxu0 %v6000
      %v6065 = vpop.f32.mrf.mxu0
      %v6066 = vadd.f32 0.0, %v6065
      %v6067 = vpop.f32.mrf.mxu0
      %v6068 = vpop.f32.mrf.mxu0
      %v6069 = vadd.f32 0.0, %v6068
      %v6070 = vpop.f32.mrf.mxu0
      %6071 = vmatprep.mubr.bf16.mxu0 0
      %6072 = vmatmul.mubr.bf16.gmra.mxu0 %v6003
      %v6073 = vpop.f32.mrf.mxu0
      %v6074 = vadd.f32 0.0, %v6073
      %v6075 = vpop.f32.mrf.mxu0
      %v6076 = vpop.f32.mrf.mxu0
      %v6077 = vadd.f32 0.0, %v6076
      %v6078 = vpop.f32.mrf.mxu0
      %6079 = vmatprep.mubr.bf16.mxu0 0
      %6080 = vmatmul.mubr.bf16.gmra.mxu0 %v6006
      %v6081 = vpop.f32.mrf.mxu0
      %v6082 = vadd.f32 0.0, %v6081
      %v6083 = vpop.f32.mrf.mxu0
      %v6084 = vpop.f32.mrf.mxu0
      %v6085 = vadd.f32 0.0, %v6084
      %v6086 = vpop.f32.mrf.mxu0
      %6087 = vmatprep.mubr.bf16.mxu0 0
      %6088 = vmatmul.mubr.bf16.gmra.mxu0 %v6009
      %v6089 = vpop.f32.mrf.mxu0
      %v6090 = vadd.f32 0.0, %v6089
      %v6091 = vpop.f32.mrf.mxu0
      %v6092 = vpop.f32.mrf.mxu0
      %v6093 = vadd.f32 0.0, %v6092
      %v6094 = vpop.f32.mrf.mxu0
      %6095 = vmatprep.mubr.bf16.mxu0 0
      %6096 = vmatmul.mubr.bf16.gmra.mxu0 %v6012
      %v6097 = vpop.f32.mrf.mxu0
      %v6098 = vadd.f32 0.0, %v6097
      %v6099 = vpop.f32.mrf.mxu0
      %v6100 = vpop.f32.mrf.mxu0
      %v6101 = vadd.f32 0.0, %v6100
      %v6102 = vpop.f32.mrf.mxu0
      %6103 = vmatprep.mubr.bf16.mxu0 0
      %6104 = vmatmul.mubr.bf16.gmra.mxu0 %v6015
      %v6105 = vpop.f32.mrf.mxu0
      %v6106 = vadd.f32 0.0, %v6105
      %v6107 = vpop.f32.mrf.mxu0
      %v6108 = vpop.f32.mrf.mxu0
      %v6109 = vadd.f32 0.0, %v6108
      %v6110 = vpop.f32.mrf.mxu0
      %6111 = vmatprep.mubr.bf16.mxu0 0
      %6112 = vmatmul.mubr.bf16.gmra.mxu0 %v6018
      %v6113 = vpop.f32.mrf.mxu0
      %v6114 = vadd.f32 0.0, %v6113
      %v6115 = vpop.f32.mrf.mxu0
      %v6116 = vpop.f32.mrf.mxu0
      %v6117 = vadd.f32 0.0, %v6116
      %v6118 = vpop.f32.mrf.mxu0
      %6119 = vmatprep.mubr.bf16.mxu0 0
      %6120 = vmatmul.mubr.bf16.gmra.mxu0 %v6021
      %v6121 = vpop.f32.mrf.mxu0
      %v6122 = vadd.f32 0.0, %v6121
      %v6123 = vpop.f32.mrf.mxu0
      %v6124 = vpop.f32.mrf.mxu0
      %v6125 = vadd.f32 0.0, %v6124
      %v6126 = vpop.f32.mrf.mxu0
      %6127 = vdwg.mxu0
      %v6128 = vadd.f32 %v5860, %v6058
      %v6129 = vadd.f32 %v5861, %v6061
      %v6130 = vadd.f32 %v5862, %v6066
      %v6131 = vadd.f32 %v5863, %v6069
      %v6132 = vadd.f32 %v5864, %v6074
      %v6133 = vadd.f32 %v5865, %v6077
      %v6134 = vadd.f32 %v5866, %v6082
      %v6135 = vadd.f32 %v5867, %v6085
      %v6136 = vadd.f32 %v5868, %v6090
      %v6137 = vadd.f32 %v5869, %v6093
      %v6138 = vadd.f32 %v5870, %v6098
      %v6139 = vadd.f32 %v5871, %v6101
      %v6140 = vadd.f32 %v5872, %v6106
      %v6141 = vadd.f32 %v5873, %v6109
      %v6142 = vadd.f32 %v5874, %v6114
      %v6143 = vadd.f32 %v5875, %v6117
      %v6144 = vadd.f32 %v5876, %v6122
      %v6145 = vadd.f32 %v5877, %v6125
      %v6146 = vld [vmem:[#allocation2 + $0xa0] sm:$0x7]
      %v6147 = vld [vmem:[%s3559] sm:$0xf]
      %v6148 = vld [vmem:[%s3559 + $0x4] sm:$0xf]
      %v6149 = vld [vmem:[%s3559 + $0x8] sm:$0xf]
      %v6150 = vld [vmem:[%s3559 + $0xc] sm:$0xf]
      %v6151 = vld [vmem:[%s3559 + $0x10] sm:$0xf]
      %v6152 = vld [vmem:[%s3559 + $0x14] sm:$0xf]
      %v6153 = vld [vmem:[%s3559 + $0x18] sm:$0xf]
      %v6154 = vld [vmem:[%s3559 + $0x1c] sm:$0xf]
      %v6156 = vunpack.c.l.b16 %v6146
      %v6157 = vpack.c.b16 %v6156, %v6156
      %v6159 = vshrl.u32 %v5943, 16
      %v6161 = vrot.slane %v6159, 2
      %v6162 = vshll.u32 %v5943, 16
      %v6164 = vrot.slane %v6162, 3
      %v6165 = vor.u32 %v6161, %v6164
      %v6167 = vshrl.u32 %v5944, 16
      %v6169 = vrot.slane %v6167, 2
      %v6170 = vshll.u32 %v5944, 16
      %v6172 = vrot.slane %v6170, 3
      %v6173 = vor.u32 %v6169, %v6172
      %v6174 = vsel %vm3571, %v6165, %v6173
      %v6176 = vshrl.u32 %v5945, 16
      %v6178 = vrot.slane %v6176, 2
      %v6179 = vshll.u32 %v5945, 16
      %v6181 = vrot.slane %v6179, 3
      %v6182 = vor.u32 %v6178, %v6181
      %v6183 = vsel %vm3571, %v6173, %v6182
      %v6185 = vshrl.u32 %v5946, 16
      %v6187 = vrot.slane %v6185, 2
      %v6188 = vshll.u32 %v5946, 16
      %v6190 = vrot.slane %v6188, 3
      %v6191 = vor.u32 %v6187, %v6190
      %v6192 = vsel %vm3571, %v6182, %v6191
      %v6194 = vshrl.u32 %v5947, 16
      %v6196 = vrot.slane %v6194, 2
      %v6197 = vshll.u32 %v5947, 16
      %v6199 = vrot.slane %v6197, 3
      %v6200 = vor.u32 %v6196, %v6199
      %v6201 = vsel %vm3571, %v6191, %v6200
      %v6203 = vshrl.u32 %v5948, 16
      %v6205 = vrot.slane %v6203, 2
      %v6206 = vshll.u32 %v5948, 16
      %v6208 = vrot.slane %v6206, 3
      %v6209 = vor.u32 %v6205, %v6208
      %v6210 = vsel %vm3571, %v6200, %v6209
      %v6212 = vshrl.u32 %v5949, 16
      %v6214 = vrot.slane %v6212, 2
      %v6215 = vshll.u32 %v5949, 16
      %v6217 = vrot.slane %v6215, 3
      %v6218 = vor.u32 %v6214, %v6217
      %v6219 = vsel %vm3571, %v6209, %v6218
      %v6221 = vshrl.u32 %v5950, 16
      %v6223 = vrot.slane %v6221, 2
      %v6224 = vshll.u32 %v5950, 16
      %v6226 = vrot.slane %v6224, 3
      %v6227 = vor.u32 %v6223, %v6226
      %v6228 = vsel %vm3571, %v6218, %v6227
      %v6230 = vshrl.u32 %v5951, 16
      %v6232 = vrot.slane %v6230, 2
      %v6233 = vshll.u32 %v5951, 16
      %v6235 = vrot.slane %v6233, 3
      %v6236 = vor.u32 %v6232, %v6235
      %v6237 = vsel %vm3571, %v6227, %v6236
      %v6239 = vshrl.u32 %v6157, 16
      %v6241 = vrot.slane %v6239, 2
      %v6242 = vshll.u32 %v6157, 16
      %v6244 = vrot.slane %v6242, 3
      %v6245 = vor.u32 %v6241, %v6244
      %v6246 = vsel %vm3571, %v6236, %v6245
      %v6255 = vunpack.c.l.b16 %v6147
      %v6256 = vunpack.c.l.b16 %v6148
      %v6257 = vunpack.c.l.b16 %v6149
      %v6258 = vunpack.c.l.b16 %v6150
      %v6259 = vunpack.c.l.b16 %v6151
      %v6260 = vunpack.c.l.b16 %v6152
      %v6261 = vunpack.c.l.b16 %v6153
      %v6262 = vunpack.c.l.b16 %v6154
      %v6263 = vpack.c.b16 %v6256, %v6255
      %v6264 = vpack.c.b16 %v6258, %v6257
      %v6265 = vpack.c.b16 %v6260, %v6259
      %v6266 = vpack.c.b16 %v6262, %v6261
      %v6272 = vsel %vm2049, %v6174, 0
      %v6275 = vsel %vm2049, %v6183, 0
      %v6278 = vsel %vm2049, %v6192, 0
      %v6281 = vsel %vm2049, %v6201, 0
      %v6284 = vsel %vm2049, %v6210, 0
      %v6287 = vsel %vm2049, %v6219, 0
      %v6290 = vsel %vm2049, %v6228, 0
      %v6293 = vsel %vm2049, %v6237, 0
      %v6296 = vsel %vm2049, %v6246, 0
      %6298 = vmatprep.subr.bf16.mxu0 0
      %6299 = vmatpush1.bf16.msra.mxu0 0
      %6300 = vmatprep.subr.bf16.mxu0 0
      %6301 = vmatpush1.bf16.msra.mxu0 0
      %6302 = vmatprep.subr.bf16.mxu0 0
      %6303 = vmatpush1.bf16.msra.mxu0 0
      %6304 = vmatprep.subr.bf16.mxu0 0
      %6305 = vmatpush1.bf16.msra.mxu0 0
      %6306 = vmatprep.subr.bf16.mxu0 0
      %6307 = vmatpush1.bf16.msra.mxu0 %v6266
      %6308 = vmatprep.subr.bf16.mxu0 0
      %6309 = vmatpush1.bf16.msra.mxu0 %v6265
      %6310 = vmatprep.subr.bf16.mxu0 0
      %6311 = vmatpush1.bf16.msra.mxu0 %v6264
      %6312 = vmatprep.subr.bf16.mxu0 0
      %6313 = vmatpush1.bf16.msra.mxu0 %v6263
      %6314 = vmatprep.subr.bf16.mxu0 0
      %6315 = vmatpush2.bf16.msra.mxu0 0
      %6316 = vmatprep.subr.bf16.mxu0 0
      %6317 = vmatpush2.bf16.msra.mxu0 0
      %6318 = vmatprep.subr.bf16.mxu0 0
      %6319 = vmatpush2.bf16.msra.mxu0 0
      %6320 = vmatprep.subr.bf16.mxu0 0
      %6321 = vmatpush2.bf16.msra.mxu0 0
      %6322 = vmatprep.subr.bf16.mxu0 0
      %6323 = vmatpush2.bf16.msra.mxu0 0
      %6324 = vmatprep.subr.bf16.mxu0 0
      %6325 = vmatpush2.bf16.msra.mxu0 0
      %6326 = vmatprep.subr.bf16.mxu0 0
      %6327 = vmatpush2.bf16.msra.mxu0 0
      %6328 = vmatprep.subr.bf16.mxu0 0
      %6329 = vmatpush2.bf16.msra.mxu0 0
      %6330 = vmatprep.mubr.bf16.mxu0 0
      %6331 = vmatmul.mubr.bf16.gmra.mxu0 %v6272
      %v6332 = vpop.f32.mrf.mxu0
      %v6333 = vadd.f32 0.0, %v6332
      %v6334 = vpop.f32.mrf.mxu0
      %v6335 = vpop.f32.mrf.mxu0
      %v6336 = vadd.f32 0.0, %v6335
      %v6337 = vpop.f32.mrf.mxu0
      %6338 = vmatprep.mubr.bf16.mxu0 0
      %6339 = vmatmul.mubr.bf16.gmra.mxu0 %v6275
      %v6340 = vpop.f32.mrf.mxu0
      %v6341 = vadd.f32 0.0, %v6340
      %v6342 = vpop.f32.mrf.mxu0
      %v6343 = vpop.f32.mrf.mxu0
      %v6344 = vadd.f32 0.0, %v6343
      %v6345 = vpop.f32.mrf.mxu0
      %6346 = vmatprep.mubr.bf16.mxu0 0
      %6347 = vmatmul.mubr.bf16.gmra.mxu0 %v6278
      %v6348 = vpop.f32.mrf.mxu0
      %v6349 = vadd.f32 0.0, %v6348
      %v6350 = vpop.f32.mrf.mxu0
      %v6351 = vpop.f32.mrf.mxu0
      %v6352 = vadd.f32 0.0, %v6351
      %v6353 = vpop.f32.mrf.mxu0
      %6354 = vmatprep.mubr.bf16.mxu0 0
      %6355 = vmatmul.mubr.bf16.gmra.mxu0 %v6281
      %v6356 = vpop.f32.mrf.mxu0
      %v6357 = vadd.f32 0.0, %v6356
      %v6358 = vpop.f32.mrf.mxu0
      %v6359 = vpop.f32.mrf.mxu0
      %v6360 = vadd.f32 0.0, %v6359
      %v6361 = vpop.f32.mrf.mxu0
      %6362 = vmatprep.mubr.bf16.mxu0 0
      %6363 = vmatmul.mubr.bf16.gmra.mxu0 %v6284
      %v6364 = vpop.f32.mrf.mxu0
      %v6365 = vadd.f32 0.0, %v6364
      %v6366 = vpop.f32.mrf.mxu0
      %v6367 = vpop.f32.mrf.mxu0
      %v6368 = vadd.f32 0.0, %v6367
      %v6369 = vpop.f32.mrf.mxu0
      %6370 = vmatprep.mubr.bf16.mxu0 0
      %6371 = vmatmul.mubr.bf16.gmra.mxu0 %v6287
      %v6372 = vpop.f32.mrf.mxu0
      %v6373 = vadd.f32 0.0, %v6372
      %v6374 = vpop.f32.mrf.mxu0
      %v6375 = vpop.f32.mrf.mxu0
      %v6376 = vadd.f32 0.0, %v6375
      %v6377 = vpop.f32.mrf.mxu0
      %6378 = vmatprep.mubr.bf16.mxu0 0
      %6379 = vmatmul.mubr.bf16.gmra.mxu0 %v6290
      %v6380 = vpop.f32.mrf.mxu0
      %v6381 = vadd.f32 0.0, %v6380
      %v6382 = vpop.f32.mrf.mxu0
      %v6383 = vpop.f32.mrf.mxu0
      %v6384 = vadd.f32 0.0, %v6383
      %v6385 = vpop.f32.mrf.mxu0
      %6386 = vmatprep.mubr.bf16.mxu0 0
      %6387 = vmatmul.mubr.bf16.gmra.mxu0 %v6293
      %v6388 = vpop.f32.mrf.mxu0
      %v6389 = vadd.f32 0.0, %v6388
      %v6390 = vpop.f32.mrf.mxu0
      %v6391 = vpop.f32.mrf.mxu0
      %v6392 = vadd.f32 0.0, %v6391
      %v6393 = vpop.f32.mrf.mxu0
      %6394 = vmatprep.mubr.bf16.mxu0 0
      %6395 = vmatmul.mubr.bf16.gmra.mxu0 %v6296
      %v6396 = vpop.f32.mrf.mxu0
      %v6397 = vadd.f32 0.0, %v6396
      %v6398 = vpop.f32.mrf.mxu0
      %v6399 = vpop.f32.mrf.mxu0
      %v6400 = vadd.f32 0.0, %v6399
      %v6401 = vpop.f32.mrf.mxu0
      %6402 = vdwg.mxu0
      %v6403 = vadd.f32 %v6128, %v6333
      %v6404 = vadd.f32 %v6129, %v6336
      %v6405 = vadd.f32 %v6130, %v6341
      %v6406 = vadd.f32 %v6131, %v6344
      %v6407 = vadd.f32 %v6132, %v6349
      %v6408 = vadd.f32 %v6133, %v6352
      %v6409 = vadd.f32 %v6134, %v6357
      %v6410 = vadd.f32 %v6135, %v6360
      %v6411 = vadd.f32 %v6136, %v6365
      %v6412 = vadd.f32 %v6137, %v6368
      %v6413 = vadd.f32 %v6138, %v6373
      %v6414 = vadd.f32 %v6139, %v6376
      %v6415 = vadd.f32 %v6140, %v6381
      %v6416 = vadd.f32 %v6141, %v6384
      %v6417 = vadd.f32 %v6142, %v6389
      %v6418 = vadd.f32 %v6143, %v6392
      %v6419 = vadd.f32 %v6144, %v6397
      %v6420 = vadd.f32 %v6145, %v6400
      %v6421 = vld [vmem:[#allocation2 + $0x58] sm:$0x8]
      %v6422 = vld [vmem:[%s3836] sm:$0xf]
      %v6423 = vld [vmem:[%s3836 + $0x4] sm:$0xf]
      %v6424 = vld [vmem:[%s3836 + $0x8] sm:$0xf]
      %v6425 = vld [vmem:[%s3836 + $0xc] sm:$0xf]
      %v6426 = vld [vmem:[%s3836 + $0x10] sm:$0xf]
      %v6427 = vld [vmem:[%s3836 + $0x14] sm:$0xf]
      %v6428 = vld [vmem:[%s3836 + $0x18] sm:$0xf]
      %v6429 = vld [vmem:[%s3836 + $0x1c] sm:$0xf]
      %v6431 = vunpack.c.l.b16 %v6421
      %v6432 = vpack.c.b16 %v5925, %v6431
      %v6433 = vrot.slane %v6432, 3
      %v6434 = vrot.slane %v5944, 3
      %v6435 = vsel %vm3848, %v6433, %v6434
      %v6436 = vrot.slane %v5945, 3
      %v6437 = vsel %vm3848, %v6434, %v6436
      %v6438 = vrot.slane %v5946, 3
      %v6439 = vsel %vm3848, %v6436, %v6438
      %v6440 = vrot.slane %v5947, 3
      %v6441 = vsel %vm3848, %v6438, %v6440
      %v6442 = vrot.slane %v5948, 3
      %v6443 = vsel %vm3848, %v6440, %v6442
      %v6444 = vrot.slane %v5949, 3
      %v6445 = vsel %vm3848, %v6442, %v6444
      %v6446 = vrot.slane %v5950, 3
      %v6447 = vsel %vm3848, %v6444, %v6446
      %v6448 = vrot.slane %v5951, 3
      %v6449 = vsel %vm3848, %v6446, %v6448
      %v6450 = vrot.slane %v6157, 3
      %v6451 = vsel %vm3848, %v6448, %v6450
      %v6460 = vunpack.c.l.b16 %v6422
      %v6461 = vunpack.c.l.b16 %v6423
      %v6462 = vunpack.c.l.b16 %v6424
      %v6463 = vunpack.c.l.b16 %v6425
      %v6464 = vunpack.c.l.b16 %v6426
      %v6465 = vunpack.c.l.b16 %v6427
      %v6466 = vunpack.c.l.b16 %v6428
      %v6467 = vunpack.c.l.b16 %v6429
      %v6468 = vpack.c.b16 %v6461, %v6460
      %v6469 = vpack.c.b16 %v6463, %v6462
      %v6470 = vpack.c.b16 %v6465, %v6464
      %v6471 = vpack.c.b16 %v6467, %v6466
      %v6477 = vsel %vm2049, %v6435, 0
      %v6480 = vsel %vm2049, %v6437, 0
      %v6483 = vsel %vm2049, %v6439, 0
      %v6486 = vsel %vm2049, %v6441, 0
      %v6489 = vsel %vm2049, %v6443, 0
      %v6492 = vsel %vm2049, %v6445, 0
      %v6495 = vsel %vm2049, %v6447, 0
      %v6498 = vsel %vm2049, %v6449, 0
      %v6501 = vsel %vm2049, %v6451, 0
      %6503 = vmatprep.subr.bf16.mxu0 0
      %6504 = vmatpush1.bf16.msra.mxu0 0
      %6505 = vmatprep.subr.bf16.mxu0 0
      %6506 = vmatpush1.bf16.msra.mxu0 0
      %6507 = vmatprep.subr.bf16.mxu0 0
      %6508 = vmatpush1.bf16.msra.mxu0 0
      %6509 = vmatprep.subr.bf16.mxu0 0
      %6510 = vmatpush1.bf16.msra.mxu0 0
      %6511 = vmatprep.subr.bf16.mxu0 0
      %6512 = vmatpush1.bf16.msra.mxu0 %v6471
      %6513 = vmatprep.subr.bf16.mxu0 0
      %6514 = vmatpush1.bf16.msra.mxu0 %v6470
      %6515 = vmatprep.subr.bf16.mxu0 0
      %6516 = vmatpush1.bf16.msra.mxu0 %v6469
      %6517 = vmatprep.subr.bf16.mxu0 0
      %6518 = vmatpush1.bf16.msra.mxu0 %v6468
      %6519 = vmatprep.subr.bf16.mxu0 0
      %6520 = vmatpush2.bf16.msra.mxu0 0
      %6521 = vmatprep.subr.bf16.mxu0 0
      %6522 = vmatpush2.bf16.msra.mxu0 0
      %6523 = vmatprep.subr.bf16.mxu0 0
      %6524 = vmatpush2.bf16.msra.mxu0 0
      %6525 = vmatprep.subr.bf16.mxu0 0
      %6526 = vmatpush2.bf16.msra.mxu0 0
      %6527 = vmatprep.subr.bf16.mxu0 0
      %6528 = vmatpush2.bf16.msra.mxu0 0
      %6529 = vmatprep.subr.bf16.mxu0 0
      %6530 = vmatpush2.bf16.msra.mxu0 0
      %6531 = vmatprep.subr.bf16.mxu0 0
      %6532 = vmatpush2.bf16.msra.mxu0 0
      %6533 = vmatprep.subr.bf16.mxu0 0
      %6534 = vmatpush2.bf16.msra.mxu0 0
      %6535 = vmatprep.mubr.bf16.mxu0 0
      %6536 = vmatmul.mubr.bf16.gmra.mxu0 %v6477
      %v6537 = vpop.f32.mrf.mxu0
      %v6538 = vadd.f32 0.0, %v6537
      %v6539 = vpop.f32.mrf.mxu0
      %v6540 = vpop.f32.mrf.mxu0
      %v6541 = vadd.f32 0.0, %v6540
      %v6542 = vpop.f32.mrf.mxu0
      %6543 = vmatprep.mubr.bf16.mxu0 0
      %6544 = vmatmul.mubr.bf16.gmra.mxu0 %v6480
      %v6545 = vpop.f32.mrf.mxu0
      %v6546 = vadd.f32 0.0, %v6545
      %v6547 = vpop.f32.mrf.mxu0
      %v6548 = vpop.f32.mrf.mxu0
      %v6549 = vadd.f32 0.0, %v6548
      %v6550 = vpop.f32.mrf.mxu0
      %6551 = vmatprep.mubr.bf16.mxu0 0
      %6552 = vmatmul.mubr.bf16.gmra.mxu0 %v6483
      %v6553 = vpop.f32.mrf.mxu0
      %v6554 = vadd.f32 0.0, %v6553
      %v6555 = vpop.f32.mrf.mxu0
      %v6556 = vpop.f32.mrf.mxu0
      %v6557 = vadd.f32 0.0, %v6556
      %v6558 = vpop.f32.mrf.mxu0
      %6559 = vmatprep.mubr.bf16.mxu0 0
      %6560 = vmatmul.mubr.bf16.gmra.mxu0 %v6486
      %v6561 = vpop.f32.mrf.mxu0
      %v6562 = vadd.f32 0.0, %v6561
      %v6563 = vpop.f32.mrf.mxu0
      %v6564 = vpop.f32.mrf.mxu0
      %v6565 = vadd.f32 0.0, %v6564
      %v6566 = vpop.f32.mrf.mxu0
      %6567 = vmatprep.mubr.bf16.mxu0 0
      %6568 = vmatmul.mubr.bf16.gmra.mxu0 %v6489
      %v6569 = vpop.f32.mrf.mxu0
      %v6570 = vadd.f32 0.0, %v6569
      %v6571 = vpop.f32.mrf.mxu0
      %v6572 = vpop.f32.mrf.mxu0
      %v6573 = vadd.f32 0.0, %v6572
      %v6574 = vpop.f32.mrf.mxu0
      %6575 = vmatprep.mubr.bf16.mxu0 0
      %6576 = vmatmul.mubr.bf16.gmra.mxu0 %v6492
      %v6577 = vpop.f32.mrf.mxu0
      %v6578 = vadd.f32 0.0, %v6577
      %v6579 = vpop.f32.mrf.mxu0
      %v6580 = vpop.f32.mrf.mxu0
      %v6581 = vadd.f32 0.0, %v6580
      %v6582 = vpop.f32.mrf.mxu0
      %6583 = vmatprep.mubr.bf16.mxu0 0
      %6584 = vmatmul.mubr.bf16.gmra.mxu0 %v6495
      %v6585 = vpop.f32.mrf.mxu0
      %v6586 = vadd.f32 0.0, %v6585
      %v6587 = vpop.f32.mrf.mxu0
      %v6588 = vpop.f32.mrf.mxu0
      %v6589 = vadd.f32 0.0, %v6588
      %v6590 = vpop.f32.mrf.mxu0
      %6591 = vmatprep.mubr.bf16.mxu0 0
      %6592 = vmatmul.mubr.bf16.gmra.mxu0 %v6498
      %v6593 = vpop.f32.mrf.mxu0
      %v6594 = vadd.f32 0.0, %v6593
      %v6595 = vpop.f32.mrf.mxu0
      %v6596 = vpop.f32.mrf.mxu0
      %v6597 = vadd.f32 0.0, %v6596
      %v6598 = vpop.f32.mrf.mxu0
      %6599 = vmatprep.mubr.bf16.mxu0 0
      %6600 = vmatmul.mubr.bf16.gmra.mxu0 %v6501
      %v6601 = vpop.f32.mrf.mxu0
      %v6602 = vadd.f32 0.0, %v6601
      %v6603 = vpop.f32.mrf.mxu0
      %v6604 = vpop.f32.mrf.mxu0
      %v6605 = vadd.f32 0.0, %v6604
      %v6606 = vpop.f32.mrf.mxu0
      %6607 = vdwg.mxu0
      %v6608 = vadd.f32 %v6403, %v6538
      %v6609 = vadd.f32 %v6404, %v6541
      %v6610 = vadd.f32 %v6405, %v6546
      %v6611 = vadd.f32 %v6406, %v6549
      %v6612 = vadd.f32 %v6407, %v6554
      %v6613 = vadd.f32 %v6408, %v6557
      %v6614 = vadd.f32 %v6409, %v6562
      %v6615 = vadd.f32 %v6410, %v6565
      %v6616 = vadd.f32 %v6411, %v6570
      %v6617 = vadd.f32 %v6412, %v6573
      %v6618 = vadd.f32 %v6413, %v6578
      %v6619 = vadd.f32 %v6414, %v6581
      %v6620 = vadd.f32 %v6415, %v6586
      %v6621 = vadd.f32 %v6416, %v6589
      %v6622 = vadd.f32 %v6417, %v6594
      %v6623 = vadd.f32 %v6418, %v6597
      %v6624 = vadd.f32 %v6419, %v6602
      %v6625 = vadd.f32 %v6420, %v6605
      %v6626 = vld [vmem:[%s6] sm:$0x1]
      %v6628 = vlaneseq
      %v6629 = vshrl.u32 %v6628, 7
      %v6630 = vsub.s32 0, %v6629
      %v6631 = vrot.slane %v6626, %v6630
      %v6633 = vmul.f32 %v6608, %v6631
      %v6634 = vmul.f32 %v6609, %v6631
      %v6635 = vmul.f32 %v6610, %v6631
      %v6636 = vmul.f32 %v6611, %v6631
      %v6637 = vmul.f32 %v6612, %v6631
      %v6638 = vmul.f32 %v6613, %v6631
      %v6639 = vmul.f32 %v6614, %v6631
      %v6640 = vmul.f32 %v6615, %v6631
      %v6641 = vmul.f32 %v6616, %v6631
      %v6642 = vmul.f32 %v6617, %v6631
      %v6643 = vmul.f32 %v6618, %v6631
      %v6644 = vmul.f32 %v6619, %v6631
      %v6645 = vmul.f32 %v6620, %v6631
      %v6646 = vmul.f32 %v6621, %v6631
      %v6647 = vmul.f32 %v6622, %v6631
      %v6648 = vmul.f32 %v6623, %v6631
      %v6649 = vmul.f32 %v6624, %v6631
      %v6650 = vmul.f32 %v6625, %v6631
      %v6651 = vld [vmem:[%s7] sm:$0x1]
      %v6653 = vlaneseq
      %v6654 = vshrl.u32 %v6653, 7
      %v6655 = vsub.s32 0, %v6654
      %v6656 = vrot.slane %v6651, %v6655
      %v6658 = vadd.f32 %v6633, %v6656
      %v6659 = vadd.f32 %v6634, %v6656
      %v6660 = vadd.f32 %v6635, %v6656
      %v6661 = vadd.f32 %v6636, %v6656
      %v6662 = vadd.f32 %v6637, %v6656
      %v6663 = vadd.f32 %v6638, %v6656
      %v6664 = vadd.f32 %v6639, %v6656
      %v6665 = vadd.f32 %v6640, %v6656
      %v6666 = vadd.f32 %v6641, %v6656
      %v6667 = vadd.f32 %v6642, %v6656
      %v6668 = vadd.f32 %v6643, %v6656
      %v6669 = vadd.f32 %v6644, %v6656
      %v6670 = vadd.f32 %v6645, %v6656
      %v6671 = vadd.f32 %v6646, %v6656
      %v6672 = vadd.f32 %v6647, %v6656
      %v6673 = vadd.f32 %v6648, %v6656
      %v6674 = vadd.f32 %v6649, %v6656
      %v6675 = vadd.f32 %v6650, %v6656
      %v6676 = vmax.f32 %v6658, 0.0
      %v6677 = vmax.f32 %v6659, 0.0
      %v6678 = vmax.f32 %v6660, 0.0
      %v6679 = vmax.f32 %v6661, 0.0
      %v6680 = vmax.f32 %v6662, 0.0
      %v6681 = vmax.f32 %v6663, 0.0
      %v6682 = vmax.f32 %v6664, 0.0
      %v6683 = vmax.f32 %v6665, 0.0
      %v6684 = vmax.f32 %v6666, 0.0
      %v6685 = vmax.f32 %v6667, 0.0
      %v6686 = vmax.f32 %v6668, 0.0
      %v6687 = vmax.f32 %v6669, 0.0
      %v6688 = vmax.f32 %v6670, 0.0
      %v6689 = vmax.f32 %v6671, 0.0
      %v6690 = vmax.f32 %v6672, 0.0
      %v6691 = vmax.f32 %v6673, 0.0
      %v6692 = vmax.f32 %v6674, 0.0
      %v6693 = vmax.f32 %v6675, 0.0
      %v6694 = vpack.c.bf16 %v6677, %v6676
      %v6695 = vpack.c.bf16 %v6679, %v6678
      %v6696 = vpack.c.bf16 %v6681, %v6680
      %v6697 = vpack.c.bf16 %v6683, %v6682
      %v6698 = vpack.c.bf16 %v6685, %v6684
      %v6699 = vpack.c.bf16 %v6687, %v6686
      %v6700 = vpack.c.bf16 %v6689, %v6688
      %v6701 = vpack.c.bf16 %v6691, %v6690
      %v6702 = vpack.c.bf16 %v6693, %v6692
      %v6712 = vunpack.c.l.b16 %v6694
      %v6713 = vunpack.c.h.b16 %v6694
      %v6714 = vunpack.c.l.b16 %v6695
      %v6715 = vunpack.c.h.b16 %v6695
      %v6716 = vunpack.c.l.b16 %v6696
      %v6717 = vunpack.c.h.b16 %v6696
      %v6718 = vunpack.c.l.b16 %v6697
      %v6719 = vunpack.c.h.b16 %v6697
      %v6720 = vunpack.c.l.b16 %v6698
      %v6721 = vunpack.c.h.b16 %v6698
      %v6722 = vunpack.c.l.b16 %v6699
      %v6723 = vunpack.c.h.b16 %v6699
      %v6724 = vunpack.c.l.b16 %v6700
      %v6725 = vunpack.c.h.b16 %v6700
      %v6726 = vunpack.c.l.b16 %v6701
      %v6727 = vunpack.c.h.b16 %v6701
      %v6728 = vunpack.c.l.b16 %v6702
      %v6729 = vunpack.c.h.b16 %v6702
      %v6730 = vpack.c.b16 %v6712, %v6712
      %v6731 = vpack.c.b16 %v6713, %v6713
      %v6732 = vpack.c.b16 %v6714, %v6714
      %v6733 = vpack.c.b16 %v6715, %v6715
      %v6734 = vpack.c.b16 %v6716, %v6716
      %v6735 = vpack.c.b16 %v6717, %v6717
      %v6736 = vpack.c.b16 %v6718, %v6718
      %v6737 = vpack.c.b16 %v6719, %v6719
      %v6738 = vpack.c.b16 %v6720, %v6720
      %v6739 = vpack.c.b16 %v6721, %v6721
      %v6740 = vpack.c.b16 %v6722, %v6722
      %v6741 = vpack.c.b16 %v6723, %v6723
      %v6742 = vpack.c.b16 %v6724, %v6724
      %v6743 = vpack.c.b16 %v6725, %v6725
      %v6744 = vpack.c.b16 %v6726, %v6726
      %v6745 = vpack.c.b16 %v6727, %v6727
      %v6746 = vpack.c.b16 %v6728, %v6728
      %v6747 = vpack.c.b16 %v6729, %v6729
      %6766 = vst [vmem:[#allocation3 + $0x48] sm:$0xf] %v6730
      %6767 = vst [vmem:[#allocation3 + $0x4c] sm:$0xf] %v6731
      %6768 = vst [vmem:[#allocation3 + $0x50] sm:$0xf] %v6732
      %6769 = vst [vmem:[#allocation3 + $0x54] sm:$0xf] %v6733
      %6770 = vst [vmem:[#allocation3 + $0x58] sm:$0xf] %v6734
      %6771 = vst [vmem:[#allocation3 + $0x5c] sm:$0xf] %v6735
      %6772 = vst [vmem:[#allocation3 + $0x60] sm:$0xf] %v6736
      %6773 = vst [vmem:[#allocation3 + $0x64] sm:$0xf] %v6737
      %6774 = vst [vmem:[#allocation3 + $0x68] sm:$0xf] %v6738
      %6775 = vst [vmem:[#allocation3 + $0x6c] sm:$0xf] %v6739
      %6776 = vst [vmem:[#allocation3 + $0x70] sm:$0xf] %v6740
      %6777 = vst [vmem:[#allocation3 + $0x74] sm:$0xf] %v6741
      %6778 = vst [vmem:[#allocation3 + $0x78] sm:$0xf] %v6742
      %6779 = vst [vmem:[#allocation3 + $0x7c] sm:$0xf] %v6743
      %6780 = vst [vmem:[#allocation3 + $0x80] sm:$0xf] %v6744
      %6781 = vst [vmem:[#allocation3 + $0x84] sm:$0xf] %v6745
      %6782 = vst [vmem:[#allocation3 + $0x88] sm:$0xf] %v6746
      %6783 = vst [vmem:[#allocation3 + $0x8c] sm:$0xf] %v6747
      %v6784 = vld [vmem:[%s1 + $0x50] sm:$0xe]
      %v6785 = vld [vmem:[%s1 + $0x54] sm:$0xf]
      %v6786 = vld [vmem:[%s1 + $0x58] sm:$0xf]
      %v6787 = vld [vmem:[%s1 + $0x5c] sm:$0xf]
      %v6788 = vld [vmem:[%s1 + $0x60] sm:$0xf]
      %v6789 = vld [vmem:[%s1 + $0x64] sm:$0xf]
      %v6790 = vld [vmem:[%s1 + $0x68] sm:$0xf]
      %v6791 = vld [vmem:[%s1 + $0x6c] sm:$0xf]
      %v6792 = vld [vmem:[%s1 + $0x70] sm:$0xf]
      %v6793 = vld [vmem:[%s1 + $0x74] sm:$0xf]
      %v6794 = vld [vmem:[%s1 + $0x78] sm:$0xf]
      %v6795 = vld [vmem:[%s1 + $0x7c] sm:$0xf]
      %v6796 = vld [vmem:[%s1 + $0x80] sm:$0xf]
      %v6797 = vld [vmem:[%s1 + $0x84] sm:$0xf]
      %v6798 = vld [vmem:[%s1 + $0x88] sm:$0xf]
      %v6799 = vld [vmem:[%s1 + $0x8c] sm:$0xf]
      %v6800 = vld [vmem:[%s1 + $0x90] sm:$0xf]
      %v6801 = vld [vmem:[%s1 + $0x94] sm:$0xf]
      %v6802 = vld [vmem:[%s1 + $0x98] sm:$0x3]
      %v6803 = vunpack.c.l.bf16 %v6784
      %v6804 = vunpack.c.l.bf16 %v6785
      %v6805 = vunpack.c.l.bf16 %v6786
      %v6806 = vunpack.c.l.bf16 %v6787
      %v6807 = vunpack.c.l.bf16 %v6788
      %v6808 = vunpack.c.l.bf16 %v6789
      %v6809 = vunpack.c.l.bf16 %v6790
      %v6810 = vunpack.c.l.bf16 %v6791
      %v6811 = vunpack.c.l.bf16 %v6792
      %v6812 = vunpack.c.l.bf16 %v6793
      %v6813 = vunpack.c.l.bf16 %v6794
      %v6814 = vunpack.c.l.bf16 %v6795
      %v6815 = vunpack.c.l.bf16 %v6796
      %v6816 = vunpack.c.l.bf16 %v6797
      %v6817 = vunpack.c.l.bf16 %v6798
      %v6818 = vunpack.c.l.bf16 %v6799
      %v6819 = vunpack.c.l.bf16 %v6800
      %v6820 = vunpack.c.l.bf16 %v6801
      %v6821 = vunpack.c.l.bf16 %v6802
      %6840 = vrot.lane.b32.xlu0 %v6676, 64
      %v6841 = vpop.permute.xlu0 %6840
      %6842 = vrot.lane.b32.xlu0 %v6677, 64
      %v6843 = vpop.permute.xlu0 %6842
      %6844 = vrot.lane.b32.xlu0 %v6678, 64
      %v6845 = vpop.permute.xlu0 %6844
      %6846 = vrot.lane.b32.xlu0 %v6679, 64
      %v6847 = vpop.permute.xlu0 %6846
      %6848 = vrot.lane.b32.xlu0 %v6680, 64
      %v6849 = vpop.permute.xlu0 %6848
      %6850 = vrot.lane.b32.xlu0 %v6681, 64
      %v6851 = vpop.permute.xlu0 %6850
      %6852 = vrot.lane.b32.xlu0 %v6682, 64
      %v6853 = vpop.permute.xlu0 %6852
      %6854 = vrot.lane.b32.xlu0 %v6683, 64
      %v6855 = vpop.permute.xlu0 %6854
      %6856 = vrot.lane.b32.xlu0 %v6684, 64
      %v6857 = vpop.permute.xlu0 %6856
      %6858 = vrot.lane.b32.xlu0 %v6685, 64
      %v6859 = vpop.permute.xlu0 %6858
      %6860 = vrot.lane.b32.xlu0 %v6686, 64
      %v6861 = vpop.permute.xlu0 %6860
      %6862 = vrot.lane.b32.xlu0 %v6687, 64
      %v6863 = vpop.permute.xlu0 %6862
      %6864 = vrot.lane.b32.xlu0 %v6688, 64
      %v6865 = vpop.permute.xlu0 %6864
      %6866 = vrot.lane.b32.xlu0 %v6689, 64
      %v6867 = vpop.permute.xlu0 %6866
      %6868 = vrot.lane.b32.xlu0 %v6690, 64
      %v6869 = vpop.permute.xlu0 %6868
      %6870 = vrot.lane.b32.xlu0 %v6691, 64
      %v6871 = vpop.permute.xlu0 %6870
      %6872 = vrot.lane.b32.xlu0 %v6692, 64
      %v6873 = vpop.permute.xlu0 %6872
      %6874 = vrot.lane.b32.xlu0 %v6693, 64
      %v6875 = vpop.permute.xlu0 %6874
      %v6894 = vadd.f32 %v6676, %v6841
      %v6895 = vadd.f32 %v6677, %v6843
      %v6896 = vadd.f32 %v6678, %v6845
      %v6897 = vadd.f32 %v6679, %v6847
      %v6898 = vadd.f32 %v6680, %v6849
      %v6899 = vadd.f32 %v6681, %v6851
      %v6900 = vadd.f32 %v6682, %v6853
      %v6901 = vadd.f32 %v6683, %v6855
      %v6902 = vadd.f32 %v6684, %v6857
      %v6903 = vadd.f32 %v6685, %v6859
      %v6904 = vadd.f32 %v6686, %v6861
      %v6905 = vadd.f32 %v6687, %v6863
      %v6906 = vadd.f32 %v6688, %v6865
      %v6907 = vadd.f32 %v6689, %v6867
      %v6908 = vadd.f32 %v6690, %v6869
      %v6909 = vadd.f32 %v6691, %v6871
      %v6910 = vadd.f32 %v6692, %v6873
      %v6911 = vadd.f32 %v6693, %v6875
      %v6931 = vrot.slane %v6803, 3
      %v6932 = vrot.slane %v6804, 3
      %v6933 = vsel %vm4347, %v6931, %v6932
      %v6934 = vrot.slane %v6805, 3
      %v6935 = vsel %vm4347, %v6932, %v6934
      %v6936 = vrot.slane %v6806, 3
      %v6937 = vsel %vm4347, %v6934, %v6936
      %v6938 = vrot.slane %v6807, 3
      %v6939 = vsel %vm4347, %v6936, %v6938
      %v6940 = vrot.slane %v6808, 3
      %v6941 = vsel %vm4347, %v6938, %v6940
      %v6942 = vrot.slane %v6809, 3
      %v6943 = vsel %vm4347, %v6940, %v6942
      %v6944 = vrot.slane %v6810, 3
      %v6945 = vsel %vm4347, %v6942, %v6944
      %v6946 = vrot.slane %v6811, 3
      %v6947 = vsel %vm4347, %v6944, %v6946
      %v6948 = vrot.slane %v6812, 3
      %v6949 = vsel %vm4347, %v6946, %v6948
      %v6950 = vrot.slane %v6813, 3
      %v6951 = vsel %vm4347, %v6948, %v6950
      %v6952 = vrot.slane %v6814, 3
      %v6953 = vsel %vm4347, %v6950, %v6952
      %v6954 = vrot.slane %v6815, 3
      %v6955 = vsel %vm4347, %v6952, %v6954
      %v6956 = vrot.slane %v6816, 3
      %v6957 = vsel %vm4347, %v6954, %v6956
      %v6958 = vrot.slane %v6817, 3
      %v6959 = vsel %vm4347, %v6956, %v6958
      %v6960 = vrot.slane %v6818, 3
      %v6961 = vsel %vm4347, %v6958, %v6960
      %v6962 = vrot.slane %v6819, 3
      %v6963 = vsel %vm4347, %v6960, %v6962
      %v6964 = vrot.slane %v6820, 3
      %v6965 = vsel %vm4347, %v6962, %v6964
      %v6966 = vrot.slane %v6821, 3
      %v6967 = vsel %vm4347, %v6964, %v6966
      %v6986 = vmul.f32 %v6894, %v6933
      %v6987 = vmul.f32 %v6895, %v6935
      %v6988 = vmul.f32 %v6896, %v6937
      %v6989 = vmul.f32 %v6897, %v6939
      %v6990 = vmul.f32 %v6898, %v6941
      %v6991 = vmul.f32 %v6899, %v6943
      %v6992 = vmul.f32 %v6900, %v6945
      %v6993 = vmul.f32 %v6901, %v6947
      %v6994 = vmul.f32 %v6902, %v6949
      %v6995 = vmul.f32 %v6903, %v6951
      %v6996 = vmul.f32 %v6904, %v6953
      %v6997 = vmul.f32 %v6905, %v6955
      %v6998 = vmul.f32 %v6906, %v6957
      %v6999 = vmul.f32 %v6907, %v6959
      %v7000 = vmul.f32 %v6908, %v6961
      %v7001 = vmul.f32 %v6909, %v6963
      %v7002 = vmul.f32 %v6910, %v6965
      %v7003 = vmul.f32 %v6911, %v6967
      %v7004 = vsel %vm2049, %v6986, 0.0
      %v7005 = vsel %vm2049, %v6987, 0.0
      %v7006 = vadd.f32 %v7004, %v7005
      %v7007 = vsel %vm2049, %v6988, 0.0
      %v7008 = vadd.f32 %v7006, %v7007
      %v7009 = vsel %vm2049, %v6989, 0.0
      %v7010 = vadd.f32 %v7008, %v7009
      %v7011 = vsel %vm2049, %v6990, 0.0
      %v7012 = vadd.f32 %v7010, %v7011
      %v7013 = vsel %vm2049, %v6991, 0.0
      %v7014 = vadd.f32 %v7012, %v7013
      %v7015 = vsel %vm2049, %v6992, 0.0
      %v7016 = vadd.f32 %v7014, %v7015
      %v7017 = vsel %vm2049, %v6993, 0.0
      %v7018 = vadd.f32 %v7016, %v7017
      %v7019 = vsel %vm2049, %v6994, 0.0
      %v7020 = vadd.f32 %v7018, %v7019
      %v7021 = vsel %vm2049, %v6995, 0.0
      %v7022 = vadd.f32 %v7020, %v7021
      %v7023 = vsel %vm2049, %v6996, 0.0
      %v7024 = vadd.f32 %v7022, %v7023
      %v7025 = vsel %vm2049, %v6997, 0.0
      %v7026 = vadd.f32 %v7024, %v7025
      %v7027 = vsel %vm2049, %v6998, 0.0
      %v7028 = vadd.f32 %v7026, %v7027
      %v7029 = vsel %vm2049, %v6999, 0.0
      %v7030 = vadd.f32 %v7028, %v7029
      %v7031 = vsel %vm2049, %v7000, 0.0
      %v7032 = vadd.f32 %v7030, %v7031
      %v7033 = vsel %vm2049, %v7001, 0.0
      %v7034 = vadd.f32 %v7032, %v7033
      %v7035 = vsel %vm2049, %v7002, 0.0
      %v7036 = vadd.f32 %v7034, %v7035
      %v7037 = vsel %vm2049, %v7003, 0.0
      %v7038 = vadd.f32 %v7036, %v7037
      %v7039 = vrot.slane %v7038, 4
      %v7040 = vadd.f32 %v7038, %v7039
      %v7041 = vrot.slane %v7040, 2
      %v7042 = vadd.f32 %v7040, %v7041
      %v7043 = vrot.slane %v7042, 1
      %v7044 = vadd.f32 %v7042, %v7043
      %v7045 = vadd.f32 %v4462, %v7044
      %v7046 = vmul.f32 %v7045, 0.00390625
      %v7047 = vld [vmem:[%s8] sm:$0xff]
      %v7048 = vld [vmem:[%s8 + $0x8] sm:$0xff]
      %v7049 = vld [vmem:[%s8 + $0x10] sm:$0xff]
      %v7050 = vld [vmem:[%s8 + $0x18] sm:$0xff]
      %v7051 = vld [vmem:[%s8 + $0x20] sm:$0xff]
      %v7052 = vld [vmem:[%s8 + $0x28] sm:$0xff]
      %v7053 = vld [vmem:[%s8 + $0x30] sm:$0xff]
      %v7054 = vld [vmem:[%s8 + $0x38] sm:$0xff]
      %v7056 = vsel %vm2049, %v7046, 0
      %7058 = vmatprep.subr.mxu0 0.0
      %7059 = vmatpush1.msra.mxu0 0.0
      %7060 = vmatprep.subr.mxu0 0.0
      %7061 = vmatpush1.msra.mxu0 0.0
      %7062 = vmatprep.subr.mxu0 0.0
      %7063 = vmatpush1.msra.mxu0 0.0
      %7064 = vmatprep.subr.mxu0 0.0
      %7065 = vmatpush1.msra.mxu0 0.0
      %7066 = vmatprep.subr.mxu0 0.0
      %7067 = vmatpush1.msra.mxu0 0.0
      %7068 = vmatprep.subr.mxu0 0.0
      %7069 = vmatpush1.msra.mxu0 0.0
      %7070 = vmatprep.subr.mxu0 0.0
      %7071 = vmatpush1.msra.mxu0 0.0
      %7072 = vmatprep.subr.mxu0 0.0
      %7073 = vmatpush1.msra.mxu0 0.0
      %7074 = vmatprep.subr.mxu0 0.0
      %7075 = vmatpush1.msra.mxu0 %v7054
      %7076 = vmatprep.subr.mxu0 0.0
      %7077 = vmatpush1.msra.mxu0 %v7053
      %7078 = vmatprep.subr.mxu0 0.0
      %7079 = vmatpush1.msra.mxu0 %v7052
      %7080 = vmatprep.subr.mxu0 0.0
      %7081 = vmatpush1.msra.mxu0 %v7051
      %7082 = vmatprep.subr.mxu0 0.0
      %7083 = vmatpush1.msra.mxu0 %v7050
      %7084 = vmatprep.subr.mxu0 0.0
      %7085 = vmatpush1.msra.mxu0 %v7049
      %7086 = vmatprep.subr.mxu0 0.0
      %7087 = vmatpush1.msra.mxu0 %v7048
      %7088 = vmatprep.subr.mxu0 0.0
      %7089 = vmatpush1.msra.mxu0 %v7047
      %7090 = vmatprep.subr.mxu0 0.0
      %7091 = vmatpush2.msra.mxu0 0.0
      %7092 = vmatprep.subr.mxu0 0.0
      %7093 = vmatpush2.msra.mxu0 0.0
      %7094 = vmatprep.subr.mxu0 0.0
      %7095 = vmatpush2.msra.mxu0 0.0
      %7096 = vmatprep.subr.mxu0 0.0
      %7097 = vmatpush2.msra.mxu0 0.0
      %7098 = vmatprep.subr.mxu0 0.0
      %7099 = vmatpush2.msra.mxu0 0.0
      %7100 = vmatprep.subr.mxu0 0.0
      %7101 = vmatpush2.msra.mxu0 0.0
      %7102 = vmatprep.subr.mxu0 0.0
      %7103 = vmatpush2.msra.mxu0 0.0
      %7104 = vmatprep.subr.mxu0 0.0
      %7105 = vmatpush2.msra.mxu0 0.0
      %7106 = vmatprep.subr.mxu0 0.0
      %7107 = vmatpush2.msra.mxu0 0.0
      %7108 = vmatprep.subr.mxu0 0.0
      %7109 = vmatpush2.msra.mxu0 0.0
      %7110 = vmatprep.subr.mxu0 0.0
      %7111 = vmatpush2.msra.mxu0 0.0
      %7112 = vmatprep.subr.mxu0 0.0
      %7113 = vmatpush2.msra.mxu0 0.0
      %7114 = vmatprep.subr.mxu0 0.0
      %7115 = vmatpush2.msra.mxu0 0.0
      %7116 = vmatprep.subr.mxu0 0.0
      %7117 = vmatpush2.msra.mxu0 0.0
      %7118 = vmatprep.subr.mxu0 0.0
      %7119 = vmatpush2.msra.mxu0 0.0
      %7120 = vmatprep.subr.mxu0 0.0
      %7121 = vmatpush2.msra.mxu0 0.0
      %7122 = vmatprep.mubr.f32.mxu0 0.0
      %7123 = vmatmul.mubr.f32.gmra.mxu0 %v7056
      %v7124 = vpop.f32.mrf.mxu0
      %v7125 = vadd.f32 0.0, %v7124
      %v7126 = vpop.f32.mrf.mxu0
      %7127 = vdwg.mxu0
      %v7128 = vld [vmem:[%s9] sm:$0x1]
      %v7129 = vmul.f32 %v7125, %v7128
      %v7130 = vld [vmem:[%s10] sm:$0x1]
      %v7131 = vadd.f32 %v7129, %v7130
      %v7132 = vmax.f32 %v7131, 0.0
      %v7133 = vld [vmem:[%s11] sm:$0xff]
      %v7134 = vld [vmem:[%s11 + $0x8] sm:$0xff]
      %v7135 = vld [vmem:[%s11 + $0x10] sm:$0xff]
      %v7136 = vld [vmem:[%s11 + $0x18] sm:$0xff]
      %v7137 = vld [vmem:[%s12] sm:$0x1]
      %vm7138 = vcmask 261120
      %v7140 = vsel %vm7138, %v7132, 0
      %7142 = vmatprep.subr.mxu0 0.0
      %7143 = vmatpush1.msra.mxu0 0.0
      %7144 = vmatprep.subr.mxu0 0.0
      %7145 = vmatpush1.msra.mxu0 0.0
      %7146 = vmatprep.subr.mxu0 0.0
      %7147 = vmatpush1.msra.mxu0 0.0
      %7148 = vmatprep.subr.mxu0 0.0
      %7149 = vmatpush1.msra.mxu0 0.0
      %7150 = vmatprep.subr.mxu0 0.0
      %7151 = vmatpush1.msra.mxu0 0.0
      %7152 = vmatprep.subr.mxu0 0.0
      %7153 = vmatpush1.msra.mxu0 0.0
      %7154 = vmatprep.subr.mxu0 0.0
      %7155 = vmatpush1.msra.mxu0 0.0
      %7156 = vmatprep.subr.mxu0 0.0
      %7157 = vmatpush1.msra.mxu0 0.0
      %7158 = vmatprep.subr.mxu0 0.0
      %7159 = vmatpush1.msra.mxu0 0.0
      %7160 = vmatprep.subr.mxu0 0.0
      %7161 = vmatpush1.msra.mxu0 0.0
      %7162 = vmatprep.subr.mxu0 0.0
      %7163 = vmatpush1.msra.mxu0 0.0
      %7164 = vmatprep.subr.mxu0 0.0
      %7165 = vmatpush1.msra.mxu0 0.0
      %7166 = vmatprep.subr.mxu0 0.0
      %7167 = vmatpush1.msra.mxu0 %v7136
      %7168 = vmatprep.subr.mxu0 0.0
      %7169 = vmatpush1.msra.mxu0 %v7135
      %7170 = vmatprep.subr.mxu0 0.0
      %7171 = vmatpush1.msra.mxu0 %v7134
      %7172 = vmatprep.subr.mxu0 0.0
      %7173 = vmatpush1.msra.mxu0 %v7133
      %7174 = vmatprep.subr.mxu0 0.0
      %7175 = vmatpush2.msra.mxu0 0.0
      %7176 = vmatprep.subr.mxu0 0.0
      %7177 = vmatpush2.msra.mxu0 0.0
      %7178 = vmatprep.subr.mxu0 0.0
      %7179 = vmatpush2.msra.mxu0 0.0
      %7180 = vmatprep.subr.mxu0 0.0
      %7181 = vmatpush2.msra.mxu0 0.0
      %7182 = vmatprep.subr.mxu0 0.0
      %7183 = vmatpush2.msra.mxu0 0.0
      %7184 = vmatprep.subr.mxu0 0.0
      %7185 = vmatpush2.msra.mxu0 0.0
      %7186 = vmatprep.subr.mxu0 0.0
      %7187 = vmatpush2.msra.mxu0 0.0
      %7188 = vmatprep.subr.mxu0 0.0
      %7189 = vmatpush2.msra.mxu0 0.0
      %7190 = vmatprep.subr.mxu0 0.0
      %7191 = vmatpush2.msra.mxu0 0.0
      %7192 = vmatprep.subr.mxu0 0.0
      %7193 = vmatpush2.msra.mxu0 0.0
      %7194 = vmatprep.subr.mxu0 0.0
      %7195 = vmatpush2.msra.mxu0 0.0
      %7196 = vmatprep.subr.mxu0 0.0
      %7197 = vmatpush2.msra.mxu0 0.0
      %7198 = vmatprep.subr.mxu0 0.0
      %7199 = vmatpush2.msra.mxu0 0.0
      %7200 = vmatprep.subr.mxu0 0.0
      %7201 = vmatpush2.msra.mxu0 0.0
      %7202 = vmatprep.subr.mxu0 0.0
      %7203 = vmatpush2.msra.mxu0 0.0
      %7204 = vmatprep.subr.mxu0 0.0
      %7205 = vmatpush2.msra.mxu0 0.0
      %7206 = vmatprep.mubr.f32.mxu0 0.0
      %7207 = vmatmul.mubr.f32.gmra.mxu0 %v7140
      %v7208 = vpop.f32.mrf.mxu0
      %v7209 = vadd.f32 %v7137, %v7208
      %v7210 = vpop.f32.mrf.mxu0
      %7211 = vdwg.mxu0
      %7213 = vrot.lane.b32.xlu0 %v7209, 64
      %v7214 = vpop.permute.xlu0 %7213
      %v7216 = vmax.f32 %v7209, %v7214
      %v7217 = vsub.f32 %v7209, %v7216
      %v7218 = vmul.f32 %v7217, 1.442695
      %v7219 = vpow.pop %v7218
      %7221 = vrot.lane.b32.xlu0 %v7216, 64
      %v7222 = vpop.permute.xlu0 %7221
      %v7224 = vsub.f32 %v7209, %v7222
      %v7225 = vmul.f32 %v7224, 1.442695
      %v7226 = vpow.pop %v7225
      %7228 = vrot.lane.b32.xlu0 %v7226, 64
      %v7229 = vpop.permute.xlu0 %7228
      %v7231 = vadd.f32 %v7219, %v7229
      %v7232 = vrcp.pop %v7231
      %v7233 = vmul.f32 %v7219, %v7232
      %7235 = vrot.lane.b32.xlu0 %v7232, 64
      %v7236 = vpop.permute.xlu0 %7235
      %v7238 = vmul.f32 %v7226, %v7236
      %v7239 = vld [vmem:[#allocation3] sm:$0xf]
      %v7240 = vld [vmem:[#allocation3 + $0x4] sm:$0xf]
      %v7241 = vld [vmem:[#allocation3 + $0x8] sm:$0xf]
      %v7242 = vld [vmem:[#allocation3 + $0xc] sm:$0xf]
      %v7243 = vld [vmem:[#allocation3 + $0x10] sm:$0xf]
      %v7244 = vld [vmem:[#allocation3 + $0x14] sm:$0xf]
      %v7245 = vld [vmem:[#allocation3 + $0x18] sm:$0xf]
      %v7246 = vld [vmem:[#allocation3 + $0x1c] sm:$0xf]
      %v7247 = vld [vmem:[#allocation3 + $0x20] sm:$0xf]
      %v7248 = vld [vmem:[#allocation3 + $0x24] sm:$0xf]
      %v7249 = vld [vmem:[#allocation3 + $0x28] sm:$0xf]
      %v7250 = vld [vmem:[#allocation3 + $0x2c] sm:$0xf]
      %v7251 = vld [vmem:[#allocation3 + $0x30] sm:$0xf]
      %v7252 = vld [vmem:[#allocation3 + $0x34] sm:$0xf]
      %v7253 = vld [vmem:[#allocation3 + $0x38] sm:$0xf]
      %v7254 = vld [vmem:[#allocation3 + $0x3c] sm:$0xf]
      %v7255 = vld [vmem:[#allocation3 + $0x40] sm:$0xf]
      %v7256 = vld [vmem:[#allocation3 + $0x44] sm:$0xf]
      %v7257 = vunpack.c.l.bf16 %v7239
      %v7258 = vunpack.c.l.bf16 %v7240
      %v7259 = vunpack.c.l.bf16 %v7241
      %v7260 = vunpack.c.l.bf16 %v7242
      %v7261 = vunpack.c.l.bf16 %v7243
      %v7262 = vunpack.c.l.bf16 %v7244
      %v7263 = vunpack.c.l.bf16 %v7245
      %v7264 = vunpack.c.l.bf16 %v7246
      %v7265 = vunpack.c.l.bf16 %v7247
      %v7266 = vunpack.c.l.bf16 %v7248
      %v7267 = vunpack.c.l.bf16 %v7249
      %v7268 = vunpack.c.l.bf16 %v7250
      %v7269 = vunpack.c.l.bf16 %v7251
      %v7270 = vunpack.c.l.bf16 %v7252
      %v7271 = vunpack.c.l.bf16 %v7253
      %v7272 = vunpack.c.l.bf16 %v7254
      %v7273 = vunpack.c.l.bf16 %v7255
      %v7274 = vunpack.c.l.bf16 %v7256
      %v7275 = vlaneseq
      %v7276 = vshrl.u32 %v7275, 7
      %v7277 = vsub.s32 0, %v7276
      %v7278 = vrot.slane %v7233, %v7277
      %v7279 = vmul.f32 %v7278, %v7257
      %v7280 = vmul.f32 %v7278, %v7258
      %v7281 = vmul.f32 %v7278, %v7259
      %v7282 = vmul.f32 %v7278, %v7260
      %v7283 = vmul.f32 %v7278, %v7261
      %v7284 = vmul.f32 %v7278, %v7262
      %v7285 = vmul.f32 %v7278, %v7263
      %v7286 = vmul.f32 %v7278, %v7264
      %v7287 = vmul.f32 %v7278, %v7265
      %v7288 = vmul.f32 %v7278, %v7266
      %v7289 = vmul.f32 %v7278, %v7267
      %v7290 = vmul.f32 %v7278, %v7268
      %v7291 = vmul.f32 %v7278, %v7269
      %v7292 = vmul.f32 %v7278, %v7270
      %v7293 = vmul.f32 %v7278, %v7271
      %v7294 = vmul.f32 %v7278, %v7272
      %v7295 = vmul.f32 %v7278, %v7273
      %v7296 = vmul.f32 %v7278, %v7274
      %v7297 = vlaneseq
      %v7298 = vshrl.u32 %v7297, 7
      %v7299 = vsub.s32 0, %v7298
      %v7300 = vrot.slane %v7238, %v7299
      %v7301 = vmul.f32 %v7300, %v7257
      %v7302 = vmul.f32 %v7300, %v7258
      %v7303 = vmul.f32 %v7300, %v7259
      %v7304 = vmul.f32 %v7300, %v7260
      %v7305 = vmul.f32 %v7300, %v7261
      %v7306 = vmul.f32 %v7300, %v7262
      %v7307 = vmul.f32 %v7300, %v7263
      %v7308 = vmul.f32 %v7300, %v7264
      %v7309 = vmul.f32 %v7300, %v7265
      %v7310 = vmul.f32 %v7300, %v7266
      %v7311 = vmul.f32 %v7300, %v7267
      %v7312 = vmul.f32 %v7300, %v7268
      %v7313 = vmul.f32 %v7300, %v7269
      %v7314 = vmul.f32 %v7300, %v7270
      %v7315 = vmul.f32 %v7300, %v7271
      %v7316 = vmul.f32 %v7300, %v7272
      %v7317 = vmul.f32 %v7300, %v7273
      %v7318 = vmul.f32 %v7300, %v7274
      %7337 = vrot.lane.b32.xlu0 %v7301, 64
      %v7338 = vpop.permute.xlu0 %7337
      %7339 = vrot.lane.b32.xlu0 %v7302, 64
      %v7340 = vpop.permute.xlu0 %7339
      %7341 = vrot.lane.b32.xlu0 %v7303, 64
      %v7342 = vpop.permute.xlu0 %7341
      %7343 = vrot.lane.b32.xlu0 %v7304, 64
      %v7344 = vpop.permute.xlu0 %7343
      %7345 = vrot.lane.b32.xlu0 %v7305, 64
      %v7346 = vpop.permute.xlu0 %7345
      %7347 = vrot.lane.b32.xlu0 %v7306, 64
      %v7348 = vpop.permute.xlu0 %7347
      %7349 = vrot.lane.b32.xlu0 %v7307, 64
      %v7350 = vpop.permute.xlu0 %7349
      %7351 = vrot.lane.b32.xlu0 %v7308, 64
      %v7352 = vpop.permute.xlu0 %7351
      %7353 = vrot.lane.b32.xlu0 %v7309, 64
      %v7354 = vpop.permute.xlu0 %7353
      %7355 = vrot.lane.b32.xlu0 %v7310, 64
      %v7356 = vpop.permute.xlu0 %7355
      %7357 = vrot.lane.b32.xlu0 %v7311, 64
      %v7358 = vpop.permute.xlu0 %7357
      %7359 = vrot.lane.b32.xlu0 %v7312, 64
      %v7360 = vpop.permute.xlu0 %7359
      %7361 = vrot.lane.b32.xlu0 %v7313, 64
      %v7362 = vpop.permute.xlu0 %7361
      %7363 = vrot.lane.b32.xlu0 %v7314, 64
      %v7364 = vpop.permute.xlu0 %7363
      %7365 = vrot.lane.b32.xlu0 %v7315, 64
      %v7366 = vpop.permute.xlu0 %7365
      %7367 = vrot.lane.b32.xlu0 %v7316, 64
      %v7368 = vpop.permute.xlu0 %7367
      %7369 = vrot.lane.b32.xlu0 %v7317, 64
      %v7370 = vpop.permute.xlu0 %7369
      %7371 = vrot.lane.b32.xlu0 %v7318, 64
      %v7372 = vpop.permute.xlu0 %7371
      %v7391 = vadd.f32 %v7279, %v7338
      %v7392 = vadd.f32 %v7280, %v7340
      %v7393 = vadd.f32 %v7281, %v7342
      %v7394 = vadd.f32 %v7282, %v7344
      %v7395 = vadd.f32 %v7283, %v7346
      %v7396 = vadd.f32 %v7284, %v7348
      %v7397 = vadd.f32 %v7285, %v7350
      %v7398 = vadd.f32 %v7286, %v7352
      %v7399 = vadd.f32 %v7287, %v7354
      %v7400 = vadd.f32 %v7288, %v7356
      %v7401 = vadd.f32 %v7289, %v7358
      %v7402 = vadd.f32 %v7290, %v7360
      %v7403 = vadd.f32 %v7291, %v7362
      %v7404 = vadd.f32 %v7292, %v7364
      %v7405 = vadd.f32 %v7293, %v7366
      %v7406 = vadd.f32 %v7294, %v7368
      %v7407 = vadd.f32 %v7295, %v7370
      %v7408 = vadd.f32 %v7296, %v7372
      %v7409 = vpack.c.bf16 %v7392, %v7391
      %v7410 = vpack.c.bf16 %v7394, %v7393
      %v7411 = vpack.c.bf16 %v7396, %v7395
      %v7412 = vpack.c.bf16 %v7398, %v7397
      %v7413 = vpack.c.bf16 %v7400, %v7399
      %v7414 = vpack.c.bf16 %v7402, %v7401
      %v7415 = vpack.c.bf16 %v7404, %v7403
      %v7416 = vpack.c.bf16 %v7406, %v7405
      %v7417 = vpack.c.bf16 %v7408, %v7407
      %v7418 = vld [vmem:[%s13] sm:$0xff]
      %v7419 = vld [vmem:[%s13 + $0x8] sm:$0xff]
      %v7420 = vld [vmem:[%s13 + $0x10] sm:$0xff]
      %v7421 = vld [vmem:[%s13 + $0x18] sm:$0xff]
      %v7422 = vld [vmem:[%s13 + $0x20] sm:$0xff]
      %v7423 = vld [vmem:[%s13 + $0x28] sm:$0xff]
      %v7424 = vld [vmem:[%s13 + $0x30] sm:$0xff]
      %v7425 = vld [vmem:[%s13 + $0x38] sm:$0xff]
      %v7434 = vunpack.c.l.b16 %v7418
      %v7435 = vunpack.c.h.b16 %v7418
      %v7436 = vunpack.c.l.b16 %v7419
      %v7437 = vunpack.c.h.b16 %v7419
      %v7438 = vunpack.c.l.b16 %v7420
      %v7439 = vunpack.c.h.b16 %v7420
      %v7440 = vunpack.c.l.b16 %v7421
      %v7441 = vunpack.c.h.b16 %v7421
      %v7442 = vunpack.c.l.b16 %v7422
      %v7443 = vunpack.c.h.b16 %v7422
      %v7444 = vunpack.c.l.b16 %v7423
      %v7445 = vunpack.c.h.b16 %v7423
      %v7446 = vunpack.c.l.b16 %v7424
      %v7447 = vunpack.c.h.b16 %v7424
      %v7448 = vunpack.c.l.b16 %v7425
      %v7449 = vunpack.c.h.b16 %v7425
      %v7450 = vpack.c.b16 %v7436, %v7434
      %v7451 = vpack.c.b16 %v7437, %v7435
      %v7452 = vpack.c.b16 %v7440, %v7438
      %v7453 = vpack.c.b16 %v7441, %v7439
      %v7454 = vpack.c.b16 %v7444, %v7442
      %v7455 = vpack.c.b16 %v7445, %v7443
      %v7456 = vpack.c.b16 %v7448, %v7446
      %v7457 = vpack.c.b16 %v7449, %v7447
      %v7467 = vsel %vm2049, %v7409, 0
      %v7470 = vsel %vm2049, %v7410, 0
      %v7473 = vsel %vm2049, %v7411, 0
      %v7476 = vsel %vm2049, %v7412, 0
      %v7479 = vsel %vm2049, %v7413, 0
      %v7482 = vsel %vm2049, %v7414, 0
      %v7485 = vsel %vm2049, %v7415, 0
      %v7488 = vsel %vm2049, %v7416, 0
      %v7491 = vsel %vm2049, %v7417, 0
      %7493 = vmatprep.subr.bf16.mxu0 0
      %7494 = vmatpush1.bf16.msra.mxu0 0
      %7495 = vmatprep.subr.bf16.mxu0 0
      %7496 = vmatpush1.bf16.msra.mxu0 0
      %7497 = vmatprep.subr.bf16.mxu0 0
      %7498 = vmatpush1.bf16.msra.mxu0 0
      %7499 = vmatprep.subr.bf16.mxu0 0
      %7500 = vmatpush1.bf16.msra.mxu0 0
      %7501 = vmatprep.subr.bf16.mxu0 %v7457
      %7502 = vmatpush1.bf16.msra.mxu0 %v7456
      %7503 = vmatprep.subr.bf16.mxu0 %v7455
      %7504 = vmatpush1.bf16.msra.mxu0 %v7454
      %7505 = vmatprep.subr.bf16.mxu0 %v7453
      %7506 = vmatpush1.bf16.msra.mxu0 %v7452
      %7507 = vmatprep.subr.bf16.mxu0 %v7451
      %7508 = vmatpush1.bf16.msra.mxu0 %v7450
      %7509 = vmatprep.subr.bf16.mxu0 0
      %7510 = vmatpush2.bf16.msra.mxu0 0
      %7511 = vmatprep.subr.bf16.mxu0 0
      %7512 = vmatpush2.bf16.msra.mxu0 0
      %7513 = vmatprep.subr.bf16.mxu0 0
      %7514 = vmatpush2.bf16.msra.mxu0 0
      %7515 = vmatprep.subr.bf16.mxu0 0
      %7516 = vmatpush2.bf16.msra.mxu0 0
      %7517 = vmatprep.subr.bf16.mxu0 0
      %7518 = vmatpush2.bf16.msra.mxu0 0
      %7519 = vmatprep.subr.bf16.mxu0 0
      %7520 = vmatpush2.bf16.msra.mxu0 0
      %7521 = vmatprep.subr.bf16.mxu0 0
      %7522 = vmatpush2.bf16.msra.mxu0 0
      %7523 = vmatprep.subr.bf16.mxu0 0
      %7524 = vmatpush2.bf16.msra.mxu0 0
      %7525 = vmatprep.mubr.bf16.mxu0 0
      %7526 = vmatmul.mubr.bf16.gmra.mxu0 %v7467
      %v7527 = vpop.f32.mrf.mxu0
      %v7528 = vadd.f32 0.0, %v7527
      %v7529 = vpop.f32.mrf.mxu0
      %v7530 = vadd.f32 0.0, %v7529
      %v7531 = vpop.f32.mrf.mxu0
      %v7532 = vadd.f32 0.0, %v7531
      %v7533 = vpop.f32.mrf.mxu0
      %v7534 = vadd.f32 0.0, %v7533
      %7535 = vmatprep.mubr.bf16.mxu0 0
      %7536 = vmatmul.mubr.bf16.gmra.mxu0 %v7470
      %v7537 = vpop.f32.mrf.mxu0
      %v7538 = vadd.f32 0.0, %v7537
      %v7539 = vpop.f32.mrf.mxu0
      %v7540 = vadd.f32 0.0, %v7539
      %v7541 = vpop.f32.mrf.mxu0
      %v7542 = vadd.f32 0.0, %v7541
      %v7543 = vpop.f32.mrf.mxu0
      %v7544 = vadd.f32 0.0, %v7543
      %7545 = vmatprep.mubr.bf16.mxu0 0
      %7546 = vmatmul.mubr.bf16.gmra.mxu0 %v7473
      %v7547 = vpop.f32.mrf.mxu0
      %v7548 = vadd.f32 0.0, %v7547
      %v7549 = vpop.f32.mrf.mxu0
      %v7550 = vadd.f32 0.0, %v7549
      %v7551 = vpop.f32.mrf.mxu0
      %v7552 = vadd.f32 0.0, %v7551
      %v7553 = vpop.f32.mrf.mxu0
      %v7554 = vadd.f32 0.0, %v7553
      %7555 = vmatprep.mubr.bf16.mxu0 0
      %7556 = vmatmul.mubr.bf16.gmra.mxu0 %v7476
      %v7557 = vpop.f32.mrf.mxu0
      %v7558 = vadd.f32 0.0, %v7557
      %v7559 = vpop.f32.mrf.mxu0
      %v7560 = vadd.f32 0.0, %v7559
      %v7561 = vpop.f32.mrf.mxu0
      %v7562 = vadd.f32 0.0, %v7561
      %v7563 = vpop.f32.mrf.mxu0
      %v7564 = vadd.f32 0.0, %v7563
      %7565 = vmatprep.mubr.bf16.mxu0 0
      %7566 = vmatmul.mubr.bf16.gmra.mxu0 %v7479
      %v7567 = vpop.f32.mrf.mxu0
      %v7568 = vadd.f32 0.0, %v7567
      %v7569 = vpop.f32.mrf.mxu0
      %v7570 = vadd.f32 0.0, %v7569
      %v7571 = vpop.f32.mrf.mxu0
      %v7572 = vadd.f32 0.0, %v7571
      %v7573 = vpop.f32.mrf.mxu0
      %v7574 = vadd.f32 0.0, %v7573
      %7575 = vmatprep.mubr.bf16.mxu0 0
      %7576 = vmatmul.mubr.bf16.gmra.mxu0 %v7482
      %v7577 = vpop.f32.mrf.mxu0
      %v7578 = vadd.f32 0.0, %v7577
      %v7579 = vpop.f32.mrf.mxu0
      %v7580 = vadd.f32 0.0, %v7579
      %v7581 = vpop.f32.mrf.mxu0
      %v7582 = vadd.f32 0.0, %v7581
      %v7583 = vpop.f32.mrf.mxu0
      %v7584 = vadd.f32 0.0, %v7583
      %7585 = vmatprep.mubr.bf16.mxu0 0
      %7586 = vmatmul.mubr.bf16.gmra.mxu0 %v7485
      %v7587 = vpop.f32.mrf.mxu0
      %v7588 = vadd.f32 0.0, %v7587
      %v7589 = vpop.f32.mrf.mxu0
      %v7590 = vadd.f32 0.0, %v7589
      %v7591 = vpop.f32.mrf.mxu0
      %v7592 = vadd.f32 0.0, %v7591
      %v7593 = vpop.f32.mrf.mxu0
      %v7594 = vadd.f32 0.0, %v7593
      %7595 = vmatprep.mubr.bf16.mxu0 0
      %7596 = vmatmul.mubr.bf16.gmra.mxu0 %v7488
      %v7597 = vpop.f32.mrf.mxu0
      %v7598 = vadd.f32 0.0, %v7597
      %v7599 = vpop.f32.mrf.mxu0
      %v7600 = vadd.f32 0.0, %v7599
      %v7601 = vpop.f32.mrf.mxu0
      %v7602 = vadd.f32 0.0, %v7601
      %v7603 = vpop.f32.mrf.mxu0
      %v7604 = vadd.f32 0.0, %v7603
      %7605 = vmatprep.mubr.bf16.mxu0 0
      %7606 = vmatmul.mubr.bf16.gmra.mxu0 %v7491
      %v7607 = vpop.f32.mrf.mxu0
      %v7608 = vadd.f32 0.0, %v7607
      %v7609 = vpop.f32.mrf.mxu0
      %v7610 = vadd.f32 0.0, %v7609
      %v7611 = vpop.f32.mrf.mxu0
      %v7612 = vadd.f32 0.0, %v7611
      %v7613 = vpop.f32.mrf.mxu0
      %v7614 = vadd.f32 0.0, %v7613
      %7615 = vdwg.mxu0
      %v7616 = vld [vmem:[%s516 + $0x10] sm:$0xee]
      %v7617 = vld [vmem:[%s516 + $0x18] sm:$0xff]
      %v7618 = vld [vmem:[%s516 + $0x20] sm:$0xff]
      %v7619 = vld [vmem:[%s516 + $0x28] sm:$0xff]
      %v7620 = vld [vmem:[%s516 + $0x30] sm:$0xff]
      %v7621 = vld [vmem:[%s516 + $0x38] sm:$0xff]
      %v7622 = vld [vmem:[%s516 + $0x40] sm:$0xff]
      %v7623 = vld [vmem:[%s516 + $0x48] sm:$0xff]
      %v7624 = vld [vmem:[%s516 + $0x50] sm:$0xff]
      %v7625 = vld [vmem:[%s516 + $0x58] sm:$0xff]
      %v7626 = vld [vmem:[%s516 + $0x60] sm:$0xff]
      %v7627 = vld [vmem:[%s516 + $0x68] sm:$0xff]
      %v7628 = vld [vmem:[%s516 + $0x70] sm:$0xff]
      %v7629 = vld [vmem:[%s516 + $0x78] sm:$0xff]
      %v7630 = vld [vmem:[%s516 + $0x80] sm:$0xff]
      %v7631 = vld [vmem:[%s516 + $0x88] sm:$0xff]
      %v7632 = vld [vmem:[%s516 + $0x90] sm:$0xff]
      %v7633 = vld [vmem:[%s516 + $0x98] sm:$0xff]
      %v7634 = vld [vmem:[%s516 + $0xa0] sm:$0x33]
      %v7635 = vunpack.c.l.bf16 %v7616
      %v7636 = vunpack.c.h.bf16 %v7616
      %v7637 = vunpack.c.l.bf16 %v7617
      %v7638 = vunpack.c.h.bf16 %v7617
      %v7639 = vunpack.c.l.bf16 %v7618
      %v7640 = vunpack.c.h.bf16 %v7618
      %v7641 = vunpack.c.l.bf16 %v7619
      %v7642 = vunpack.c.h.bf16 %v7619
      %v7643 = vunpack.c.l.bf16 %v7620
      %v7644 = vunpack.c.h.bf16 %v7620
      %v7645 = vunpack.c.l.bf16 %v7621
      %v7646 = vunpack.c.h.bf16 %v7621
      %v7647 = vunpack.c.l.bf16 %v7622
      %v7648 = vunpack.c.h.bf16 %v7622
      %v7649 = vunpack.c.l.bf16 %v7623
      %v7650 = vunpack.c.h.bf16 %v7623
      %v7651 = vunpack.c.l.bf16 %v7624
      %v7652 = vunpack.c.h.bf16 %v7624
      %v7653 = vunpack.c.l.bf16 %v7625
      %v7654 = vunpack.c.h.bf16 %v7625
      %v7655 = vunpack.c.l.bf16 %v7626
      %v7656 = vunpack.c.h.bf16 %v7626
      %v7657 = vunpack.c.l.bf16 %v7627
      %v7658 = vunpack.c.h.bf16 %v7627
      %v7659 = vunpack.c.l.bf16 %v7628
      %v7660 = vunpack.c.h.bf16 %v7628
      %v7661 = vunpack.c.l.bf16 %v7629
      %v7662 = vunpack.c.h.bf16 %v7629
      %v7663 = vunpack.c.l.bf16 %v7630
      %v7664 = vunpack.c.h.bf16 %v7630
      %v7665 = vunpack.c.l.bf16 %v7631
      %v7666 = vunpack.c.h.bf16 %v7631
      %v7667 = vunpack.c.l.bf16 %v7632
      %v7668 = vunpack.c.h.bf16 %v7632
      %v7669 = vunpack.c.l.bf16 %v7633
      %v7670 = vunpack.c.h.bf16 %v7633
      %v7671 = vunpack.c.l.bf16 %v7634
      %v7672 = vunpack.c.h.bf16 %v7634
      %v7673 = vld [vmem:[%s14] sm:$0x3]
      %v7675 = vlaneseq
      %v7676 = vshrl.u32 %v7675, 7
      %v7677 = vsub.s32 0, %v7676
      %v7678 = vrot.slane %v7673, %v7677
      %v7679 = vlaneseq
      %v7680 = vshrl.u32 %v7679, 7
      %v7681 = vsub.s32 1, %v7680
      %v7682 = vrot.slane %v7673, %v7681
      %v7685 = vmul.f32 %v7528, %v7678
      %v7686 = vmul.f32 %v7530, %v7682
      %v7687 = vmul.f32 %v7532, %v7678
      %v7688 = vmul.f32 %v7534, %v7682
      %v7689 = vmul.f32 %v7538, %v7678
      %v7690 = vmul.f32 %v7540, %v7682
      %v7691 = vmul.f32 %v7542, %v7678
      %v7692 = vmul.f32 %v7544, %v7682
      %v7693 = vmul.f32 %v7548, %v7678
      %v7694 = vmul.f32 %v7550, %v7682
      %v7695 = vmul.f32 %v7552, %v7678
      %v7696 = vmul.f32 %v7554, %v7682
      %v7697 = vmul.f32 %v7558, %v7678
      %v7698 = vmul.f32 %v7560, %v7682
      %v7699 = vmul.f32 %v7562, %v7678
      %v7700 = vmul.f32 %v7564, %v7682
      %v7701 = vmul.f32 %v7568, %v7678
      %v7702 = vmul.f32 %v7570, %v7682
      %v7703 = vmul.f32 %v7572, %v7678
      %v7704 = vmul.f32 %v7574, %v7682
      %v7705 = vmul.f32 %v7578, %v7678
      %v7706 = vmul.f32 %v7580, %v7682
      %v7707 = vmul.f32 %v7582, %v7678
      %v7708 = vmul.f32 %v7584, %v7682
      %v7709 = vmul.f32 %v7588, %v7678
      %v7710 = vmul.f32 %v7590, %v7682
      %v7711 = vmul.f32 %v7592, %v7678
      %v7712 = vmul.f32 %v7594, %v7682
      %v7713 = vmul.f32 %v7598, %v7678
      %v7714 = vmul.f32 %v7600, %v7682
      %v7715 = vmul.f32 %v7602, %v7678
      %v7716 = vmul.f32 %v7604, %v7682
      %v7717 = vmul.f32 %v7608, %v7678
      %v7718 = vmul.f32 %v7610, %v7682
      %v7719 = vmul.f32 %v7612, %v7678
      %v7720 = vmul.f32 %v7614, %v7682
      %v7721 = vld [vmem:[%s15] sm:$0x3]
      %v7723 = vlaneseq
      %v7724 = vshrl.u32 %v7723, 7
      %v7725 = vsub.s32 0, %v7724
      %v7726 = vrot.slane %v7721, %v7725
      %v7727 = vlaneseq
      %v7728 = vshrl.u32 %v7727, 7
      %v7729 = vsub.s32 1, %v7728
      %v7730 = vrot.slane %v7721, %v7729
      %v7733 = vadd.f32 %v7685, %v7726
      %v7734 = vadd.f32 %v7686, %v7730
      %v7735 = vadd.f32 %v7687, %v7726
      %v7736 = vadd.f32 %v7688, %v7730
      %v7737 = vadd.f32 %v7689, %v7726
      %v7738 = vadd.f32 %v7690, %v7730
      %v7739 = vadd.f32 %v7691, %v7726
      %v7740 = vadd.f32 %v7692, %v7730
      %v7741 = vadd.f32 %v7693, %v7726
      %v7742 = vadd.f32 %v7694, %v7730
      %v7743 = vadd.f32 %v7695, %v7726
      %v7744 = vadd.f32 %v7696, %v7730
      %v7745 = vadd.f32 %v7697, %v7726
      %v7746 = vadd.f32 %v7698, %v7730
      %v7747 = vadd.f32 %v7699, %v7726
      %v7748 = vadd.f32 %v7700, %v7730
      %v7749 = vadd.f32 %v7701, %v7726
      %v7750 = vadd.f32 %v7702, %v7730
      %v7751 = vadd.f32 %v7703, %v7726
      %v7752 = vadd.f32 %v7704, %v7730
      %v7753 = vadd.f32 %v7705, %v7726
      %v7754 = vadd.f32 %v7706, %v7730
      %v7755 = vadd.f32 %v7707, %v7726
      %v7756 = vadd.f32 %v7708, %v7730
      %v7757 = vadd.f32 %v7709, %v7726
      %v7758 = vadd.f32 %v7710, %v7730
      %v7759 = vadd.f32 %v7711, %v7726
      %v7760 = vadd.f32 %v7712, %v7730
      %v7761 = vadd.f32 %v7713, %v7726
      %v7762 = vadd.f32 %v7714, %v7730
      %v7763 = vadd.f32 %v7715, %v7726
      %v7764 = vadd.f32 %v7716, %v7730
      %v7765 = vadd.f32 %v7717, %v7726
      %v7766 = vadd.f32 %v7718, %v7730
      %v7767 = vadd.f32 %v7719, %v7726
      %v7768 = vadd.f32 %v7720, %v7730
      %v7807 = vrot.slane %v7635, 3
      %v7808 = vrot.slane %v7637, 3
      %v7809 = vsel %vm4347, %v7807, %v7808
      %v7810 = vrot.slane %v7636, 3
      %v7811 = vrot.slane %v7638, 3
      %v7812 = vsel %vm4347, %v7810, %v7811
      %v7813 = vrot.slane %v7639, 3
      %v7814 = vsel %vm4347, %v7808, %v7813
      %v7815 = vrot.slane %v7640, 3
      %v7816 = vsel %vm4347, %v7811, %v7815
      %v7817 = vrot.slane %v7641, 3
      %v7818 = vsel %vm4347, %v7813, %v7817
      %v7819 = vrot.slane %v7642, 3
      %v7820 = vsel %vm4347, %v7815, %v7819
      %v7821 = vrot.slane %v7643, 3
      %v7822 = vsel %vm4347, %v7817, %v7821
      %v7823 = vrot.slane %v7644, 3
      %v7824 = vsel %vm4347, %v7819, %v7823
      %v7825 = vrot.slane %v7645, 3
      %v7826 = vsel %vm4347, %v7821, %v7825
      %v7827 = vrot.slane %v7646, 3
      %v7828 = vsel %vm4347, %v7823, %v7827
      %v7829 = vrot.slane %v7647, 3
      %v7830 = vsel %vm4347, %v7825, %v7829
      %v7831 = vrot.slane %v7648, 3
      %v7832 = vsel %vm4347, %v7827, %v7831
      %v7833 = vrot.slane %v7649, 3
      %v7834 = vsel %vm4347, %v7829, %v7833
      %v7835 = vrot.slane %v7650, 3
      %v7836 = vsel %vm4347, %v7831, %v7835
      %v7837 = vrot.slane %v7651, 3
      %v7838 = vsel %vm4347, %v7833, %v7837
      %v7839 = vrot.slane %v7652, 3
      %v7840 = vsel %vm4347, %v7835, %v7839
      %v7841 = vrot.slane %v7653, 3
      %v7842 = vsel %vm4347, %v7837, %v7841
      %v7843 = vrot.slane %v7654, 3
      %v7844 = vsel %vm4347, %v7839, %v7843
      %v7845 = vrot.slane %v7655, 3
      %v7846 = vsel %vm4347, %v7841, %v7845
      %v7847 = vrot.slane %v7656, 3
      %v7848 = vsel %vm4347, %v7843, %v7847
      %v7849 = vrot.slane %v7657, 3
      %v7850 = vsel %vm4347, %v7845, %v7849
      %v7851 = vrot.slane %v7658, 3
      %v7852 = vsel %vm4347, %v7847, %v7851
      %v7853 = vrot.slane %v7659, 3
      %v7854 = vsel %vm4347, %v7849, %v7853
      %v7855 = vrot.slane %v7660, 3
      %v7856 = vsel %vm4347, %v7851, %v7855
      %v7857 = vrot.slane %v7661, 3
      %v7858 = vsel %vm4347, %v7853, %v7857
      %v7859 = vrot.slane %v7662, 3
      %v7860 = vsel %vm4347, %v7855, %v7859
      %v7861 = vrot.slane %v7663, 3
      %v7862 = vsel %vm4347, %v7857, %v7861
      %v7863 = vrot.slane %v7664, 3
      %v7864 = vsel %vm4347, %v7859, %v7863
      %v7865 = vrot.slane %v7665, 3
      %v7866 = vsel %vm4347, %v7861, %v7865
      %v7867 = vrot.slane %v7666, 3
      %v7868 = vsel %vm4347, %v7863, %v7867
      %v7869 = vrot.slane %v7667, 3
      %v7870 = vsel %vm4347, %v7865, %v7869
      %v7871 = vrot.slane %v7668, 3
      %v7872 = vsel %vm4347, %v7867, %v7871
      %v7873 = vrot.slane %v7669, 3
      %v7874 = vsel %vm4347, %v7869, %v7873
      %v7875 = vrot.slane %v7670, 3
      %v7876 = vsel %vm4347, %v7871, %v7875
      %v7877 = vrot.slane %v7671, 3
      %v7878 = vsel %vm4347, %v7873, %v7877
      %v7879 = vrot.slane %v7672, 3
      %v7880 = vsel %vm4347, %v7875, %v7879
      %v7917 = vadd.f32 %v7733, %v7809
      %v7918 = vadd.f32 %v7734, %v7812
      %v7919 = vadd.f32 %v7735, %v7814
      %v7920 = vadd.f32 %v7736, %v7816
      %v7921 = vadd.f32 %v7737, %v7818
      %v7922 = vadd.f32 %v7738, %v7820
      %v7923 = vadd.f32 %v7739, %v7822
      %v7924 = vadd.f32 %v7740, %v7824
      %v7925 = vadd.f32 %v7741, %v7826
      %v7926 = vadd.f32 %v7742, %v7828
      %v7927 = vadd.f32 %v7743, %v7830
      %v7928 = vadd.f32 %v7744, %v7832
      %v7929 = vadd.f32 %v7745, %v7834
      %v7930 = vadd.f32 %v7746, %v7836
      %v7931 = vadd.f32 %v7747, %v7838
      %v7932 = vadd.f32 %v7748, %v7840
      %v7933 = vadd.f32 %v7749, %v7842
      %v7934 = vadd.f32 %v7750, %v7844
      %v7935 = vadd.f32 %v7751, %v7846
      %v7936 = vadd.f32 %v7752, %v7848
      %v7937 = vadd.f32 %v7753, %v7850
      %v7938 = vadd.f32 %v7754, %v7852
      %v7939 = vadd.f32 %v7755, %v7854
      %v7940 = vadd.f32 %v7756, %v7856
      %v7941 = vadd.f32 %v7757, %v7858
      %v7942 = vadd.f32 %v7758, %v7860
      %v7943 = vadd.f32 %v7759, %v7862
      %v7944 = vadd.f32 %v7760, %v7864
      %v7945 = vadd.f32 %v7761, %v7866
      %v7946 = vadd.f32 %v7762, %v7868
      %v7947 = vadd.f32 %v7763, %v7870
      %v7948 = vadd.f32 %v7764, %v7872
      %v7949 = vadd.f32 %v7765, %v7874
      %v7950 = vadd.f32 %v7766, %v7876
      %v7951 = vadd.f32 %v7767, %v7878
      %v7952 = vadd.f32 %v7768, %v7880
      %v7953 = vmax.f32 %v7917, 0.0
      %v7954 = vmax.f32 %v7918, 0.0
      %v7955 = vmax.f32 %v7919, 0.0
      %v7956 = vmax.f32 %v7920, 0.0
      %v7957 = vmax.f32 %v7921, 0.0
      %v7958 = vmax.f32 %v7922, 0.0
      %v7959 = vmax.f32 %v7923, 0.0
      %v7960 = vmax.f32 %v7924, 0.0
      %v7961 = vmax.f32 %v7925, 0.0
      %v7962 = vmax.f32 %v7926, 0.0
      %v7963 = vmax.f32 %v7927, 0.0
      %v7964 = vmax.f32 %v7928, 0.0
      %v7965 = vmax.f32 %v7929, 0.0
      %v7966 = vmax.f32 %v7930, 0.0
      %v7967 = vmax.f32 %v7931, 0.0
      %v7968 = vmax.f32 %v7932, 0.0
      %v7969 = vmax.f32 %v7933, 0.0
      %v7970 = vmax.f32 %v7934, 0.0
      %v7971 = vmax.f32 %v7935, 0.0
      %v7972 = vmax.f32 %v7936, 0.0
      %v7973 = vmax.f32 %v7937, 0.0
      %v7974 = vmax.f32 %v7938, 0.0
      %v7975 = vmax.f32 %v7939, 0.0
      %v7976 = vmax.f32 %v7940, 0.0
      %v7977 = vmax.f32 %v7941, 0.0
      %v7978 = vmax.f32 %v7942, 0.0
      %v7979 = vmax.f32 %v7943, 0.0
      %v7980 = vmax.f32 %v7944, 0.0
      %v7981 = vmax.f32 %v7945, 0.0
      %v7982 = vmax.f32 %v7946, 0.0
      %v7983 = vmax.f32 %v7947, 0.0
      %v7984 = vmax.f32 %v7948, 0.0
      %v7985 = vmax.f32 %v7949, 0.0
      %v7986 = vmax.f32 %v7950, 0.0
      %v7987 = vmax.f32 %v7951, 0.0
      %v7988 = vmax.f32 %v7952, 0.0
      %v7989 = vpack.c.bf16 %v7955, %v7953
      %v7990 = vpack.c.bf16 %v7956, %v7954
      %v7991 = vpack.c.bf16 %v7959, %v7957
      %v7992 = vpack.c.bf16 %v7960, %v7958
      %v7993 = vpack.c.bf16 %v7963, %v7961
      %v7994 = vpack.c.bf16 %v7964, %v7962
      %v7995 = vpack.c.bf16 %v7967, %v7965
      %v7996 = vpack.c.bf16 %v7968, %v7966
      %v7997 = vpack.c.bf16 %v7971, %v7969
      %v7998 = vpack.c.bf16 %v7972, %v7970
      %v7999 = vpack.c.bf16 %v7975, %v7973
      %v8000 = vpack.c.bf16 %v7976, %v7974
      %v8001 = vpack.c.bf16 %v7979, %v7977
      %v8002 = vpack.c.bf16 %v7980, %v7978
      %v8003 = vpack.c.bf16 %v7983, %v7981
      %v8004 = vpack.c.bf16 %v7984, %v7982
      %v8005 = vpack.c.bf16 %v7987, %v7985
      %v8006 = vpack.c.bf16 %v7988, %v7986
      %v8025 = vunpack.c.l.b16 %v7989
      %v8026 = vunpack.c.l.b16 %v7990
      %v8027 = vunpack.c.h.b16 %v7989
      %v8028 = vunpack.c.h.b16 %v7990
      %v8029 = vunpack.c.l.b16 %v7991
      %v8030 = vunpack.c.l.b16 %v7992
      %v8031 = vunpack.c.h.b16 %v7991
      %v8032 = vunpack.c.h.b16 %v7992
      %v8033 = vunpack.c.l.b16 %v7993
      %v8034 = vunpack.c.l.b16 %v7994
      %v8035 = vunpack.c.h.b16 %v7993
      %v8036 = vunpack.c.h.b16 %v7994
      %v8037 = vunpack.c.l.b16 %v7995
      %v8038 = vunpack.c.l.b16 %v7996
      %v8039 = vunpack.c.h.b16 %v7995
      %v8040 = vunpack.c.h.b16 %v7996
      %v8041 = vunpack.c.l.b16 %v7997
      %v8042 = vunpack.c.l.b16 %v7998
      %v8043 = vunpack.c.h.b16 %v7997
      %v8044 = vunpack.c.h.b16 %v7998
      %v8045 = vunpack.c.l.b16 %v7999
      %v8046 = vunpack.c.l.b16 %v8000
      %v8047 = vunpack.c.h.b16 %v7999
      %v8048 = vunpack.c.h.b16 %v8000
      %v8049 = vunpack.c.l.b16 %v8001
      %v8050 = vunpack.c.l.b16 %v8002
      %v8051 = vunpack.c.h.b16 %v8001
      %v8052 = vunpack.c.h.b16 %v8002
      %v8053 = vunpack.c.l.b16 %v8003
      %v8054 = vunpack.c.l.b16 %v8004
      %v8055 = vunpack.c.h.b16 %v8003
      %v8056 = vunpack.c.h.b16 %v8004
      %v8057 = vunpack.c.l.b16 %v8005
      %v8058 = vunpack.c.l.b16 %v8006
      %v8059 = vunpack.c.h.b16 %v8005
      %v8060 = vunpack.c.h.b16 %v8006
      %v8061 = vpack.c.b16 %v8026, %v8025
      %v8062 = vpack.c.b16 %v8028, %v8027
      %v8063 = vpack.c.b16 %v8030, %v8029
      %v8064 = vpack.c.b16 %v8032, %v8031
      %v8065 = vpack.c.b16 %v8034, %v8033
      %v8066 = vpack.c.b16 %v8036, %v8035
      %v8067 = vpack.c.b16 %v8038, %v8037
      %v8068 = vpack.c.b16 %v8040, %v8039
      %v8069 = vpack.c.b16 %v8042, %v8041
      %v8070 = vpack.c.b16 %v8044, %v8043
      %v8071 = vpack.c.b16 %v8046, %v8045
      %v8072 = vpack.c.b16 %v8048, %v8047
      %v8073 = vpack.c.b16 %v8050, %v8049
      %v8074 = vpack.c.b16 %v8052, %v8051
      %v8075 = vpack.c.b16 %v8054, %v8053
      %v8076 = vpack.c.b16 %v8056, %v8055
      %v8077 = vpack.c.b16 %v8058, %v8057
      %v8078 = vpack.c.b16 %v8060, %v8059
      %8097 = vst [vmem:[%s521] sm:$0xff] %v8061
      %8098 = vst [vmem:[%s521 + $0x8] sm:$0xff] %v8062
      %8099 = vst [vmem:[%s521 + $0x10] sm:$0xff] %v8063
      %8100 = vst [vmem:[%s521 + $0x18] sm:$0xff] %v8064
      %8101 = vst [vmem:[%s521 + $0x20] sm:$0xff] %v8065
      %8102 = vst [vmem:[%s521 + $0x28] sm:$0xff] %v8066
      %8103 = vst [vmem:[%s521 + $0x30] sm:$0xff] %v8067
      %8104 = vst [vmem:[%s521 + $0x38] sm:$0xff] %v8068
      %8105 = vst [vmem:[%s521 + $0x40] sm:$0xff] %v8069
      %8106 = vst [vmem:[%s521 + $0x48] sm:$0xff] %v8070
      %8107 = vst [vmem:[%s521 + $0x50] sm:$0xff] %v8071
      %8108 = vst [vmem:[%s521 + $0x58] sm:$0xff] %v8072
      %8109 = vst [vmem:[%s521 + $0x60] sm:$0xff] %v8073
      %8110 = vst [vmem:[%s521 + $0x68] sm:$0xff] %v8074
      %8111 = vst [vmem:[%s521 + $0x70] sm:$0xff] %v8075
      %8112 = vst [vmem:[%s521 + $0x78] sm:$0xff] %v8076
      %8113 = vst [vmem:[%s521 + $0x80] sm:$0xff] %v8077
      %8114 = vst [vmem:[%s521 + $0x88] sm:$0xff] %v8078
      %v8115 = vld [vmem:[#allocation3 + $0x48] sm:$0xf]
      %v8116 = vld [vmem:[#allocation3 + $0x4c] sm:$0xf]
      %v8117 = vld [vmem:[#allocation3 + $0x50] sm:$0xf]
      %v8118 = vld [vmem:[#allocation3 + $0x54] sm:$0xf]
      %v8119 = vld [vmem:[#allocation3 + $0x58] sm:$0xf]
      %v8120 = vld [vmem:[#allocation3 + $0x5c] sm:$0xf]
      %v8121 = vld [vmem:[#allocation3 + $0x60] sm:$0xf]
      %v8122 = vld [vmem:[#allocation3 + $0x64] sm:$0xf]
      %v8123 = vld [vmem:[#allocation3 + $0x68] sm:$0xf]
      %v8124 = vld [vmem:[#allocation3 + $0x6c] sm:$0xf]
      %v8125 = vld [vmem:[#allocation3 + $0x70] sm:$0xf]
      %v8126 = vld [vmem:[#allocation3 + $0x74] sm:$0xf]
      %v8127 = vld [vmem:[#allocation3 + $0x78] sm:$0xf]
      %v8128 = vld [vmem:[#allocation3 + $0x7c] sm:$0xf]
      %v8129 = vld [vmem:[#allocation3 + $0x80] sm:$0xf]
      %v8130 = vld [vmem:[#allocation3 + $0x84] sm:$0xf]
      %v8131 = vld [vmem:[#allocation3 + $0x88] sm:$0xf]
      %v8132 = vld [vmem:[#allocation3 + $0x8c] sm:$0xf]
      %v8133 = vunpack.c.l.bf16 %v8115
      %v8134 = vunpack.c.l.bf16 %v8116
      %v8135 = vunpack.c.l.bf16 %v8117
      %v8136 = vunpack.c.l.bf16 %v8118
      %v8137 = vunpack.c.l.bf16 %v8119
      %v8138 = vunpack.c.l.bf16 %v8120
      %v8139 = vunpack.c.l.bf16 %v8121
      %v8140 = vunpack.c.l.bf16 %v8122
      %v8141 = vunpack.c.l.bf16 %v8123
      %v8142 = vunpack.c.l.bf16 %v8124
      %v8143 = vunpack.c.l.bf16 %v8125
      %v8144 = vunpack.c.l.bf16 %v8126
      %v8145 = vunpack.c.l.bf16 %v8127
      %v8146 = vunpack.c.l.bf16 %v8128
      %v8147 = vunpack.c.l.bf16 %v8129
      %v8148 = vunpack.c.l.bf16 %v8130
      %v8149 = vunpack.c.l.bf16 %v8131
      %v8150 = vunpack.c.l.bf16 %v8132
      %v8151 = vmul.f32 %v7278, %v8133
      %v8152 = vmul.f32 %v7278, %v8134
      %v8153 = vmul.f32 %v7278, %v8135
      %v8154 = vmul.f32 %v7278, %v8136
      %v8155 = vmul.f32 %v7278, %v8137
      %v8156 = vmul.f32 %v7278, %v8138
      %v8157 = vmul.f32 %v7278, %v8139
      %v8158 = vmul.f32 %v7278, %v8140
      %v8159 = vmul.f32 %v7278, %v8141
      %v8160 = vmul.f32 %v7278, %v8142
      %v8161 = vmul.f32 %v7278, %v8143
      %v8162 = vmul.f32 %v7278, %v8144
      %v8163 = vmul.f32 %v7278, %v8145
      %v8164 = vmul.f32 %v7278, %v8146
      %v8165 = vmul.f32 %v7278, %v8147
      %v8166 = vmul.f32 %v7278, %v8148
      %v8167 = vmul.f32 %v7278, %v8149
      %v8168 = vmul.f32 %v7278, %v8150
      %v8169 = vmul.f32 %v7300, %v8133
      %v8170 = vmul.f32 %v7300, %v8134
      %v8171 = vmul.f32 %v7300, %v8135
      %v8172 = vmul.f32 %v7300, %v8136
      %v8173 = vmul.f32 %v7300, %v8137
      %v8174 = vmul.f32 %v7300, %v8138
      %v8175 = vmul.f32 %v7300, %v8139
      %v8176 = vmul.f32 %v7300, %v8140
      %v8177 = vmul.f32 %v7300, %v8141
      %v8178 = vmul.f32 %v7300, %v8142
      %v8179 = vmul.f32 %v7300, %v8143
      %v8180 = vmul.f32 %v7300, %v8144
      %v8181 = vmul.f32 %v7300, %v8145
      %v8182 = vmul.f32 %v7300, %v8146
      %v8183 = vmul.f32 %v7300, %v8147
      %v8184 = vmul.f32 %v7300, %v8148
      %v8185 = vmul.f32 %v7300, %v8149
      %v8186 = vmul.f32 %v7300, %v8150
      %8205 = vrot.lane.b32.xlu0 %v8169, 64
      %v8206 = vpop.permute.xlu0 %8205
      %8207 = vrot.lane.b32.xlu0 %v8170, 64
      %v8208 = vpop.permute.xlu0 %8207
      %8209 = vrot.lane.b32.xlu0 %v8171, 64
      %v8210 = vpop.permute.xlu0 %8209
      %8211 = vrot.lane.b32.xlu0 %v8172, 64
      %v8212 = vpop.permute.xlu0 %8211
      %8213 = vrot.lane.b32.xlu0 %v8173, 64
      %v8214 = vpop.permute.xlu0 %8213
      %8215 = vrot.lane.b32.xlu0 %v8174, 64
      %v8216 = vpop.permute.xlu0 %8215
      %8217 = vrot.lane.b32.xlu0 %v8175, 64
      %v8218 = vpop.permute.xlu0 %8217
      %8219 = vrot.lane.b32.xlu0 %v8176, 64
      %v8220 = vpop.permute.xlu0 %8219
      %8221 = vrot.lane.b32.xlu0 %v8177, 64
      %v8222 = vpop.permute.xlu0 %8221
      %8223 = vrot.lane.b32.xlu0 %v8178, 64
      %v8224 = vpop.permute.xlu0 %8223
      %8225 = vrot.lane.b32.xlu0 %v8179, 64
      %v8226 = vpop.permute.xlu0 %8225
      %8227 = vrot.lane.b32.xlu0 %v8180, 64
      %v8228 = vpop.permute.xlu0 %8227
      %8229 = vrot.lane.b32.xlu0 %v8181, 64
      %v8230 = vpop.permute.xlu0 %8229
      %8231 = vrot.lane.b32.xlu0 %v8182, 64
      %v8232 = vpop.permute.xlu0 %8231
      %8233 = vrot.lane.b32.xlu0 %v8183, 64
      %v8234 = vpop.permute.xlu0 %8233
      %8235 = vrot.lane.b32.xlu0 %v8184, 64
      %v8236 = vpop.permute.xlu0 %8235
      %8237 = vrot.lane.b32.xlu0 %v8185, 64
      %v8238 = vpop.permute.xlu0 %8237
      %8239 = vrot.lane.b32.xlu0 %v8186, 64
      %v8240 = vpop.permute.xlu0 %8239
      %v8259 = vadd.f32 %v8151, %v8206
      %v8260 = vadd.f32 %v8152, %v8208
      %v8261 = vadd.f32 %v8153, %v8210
      %v8262 = vadd.f32 %v8154, %v8212
      %v8263 = vadd.f32 %v8155, %v8214
      %v8264 = vadd.f32 %v8156, %v8216
      %v8265 = vadd.f32 %v8157, %v8218
      %v8266 = vadd.f32 %v8158, %v8220
      %v8267 = vadd.f32 %v8159, %v8222
      %v8268 = vadd.f32 %v8160, %v8224
      %v8269 = vadd.f32 %v8161, %v8226
      %v8270 = vadd.f32 %v8162, %v8228
      %v8271 = vadd.f32 %v8163, %v8230
      %v8272 = vadd.f32 %v8164, %v8232
      %v8273 = vadd.f32 %v8165, %v8234
      %v8274 = vadd.f32 %v8166, %v8236
      %v8275 = vadd.f32 %v8167, %v8238
      %v8276 = vadd.f32 %v8168, %v8240
      %v8277 = vpack.c.bf16 %v8260, %v8259
      %v8278 = vpack.c.bf16 %v8262, %v8261
      %v8279 = vpack.c.bf16 %v8264, %v8263
      %v8280 = vpack.c.bf16 %v8266, %v8265
      %v8281 = vpack.c.bf16 %v8268, %v8267
      %v8282 = vpack.c.bf16 %v8270, %v8269
      %v8283 = vpack.c.bf16 %v8272, %v8271
      %v8284 = vpack.c.bf16 %v8274, %v8273
      %v8285 = vpack.c.bf16 %v8276, %v8275
      %v8286 = vld [vmem:[%s13] sm:$0xff]
      %v8287 = vld [vmem:[%s13 + $0x8] sm:$0xff]
      %v8288 = vld [vmem:[%s13 + $0x10] sm:$0xff]
      %v8289 = vld [vmem:[%s13 + $0x18] sm:$0xff]
      %v8290 = vld [vmem:[%s13 + $0x20] sm:$0xff]
      %v8291 = vld [vmem:[%s13 + $0x28] sm:$0xff]
      %v8292 = vld [vmem:[%s13 + $0x30] sm:$0xff]
      %v8293 = vld [vmem:[%s13 + $0x38] sm:$0xff]
      %v8302 = vunpack.c.l.b16 %v8286
      %v8303 = vunpack.c.h.b16 %v8286
      %v8304 = vunpack.c.l.b16 %v8287
      %v8305 = vunpack.c.h.b16 %v8287
      %v8306 = vunpack.c.l.b16 %v8288
      %v8307 = vunpack.c.h.b16 %v8288
      %v8308 = vunpack.c.l.b16 %v8289
      %v8309 = vunpack.c.h.b16 %v8289
      %v8310 = vunpack.c.l.b16 %v8290
      %v8311 = vunpack.c.h.b16 %v8290
      %v8312 = vunpack.c.l.b16 %v8291
      %v8313 = vunpack.c.h.b16 %v8291
      %v8314 = vunpack.c.l.b16 %v8292
      %v8315 = vunpack.c.h.b16 %v8292
      %v8316 = vunpack.c.l.b16 %v8293
      %v8317 = vunpack.c.h.b16 %v8293
      %v8318 = vpack.c.b16 %v8304, %v8302
      %v8319 = vpack.c.b16 %v8305, %v8303
      %v8320 = vpack.c.b16 %v8308, %v8306
      %v8321 = vpack.c.b16 %v8309, %v8307
      %v8322 = vpack.c.b16 %v8312, %v8310
      %v8323 = vpack.c.b16 %v8313, %v8311
      %v8324 = vpack.c.b16 %v8316, %v8314
      %v8325 = vpack.c.b16 %v8317, %v8315
      %v8335 = vsel %vm2049, %v8277, 0
      %v8338 = vsel %vm2049, %v8278, 0
      %v8341 = vsel %vm2049, %v8279, 0
      %v8344 = vsel %vm2049, %v8280, 0
      %v8347 = vsel %vm2049, %v8281, 0
      %v8350 = vsel %vm2049, %v8282, 0
      %v8353 = vsel %vm2049, %v8283, 0
      %v8356 = vsel %vm2049, %v8284, 0
      %v8359 = vsel %vm2049, %v8285, 0
      %8361 = vmatprep.subr.bf16.mxu0 0
      %8362 = vmatpush1.bf16.msra.mxu0 0
      %8363 = vmatprep.subr.bf16.mxu0 0
      %8364 = vmatpush1.bf16.msra.mxu0 0
      %8365 = vmatprep.subr.bf16.mxu0 0
      %8366 = vmatpush1.bf16.msra.mxu0 0
      %8367 = vmatprep.subr.bf16.mxu0 0
      %8368 = vmatpush1.bf16.msra.mxu0 0
      %8369 = vmatprep.subr.bf16.mxu0 %v8325
      %8370 = vmatpush1.bf16.msra.mxu0 %v8324
      %8371 = vmatprep.subr.bf16.mxu0 %v8323
      %8372 = vmatpush1.bf16.msra.mxu0 %v8322
      %8373 = vmatprep.subr.bf16.mxu0 %v8321
      %8374 = vmatpush1.bf16.msra.mxu0 %v8320
      %8375 = vmatprep.subr.bf16.mxu0 %v8319
      %8376 = vmatpush1.bf16.msra.mxu0 %v8318
      %8377 = vmatprep.subr.bf16.mxu0 0
      %8378 = vmatpush2.bf16.msra.mxu0 0
      %8379 = vmatprep.subr.bf16.mxu0 0
      %8380 = vmatpush2.bf16.msra.mxu0 0
      %8381 = vmatprep.subr.bf16.mxu0 0
      %8382 = vmatpush2.bf16.msra.mxu0 0
      %8383 = vmatprep.subr.bf16.mxu0 0
      %8384 = vmatpush2.bf16.msra.mxu0 0
      %8385 = vmatprep.subr.bf16.mxu0 0
      %8386 = vmatpush2.bf16.msra.mxu0 0
      %8387 = vmatprep.subr.bf16.mxu0 0
      %8388 = vmatpush2.bf16.msra.mxu0 0
      %8389 = vmatprep.subr.bf16.mxu0 0
      %8390 = vmatpush2.bf16.msra.mxu0 0
      %8391 = vmatprep.subr.bf16.mxu0 0
      %8392 = vmatpush2.bf16.msra.mxu0 0
      %8393 = vmatprep.mubr.bf16.mxu0 0
      %8394 = vmatmul.mubr.bf16.gmra.mxu0 %v8335
      %v8395 = vpop.f32.mrf.mxu0
      %v8396 = vadd.f32 0.0, %v8395
      %v8397 = vpop.f32.mrf.mxu0
      %v8398 = vadd.f32 0.0, %v8397
      %v8399 = vpop.f32.mrf.mxu0
      %v8400 = vadd.f32 0.0, %v8399
      %v8401 = vpop.f32.mrf.mxu0
      %v8402 = vadd.f32 0.0, %v8401
      %8403 = vmatprep.mubr.bf16.mxu0 0
      %8404 = vmatmul.mubr.bf16.gmra.mxu0 %v8338
      %v8405 = vpop.f32.mrf.mxu0
      %v8406 = vadd.f32 0.0, %v8405
      %v8407 = vpop.f32.mrf.mxu0
      %v8408 = vadd.f32 0.0, %v8407
      %v8409 = vpop.f32.mrf.mxu0
      %v8410 = vadd.f32 0.0, %v8409
      %v8411 = vpop.f32.mrf.mxu0
      %v8412 = vadd.f32 0.0, %v8411
      %8413 = vmatprep.mubr.bf16.mxu0 0
      %8414 = vmatmul.mubr.bf16.gmra.mxu0 %v8341
      %v8415 = vpop.f32.mrf.mxu0
      %v8416 = vadd.f32 0.0, %v8415
      %v8417 = vpop.f32.mrf.mxu0
      %v8418 = vadd.f32 0.0, %v8417
      %v8419 = vpop.f32.mrf.mxu0
      %v8420 = vadd.f32 0.0, %v8419
      %v8421 = vpop.f32.mrf.mxu0
      %v8422 = vadd.f32 0.0, %v8421
      %8423 = vmatprep.mubr.bf16.mxu0 0
      %8424 = vmatmul.mubr.bf16.gmra.mxu0 %v8344
      %v8425 = vpop.f32.mrf.mxu0
      %v8426 = vadd.f32 0.0, %v8425
      %v8427 = vpop.f32.mrf.mxu0
      %v8428 = vadd.f32 0.0, %v8427
      %v8429 = vpop.f32.mrf.mxu0
      %v8430 = vadd.f32 0.0, %v8429
      %v8431 = vpop.f32.mrf.mxu0
      %v8432 = vadd.f32 0.0, %v8431
      %8433 = vmatprep.mubr.bf16.mxu0 0
      %8434 = vmatmul.mubr.bf16.gmra.mxu0 %v8347
      %v8435 = vpop.f32.mrf.mxu0
      %v8436 = vadd.f32 0.0, %v8435
      %v8437 = vpop.f32.mrf.mxu0
      %v8438 = vadd.f32 0.0, %v8437
      %v8439 = vpop.f32.mrf.mxu0
      %v8440 = vadd.f32 0.0, %v8439
      %v8441 = vpop.f32.mrf.mxu0
      %v8442 = vadd.f32 0.0, %v8441
      %8443 = vmatprep.mubr.bf16.mxu0 0
      %8444 = vmatmul.mubr.bf16.gmra.mxu0 %v8350
      %v8445 = vpop.f32.mrf.mxu0
      %v8446 = vadd.f32 0.0, %v8445
      %v8447 = vpop.f32.mrf.mxu0
      %v8448 = vadd.f32 0.0, %v8447
      %v8449 = vpop.f32.mrf.mxu0
      %v8450 = vadd.f32 0.0, %v8449
      %v8451 = vpop.f32.mrf.mxu0
      %v8452 = vadd.f32 0.0, %v8451
      %8453 = vmatprep.mubr.bf16.mxu0 0
      %8454 = vmatmul.mubr.bf16.gmra.mxu0 %v8353
      %v8455 = vpop.f32.mrf.mxu0
      %v8456 = vadd.f32 0.0, %v8455
      %v8457 = vpop.f32.mrf.mxu0
      %v8458 = vadd.f32 0.0, %v8457
      %v8459 = vpop.f32.mrf.mxu0
      %v8460 = vadd.f32 0.0, %v8459
      %v8461 = vpop.f32.mrf.mxu0
      %v8462 = vadd.f32 0.0, %v8461
      %8463 = vmatprep.mubr.bf16.mxu0 0
      %8464 = vmatmul.mubr.bf16.gmra.mxu0 %v8356
      %v8465 = vpop.f32.mrf.mxu0
      %v8466 = vadd.f32 0.0, %v8465
      %v8467 = vpop.f32.mrf.mxu0
      %v8468 = vadd.f32 0.0, %v8467
      %v8469 = vpop.f32.mrf.mxu0
      %v8470 = vadd.f32 0.0, %v8469
      %v8471 = vpop.f32.mrf.mxu0
      %v8472 = vadd.f32 0.0, %v8471
      %8473 = vmatprep.mubr.bf16.mxu0 0
      %8474 = vmatmul.mubr.bf16.gmra.mxu0 %v8359
      %v8475 = vpop.f32.mrf.mxu0
      %v8476 = vadd.f32 0.0, %v8475
      %v8477 = vpop.f32.mrf.mxu0
      %v8478 = vadd.f32 0.0, %v8477
      %v8479 = vpop.f32.mrf.mxu0
      %v8480 = vadd.f32 0.0, %v8479
      %v8481 = vpop.f32.mrf.mxu0
      %v8482 = vadd.f32 0.0, %v8481
      %8483 = vdwg.mxu0
      %v8484 = vld [vmem:[%s516 + $0xa0] sm:$0xee]
      %v8485 = vld [vmem:[%s516 + $0xa8] sm:$0xff]
      %v8486 = vld [vmem:[%s516 + $0xb0] sm:$0xff]
      %v8487 = vld [vmem:[%s516 + $0xb8] sm:$0xff]
      %v8488 = vld [vmem:[%s516 + $0xc0] sm:$0xff]
      %v8489 = vld [vmem:[%s516 + $0xc8] sm:$0xff]
      %v8490 = vld [vmem:[%s516 + $0xd0] sm:$0xff]
      %v8491 = vld [vmem:[%s516 + $0xd8] sm:$0xff]
      %v8492 = vld [vmem:[%s516 + $0xe0] sm:$0xff]
      %v8493 = vld [vmem:[%s516 + $0xe8] sm:$0xff]
      %v8494 = vld [vmem:[%s516 + $0xf0] sm:$0xff]
      %v8495 = vld [vmem:[%s516 + $0xf8] sm:$0xff]
      %v8496 = vld [vmem:[%s516 + $0x100] sm:$0xff]
      %v8497 = vld [vmem:[%s516 + $0x108] sm:$0xff]
      %v8498 = vld [vmem:[%s516 + $0x110] sm:$0xff]
      %v8499 = vld [vmem:[%s516 + $0x118] sm:$0xff]
      %v8500 = vld [vmem:[%s516 + $0x120] sm:$0xff]
      %v8501 = vld [vmem:[%s516 + $0x128] sm:$0xff]
      %v8502 = vld [vmem:[%s516 + $0x130] sm:$0x33]
      %v8503 = vunpack.c.l.bf16 %v8484
      %v8504 = vunpack.c.h.bf16 %v8484
      %v8505 = vunpack.c.l.bf16 %v8485
      %v8506 = vunpack.c.h.bf16 %v8485
      %v8507 = vunpack.c.l.bf16 %v8486
      %v8508 = vunpack.c.h.bf16 %v8486
      %v8509 = vunpack.c.l.bf16 %v8487
      %v8510 = vunpack.c.h.bf16 %v8487
      %v8511 = vunpack.c.l.bf16 %v8488
      %v8512 = vunpack.c.h.bf16 %v8488
      %v8513 = vunpack.c.l.bf16 %v8489
      %v8514 = vunpack.c.h.bf16 %v8489
      %v8515 = vunpack.c.l.bf16 %v8490
      %v8516 = vunpack.c.h.bf16 %v8490
      %v8517 = vunpack.c.l.bf16 %v8491
      %v8518 = vunpack.c.h.bf16 %v8491
      %v8519 = vunpack.c.l.bf16 %v8492
      %v8520 = vunpack.c.h.bf16 %v8492
      %v8521 = vunpack.c.l.bf16 %v8493
      %v8522 = vunpack.c.h.bf16 %v8493
      %v8523 = vunpack.c.l.bf16 %v8494
      %v8524 = vunpack.c.h.bf16 %v8494
      %v8525 = vunpack.c.l.bf16 %v8495
      %v8526 = vunpack.c.h.bf16 %v8495
      %v8527 = vunpack.c.l.bf16 %v8496
      %v8528 = vunpack.c.h.bf16 %v8496
      %v8529 = vunpack.c.l.bf16 %v8497
      %v8530 = vunpack.c.h.bf16 %v8497
      %v8531 = vunpack.c.l.bf16 %v8498
      %v8532 = vunpack.c.h.bf16 %v8498
      %v8533 = vunpack.c.l.bf16 %v8499
      %v8534 = vunpack.c.h.bf16 %v8499
      %v8535 = vunpack.c.l.bf16 %v8500
      %v8536 = vunpack.c.h.bf16 %v8500
      %v8537 = vunpack.c.l.bf16 %v8501
      %v8538 = vunpack.c.h.bf16 %v8501
      %v8539 = vunpack.c.l.bf16 %v8502
      %v8540 = vunpack.c.h.bf16 %v8502
      %v8541 = vld [vmem:[%s14] sm:$0x3]
      %v8543 = vlaneseq
      %v8544 = vshrl.u32 %v8543, 7
      %v8545 = vsub.s32 0, %v8544
      %v8546 = vrot.slane %v8541, %v8545
      %v8547 = vlaneseq
      %v8548 = vshrl.u32 %v8547, 7
      %v8549 = vsub.s32 1, %v8548
      %v8550 = vrot.slane %v8541, %v8549
      %v8553 = vmul.f32 %v8396, %v8546
      %v8554 = vmul.f32 %v8398, %v8550
      %v8555 = vmul.f32 %v8400, %v8546
      %v8556 = vmul.f32 %v8402, %v8550
      %v8557 = vmul.f32 %v8406, %v8546
      %v8558 = vmul.f32 %v8408, %v8550
      %v8559 = vmul.f32 %v8410, %v8546
      %v8560 = vmul.f32 %v8412, %v8550
      %v8561 = vmul.f32 %v8416, %v8546
      %v8562 = vmul.f32 %v8418, %v8550
      %v8563 = vmul.f32 %v8420, %v8546
      %v8564 = vmul.f32 %v8422, %v8550
      %v8565 = vmul.f32 %v8426, %v8546
      %v8566 = vmul.f32 %v8428, %v8550
      %v8567 = vmul.f32 %v8430, %v8546
      %v8568 = vmul.f32 %v8432, %v8550
      %v8569 = vmul.f32 %v8436, %v8546
      %v8570 = vmul.f32 %v8438, %v8550
      %v8571 = vmul.f32 %v8440, %v8546
      %v8572 = vmul.f32 %v8442, %v8550
      %v8573 = vmul.f32 %v8446, %v8546
      %v8574 = vmul.f32 %v8448, %v8550
      %v8575 = vmul.f32 %v8450, %v8546
      %v8576 = vmul.f32 %v8452, %v8550
      %v8577 = vmul.f32 %v8456, %v8546
      %v8578 = vmul.f32 %v8458, %v8550
      %v8579 = vmul.f32 %v8460, %v8546
      %v8580 = vmul.f32 %v8462, %v8550
      %v8581 = vmul.f32 %v8466, %v8546
      %v8582 = vmul.f32 %v8468, %v8550
      %v8583 = vmul.f32 %v8470, %v8546
      %v8584 = vmul.f32 %v8472, %v8550
      %v8585 = vmul.f32 %v8476, %v8546
      %v8586 = vmul.f32 %v8478, %v8550
      %v8587 = vmul.f32 %v8480, %v8546
      %v8588 = vmul.f32 %v8482, %v8550
      %v8589 = vld [vmem:[%s15] sm:$0x3]
      %v8591 = vlaneseq
      %v8592 = vshrl.u32 %v8591, 7
      %v8593 = vsub.s32 0, %v8592
      %v8594 = vrot.slane %v8589, %v8593
      %v8595 = vlaneseq
      %v8596 = vshrl.u32 %v8595, 7
      %v8597 = vsub.s32 1, %v8596
      %v8598 = vrot.slane %v8589, %v8597
      %v8601 = vadd.f32 %v8553, %v8594
      %v8602 = vadd.f32 %v8554, %v8598
      %v8603 = vadd.f32 %v8555, %v8594
      %v8604 = vadd.f32 %v8556, %v8598
      %v8605 = vadd.f32 %v8557, %v8594
      %v8606 = vadd.f32 %v8558, %v8598
      %v8607 = vadd.f32 %v8559, %v8594
      %v8608 = vadd.f32 %v8560, %v8598
      %v8609 = vadd.f32 %v8561, %v8594
      %v8610 = vadd.f32 %v8562, %v8598
      %v8611 = vadd.f32 %v8563, %v8594
      %v8612 = vadd.f32 %v8564, %v8598
      %v8613 = vadd.f32 %v8565, %v8594
      %v8614 = vadd.f32 %v8566, %v8598
      %v8615 = vadd.f32 %v8567, %v8594
      %v8616 = vadd.f32 %v8568, %v8598
      %v8617 = vadd.f32 %v8569, %v8594
      %v8618 = vadd.f32 %v8570, %v8598
      %v8619 = vadd.f32 %v8571, %v8594
      %v8620 = vadd.f32 %v8572, %v8598
      %v8621 = vadd.f32 %v8573, %v8594
      %v8622 = vadd.f32 %v8574, %v8598
      %v8623 = vadd.f32 %v8575, %v8594
      %v8624 = vadd.f32 %v8576, %v8598
      %v8625 = vadd.f32 %v8577, %v8594
      %v8626 = vadd.f32 %v8578, %v8598
      %v8627 = vadd.f32 %v8579, %v8594
      %v8628 = vadd.f32 %v8580, %v8598
      %v8629 = vadd.f32 %v8581, %v8594
      %v8630 = vadd.f32 %v8582, %v8598
      %v8631 = vadd.f32 %v8583, %v8594
      %v8632 = vadd.f32 %v8584, %v8598
      %v8633 = vadd.f32 %v8585, %v8594
      %v8634 = vadd.f32 %v8586, %v8598
      %v8635 = vadd.f32 %v8587, %v8594
      %v8636 = vadd.f32 %v8588, %v8598
      %v8675 = vrot.slane %v8503, 3
      %v8676 = vrot.slane %v8505, 3
      %v8677 = vsel %vm4347, %v8675, %v8676
      %v8678 = vrot.slane %v8504, 3
      %v8679 = vrot.slane %v8506, 3
      %v8680 = vsel %vm4347, %v8678, %v8679
      %v8681 = vrot.slane %v8507, 3
      %v8682 = vsel %vm4347, %v8676, %v8681
      %v8683 = vrot.slane %v8508, 3
      %v8684 = vsel %vm4347, %v8679, %v8683
      %v8685 = vrot.slane %v8509, 3
      %v8686 = vsel %vm4347, %v8681, %v8685
      %v8687 = vrot.slane %v8510, 3
      %v8688 = vsel %vm4347, %v8683, %v8687
      %v8689 = vrot.slane %v8511, 3
      %v8690 = vsel %vm4347, %v8685, %v8689
      %v8691 = vrot.slane %v8512, 3
      %v8692 = vsel %vm4347, %v8687, %v8691
      %v8693 = vrot.slane %v8513, 3
      %v8694 = vsel %vm4347, %v8689, %v8693
      %v8695 = vrot.slane %v8514, 3
      %v8696 = vsel %vm4347, %v8691, %v8695
      %v8697 = vrot.slane %v8515, 3
      %v8698 = vsel %vm4347, %v8693, %v8697
      %v8699 = vrot.slane %v8516, 3
      %v8700 = vsel %vm4347, %v8695, %v8699
      %v8701 = vrot.slane %v8517, 3
      %v8702 = vsel %vm4347, %v8697, %v8701
      %v8703 = vrot.slane %v8518, 3
      %v8704 = vsel %vm4347, %v8699, %v8703
      %v8705 = vrot.slane %v8519, 3
      %v8706 = vsel %vm4347, %v8701, %v8705
      %v8707 = vrot.slane %v8520, 3
      %v8708 = vsel %vm4347, %v8703, %v8707
      %v8709 = vrot.slane %v8521, 3
      %v8710 = vsel %vm4347, %v8705, %v8709
      %v8711 = vrot.slane %v8522, 3
      %v8712 = vsel %vm4347, %v8707, %v8711
      %v8713 = vrot.slane %v8523, 3
      %v8714 = vsel %vm4347, %v8709, %v8713
      %v8715 = vrot.slane %v8524, 3
      %v8716 = vsel %vm4347, %v8711, %v8715
      %v8717 = vrot.slane %v8525, 3
      %v8718 = vsel %vm4347, %v8713, %v8717
      %v8719 = vrot.slane %v8526, 3
      %v8720 = vsel %vm4347, %v8715, %v8719
      %v8721 = vrot.slane %v8527, 3
      %v8722 = vsel %vm4347, %v8717, %v8721
      %v8723 = vrot.slane %v8528, 3
      %v8724 = vsel %vm4347, %v8719, %v8723
      %v8725 = vrot.slane %v8529, 3
      %v8726 = vsel %vm4347, %v8721, %v8725
      %v8727 = vrot.slane %v8530, 3
      %v8728 = vsel %vm4347, %v8723, %v8727
      %v8729 = vrot.slane %v8531, 3
      %v8730 = vsel %vm4347, %v8725, %v8729
      %v8731 = vrot.slane %v8532, 3
      %v8732 = vsel %vm4347, %v8727, %v8731
      %v8733 = vrot.slane %v8533, 3
      %v8734 = vsel %vm4347, %v8729, %v8733
      %v8735 = vrot.slane %v8534, 3
      %v8736 = vsel %vm4347, %v8731, %v8735
      %v8737 = vrot.slane %v8535, 3
      %v8738 = vsel %vm4347, %v8733, %v8737
      %v8739 = vrot.slane %v8536, 3
      %v8740 = vsel %vm4347, %v8735, %v8739
      %v8741 = vrot.slane %v8537, 3
      %v8742 = vsel %vm4347, %v8737, %v8741
      %v8743 = vrot.slane %v8538, 3
      %v8744 = vsel %vm4347, %v8739, %v8743
      %v8745 = vrot.slane %v8539, 3
      %v8746 = vsel %vm4347, %v8741, %v8745
      %v8747 = vrot.slane %v8540, 3
      %v8748 = vsel %vm4347, %v8743, %v8747
      %v8785 = vadd.f32 %v8601, %v8677
      %v8786 = vadd.f32 %v8602, %v8680
      %v8787 = vadd.f32 %v8603, %v8682
      %v8788 = vadd.f32 %v8604, %v8684
      %v8789 = vadd.f32 %v8605, %v8686
      %v8790 = vadd.f32 %v8606, %v8688
      %v8791 = vadd.f32 %v8607, %v8690
      %v8792 = vadd.f32 %v8608, %v8692
      %v8793 = vadd.f32 %v8609, %v8694
      %v8794 = vadd.f32 %v8610, %v8696
      %v8795 = vadd.f32 %v8611, %v8698
      %v8796 = vadd.f32 %v8612, %v8700
      %v8797 = vadd.f32 %v8613, %v8702
      %v8798 = vadd.f32 %v8614, %v8704
      %v8799 = vadd.f32 %v8615, %v8706
      %v8800 = vadd.f32 %v8616, %v8708
      %v8801 = vadd.f32 %v8617, %v8710
      %v8802 = vadd.f32 %v8618, %v8712
      %v8803 = vadd.f32 %v8619, %v8714
      %v8804 = vadd.f32 %v8620, %v8716
      %v8805 = vadd.f32 %v8621, %v8718
      %v8806 = vadd.f32 %v8622, %v8720
      %v8807 = vadd.f32 %v8623, %v8722
      %v8808 = vadd.f32 %v8624, %v8724
      %v8809 = vadd.f32 %v8625, %v8726
      %v8810 = vadd.f32 %v8626, %v8728
      %v8811 = vadd.f32 %v8627, %v8730
      %v8812 = vadd.f32 %v8628, %v8732
      %v8813 = vadd.f32 %v8629, %v8734
      %v8814 = vadd.f32 %v8630, %v8736
      %v8815 = vadd.f32 %v8631, %v8738
      %v8816 = vadd.f32 %v8632, %v8740
      %v8817 = vadd.f32 %v8633, %v8742
      %v8818 = vadd.f32 %v8634, %v8744
      %v8819 = vadd.f32 %v8635, %v8746
      %v8820 = vadd.f32 %v8636, %v8748
      %v8821 = vmax.f32 %v8785, 0.0
      %v8822 = vmax.f32 %v8786, 0.0
      %v8823 = vmax.f32 %v8787, 0.0
      %v8824 = vmax.f32 %v8788, 0.0
      %v8825 = vmax.f32 %v8789, 0.0
      %v8826 = vmax.f32 %v8790, 0.0
      %v8827 = vmax.f32 %v8791, 0.0
      %v8828 = vmax.f32 %v8792, 0.0
      %v8829 = vmax.f32 %v8793, 0.0
      %v8830 = vmax.f32 %v8794, 0.0
      %v8831 = vmax.f32 %v8795, 0.0
      %v8832 = vmax.f32 %v8796, 0.0
      %v8833 = vmax.f32 %v8797, 0.0
      %v8834 = vmax.f32 %v8798, 0.0
      %v8835 = vmax.f32 %v8799, 0.0
      %v8836 = vmax.f32 %v8800, 0.0
      %v8837 = vmax.f32 %v8801, 0.0
      %v8838 = vmax.f32 %v8802, 0.0
      %v8839 = vmax.f32 %v8803, 0.0
      %v8840 = vmax.f32 %v8804, 0.0
      %v8841 = vmax.f32 %v8805, 0.0
      %v8842 = vmax.f32 %v8806, 0.0
      %v8843 = vmax.f32 %v8807, 0.0
      %v8844 = vmax.f32 %v8808, 0.0
      %v8845 = vmax.f32 %v8809, 0.0
      %v8846 = vmax.f32 %v8810, 0.0
      %v8847 = vmax.f32 %v8811, 0.0
      %v8848 = vmax.f32 %v8812, 0.0
      %v8849 = vmax.f32 %v8813, 0.0
      %v8850 = vmax.f32 %v8814, 0.0
      %v8851 = vmax.f32 %v8815, 0.0
      %v8852 = vmax.f32 %v8816, 0.0
      %v8853 = vmax.f32 %v8817, 0.0
      %v8854 = vmax.f32 %v8818, 0.0
      %v8855 = vmax.f32 %v8819, 0.0
      %v8856 = vmax.f32 %v8820, 0.0
      %v8857 = vpack.c.bf16 %v8823, %v8821
      %v8858 = vpack.c.bf16 %v8824, %v8822
      %v8859 = vpack.c.bf16 %v8827, %v8825
      %v8860 = vpack.c.bf16 %v8828, %v8826
      %v8861 = vpack.c.bf16 %v8831, %v8829
      %v8862 = vpack.c.bf16 %v8832, %v8830
      %v8863 = vpack.c.bf16 %v8835, %v8833
      %v8864 = vpack.c.bf16 %v8836, %v8834
      %v8865 = vpack.c.bf16 %v8839, %v8837
      %v8866 = vpack.c.bf16 %v8840, %v8838
      %v8867 = vpack.c.bf16 %v8843, %v8841
      %v8868 = vpack.c.bf16 %v8844, %v8842
      %v8869 = vpack.c.bf16 %v8847, %v8845
      %v8870 = vpack.c.bf16 %v8848, %v8846
      %v8871 = vpack.c.bf16 %v8851, %v8849
      %v8872 = vpack.c.bf16 %v8852, %v8850
      %v8873 = vpack.c.bf16 %v8855, %v8853
      %v8874 = vpack.c.bf16 %v8856, %v8854
      %v8893 = vunpack.c.l.b16 %v8857
      %v8894 = vunpack.c.l.b16 %v8858
      %v8895 = vunpack.c.h.b16 %v8857
      %v8896 = vunpack.c.h.b16 %v8858
      %v8897 = vunpack.c.l.b16 %v8859
      %v8898 = vunpack.c.l.b16 %v8860
      %v8899 = vunpack.c.h.b16 %v8859
      %v8900 = vunpack.c.h.b16 %v8860
      %v8901 = vunpack.c.l.b16 %v8861
      %v8902 = vunpack.c.l.b16 %v8862
      %v8903 = vunpack.c.h.b16 %v8861
      %v8904 = vunpack.c.h.b16 %v8862
      %v8905 = vunpack.c.l.b16 %v8863
      %v8906 = vunpack.c.l.b16 %v8864
      %v8907 = vunpack.c.h.b16 %v8863
      %v8908 = vunpack.c.h.b16 %v8864
      %v8909 = vunpack.c.l.b16 %v8865
      %v8910 = vunpack.c.l.b16 %v8866
      %v8911 = vunpack.c.h.b16 %v8865
      %v8912 = vunpack.c.h.b16 %v8866
      %v8913 = vunpack.c.l.b16 %v8867
      %v8914 = vunpack.c.l.b16 %v8868
      %v8915 = vunpack.c.h.b16 %v8867
      %v8916 = vunpack.c.h.b16 %v8868
      %v8917 = vunpack.c.l.b16 %v8869
      %v8918 = vunpack.c.l.b16 %v8870
      %v8919 = vunpack.c.h.b16 %v8869
      %v8920 = vunpack.c.h.b16 %v8870
      %v8921 = vunpack.c.l.b16 %v8871
      %v8922 = vunpack.c.l.b16 %v8872
      %v8923 = vunpack.c.h.b16 %v8871
      %v8924 = vunpack.c.h.b16 %v8872
      %v8925 = vunpack.c.l.b16 %v8873
      %v8926 = vunpack.c.l.b16 %v8874
      %v8927 = vunpack.c.h.b16 %v8873
      %v8928 = vunpack.c.h.b16 %v8874
      %v8929 = vpack.c.b16 %v8894, %v8893
      %v8930 = vpack.c.b16 %v8896, %v8895
      %v8931 = vpack.c.b16 %v8898, %v8897
      %v8932 = vpack.c.b16 %v8900, %v8899
      %v8933 = vpack.c.b16 %v8902, %v8901
      %v8934 = vpack.c.b16 %v8904, %v8903
      %v8935 = vpack.c.b16 %v8906, %v8905
      %v8936 = vpack.c.b16 %v8908, %v8907
      %v8937 = vpack.c.b16 %v8910, %v8909
      %v8938 = vpack.c.b16 %v8912, %v8911
      %v8939 = vpack.c.b16 %v8914, %v8913
      %v8940 = vpack.c.b16 %v8916, %v8915
      %v8941 = vpack.c.b16 %v8918, %v8917
      %v8942 = vpack.c.b16 %v8920, %v8919
      %v8943 = vpack.c.b16 %v8922, %v8921
      %v8944 = vpack.c.b16 %v8924, %v8923
      %v8945 = vpack.c.b16 %v8926, %v8925
      %v8946 = vpack.c.b16 %v8928, %v8927
      %8965 = vst [vmem:[%s521 + $0x90] sm:$0xff] %v8929
      %8966 = vst [vmem:[%s521 + $0x98] sm:$0xff] %v8930
      %8967 = vst [vmem:[%s521 + $0xa0] sm:$0xff] %v8931
      %8968 = vst [vmem:[%s521 + $0xa8] sm:$0xff] %v8932
      %8969 = vst [vmem:[%s521 + $0xb0] sm:$0xff] %v8933
      %8970 = vst [vmem:[%s521 + $0xb8] sm:$0xff] %v8934
      %8971 = vst [vmem:[%s521 + $0xc0] sm:$0xff] %v8935
      %8972 = vst [vmem:[%s521 + $0xc8] sm:$0xff] %v8936
      %8973 = vst [vmem:[%s521 + $0xd0] sm:$0xff] %v8937
      %8974 = vst [vmem:[%s521 + $0xd8] sm:$0xff] %v8938
      %8975 = vst [vmem:[%s521 + $0xe0] sm:$0xff] %v8939
      %8976 = vst [vmem:[%s521 + $0xe8] sm:$0xff] %v8940
      %8977 = vst [vmem:[%s521 + $0xf0] sm:$0xff] %v8941
      %8978 = vst [vmem:[%s521 + $0xf8] sm:$0xff] %v8942
      %8979 = vst [vmem:[%s521 + $0x100] sm:$0xff] %v8943
      %8980 = vst [vmem:[%s521 + $0x108] sm:$0xff] %v8944
      %8981 = vst [vmem:[%s521 + $0x110] sm:$0xff] %v8945
      %8982 = vst [vmem:[%s521 + $0x118] sm:$0xff] %v8946
      %p8983 = scmp.lt.s32.totalorder %s27, 1
      %s8984 = scalar_select %p8983, %s27, 1
      %s8985 = smul.addr %s8984, 72
      %s8986 = smul.addr %s8985, 4
      %s8987 = scalar_lea.vmem %s16, %s8986
      // Predicated region
      $region85: #{bottleneck_forward.1} parent=83 // pred_check
        %p8988 = pneg %p386
      $region86: #{bottleneck_forward.1} parent=83 // pred_check_branch
        %8990 = sbr.rel (%p8988) target = $region88
      $region87: #{bottleneck_forward.1} parent=83 // pred_region
        _
      $region88: #{bottleneck_forward.1} parent=83 // pred_fallthru
        _
    $region84: #{bottleneck_forward.1} parent=5 // pred_fallthru
      _
    %p8991 = scmp.le.s32.totalorder 2, %s22
    // Predicated region
    $region89: #{bottleneck_forward.1} parent=5 // pred_check
      %p8992 = pneg %p8991
    $region90: #{bottleneck_forward.1} parent=5 // pred_check_branch
      %8994 = sbr.rel (%p8992) target = $region92
    $region91: #{bottleneck_forward.1} parent=5 // pred_region
      %s8995 = ssub.s32 %s22, 2
      // Predicated region
      $region93: #{bottleneck_forward.1} parent=91 // pred_check
        %p8996 = pneg %p392
      $region94: #{bottleneck_forward.1} parent=91 // pred_check_branch
        %8998 = sbr.rel (%p8996) target = $region96
      $region95: #{bottleneck_forward.1} parent=91 // pred_region
        %p8999 = scmp.lt.s32.totalorder %s28, 1
        %s9000 = scalar_select %p8999, %s28, 1
        %s9001 = smul.addr %s9000, 72
        %s9002 = smul.addr %s9001, 4
        %s9003 = scalar_lea.vmem %s16, %s9002
      $region96: #{bottleneck_forward.1} parent=91 // pred_fallthru
        _
    $region92: #{bottleneck_forward.1} parent=5 // pred_fallthru
      _
  $region6: #{bottleneck_forward.1} parent=0 // loop_footer
    %s26 = sadd.s32 1, %s22
  $region7: #{bottleneck_forward.1} parent=0 // loop_footer_branch
    %21 = sbr.rel target = $region3
  $region8: #{bottleneck_forward.1} parent=0 // loop_exit
    _

</llo_original>
